<compile_context>
chip_gen: v7x
topology: tpu7x:2x2x1
jax: 0.10.0
libtpu: 0.0.40
codegen_flags: <defaults>
</compile_context>

<pallas_src>
import functools

import jax
import jax.numpy as jnp
import numpy as np
from jax.experimental import pallas as pl
from jax.experimental.pallas import tpu as pltpu

EPSILON = 1e-08


def _capsule_kernel(x_ref, w_ref, o_ref, *, routings, num_capsule, dim_capsule):
    # x_ref: (I, TB, C)   w_ref: (I, C, J*D)   o_ref: (TB, J, D)
    J, D = num_capsule, dim_capsule
    x = x_ref[...]                                   # (I, TB, C)
    w = w_ref[...]                                   # (I, C, J*D)
    n_i, tb, _ = x.shape

    # ---- u_hat projection on the MXU (batch = in_units, lane dim = J*D) ----
    # u_hat_f[i, b, j*D+d] = sum_c x[i, b, c] * w[i, c, j*D+d]
    u_hat_f = jnp.einsum('ibc,icf->ibf', x, w,
                         preferred_element_type=jnp.float32)       # (I, TB, J*D)

    # ---- one-time rearrangement to the single routing layout (G, D, I) -----
    # u_hat_t[b*J + j, d, i] = u_hat[b, i, j, d].  Done once, outside the loop,
    # using only 2-D transposes + leading-dim reshapes + leading-dim concat.
    per_b = []
    for b in range(tb):                              # static unroll, TB <= 8
        ub = u_hat_f[:, b, :]                        # (I, J*D)
        ub = ub.T                                    # (J*D, I)  single 2-D transpose
        per_b.append(ub.reshape(J, D, n_i))          # leading-dim split only
    u_hat_t = jnp.concatenate(per_b, axis=0)         # (G, D, I), G = TB*J
    g_tot = tb * J

    # ---- dynamic routing, batched over G = TB*J capsule instances ----------
    b_log = None                                     # zero logits at iteration 0
    v = None
    for it in range(routings):
        if it == 0:
            # softmax(zeros) == 1/I : skip the exp/max/sum pass entirely.
            c = jnp.full((g_tot, 1, n_i), 1.0 / n_i, dtype=jnp.float32)
        else:
            m = jnp.max(b_log, axis=-1, keepdims=True)
            e = jnp.exp(b_log - m)
            c = e / jnp.sum(e, axis=-1, keepdims=True)             # (G, 1, I)

        # s[g, 0, d] = sum_i c[g, 0, i] * u_hat_t[g, d, i]
        s = jnp.einsum('gqi,gdi->gqd', c, u_hat_t,
                       preferred_element_type=jnp.float32)         # (G, 1, D)

        # squash along dim_capsule; sqrt(sq) computed as sq * rsqrt(sq) (EUP).
        sq = jnp.sum(s * s, axis=-1, keepdims=True) + EPSILON      # (G, 1, 1)
        scale = sq * jax.lax.rsqrt(sq) / (1.0 + sq)
        v = scale * s                                              # (G, 1, D)

        if it + 1 < routings:
            # agreement: sim[g, 0, i] = sum_d v[g, 0, d] * u_hat_t[g, d, i]
            sim = jnp.einsum('gqd,gdi->gqi', v, u_hat_t,
                             preferred_element_type=jnp.float32)   # (G, 1, I)
            b_log = sim if it == 0 else b_log + sim
        # Final-iteration agreement update is dead work and intentionally skipped.

    # ---- store a dense (TB, J, D) tile; (D, J) permute happens wrapper-side --
    o_ref[...] = v[:, 0, :].reshape(tb, J, D)


def capsule_forward(u_vecs, W, routings=3):
    """u_vecs: (B, in_channels, in_units) f32; W: (I, J, C, D) f32 -> (B, D, J)."""
    B, C, I = u_vecs.shape
    I_w, J, C_w, D = W.shape
    assert I == I_w and C == C_w

    # One-time wrapper-side layout prep (plain XLA ops, outside the kernel):
    #   x_t : (I, B, C)    batch dim (in_units) leading for the batched matmul
    #   W_r : (I, C, J*D)  lane-dense RHS (J*D = 128 here)
    x_t = jnp.transpose(u_vecs, (2, 0, 1))
    W_r = jnp.transpose(W, (0, 2, 1, 3)).reshape(I, C, J * D)

    # Batch tiling: whole batch in one grid step when tiny, sublane-sized
    # (8-row) batch tiles otherwise.
    TB = B if B <= 8 else 8
    assert B % TB == 0, "batch must be divisible by the batch tile"
    grid = (B // TB,)

    kernel = functools.partial(_capsule_kernel, routings=routings,
                               num_capsule=J, dim_capsule=D)

    out = pl.pallas_call(
        kernel,
        out_shape=jax.ShapeDtypeStruct((B, J, D), jnp.float32),
        grid_spec=pltpu.PrefetchScalarGridSpec(
            num_scalar_prefetch=0,
            grid=grid,
            in_specs=[
                # x tile: all in_units, TB batch rows, all channels.
                pl.BlockSpec((I, TB, C), lambda g: (0, g, 0)),
                # W: constant index_map -> stays VMEM-resident across grid steps.
                pl.BlockSpec((I, C, J * D), lambda g: (0, 0, 0)),
            ],
            out_specs=pl.BlockSpec((TB, J, D), lambda g: (g, 0, 0)),
        ),
        compiler_params=pltpu.CompilerParams(
            dimension_semantics=("parallel",)),
    )(x_t, W_r)

    # (B, J, D) -> (B, D, J): identical to the PyTorch module's return layout.
    return jnp.transpose(out, (0, 2, 1))


def capsule_reference(u_vecs, W, routings=3):
    """Pure-JAX reference mirroring the PyTorch forward exactly."""
    B, C, I = u_vecs.shape
    _, J, _, D = W.shape
    u_hat = jnp.einsum('bci,ijcd->bijd', u_vecs, W)          # (B, I, J, D)
    b_log = jnp.zeros((B, J, I), jnp.float32)
    v = jnp.zeros((B, J, D), jnp.float32)
    for _ in range(routings):
        c = jax.nn.softmax(b_log, axis=-1)                   # (B, J, I)
        s = jnp.einsum('bji,bijd->bjd', c, u_hat)            # (B, J, D)
        sq_norm = jnp.sum(s * s, axis=-1, keepdims=True) + EPSILON
        v = jnp.sqrt(sq_norm) / (1.0 + sq_norm) * s          # (B, J, D)
        sim = jnp.einsum('bijd,bjd->bji', u_hat, v)          # (B, J, I)
        b_log = b_log + sim
    return jnp.transpose(v, (0, 2, 1))                       # (B, D, J)


if __name__ == "__main__":
    # Module hyper-parameters (small, consistent with the forward pass).
    B = 2
    in_channels = 4      # contracted against W
    in_units = 16        # number of input capsules
    num_capsule = 8
    dim_capsule = 16     # num_capsule * dim_capsule = 128 lanes
    routings = 3

    key = jax.random.PRNGKey(0)
    kx, kw = jax.random.split(key)
    # Input in the layout the PyTorch module expects: (B, C, in_units).
    x = jax.random.normal(kx, (B, in_channels, in_units), dtype=jnp.float32)
    # W ~ torch.randn(in_units, num_capsule, in_channels, dim_capsule)
    W = jax.random.normal(
        kw, (in_units, num_capsule, in_channels, dim_capsule),
        dtype=jnp.float32)

    out = capsule_forward(x, W, routings=routings)
    out = jax.block_until_ready(out)

    ref = jax.block_until_ready(capsule_reference(x, W, routings=routings))
    np.testing.assert_allclose(np.asarray(out), np.asarray(ref),
                               rtol=1e-4, atol=1e-4)

    print("KERNEL_OK")
</pallas_src>

<mosaic_0001>
module attributes {stable_mosaic.version = 11 : i64} {
  func.func @_capsule_kernel(%arg0: i32, %arg1: memref<16x2x4xf32, #tpu.memory_space<vmem>>, %arg2: memref<16x4x128xf32, #tpu.memory_space<vmem>>, %arg3: memref<2x8x16xf32, #tpu.memory_space<vmem>>) attributes {dimension_semantics = [#tpu.dimension_semantics<parallel>], iteration_bounds = array<i64: 1>, scalar_prefetch = 0 : i64, scratch_operands = 0 : i64, tpu.core_type = #tpu.core_type<tc>, window_params = [{transform_indices = @transform_0, window_bounds = array<i64: 16, 2, 4>}, {pipeline_mode = #tpu.pipeline_mode<synchronous>, transform_indices = @transform_1, window_bounds = array<i64: 16, 4, 128>}, {transform_indices = @transform_2, window_bounds = array<i64: 2, 8, 16>}]} {
    %c0 = arith.constant 0 : index
    %c0_0 = arith.constant 0 : index
    %c0_1 = arith.constant 0 : index
    %0 = vector.load %arg1[%c0, %c0_0, %c0_1] : memref<16x2x4xf32, #tpu.memory_space<vmem>>, vector<16x2x4xf32>
    %c0_2 = arith.constant 0 : index
    %c0_3 = arith.constant 0 : index
    %c0_4 = arith.constant 0 : index
    %1 = vector.load %arg2[%c0_2, %c0_3, %c0_4] : memref<16x4x128xf32, #tpu.memory_space<vmem>>, vector<16x4x128xf32>
    "tpu.trace_start"() <{level = 10 : i32, message = "ibc,icf->ibf"}> : () -> ()
    %cst = arith.constant dense<0.000000e+00> : vector<16x2x128xf32>
    %2 = tpu.matmul %0, %1, %cst {dimension_numbers = #tpu.dot_dimension_numbers<[2], [1], [1], [2], [0, 0, 0, 1, 1, 2], [0], [0]>} : vector<16x2x4xf32>, vector<16x4x128xf32>, vector<16x2x128xf32> -> vector<16x2x128xf32>
    "tpu.trace_stop"() : () -> ()
    %3 = vector.extract_strided_slice %2 {offsets = [0, 0, 0], sizes = [16, 1, 128], strides = [1, 1, 1]} : vector<16x2x128xf32> to vector<16x1x128xf32>
    %4 = vector.shape_cast %3 : vector<16x1x128xf32> to vector<16x128xf32>
    %5 = tpu.transpose %4, [1, 0] : vector<16x128xf32> -> vector<128x16xf32>
    %6 = vector.shape_cast %5 : vector<128x16xf32> to vector<8x16x16xf32>
    %7 = vector.extract_strided_slice %2 {offsets = [0, 1, 0], sizes = [16, 1, 128], strides = [1, 1, 1]} : vector<16x2x128xf32> to vector<16x1x128xf32>
    %8 = vector.shape_cast %7 : vector<16x1x128xf32> to vector<16x128xf32>
    %9 = tpu.transpose %8, [1, 0] : vector<16x128xf32> -> vector<128x16xf32>
    %10 = vector.shape_cast %9 : vector<128x16xf32> to vector<8x16x16xf32>
    %11 = tpu.concatenate %6, %10 in 0 : vector<8x16x16xf32>, vector<8x16x16xf32> -> vector<16x16x16xf32>
    %cst_5 = arith.constant 6.250000e-02 : f32
    %12 = vector.broadcast %cst_5 : f32 to vector<16x1x16xf32>
    "tpu.trace_start"() <{level = 10 : i32, message = "gqi,gdi->gqd"}> : () -> ()
    %cst_6 = arith.constant dense<0.000000e+00> : vector<16x1x16xf32>
    %13 = tpu.matmul %12, %11, %cst_6 {dimension_numbers = #tpu.dot_dimension_numbers<[2], [2], [1], [1], [0, 0, 0, 1, 1, 1], [0], [0]>} : vector<16x1x16xf32>, vector<16x16x16xf32>, vector<16x1x16xf32> -> vector<16x1x16xf32>
    "tpu.trace_stop"() : () -> ()
    %14 = arith.mulf %13, %13 : vector<16x1x16xf32>
    %cst_7 = arith.constant dense<0.000000e+00> : vector<16x1xf32>
    %15 = vector.multi_reduction <add>, %14, %cst_7 [2] : vector<16x1x16xf32> to vector<16x1xf32>
    %16 = vector.shape_cast %15 : vector<16x1xf32> to vector<16x1x1xf32>
    %cst_8 = arith.constant 9.99999993E-9 : f32
    %17 = vector.broadcast %cst_8 : f32 to vector<16x1x1xf32>
    %18 = arith.addf %16, %17 : vector<16x1x1xf32>
    %19 = math.rsqrt %18 : vector<16x1x1xf32>
    %20 = arith.mulf %18, %19 : vector<16x1x1xf32>
    %cst_9 = arith.constant 1.000000e+00 : f32
    %21 = vector.broadcast %cst_9 : f32 to vector<16x1x1xf32>
    %22 = arith.addf %21, %18 : vector<16x1x1xf32>
    %23 = arith.divf %20, %22 : vector<16x1x1xf32>
    %24 = vector.broadcast %23 : vector<16x1x1xf32> to vector<16x1x16xf32>
    %25 = arith.mulf %24, %13 : vector<16x1x16xf32>
    "tpu.trace_start"() <{level = 10 : i32, message = "gqd,gdi->gqi"}> : () -> ()
    %cst_10 = arith.constant dense<0.000000e+00> : vector<16x1x16xf32>
    %26 = tpu.matmul %25, %11, %cst_10 {dimension_numbers = #tpu.dot_dimension_numbers<[2], [1], [1], [2], [0, 0, 0, 1, 1, 2], [0], [0]>} : vector<16x1x16xf32>, vector<16x16x16xf32>, vector<16x1x16xf32> -> vector<16x1x16xf32>
    "tpu.trace_stop"() : () -> ()
    %cst_11 = arith.constant dense<0xFF800000> : vector<16x1xf32>
    %27 = vector.multi_reduction <maximumf>, %26, %cst_11 [2] : vector<16x1x16xf32> to vector<16x1xf32>
    %28 = vector.shape_cast %27 : vector<16x1xf32> to vector<16x1x1xf32>
    %29 = vector.broadcast %28 : vector<16x1x1xf32> to vector<16x1x16xf32>
    %30 = arith.subf %26, %29 : vector<16x1x16xf32>
    %31 = math.exp %30 : vector<16x1x16xf32>
    %cst_12 = arith.constant dense<0.000000e+00> : vector<16x1xf32>
    %32 = vector.multi_reduction <add>, %31, %cst_12 [2] : vector<16x1x16xf32> to vector<16x1xf32>
    %33 = vector.shape_cast %32 : vector<16x1xf32> to vector<16x1x1xf32>
    %34 = vector.broadcast %33 : vector<16x1x1xf32> to vector<16x1x16xf32>
    %35 = arith.divf %31, %34 : vector<16x1x16xf32>
    "tpu.trace_start"() <{level = 10 : i32, message = "gqi,gdi->gqd"}> : () -> ()
    %cst_13 = arith.constant dense<0.000000e+00> : vector<16x1x16xf32>
    %36 = tpu.matmul %35, %11, %cst_13 {dimension_numbers = #tpu.dot_dimension_numbers<[2], [2], [1], [1], [0, 0, 0, 1, 1, 1], [0], [0]>} : vector<16x1x16xf32>, vector<16x16x16xf32>, vector<16x1x16xf32> -> vector<16x1x16xf32>
    "tpu.trace_stop"() : () -> ()
    %37 = arith.mulf %36, %36 : vector<16x1x16xf32>
    %cst_14 = arith.constant dense<0.000000e+00> : vector<16x1xf32>
    %38 = vector.multi_reduction <add>, %37, %cst_14 [2] : vector<16x1x16xf32> to vector<16x1xf32>
    %39 = vector.shape_cast %38 : vector<16x1xf32> to vector<16x1x1xf32>
    %cst_15 = arith.constant 9.99999993E-9 : f32
    %40 = vector.broadcast %cst_15 : f32 to vector<16x1x1xf32>
    %41 = arith.addf %39, %40 : vector<16x1x1xf32>
    %42 = math.rsqrt %41 : vector<16x1x1xf32>
    %43 = arith.mulf %41, %42 : vector<16x1x1xf32>
    %cst_16 = arith.constant 1.000000e+00 : f32
    %44 = vector.broadcast %cst_16 : f32 to vector<16x1x1xf32>
    %45 = arith.addf %44, %41 : vector<16x1x1xf32>
    %46 = arith.divf %43, %45 : vector<16x1x1xf32>
    %47 = vector.broadcast %46 : vector<16x1x1xf32> to vector<16x1x16xf32>
    %48 = arith.mulf %47, %36 : vector<16x1x16xf32>
    "tpu.trace_start"() <{level = 10 : i32, message = "gqd,gdi->gqi"}> : () -> ()
    %cst_17 = arith.constant dense<0.000000e+00> : vector<16x1x16xf32>
    %49 = tpu.matmul %48, %11, %cst_17 {dimension_numbers = #tpu.dot_dimension_numbers<[2], [1], [1], [2], [0, 0, 0, 1, 1, 2], [0], [0]>} : vector<16x1x16xf32>, vector<16x16x16xf32>, vector<16x1x16xf32> -> vector<16x1x16xf32>
    "tpu.trace_stop"() : () -> ()
    %50 = arith.addf %26, %49 : vector<16x1x16xf32>
    %cst_18 = arith.constant dense<0xFF800000> : vector<16x1xf32>
    %51 = vector.multi_reduction <maximumf>, %50, %cst_18 [2] : vector<16x1x16xf32> to vector<16x1xf32>
    %52 = vector.shape_cast %51 : vector<16x1xf32> to vector<16x1x1xf32>
    %53 = vector.broadcast %52 : vector<16x1x1xf32> to vector<16x1x16xf32>
    %54 = arith.subf %50, %53 : vector<16x1x16xf32>
    %55 = math.exp %54 : vector<16x1x16xf32>
    %cst_19 = arith.constant dense<0.000000e+00> : vector<16x1xf32>
    %56 = vector.multi_reduction <add>, %55, %cst_19 [2] : vector<16x1x16xf32> to vector<16x1xf32>
    %57 = vector.shape_cast %56 : vector<16x1xf32> to vector<16x1x1xf32>
    %58 = vector.broadcast %57 : vector<16x1x1xf32> to vector<16x1x16xf32>
    %59 = arith.divf %55, %58 : vector<16x1x16xf32>
    "tpu.trace_start"() <{level = 10 : i32, message = "gqi,gdi->gqd"}> : () -> ()
    %cst_20 = arith.constant dense<0.000000e+00> : vector<16x1x16xf32>
    %60 = tpu.matmul %59, %11, %cst_20 {dimension_numbers = #tpu.dot_dimension_numbers<[2], [2], [1], [1], [0, 0, 0, 1, 1, 1], [0], [0]>} : vector<16x1x16xf32>, vector<16x16x16xf32>, vector<16x1x16xf32> -> vector<16x1x16xf32>
    "tpu.trace_stop"() : () -> ()
    %61 = arith.mulf %60, %60 : vector<16x1x16xf32>
    %cst_21 = arith.constant dense<0.000000e+00> : vector<16x1xf32>
    %62 = vector.multi_reduction <add>, %61, %cst_21 [2] : vector<16x1x16xf32> to vector<16x1xf32>
    %63 = vector.shape_cast %62 : vector<16x1xf32> to vector<16x1x1xf32>
    %cst_22 = arith.constant 9.99999993E-9 : f32
    %64 = vector.broadcast %cst_22 : f32 to vector<16x1x1xf32>
    %65 = arith.addf %63, %64 : vector<16x1x1xf32>
    %66 = math.rsqrt %65 : vector<16x1x1xf32>
    %67 = arith.mulf %65, %66 : vector<16x1x1xf32>
    %cst_23 = arith.constant 1.000000e+00 : f32
    %68 = vector.broadcast %cst_23 : f32 to vector<16x1x1xf32>
    %69 = arith.addf %68, %65 : vector<16x1x1xf32>
    %70 = arith.divf %67, %69 : vector<16x1x1xf32>
    %71 = vector.broadcast %70 : vector<16x1x1xf32> to vector<16x1x16xf32>
    %72 = arith.mulf %71, %60 : vector<16x1x16xf32>
    %73 = vector.shape_cast %72 : vector<16x1x16xf32> to vector<16x16xf32>
    %74 = vector.shape_cast %73 : vector<16x16xf32> to vector<2x8x16xf32>
    %c0_24 = arith.constant 0 : index
    %c0_25 = arith.constant 0 : index
    %c0_26 = arith.constant 0 : index
    %75 = vector.load %arg3[%c0_24, %c0_25, %c0_26] : memref<2x8x16xf32, #tpu.memory_space<vmem>>, vector<2x8x16xf32>
    tpu.vector_store %arg3[%c0_24, %c0_25, %c0_26], %74 {strides = array<i32>} : memref<2x8x16xf32, #tpu.memory_space<vmem>>, vector<2x8x16xf32>,
    return
  }
  func.func @transform_0(%arg0: i32) -> (i32, i32, i32) {
    %c0_i32 = arith.constant 0 : i32
    %c0_i32_0 = arith.constant 0 : i32
    %c0_i32_1 = arith.constant 0 : i32
    return %c0_i32, %arg0, %c0_i32_0 : i32, i32, i32
  }
  func.func @transform_1(%arg0: i32) -> (i32, i32, i32) {
    %c0_i32 = arith.constant 0 : i32
    %c0_i32_0 = arith.constant 0 : i32
    %c0_i32_1 = arith.constant 0 : i32
    %c0_i32_2 = arith.constant 0 : i32
    return %c0_i32, %c0_i32_0, %c0_i32_1 : i32, i32, i32
  }
  func.func @transform_2(%arg0: i32) -> (i32, i32, i32) {
    %c0_i32 = arith.constant 0 : i32
    %c0_i32_0 = arith.constant 0 : i32
    %c0_i32_1 = arith.constant 0 : i32
    return %arg0, %c0_i32, %c0_i32_0 : i32, i32, i32
  }
}

</mosaic_0001>

<llo_original>
// kernel: tpu_custom_call.1
$region0: #{tpu_custom_call.1}
  #allocation0 [shape = 'u32[]', space=smem, size = 0x4, offset = 0x4, fixed_abs, tag = 'smem constant byte address 0x4 - core index']
  #allocation1 [shape = 'u32[144,128]{1,0:T(1,128)}', space=vmem, size = 0x12000, scoped, tag = 'internal scratch']
  %s0 = inlined_call_operand.vmem [shape: f32[16,2,4], index: 0, kind: input, shape index: {}]
  %s1 = inlined_call_operand.hbm [shape: f32[16,4,128], index: 1, kind: input, shape index: {}]
  %s2 = inlined_call_operand.hbm [shape: f32[2,8,16], index: 2, kind: output, shape index: {}]
  %s3 = sld [smem:[#allocation0]]
  $region22: #{tpu_custom_call.1} parent=0
    _
  %s5 = ssub.s32 1, %s3
  %s6 = scalar_select 0, %s5, %s3
  $region1: #{tpu_custom_call.1} parent=0
    #allocation2 [shape = 'u8[32768]{0}', space=vmem, size = 0x8000, scoped, tag = 'input window, operand 1, single buffered']
    #allocation3 [shape = 's32[1]{0}', space=sflag, size = 0x4, scoped, tag = 'scoped memory for tpu_custom_call.1']
    #allocation4 [shape = 's32[1]{0}', space=sflag, size = 0x4, scoped, tag = 'scoped memory for tpu_custom_call.1']
    #allocation5 [shape = 'u8[8192]{0}', space=vmem, size = 0x2000, scoped, tag = 'output window, operand 0, single buffered']
    %7 = vsyncpa [#allocation3], 0
    %8 = vsyncpa [#allocation4], 0
    // Predicated region
    $region2: #{tpu_custom_call.1} parent=1 // pred_check
      _
    $region3: #{tpu_custom_call.1} parent=1 // pred_check_branch
      %10 = sbr.rel (0) target = $region5
    $region4: #{tpu_custom_call.1} parent=1 // pred_region
      _
    $region5: #{tpu_custom_call.1} parent=1 // pred_fallthru
      _
    // Predicated region
    $region6: #{tpu_custom_call.1} parent=1 // pred_check
      _
    $region7: #{tpu_custom_call.1} parent=1 // pred_check_branch
      %12 = sbr.rel (0) target = $region9
    $region8: #{tpu_custom_call.1} parent=1 // pred_region
      %s14 = ssub.s32 1024, 1024
      %15 = vsyncadd [#allocation3], %s14
      %s16 = sshll.u32 [#allocation2], 4
      %s17 = int_to_ptr.vmem [resolvable:$true] %s16
      %22 = dma.hbm_to_vmem [thread:$0]  %s1, 1024, %s17, [#allocation3], 64, 64, 4
    $region9: #{tpu_custom_call.1} parent=1 // pred_fallthru
      _
    // Predicated region
    $region10: #{tpu_custom_call.1} parent=1 // pred_check
      _
    $region11: #{tpu_custom_call.1} parent=1 // pred_check_branch
      %24 = sbr.rel (0) target = $region13
    $region12: #{tpu_custom_call.1} parent=1 // pred_region
      %25 = dma.done [#allocation3], 1024
    $region13: #{tpu_custom_call.1} parent=1 // pred_fallthru
      _
    %v26 = vld [vmem:[%s0] sm:$0x3]
    %v27 = vld [vmem:[%s0 + $0x2] sm:$0x3]
    %v28 = vld [vmem:[%s0 + $0x4] sm:$0x3]
    %v29 = vld [vmem:[%s0 + $0x6] sm:$0x3]
    %v30 = vld [vmem:[%s0 + $0x8] sm:$0x3]
    %v31 = vld [vmem:[%s0 + $0xa] sm:$0x3]
    %v32 = vld [vmem:[%s0 + $0xc] sm:$0x3]
    %v33 = vld [vmem:[%s0 + $0xe] sm:$0x3]
    %v34 = vld [vmem:[%s0 + $0x10] sm:$0x3]
    %v35 = vld [vmem:[%s0 + $0x12] sm:$0x3]
    %v36 = vld [vmem:[%s0 + $0x14] sm:$0x3]
    %v37 = vld [vmem:[%s0 + $0x16] sm:$0x3]
    %v38 = vld [vmem:[%s0 + $0x18] sm:$0x3]
    %v39 = vld [vmem:[%s0 + $0x1a] sm:$0x3]
    %v40 = vld [vmem:[%s0 + $0x1c] sm:$0x3]
    %v41 = vld [vmem:[%s0 + $0x1e] sm:$0x3]
    %v42 = vld [vmem:[#allocation2] sm:$0xf]
    %v43 = vld [vmem:[#allocation2 + $0x4] sm:$0xf]
    %v44 = vld [vmem:[#allocation2 + $0x8] sm:$0xf]
    %v45 = vld [vmem:[#allocation2 + $0xc] sm:$0xf]
    %v46 = vld [vmem:[#allocation2 + $0x10] sm:$0xf]
    %v47 = vld [vmem:[#allocation2 + $0x14] sm:$0xf]
    %v48 = vld [vmem:[#allocation2 + $0x18] sm:$0xf]
    %v49 = vld [vmem:[#allocation2 + $0x1c] sm:$0xf]
    %v50 = vld [vmem:[#allocation2 + $0x20] sm:$0xf]
    %v51 = vld [vmem:[#allocation2 + $0x24] sm:$0xf]
    %v52 = vld [vmem:[#allocation2 + $0x28] sm:$0xf]
    %v53 = vld [vmem:[#allocation2 + $0x2c] sm:$0xf]
    %v54 = vld [vmem:[#allocation2 + $0x30] sm:$0xf]
    %v55 = vld [vmem:[#allocation2 + $0x34] sm:$0xf]
    %v56 = vld [vmem:[#allocation2 + $0x38] sm:$0xf]
    %v57 = vld [vmem:[#allocation2 + $0x3c] sm:$0xf]
    %vm58 = vcmask 31744
    %v60 = vsel %vm58, %v26, 0
    %vm62 = vcmask 1043456
    %v64 = vsel %vm62, %v42, 0
    %66 = vmatprep.subr.mxu0 0.0
    %67 = vmatpush1.msra.mxu0 %v64
    %68 = vmatprep.subr.mxu0 0.0
    %69 = vmatpush1.msra.mxu0 0.0
    %70 = vmatprep.subr.mxu0 0.0
    %71 = vmatpush1.msra.mxu0 0.0
    %72 = vmatprep.subr.mxu0 0.0
    %73 = vmatpush1.msra.mxu0 0.0
    %74 = vmatprep.subr.mxu0 0.0
    %75 = vmatpush1.msra.mxu0 0.0
    %76 = vmatprep.subr.mxu0 0.0
    %77 = vmatpush1.msra.mxu0 0.0
    %78 = vmatprep.subr.mxu0 0.0
    %79 = vmatpush1.msra.mxu0 0.0
    %80 = vmatprep.subr.mxu0 0.0
    %81 = vmatpush1.msra.mxu0 0.0
    %82 = vmatprep.subr.mxu0 0.0
    %83 = vmatpush1.msra.mxu0 0.0
    %84 = vmatprep.subr.mxu0 0.0
    %85 = vmatpush1.msra.mxu0 0.0
    %86 = vmatprep.subr.mxu0 0.0
    %87 = vmatpush1.msra.mxu0 0.0
    %88 = vmatprep.subr.mxu0 0.0
    %89 = vmatpush1.msra.mxu0 0.0
    %90 = vmatprep.subr.mxu0 0.0
    %91 = vmatpush1.msra.mxu0 0.0
    %92 = vmatprep.subr.mxu0 0.0
    %93 = vmatpush1.msra.mxu0 0.0
    %94 = vmatprep.subr.mxu0 0.0
    %95 = vmatpush1.msra.mxu0 0.0
    %96 = vmatprep.subr.mxu0 0.0
    %97 = vmatpush1.msra.mxu0 0.0
    %98 = vmatprep.subr.mxu0 0.0
    %99 = vmatpush1.msra.mxu0 0.0
    %100 = vmatprep.subr.mxu0 0.0
    %101 = vmatpush1.msra.mxu0 0.0
    %102 = vmatprep.subr.mxu0 0.0
    %103 = vmatpush1.msra.mxu0 0.0
    %104 = vmatprep.subr.mxu0 0.0
    %105 = vmatpush1.msra.mxu0 0.0
    %106 = vmatprep.subr.mxu0 0.0
    %107 = vmatpush1.msra.mxu0 0.0
    %108 = vmatprep.subr.mxu0 0.0
    %109 = vmatpush1.msra.mxu0 0.0
    %110 = vmatprep.subr.mxu0 0.0
    %111 = vmatpush1.msra.mxu0 0.0
    %112 = vmatprep.subr.mxu0 0.0
    %113 = vmatpush1.msra.mxu0 0.0
    %114 = vmatprep.subr.mxu0 0.0
    %115 = vmatpush1.msra.mxu0 0.0
    %116 = vmatprep.subr.mxu0 0.0
    %117 = vmatpush1.msra.mxu0 0.0
    %118 = vmatprep.subr.mxu0 0.0
    %119 = vmatpush1.msra.mxu0 0.0
    %120 = vmatprep.subr.mxu0 0.0
    %121 = vmatpush1.msra.mxu0 0.0
    %122 = vmatprep.subr.mxu0 0.0
    %123 = vmatpush1.msra.mxu0 0.0
    %124 = vmatprep.subr.mxu0 0.0
    %125 = vmatpush1.msra.mxu0 0.0
    %126 = vmatprep.subr.mxu0 0.0
    %127 = vmatpush1.msra.mxu0 0.0
    %128 = vmatprep.subr.mxu0 0.0
    %129 = vmatpush1.msra.mxu0 0.0
    %130 = vmatprep.mubr.f32.mxu0 0.0
    %131 = vmatmul.mubr.f32.gmra.mrb[0].mxu0 %v60
    %v132 = vpop.f32.mrb[0].mxu0
    %v133 = vadd.f32 0.0, %v132
    %v134 = vpop.f32.mrb[0].mxu0
    %135 = vdwg.mxu0
    %v137 = vsel %vm58, %v27, 0
    %v140 = vsel %vm62, %v43, 0
    %142 = vmatprep.subr.mxu0 0.0
    %143 = vmatpush1.msra.mxu0 %v140
    %144 = vmatprep.subr.mxu0 0.0
    %145 = vmatpush1.msra.mxu0 0.0
    %146 = vmatprep.subr.mxu0 0.0
    %147 = vmatpush1.msra.mxu0 0.0
    %148 = vmatprep.subr.mxu0 0.0
    %149 = vmatpush1.msra.mxu0 0.0
    %150 = vmatprep.subr.mxu0 0.0
    %151 = vmatpush1.msra.mxu0 0.0
    %152 = vmatprep.subr.mxu0 0.0
    %153 = vmatpush1.msra.mxu0 0.0
    %154 = vmatprep.subr.mxu0 0.0
    %155 = vmatpush1.msra.mxu0 0.0
    %156 = vmatprep.subr.mxu0 0.0
    %157 = vmatpush1.msra.mxu0 0.0
    %158 = vmatprep.subr.mxu0 0.0
    %159 = vmatpush1.msra.mxu0 0.0
    %160 = vmatprep.subr.mxu0 0.0
    %161 = vmatpush1.msra.mxu0 0.0
    %162 = vmatprep.subr.mxu0 0.0
    %163 = vmatpush1.msra.mxu0 0.0
    %164 = vmatprep.subr.mxu0 0.0
    %165 = vmatpush1.msra.mxu0 0.0
    %166 = vmatprep.subr.mxu0 0.0
    %167 = vmatpush1.msra.mxu0 0.0
    %168 = vmatprep.subr.mxu0 0.0
    %169 = vmatpush1.msra.mxu0 0.0
    %170 = vmatprep.subr.mxu0 0.0
    %171 = vmatpush1.msra.mxu0 0.0
    %172 = vmatprep.subr.mxu0 0.0
    %173 = vmatpush1.msra.mxu0 0.0
    %174 = vmatprep.subr.mxu0 0.0
    %175 = vmatpush1.msra.mxu0 0.0
    %176 = vmatprep.subr.mxu0 0.0
    %177 = vmatpush1.msra.mxu0 0.0
    %178 = vmatprep.subr.mxu0 0.0
    %179 = vmatpush1.msra.mxu0 0.0
    %180 = vmatprep.subr.mxu0 0.0
    %181 = vmatpush1.msra.mxu0 0.0
    %182 = vmatprep.subr.mxu0 0.0
    %183 = vmatpush1.msra.mxu0 0.0
    %184 = vmatprep.subr.mxu0 0.0
    %185 = vmatpush1.msra.mxu0 0.0
    %186 = vmatprep.subr.mxu0 0.0
    %187 = vmatpush1.msra.mxu0 0.0
    %188 = vmatprep.subr.mxu0 0.0
    %189 = vmatpush1.msra.mxu0 0.0
    %190 = vmatprep.subr.mxu0 0.0
    %191 = vmatpush1.msra.mxu0 0.0
    %192 = vmatprep.subr.mxu0 0.0
    %193 = vmatpush1.msra.mxu0 0.0
    %194 = vmatprep.subr.mxu0 0.0
    %195 = vmatpush1.msra.mxu0 0.0
    %196 = vmatprep.subr.mxu0 0.0
    %197 = vmatpush1.msra.mxu0 0.0
    %198 = vmatprep.subr.mxu0 0.0
    %199 = vmatpush1.msra.mxu0 0.0
    %200 = vmatprep.subr.mxu0 0.0
    %201 = vmatpush1.msra.mxu0 0.0
    %202 = vmatprep.subr.mxu0 0.0
    %203 = vmatpush1.msra.mxu0 0.0
    %204 = vmatprep.subr.mxu0 0.0
    %205 = vmatpush1.msra.mxu0 0.0
    %206 = vmatprep.mubr.f32.mxu0 0.0
    %207 = vmatmul.mubr.f32.gmra.mrb[0].mxu0 %v137
    %v208 = vpop.f32.mrb[0].mxu0
    %v209 = vadd.f32 0.0, %v208
    %v210 = vpop.f32.mrb[0].mxu0
    %211 = vdwg.mxu0
    %v213 = vsel %vm58, %v28, 0
    %v216 = vsel %vm62, %v44, 0
    %218 = vmatprep.subr.mxu0 0.0
    %219 = vmatpush1.msra.mxu0 %v216
    %220 = vmatprep.subr.mxu0 0.0
    %221 = vmatpush1.msra.mxu0 0.0
    %222 = vmatprep.subr.mxu0 0.0
    %223 = vmatpush1.msra.mxu0 0.0
    %224 = vmatprep.subr.mxu0 0.0
    %225 = vmatpush1.msra.mxu0 0.0
    %226 = vmatprep.subr.mxu0 0.0
    %227 = vmatpush1.msra.mxu0 0.0
    %228 = vmatprep.subr.mxu0 0.0
    %229 = vmatpush1.msra.mxu0 0.0
    %230 = vmatprep.subr.mxu0 0.0
    %231 = vmatpush1.msra.mxu0 0.0
    %232 = vmatprep.subr.mxu0 0.0
    %233 = vmatpush1.msra.mxu0 0.0
    %234 = vmatprep.subr.mxu0 0.0
    %235 = vmatpush1.msra.mxu0 0.0
    %236 = vmatprep.subr.mxu0 0.0
    %237 = vmatpush1.msra.mxu0 0.0
    %238 = vmatprep.subr.mxu0 0.0
    %239 = vmatpush1.msra.mxu0 0.0
    %240 = vmatprep.subr.mxu0 0.0
    %241 = vmatpush1.msra.mxu0 0.0
    %242 = vmatprep.subr.mxu0 0.0
    %243 = vmatpush1.msra.mxu0 0.0
    %244 = vmatprep.subr.mxu0 0.0
    %245 = vmatpush1.msra.mxu0 0.0
    %246 = vmatprep.subr.mxu0 0.0
    %247 = vmatpush1.msra.mxu0 0.0
    %248 = vmatprep.subr.mxu0 0.0
    %249 = vmatpush1.msra.mxu0 0.0
    %250 = vmatprep.subr.mxu0 0.0
    %251 = vmatpush1.msra.mxu0 0.0
    %252 = vmatprep.subr.mxu0 0.0
    %253 = vmatpush1.msra.mxu0 0.0
    %254 = vmatprep.subr.mxu0 0.0
    %255 = vmatpush1.msra.mxu0 0.0
    %256 = vmatprep.subr.mxu0 0.0
    %257 = vmatpush1.msra.mxu0 0.0
    %258 = vmatprep.subr.mxu0 0.0
    %259 = vmatpush1.msra.mxu0 0.0
    %260 = vmatprep.subr.mxu0 0.0
    %261 = vmatpush1.msra.mxu0 0.0
    %262 = vmatprep.subr.mxu0 0.0
    %263 = vmatpush1.msra.mxu0 0.0
    %264 = vmatprep.subr.mxu0 0.0
    %265 = vmatpush1.msra.mxu0 0.0
    %266 = vmatprep.subr.mxu0 0.0
    %267 = vmatpush1.msra.mxu0 0.0
    %268 = vmatprep.subr.mxu0 0.0
    %269 = vmatpush1.msra.mxu0 0.0
    %270 = vmatprep.subr.mxu0 0.0
    %271 = vmatpush1.msra.mxu0 0.0
    %272 = vmatprep.subr.mxu0 0.0
    %273 = vmatpush1.msra.mxu0 0.0
    %274 = vmatprep.subr.mxu0 0.0
    %275 = vmatpush1.msra.mxu0 0.0
    %276 = vmatprep.subr.mxu0 0.0
    %277 = vmatpush1.msra.mxu0 0.0
    %278 = vmatprep.subr.mxu0 0.0
    %279 = vmatpush1.msra.mxu0 0.0
    %280 = vmatprep.subr.mxu0 0.0
    %281 = vmatpush1.msra.mxu0 0.0
    %282 = vmatprep.mubr.f32.mxu0 0.0
    %283 = vmatmul.mubr.f32.gmra.mrb[0].mxu0 %v213
    %v284 = vpop.f32.mrb[0].mxu0
    %v285 = vadd.f32 0.0, %v284
    %v286 = vpop.f32.mrb[0].mxu0
    %287 = vdwg.mxu0
    %v289 = vsel %vm58, %v29, 0
    %v292 = vsel %vm62, %v45, 0
    %294 = vmatprep.subr.mxu0 0.0
    %295 = vmatpush1.msra.mxu0 %v292
    %296 = vmatprep.subr.mxu0 0.0
    %297 = vmatpush1.msra.mxu0 0.0
    %298 = vmatprep.subr.mxu0 0.0
    %299 = vmatpush1.msra.mxu0 0.0
    %300 = vmatprep.subr.mxu0 0.0
    %301 = vmatpush1.msra.mxu0 0.0
    %302 = vmatprep.subr.mxu0 0.0
    %303 = vmatpush1.msra.mxu0 0.0
    %304 = vmatprep.subr.mxu0 0.0
    %305 = vmatpush1.msra.mxu0 0.0
    %306 = vmatprep.subr.mxu0 0.0
    %307 = vmatpush1.msra.mxu0 0.0
    %308 = vmatprep.subr.mxu0 0.0
    %309 = vmatpush1.msra.mxu0 0.0
    %310 = vmatprep.subr.mxu0 0.0
    %311 = vmatpush1.msra.mxu0 0.0
    %312 = vmatprep.subr.mxu0 0.0
    %313 = vmatpush1.msra.mxu0 0.0
    %314 = vmatprep.subr.mxu0 0.0
    %315 = vmatpush1.msra.mxu0 0.0
    %316 = vmatprep.subr.mxu0 0.0
    %317 = vmatpush1.msra.mxu0 0.0
    %318 = vmatprep.subr.mxu0 0.0
    %319 = vmatpush1.msra.mxu0 0.0
    %320 = vmatprep.subr.mxu0 0.0
    %321 = vmatpush1.msra.mxu0 0.0
    %322 = vmatprep.subr.mxu0 0.0
    %323 = vmatpush1.msra.mxu0 0.0
    %324 = vmatprep.subr.mxu0 0.0
    %325 = vmatpush1.msra.mxu0 0.0
    %326 = vmatprep.subr.mxu0 0.0
    %327 = vmatpush1.msra.mxu0 0.0
    %328 = vmatprep.subr.mxu0 0.0
    %329 = vmatpush1.msra.mxu0 0.0
    %330 = vmatprep.subr.mxu0 0.0
    %331 = vmatpush1.msra.mxu0 0.0
    %332 = vmatprep.subr.mxu0 0.0
    %333 = vmatpush1.msra.mxu0 0.0
    %334 = vmatprep.subr.mxu0 0.0
    %335 = vmatpush1.msra.mxu0 0.0
    %336 = vmatprep.subr.mxu0 0.0
    %337 = vmatpush1.msra.mxu0 0.0
    %338 = vmatprep.subr.mxu0 0.0
    %339 = vmatpush1.msra.mxu0 0.0
    %340 = vmatprep.subr.mxu0 0.0
    %341 = vmatpush1.msra.mxu0 0.0
    %342 = vmatprep.subr.mxu0 0.0
    %343 = vmatpush1.msra.mxu0 0.0
    %344 = vmatprep.subr.mxu0 0.0
    %345 = vmatpush1.msra.mxu0 0.0
    %346 = vmatprep.subr.mxu0 0.0
    %347 = vmatpush1.msra.mxu0 0.0
    %348 = vmatprep.subr.mxu0 0.0
    %349 = vmatpush1.msra.mxu0 0.0
    %350 = vmatprep.subr.mxu0 0.0
    %351 = vmatpush1.msra.mxu0 0.0
    %352 = vmatprep.subr.mxu0 0.0
    %353 = vmatpush1.msra.mxu0 0.0
    %354 = vmatprep.subr.mxu0 0.0
    %355 = vmatpush1.msra.mxu0 0.0
    %356 = vmatprep.subr.mxu0 0.0
    %357 = vmatpush1.msra.mxu0 0.0
    %358 = vmatprep.mubr.f32.mxu0 0.0
    %359 = vmatmul.mubr.f32.gmra.mrb[0].mxu0 %v289
    %v360 = vpop.f32.mrb[0].mxu0
    %v361 = vadd.f32 0.0, %v360
    %v362 = vpop.f32.mrb[0].mxu0
    %363 = vdwg.mxu0
    %v365 = vsel %vm58, %v30, 0
    %v368 = vsel %vm62, %v46, 0
    %370 = vmatprep.subr.mxu0 0.0
    %371 = vmatpush1.msra.mxu0 %v368
    %372 = vmatprep.subr.mxu0 0.0
    %373 = vmatpush1.msra.mxu0 0.0
    %374 = vmatprep.subr.mxu0 0.0
    %375 = vmatpush1.msra.mxu0 0.0
    %376 = vmatprep.subr.mxu0 0.0
    %377 = vmatpush1.msra.mxu0 0.0
    %378 = vmatprep.subr.mxu0 0.0
    %379 = vmatpush1.msra.mxu0 0.0
    %380 = vmatprep.subr.mxu0 0.0
    %381 = vmatpush1.msra.mxu0 0.0
    %382 = vmatprep.subr.mxu0 0.0
    %383 = vmatpush1.msra.mxu0 0.0
    %384 = vmatprep.subr.mxu0 0.0
    %385 = vmatpush1.msra.mxu0 0.0
    %386 = vmatprep.subr.mxu0 0.0
    %387 = vmatpush1.msra.mxu0 0.0
    %388 = vmatprep.subr.mxu0 0.0
    %389 = vmatpush1.msra.mxu0 0.0
    %390 = vmatprep.subr.mxu0 0.0
    %391 = vmatpush1.msra.mxu0 0.0
    %392 = vmatprep.subr.mxu0 0.0
    %393 = vmatpush1.msra.mxu0 0.0
    %394 = vmatprep.subr.mxu0 0.0
    %395 = vmatpush1.msra.mxu0 0.0
    %396 = vmatprep.subr.mxu0 0.0
    %397 = vmatpush1.msra.mxu0 0.0
    %398 = vmatprep.subr.mxu0 0.0
    %399 = vmatpush1.msra.mxu0 0.0
    %400 = vmatprep.subr.mxu0 0.0
    %401 = vmatpush1.msra.mxu0 0.0
    %402 = vmatprep.subr.mxu0 0.0
    %403 = vmatpush1.msra.mxu0 0.0
    %404 = vmatprep.subr.mxu0 0.0
    %405 = vmatpush1.msra.mxu0 0.0
    %406 = vmatprep.subr.mxu0 0.0
    %407 = vmatpush1.msra.mxu0 0.0
    %408 = vmatprep.subr.mxu0 0.0
    %409 = vmatpush1.msra.mxu0 0.0
    %410 = vmatprep.subr.mxu0 0.0
    %411 = vmatpush1.msra.mxu0 0.0
    %412 = vmatprep.subr.mxu0 0.0
    %413 = vmatpush1.msra.mxu0 0.0
    %414 = vmatprep.subr.mxu0 0.0
    %415 = vmatpush1.msra.mxu0 0.0
    %416 = vmatprep.subr.mxu0 0.0
    %417 = vmatpush1.msra.mxu0 0.0
    %418 = vmatprep.subr.mxu0 0.0
    %419 = vmatpush1.msra.mxu0 0.0
    %420 = vmatprep.subr.mxu0 0.0
    %421 = vmatpush1.msra.mxu0 0.0
    %422 = vmatprep.subr.mxu0 0.0
    %423 = vmatpush1.msra.mxu0 0.0
    %424 = vmatprep.subr.mxu0 0.0
    %425 = vmatpush1.msra.mxu0 0.0
    %426 = vmatprep.subr.mxu0 0.0
    %427 = vmatpush1.msra.mxu0 0.0
    %428 = vmatprep.subr.mxu0 0.0
    %429 = vmatpush1.msra.mxu0 0.0
    %430 = vmatprep.subr.mxu0 0.0
    %431 = vmatpush1.msra.mxu0 0.0
    %432 = vmatprep.subr.mxu0 0.0
    %433 = vmatpush1.msra.mxu0 0.0
    %434 = vmatprep.mubr.f32.mxu0 0.0
    %435 = vmatmul.mubr.f32.gmra.mrb[0].mxu0 %v365
    %v436 = vpop.f32.mrb[0].mxu0
    %v437 = vadd.f32 0.0, %v436
    %v438 = vpop.f32.mrb[0].mxu0
    %439 = vdwg.mxu0
    %v441 = vsel %vm58, %v31, 0
    %v444 = vsel %vm62, %v47, 0
    %446 = vmatprep.subr.mxu0 0.0
    %447 = vmatpush1.msra.mxu0 %v444
    %448 = vmatprep.subr.mxu0 0.0
    %449 = vmatpush1.msra.mxu0 0.0
    %450 = vmatprep.subr.mxu0 0.0
    %451 = vmatpush1.msra.mxu0 0.0
    %452 = vmatprep.subr.mxu0 0.0
    %453 = vmatpush1.msra.mxu0 0.0
    %454 = vmatprep.subr.mxu0 0.0
    %455 = vmatpush1.msra.mxu0 0.0
    %456 = vmatprep.subr.mxu0 0.0
    %457 = vmatpush1.msra.mxu0 0.0
    %458 = vmatprep.subr.mxu0 0.0
    %459 = vmatpush1.msra.mxu0 0.0
    %460 = vmatprep.subr.mxu0 0.0
    %461 = vmatpush1.msra.mxu0 0.0
    %462 = vmatprep.subr.mxu0 0.0
    %463 = vmatpush1.msra.mxu0 0.0
    %464 = vmatprep.subr.mxu0 0.0
    %465 = vmatpush1.msra.mxu0 0.0
    %466 = vmatprep.subr.mxu0 0.0
    %467 = vmatpush1.msra.mxu0 0.0
    %468 = vmatprep.subr.mxu0 0.0
    %469 = vmatpush1.msra.mxu0 0.0
    %470 = vmatprep.subr.mxu0 0.0
    %471 = vmatpush1.msra.mxu0 0.0
    %472 = vmatprep.subr.mxu0 0.0
    %473 = vmatpush1.msra.mxu0 0.0
    %474 = vmatprep.subr.mxu0 0.0
    %475 = vmatpush1.msra.mxu0 0.0
    %476 = vmatprep.subr.mxu0 0.0
    %477 = vmatpush1.msra.mxu0 0.0
    %478 = vmatprep.subr.mxu0 0.0
    %479 = vmatpush1.msra.mxu0 0.0
    %480 = vmatprep.subr.mxu0 0.0
    %481 = vmatpush1.msra.mxu0 0.0
    %482 = vmatprep.subr.mxu0 0.0
    %483 = vmatpush1.msra.mxu0 0.0
    %484 = vmatprep.subr.mxu0 0.0
    %485 = vmatpush1.msra.mxu0 0.0
    %486 = vmatprep.subr.mxu0 0.0
    %487 = vmatpush1.msra.mxu0 0.0
    %488 = vmatprep.subr.mxu0 0.0
    %489 = vmatpush1.msra.mxu0 0.0
    %490 = vmatprep.subr.mxu0 0.0
    %491 = vmatpush1.msra.mxu0 0.0
    %492 = vmatprep.subr.mxu0 0.0
    %493 = vmatpush1.msra.mxu0 0.0
    %494 = vmatprep.subr.mxu0 0.0
    %495 = vmatpush1.msra.mxu0 0.0
    %496 = vmatprep.subr.mxu0 0.0
    %497 = vmatpush1.msra.mxu0 0.0
    %498 = vmatprep.subr.mxu0 0.0
    %499 = vmatpush1.msra.mxu0 0.0
    %500 = vmatprep.subr.mxu0 0.0
    %501 = vmatpush1.msra.mxu0 0.0
    %502 = vmatprep.subr.mxu0 0.0
    %503 = vmatpush1.msra.mxu0 0.0
    %504 = vmatprep.subr.mxu0 0.0
    %505 = vmatpush1.msra.mxu0 0.0
    %506 = vmatprep.subr.mxu0 0.0
    %507 = vmatpush1.msra.mxu0 0.0
    %508 = vmatprep.subr.mxu0 0.0
    %509 = vmatpush1.msra.mxu0 0.0
    %510 = vmatprep.mubr.f32.mxu0 0.0
    %511 = vmatmul.mubr.f32.gmra.mrb[0].mxu0 %v441
    %v512 = vpop.f32.mrb[0].mxu0
    %v513 = vadd.f32 0.0, %v512
    %v514 = vpop.f32.mrb[0].mxu0
    %515 = vdwg.mxu0
    %v517 = vsel %vm58, %v32, 0
    %v520 = vsel %vm62, %v48, 0
    %522 = vmatprep.subr.mxu0 0.0
    %523 = vmatpush1.msra.mxu0 %v520
    %524 = vmatprep.subr.mxu0 0.0
    %525 = vmatpush1.msra.mxu0 0.0
    %526 = vmatprep.subr.mxu0 0.0
    %527 = vmatpush1.msra.mxu0 0.0
    %528 = vmatprep.subr.mxu0 0.0
    %529 = vmatpush1.msra.mxu0 0.0
    %530 = vmatprep.subr.mxu0 0.0
    %531 = vmatpush1.msra.mxu0 0.0
    %532 = vmatprep.subr.mxu0 0.0
    %533 = vmatpush1.msra.mxu0 0.0
    %534 = vmatprep.subr.mxu0 0.0
    %535 = vmatpush1.msra.mxu0 0.0
    %536 = vmatprep.subr.mxu0 0.0
    %537 = vmatpush1.msra.mxu0 0.0
    %538 = vmatprep.subr.mxu0 0.0
    %539 = vmatpush1.msra.mxu0 0.0
    %540 = vmatprep.subr.mxu0 0.0
    %541 = vmatpush1.msra.mxu0 0.0
    %542 = vmatprep.subr.mxu0 0.0
    %543 = vmatpush1.msra.mxu0 0.0
    %544 = vmatprep.subr.mxu0 0.0
    %545 = vmatpush1.msra.mxu0 0.0
    %546 = vmatprep.subr.mxu0 0.0
    %547 = vmatpush1.msra.mxu0 0.0
    %548 = vmatprep.subr.mxu0 0.0
    %549 = vmatpush1.msra.mxu0 0.0
    %550 = vmatprep.subr.mxu0 0.0
    %551 = vmatpush1.msra.mxu0 0.0
    %552 = vmatprep.subr.mxu0 0.0
    %553 = vmatpush1.msra.mxu0 0.0
    %554 = vmatprep.subr.mxu0 0.0
    %555 = vmatpush1.msra.mxu0 0.0
    %556 = vmatprep.subr.mxu0 0.0
    %557 = vmatpush1.msra.mxu0 0.0
    %558 = vmatprep.subr.mxu0 0.0
    %559 = vmatpush1.msra.mxu0 0.0
    %560 = vmatprep.subr.mxu0 0.0
    %561 = vmatpush1.msra.mxu0 0.0
    %562 = vmatprep.subr.mxu0 0.0
    %563 = vmatpush1.msra.mxu0 0.0
    %564 = vmatprep.subr.mxu0 0.0
    %565 = vmatpush1.msra.mxu0 0.0
    %566 = vmatprep.subr.mxu0 0.0
    %567 = vmatpush1.msra.mxu0 0.0
    %568 = vmatprep.subr.mxu0 0.0
    %569 = vmatpush1.msra.mxu0 0.0
    %570 = vmatprep.subr.mxu0 0.0
    %571 = vmatpush1.msra.mxu0 0.0
    %572 = vmatprep.subr.mxu0 0.0
    %573 = vmatpush1.msra.mxu0 0.0
    %574 = vmatprep.subr.mxu0 0.0
    %575 = vmatpush1.msra.mxu0 0.0
    %576 = vmatprep.subr.mxu0 0.0
    %577 = vmatpush1.msra.mxu0 0.0
    %578 = vmatprep.subr.mxu0 0.0
    %579 = vmatpush1.msra.mxu0 0.0
    %580 = vmatprep.subr.mxu0 0.0
    %581 = vmatpush1.msra.mxu0 0.0
    %582 = vmatprep.subr.mxu0 0.0
    %583 = vmatpush1.msra.mxu0 0.0
    %584 = vmatprep.subr.mxu0 0.0
    %585 = vmatpush1.msra.mxu0 0.0
    %586 = vmatprep.mubr.f32.mxu0 0.0
    %587 = vmatmul.mubr.f32.gmra.mrb[0].mxu0 %v517
    %v588 = vpop.f32.mrb[0].mxu0
    %v589 = vadd.f32 0.0, %v588
    %v590 = vpop.f32.mrb[0].mxu0
    %591 = vdwg.mxu0
    %v593 = vsel %vm58, %v33, 0
    %v596 = vsel %vm62, %v49, 0
    %598 = vmatprep.subr.mxu0 0.0
    %599 = vmatpush1.msra.mxu0 %v596
    %600 = vmatprep.subr.mxu0 0.0
    %601 = vmatpush1.msra.mxu0 0.0
    %602 = vmatprep.subr.mxu0 0.0
    %603 = vmatpush1.msra.mxu0 0.0
    %604 = vmatprep.subr.mxu0 0.0
    %605 = vmatpush1.msra.mxu0 0.0
    %606 = vmatprep.subr.mxu0 0.0
    %607 = vmatpush1.msra.mxu0 0.0
    %608 = vmatprep.subr.mxu0 0.0
    %609 = vmatpush1.msra.mxu0 0.0
    %610 = vmatprep.subr.mxu0 0.0
    %611 = vmatpush1.msra.mxu0 0.0
    %612 = vmatprep.subr.mxu0 0.0
    %613 = vmatpush1.msra.mxu0 0.0
    %614 = vmatprep.subr.mxu0 0.0
    %615 = vmatpush1.msra.mxu0 0.0
    %616 = vmatprep.subr.mxu0 0.0
    %617 = vmatpush1.msra.mxu0 0.0
    %618 = vmatprep.subr.mxu0 0.0
    %619 = vmatpush1.msra.mxu0 0.0
    %620 = vmatprep.subr.mxu0 0.0
    %621 = vmatpush1.msra.mxu0 0.0
    %622 = vmatprep.subr.mxu0 0.0
    %623 = vmatpush1.msra.mxu0 0.0
    %624 = vmatprep.subr.mxu0 0.0
    %625 = vmatpush1.msra.mxu0 0.0
    %626 = vmatprep.subr.mxu0 0.0
    %627 = vmatpush1.msra.mxu0 0.0
    %628 = vmatprep.subr.mxu0 0.0
    %629 = vmatpush1.msra.mxu0 0.0
    %630 = vmatprep.subr.mxu0 0.0
    %631 = vmatpush1.msra.mxu0 0.0
    %632 = vmatprep.subr.mxu0 0.0
    %633 = vmatpush1.msra.mxu0 0.0
    %634 = vmatprep.subr.mxu0 0.0
    %635 = vmatpush1.msra.mxu0 0.0
    %636 = vmatprep.subr.mxu0 0.0
    %637 = vmatpush1.msra.mxu0 0.0
    %638 = vmatprep.subr.mxu0 0.0
    %639 = vmatpush1.msra.mxu0 0.0
    %640 = vmatprep.subr.mxu0 0.0
    %641 = vmatpush1.msra.mxu0 0.0
    %642 = vmatprep.subr.mxu0 0.0
    %643 = vmatpush1.msra.mxu0 0.0
    %644 = vmatprep.subr.mxu0 0.0
    %645 = vmatpush1.msra.mxu0 0.0
    %646 = vmatprep.subr.mxu0 0.0
    %647 = vmatpush1.msra.mxu0 0.0
    %648 = vmatprep.subr.mxu0 0.0
    %649 = vmatpush1.msra.mxu0 0.0
    %650 = vmatprep.subr.mxu0 0.0
    %651 = vmatpush1.msra.mxu0 0.0
    %652 = vmatprep.subr.mxu0 0.0
    %653 = vmatpush1.msra.mxu0 0.0
    %654 = vmatprep.subr.mxu0 0.0
    %655 = vmatpush1.msra.mxu0 0.0
    %656 = vmatprep.subr.mxu0 0.0
    %657 = vmatpush1.msra.mxu0 0.0
    %658 = vmatprep.subr.mxu0 0.0
    %659 = vmatpush1.msra.mxu0 0.0
    %660 = vmatprep.subr.mxu0 0.0
    %661 = vmatpush1.msra.mxu0 0.0
    %662 = vmatprep.mubr.f32.mxu0 0.0
    %663 = vmatmul.mubr.f32.gmra.mrb[0].mxu0 %v593
    %v664 = vpop.f32.mrb[0].mxu0
    %v665 = vadd.f32 0.0, %v664
    %v666 = vpop.f32.mrb[0].mxu0
    %667 = vdwg.mxu0
    %v669 = vsel %vm58, %v34, 0
    %v672 = vsel %vm62, %v50, 0
    %674 = vmatprep.subr.mxu0 0.0
    %675 = vmatpush1.msra.mxu0 %v672
    %676 = vmatprep.subr.mxu0 0.0
    %677 = vmatpush1.msra.mxu0 0.0
    %678 = vmatprep.subr.mxu0 0.0
    %679 = vmatpush1.msra.mxu0 0.0
    %680 = vmatprep.subr.mxu0 0.0
    %681 = vmatpush1.msra.mxu0 0.0
    %682 = vmatprep.subr.mxu0 0.0
    %683 = vmatpush1.msra.mxu0 0.0
    %684 = vmatprep.subr.mxu0 0.0
    %685 = vmatpush1.msra.mxu0 0.0
    %686 = vmatprep.subr.mxu0 0.0
    %687 = vmatpush1.msra.mxu0 0.0
    %688 = vmatprep.subr.mxu0 0.0
    %689 = vmatpush1.msra.mxu0 0.0
    %690 = vmatprep.subr.mxu0 0.0
    %691 = vmatpush1.msra.mxu0 0.0
    %692 = vmatprep.subr.mxu0 0.0
    %693 = vmatpush1.msra.mxu0 0.0
    %694 = vmatprep.subr.mxu0 0.0
    %695 = vmatpush1.msra.mxu0 0.0
    %696 = vmatprep.subr.mxu0 0.0
    %697 = vmatpush1.msra.mxu0 0.0
    %698 = vmatprep.subr.mxu0 0.0
    %699 = vmatpush1.msra.mxu0 0.0
    %700 = vmatprep.subr.mxu0 0.0
    %701 = vmatpush1.msra.mxu0 0.0
    %702 = vmatprep.subr.mxu0 0.0
    %703 = vmatpush1.msra.mxu0 0.0
    %704 = vmatprep.subr.mxu0 0.0
    %705 = vmatpush1.msra.mxu0 0.0
    %706 = vmatprep.subr.mxu0 0.0
    %707 = vmatpush1.msra.mxu0 0.0
    %708 = vmatprep.subr.mxu0 0.0
    %709 = vmatpush1.msra.mxu0 0.0
    %710 = vmatprep.subr.mxu0 0.0
    %711 = vmatpush1.msra.mxu0 0.0
    %712 = vmatprep.subr.mxu0 0.0
    %713 = vmatpush1.msra.mxu0 0.0
    %714 = vmatprep.subr.mxu0 0.0
    %715 = vmatpush1.msra.mxu0 0.0
    %716 = vmatprep.subr.mxu0 0.0
    %717 = vmatpush1.msra.mxu0 0.0
    %718 = vmatprep.subr.mxu0 0.0
    %719 = vmatpush1.msra.mxu0 0.0
    %720 = vmatprep.subr.mxu0 0.0
    %721 = vmatpush1.msra.mxu0 0.0
    %722 = vmatprep.subr.mxu0 0.0
    %723 = vmatpush1.msra.mxu0 0.0
    %724 = vmatprep.subr.mxu0 0.0
    %725 = vmatpush1.msra.mxu0 0.0
    %726 = vmatprep.subr.mxu0 0.0
    %727 = vmatpush1.msra.mxu0 0.0
    %728 = vmatprep.subr.mxu0 0.0
    %729 = vmatpush1.msra.mxu0 0.0
    %730 = vmatprep.subr.mxu0 0.0
    %731 = vmatpush1.msra.mxu0 0.0
    %732 = vmatprep.subr.mxu0 0.0
    %733 = vmatpush1.msra.mxu0 0.0
    %734 = vmatprep.subr.mxu0 0.0
    %735 = vmatpush1.msra.mxu0 0.0
    %736 = vmatprep.subr.mxu0 0.0
    %737 = vmatpush1.msra.mxu0 0.0
    %738 = vmatprep.mubr.f32.mxu0 0.0
    %739 = vmatmul.mubr.f32.gmra.mrb[0].mxu0 %v669
    %v740 = vpop.f32.mrb[0].mxu0
    %v741 = vadd.f32 0.0, %v740
    %v742 = vpop.f32.mrb[0].mxu0
    %743 = vdwg.mxu0
    %v745 = vsel %vm58, %v35, 0
    %v748 = vsel %vm62, %v51, 0
    %750 = vmatprep.subr.mxu0 0.0
    %751 = vmatpush1.msra.mxu0 %v748
    %752 = vmatprep.subr.mxu0 0.0
    %753 = vmatpush1.msra.mxu0 0.0
    %754 = vmatprep.subr.mxu0 0.0
    %755 = vmatpush1.msra.mxu0 0.0
    %756 = vmatprep.subr.mxu0 0.0
    %757 = vmatpush1.msra.mxu0 0.0
    %758 = vmatprep.subr.mxu0 0.0
    %759 = vmatpush1.msra.mxu0 0.0
    %760 = vmatprep.subr.mxu0 0.0
    %761 = vmatpush1.msra.mxu0 0.0
    %762 = vmatprep.subr.mxu0 0.0
    %763 = vmatpush1.msra.mxu0 0.0
    %764 = vmatprep.subr.mxu0 0.0
    %765 = vmatpush1.msra.mxu0 0.0
    %766 = vmatprep.subr.mxu0 0.0
    %767 = vmatpush1.msra.mxu0 0.0
    %768 = vmatprep.subr.mxu0 0.0
    %769 = vmatpush1.msra.mxu0 0.0
    %770 = vmatprep.subr.mxu0 0.0
    %771 = vmatpush1.msra.mxu0 0.0
    %772 = vmatprep.subr.mxu0 0.0
    %773 = vmatpush1.msra.mxu0 0.0
    %774 = vmatprep.subr.mxu0 0.0
    %775 = vmatpush1.msra.mxu0 0.0
    %776 = vmatprep.subr.mxu0 0.0
    %777 = vmatpush1.msra.mxu0 0.0
    %778 = vmatprep.subr.mxu0 0.0
    %779 = vmatpush1.msra.mxu0 0.0
    %780 = vmatprep.subr.mxu0 0.0
    %781 = vmatpush1.msra.mxu0 0.0
    %782 = vmatprep.subr.mxu0 0.0
    %783 = vmatpush1.msra.mxu0 0.0
    %784 = vmatprep.subr.mxu0 0.0
    %785 = vmatpush1.msra.mxu0 0.0
    %786 = vmatprep.subr.mxu0 0.0
    %787 = vmatpush1.msra.mxu0 0.0
    %788 = vmatprep.subr.mxu0 0.0
    %789 = vmatpush1.msra.mxu0 0.0
    %790 = vmatprep.subr.mxu0 0.0
    %791 = vmatpush1.msra.mxu0 0.0
    %792 = vmatprep.subr.mxu0 0.0
    %793 = vmatpush1.msra.mxu0 0.0
    %794 = vmatprep.subr.mxu0 0.0
    %795 = vmatpush1.msra.mxu0 0.0
    %796 = vmatprep.subr.mxu0 0.0
    %797 = vmatpush1.msra.mxu0 0.0
    %798 = vmatprep.subr.mxu0 0.0
    %799 = vmatpush1.msra.mxu0 0.0
    %800 = vmatprep.subr.mxu0 0.0
    %801 = vmatpush1.msra.mxu0 0.0
    %802 = vmatprep.subr.mxu0 0.0
    %803 = vmatpush1.msra.mxu0 0.0
    %804 = vmatprep.subr.mxu0 0.0
    %805 = vmatpush1.msra.mxu0 0.0
    %806 = vmatprep.subr.mxu0 0.0
    %807 = vmatpush1.msra.mxu0 0.0
    %808 = vmatprep.subr.mxu0 0.0
    %809 = vmatpush1.msra.mxu0 0.0
    %810 = vmatprep.subr.mxu0 0.0
    %811 = vmatpush1.msra.mxu0 0.0
    %812 = vmatprep.subr.mxu0 0.0
    %813 = vmatpush1.msra.mxu0 0.0
    %814 = vmatprep.mubr.f32.mxu0 0.0
    %815 = vmatmul.mubr.f32.gmra.mrb[0].mxu0 %v745
    %v816 = vpop.f32.mrb[0].mxu0
    %v817 = vadd.f32 0.0, %v816
    %v818 = vpop.f32.mrb[0].mxu0
    %819 = vdwg.mxu0
    %v821 = vsel %vm58, %v36, 0
    %v824 = vsel %vm62, %v52, 0
    %826 = vmatprep.subr.mxu0 0.0
    %827 = vmatpush1.msra.mxu0 %v824
    %828 = vmatprep.subr.mxu0 0.0
    %829 = vmatpush1.msra.mxu0 0.0
    %830 = vmatprep.subr.mxu0 0.0
    %831 = vmatpush1.msra.mxu0 0.0
    %832 = vmatprep.subr.mxu0 0.0
    %833 = vmatpush1.msra.mxu0 0.0
    %834 = vmatprep.subr.mxu0 0.0
    %835 = vmatpush1.msra.mxu0 0.0
    %836 = vmatprep.subr.mxu0 0.0
    %837 = vmatpush1.msra.mxu0 0.0
    %838 = vmatprep.subr.mxu0 0.0
    %839 = vmatpush1.msra.mxu0 0.0
    %840 = vmatprep.subr.mxu0 0.0
    %841 = vmatpush1.msra.mxu0 0.0
    %842 = vmatprep.subr.mxu0 0.0
    %843 = vmatpush1.msra.mxu0 0.0
    %844 = vmatprep.subr.mxu0 0.0
    %845 = vmatpush1.msra.mxu0 0.0
    %846 = vmatprep.subr.mxu0 0.0
    %847 = vmatpush1.msra.mxu0 0.0
    %848 = vmatprep.subr.mxu0 0.0
    %849 = vmatpush1.msra.mxu0 0.0
    %850 = vmatprep.subr.mxu0 0.0
    %851 = vmatpush1.msra.mxu0 0.0
    %852 = vmatprep.subr.mxu0 0.0
    %853 = vmatpush1.msra.mxu0 0.0
    %854 = vmatprep.subr.mxu0 0.0
    %855 = vmatpush1.msra.mxu0 0.0
    %856 = vmatprep.subr.mxu0 0.0
    %857 = vmatpush1.msra.mxu0 0.0
    %858 = vmatprep.subr.mxu0 0.0
    %859 = vmatpush1.msra.mxu0 0.0
    %860 = vmatprep.subr.mxu0 0.0
    %861 = vmatpush1.msra.mxu0 0.0
    %862 = vmatprep.subr.mxu0 0.0
    %863 = vmatpush1.msra.mxu0 0.0
    %864 = vmatprep.subr.mxu0 0.0
    %865 = vmatpush1.msra.mxu0 0.0
    %866 = vmatprep.subr.mxu0 0.0
    %867 = vmatpush1.msra.mxu0 0.0
    %868 = vmatprep.subr.mxu0 0.0
    %869 = vmatpush1.msra.mxu0 0.0
    %870 = vmatprep.subr.mxu0 0.0
    %871 = vmatpush1.msra.mxu0 0.0
    %872 = vmatprep.subr.mxu0 0.0
    %873 = vmatpush1.msra.mxu0 0.0
    %874 = vmatprep.subr.mxu0 0.0
    %875 = vmatpush1.msra.mxu0 0.0
    %876 = vmatprep.subr.mxu0 0.0
    %877 = vmatpush1.msra.mxu0 0.0
    %878 = vmatprep.subr.mxu0 0.0
    %879 = vmatpush1.msra.mxu0 0.0
    %880 = vmatprep.subr.mxu0 0.0
    %881 = vmatpush1.msra.mxu0 0.0
    %882 = vmatprep.subr.mxu0 0.0
    %883 = vmatpush1.msra.mxu0 0.0
    %884 = vmatprep.subr.mxu0 0.0
    %885 = vmatpush1.msra.mxu0 0.0
    %886 = vmatprep.subr.mxu0 0.0
    %887 = vmatpush1.msra.mxu0 0.0
    %888 = vmatprep.subr.mxu0 0.0
    %889 = vmatpush1.msra.mxu0 0.0
    %890 = vmatprep.mubr.f32.mxu0 0.0
    %891 = vmatmul.mubr.f32.gmra.mrb[0].mxu0 %v821
    %v892 = vpop.f32.mrb[0].mxu0
    %v893 = vadd.f32 0.0, %v892
    %v894 = vpop.f32.mrb[0].mxu0
    %895 = vdwg.mxu0
    %v897 = vsel %vm58, %v37, 0
    %v900 = vsel %vm62, %v53, 0
    %902 = vmatprep.subr.mxu0 0.0
    %903 = vmatpush1.msra.mxu0 %v900
    %904 = vmatprep.subr.mxu0 0.0
    %905 = vmatpush1.msra.mxu0 0.0
    %906 = vmatprep.subr.mxu0 0.0
    %907 = vmatpush1.msra.mxu0 0.0
    %908 = vmatprep.subr.mxu0 0.0
    %909 = vmatpush1.msra.mxu0 0.0
    %910 = vmatprep.subr.mxu0 0.0
    %911 = vmatpush1.msra.mxu0 0.0
    %912 = vmatprep.subr.mxu0 0.0
    %913 = vmatpush1.msra.mxu0 0.0
    %914 = vmatprep.subr.mxu0 0.0
    %915 = vmatpush1.msra.mxu0 0.0
    %916 = vmatprep.subr.mxu0 0.0
    %917 = vmatpush1.msra.mxu0 0.0
    %918 = vmatprep.subr.mxu0 0.0
    %919 = vmatpush1.msra.mxu0 0.0
    %920 = vmatprep.subr.mxu0 0.0
    %921 = vmatpush1.msra.mxu0 0.0
    %922 = vmatprep.subr.mxu0 0.0
    %923 = vmatpush1.msra.mxu0 0.0
    %924 = vmatprep.subr.mxu0 0.0
    %925 = vmatpush1.msra.mxu0 0.0
    %926 = vmatprep.subr.mxu0 0.0
    %927 = vmatpush1.msra.mxu0 0.0
    %928 = vmatprep.subr.mxu0 0.0
    %929 = vmatpush1.msra.mxu0 0.0
    %930 = vmatprep.subr.mxu0 0.0
    %931 = vmatpush1.msra.mxu0 0.0
    %932 = vmatprep.subr.mxu0 0.0
    %933 = vmatpush1.msra.mxu0 0.0
    %934 = vmatprep.subr.mxu0 0.0
    %935 = vmatpush1.msra.mxu0 0.0
    %936 = vmatprep.subr.mxu0 0.0
    %937 = vmatpush1.msra.mxu0 0.0
    %938 = vmatprep.subr.mxu0 0.0
    %939 = vmatpush1.msra.mxu0 0.0
    %940 = vmatprep.subr.mxu0 0.0
    %941 = vmatpush1.msra.mxu0 0.0
    %942 = vmatprep.subr.mxu0 0.0
    %943 = vmatpush1.msra.mxu0 0.0
    %944 = vmatprep.subr.mxu0 0.0
    %945 = vmatpush1.msra.mxu0 0.0
    %946 = vmatprep.subr.mxu0 0.0
    %947 = vmatpush1.msra.mxu0 0.0
    %948 = vmatprep.subr.mxu0 0.0
    %949 = vmatpush1.msra.mxu0 0.0
    %950 = vmatprep.subr.mxu0 0.0
    %951 = vmatpush1.msra.mxu0 0.0
    %952 = vmatprep.subr.mxu0 0.0
    %953 = vmatpush1.msra.mxu0 0.0
    %954 = vmatprep.subr.mxu0 0.0
    %955 = vmatpush1.msra.mxu0 0.0
    %956 = vmatprep.subr.mxu0 0.0
    %957 = vmatpush1.msra.mxu0 0.0
    %958 = vmatprep.subr.mxu0 0.0
    %959 = vmatpush1.msra.mxu0 0.0
    %960 = vmatprep.subr.mxu0 0.0
    %961 = vmatpush1.msra.mxu0 0.0
    %962 = vmatprep.subr.mxu0 0.0
    %963 = vmatpush1.msra.mxu0 0.0
    %964 = vmatprep.subr.mxu0 0.0
    %965 = vmatpush1.msra.mxu0 0.0
    %966 = vmatprep.mubr.f32.mxu0 0.0
    %967 = vmatmul.mubr.f32.gmra.mrb[0].mxu0 %v897
    %v968 = vpop.f32.mrb[0].mxu0
    %v969 = vadd.f32 0.0, %v968
    %v970 = vpop.f32.mrb[0].mxu0
    %971 = vdwg.mxu0
    %v973 = vsel %vm58, %v38, 0
    %v976 = vsel %vm62, %v54, 0
    %978 = vmatprep.subr.mxu0 0.0
    %979 = vmatpush1.msra.mxu0 %v976
    %980 = vmatprep.subr.mxu0 0.0
    %981 = vmatpush1.msra.mxu0 0.0
    %982 = vmatprep.subr.mxu0 0.0
    %983 = vmatpush1.msra.mxu0 0.0
    %984 = vmatprep.subr.mxu0 0.0
    %985 = vmatpush1.msra.mxu0 0.0
    %986 = vmatprep.subr.mxu0 0.0
    %987 = vmatpush1.msra.mxu0 0.0
    %988 = vmatprep.subr.mxu0 0.0
    %989 = vmatpush1.msra.mxu0 0.0
    %990 = vmatprep.subr.mxu0 0.0
    %991 = vmatpush1.msra.mxu0 0.0
    %992 = vmatprep.subr.mxu0 0.0
    %993 = vmatpush1.msra.mxu0 0.0
    %994 = vmatprep.subr.mxu0 0.0
    %995 = vmatpush1.msra.mxu0 0.0
    %996 = vmatprep.subr.mxu0 0.0
    %997 = vmatpush1.msra.mxu0 0.0
    %998 = vmatprep.subr.mxu0 0.0
    %999 = vmatpush1.msra.mxu0 0.0
    %1000 = vmatprep.subr.mxu0 0.0
    %1001 = vmatpush1.msra.mxu0 0.0
    %1002 = vmatprep.subr.mxu0 0.0
    %1003 = vmatpush1.msra.mxu0 0.0
    %1004 = vmatprep.subr.mxu0 0.0
    %1005 = vmatpush1.msra.mxu0 0.0
    %1006 = vmatprep.subr.mxu0 0.0
    %1007 = vmatpush1.msra.mxu0 0.0
    %1008 = vmatprep.subr.mxu0 0.0
    %1009 = vmatpush1.msra.mxu0 0.0
    %1010 = vmatprep.subr.mxu0 0.0
    %1011 = vmatpush1.msra.mxu0 0.0
    %1012 = vmatprep.subr.mxu0 0.0
    %1013 = vmatpush1.msra.mxu0 0.0
    %1014 = vmatprep.subr.mxu0 0.0
    %1015 = vmatpush1.msra.mxu0 0.0
    %1016 = vmatprep.subr.mxu0 0.0
    %1017 = vmatpush1.msra.mxu0 0.0
    %1018 = vmatprep.subr.mxu0 0.0
    %1019 = vmatpush1.msra.mxu0 0.0
    %1020 = vmatprep.subr.mxu0 0.0
    %1021 = vmatpush1.msra.mxu0 0.0
    %1022 = vmatprep.subr.mxu0 0.0
    %1023 = vmatpush1.msra.mxu0 0.0
    %1024 = vmatprep.subr.mxu0 0.0
    %1025 = vmatpush1.msra.mxu0 0.0
    %1026 = vmatprep.subr.mxu0 0.0
    %1027 = vmatpush1.msra.mxu0 0.0
    %1028 = vmatprep.subr.mxu0 0.0
    %1029 = vmatpush1.msra.mxu0 0.0
    %1030 = vmatprep.subr.mxu0 0.0
    %1031 = vmatpush1.msra.mxu0 0.0
    %1032 = vmatprep.subr.mxu0 0.0
    %1033 = vmatpush1.msra.mxu0 0.0
    %1034 = vmatprep.subr.mxu0 0.0
    %1035 = vmatpush1.msra.mxu0 0.0
    %1036 = vmatprep.subr.mxu0 0.0
    %1037 = vmatpush1.msra.mxu0 0.0
    %1038 = vmatprep.subr.mxu0 0.0
    %1039 = vmatpush1.msra.mxu0 0.0
    %1040 = vmatprep.subr.mxu0 0.0
    %1041 = vmatpush1.msra.mxu0 0.0
    %1042 = vmatprep.mubr.f32.mxu0 0.0
    %1043 = vmatmul.mubr.f32.gmra.mrb[0].mxu0 %v973
    %v1044 = vpop.f32.mrb[0].mxu0
    %v1045 = vadd.f32 0.0, %v1044
    %v1046 = vpop.f32.mrb[0].mxu0
    %1047 = vdwg.mxu0
    %v1049 = vsel %vm58, %v39, 0
    %v1052 = vsel %vm62, %v55, 0
    %1054 = vmatprep.subr.mxu0 0.0
    %1055 = vmatpush1.msra.mxu0 %v1052
    %1056 = vmatprep.subr.mxu0 0.0
    %1057 = vmatpush1.msra.mxu0 0.0
    %1058 = vmatprep.subr.mxu0 0.0
    %1059 = vmatpush1.msra.mxu0 0.0
    %1060 = vmatprep.subr.mxu0 0.0
    %1061 = vmatpush1.msra.mxu0 0.0
    %1062 = vmatprep.subr.mxu0 0.0
    %1063 = vmatpush1.msra.mxu0 0.0
    %1064 = vmatprep.subr.mxu0 0.0
    %1065 = vmatpush1.msra.mxu0 0.0
    %1066 = vmatprep.subr.mxu0 0.0
    %1067 = vmatpush1.msra.mxu0 0.0
    %1068 = vmatprep.subr.mxu0 0.0
    %1069 = vmatpush1.msra.mxu0 0.0
    %1070 = vmatprep.subr.mxu0 0.0
    %1071 = vmatpush1.msra.mxu0 0.0
    %1072 = vmatprep.subr.mxu0 0.0
    %1073 = vmatpush1.msra.mxu0 0.0
    %1074 = vmatprep.subr.mxu0 0.0
    %1075 = vmatpush1.msra.mxu0 0.0
    %1076 = vmatprep.subr.mxu0 0.0
    %1077 = vmatpush1.msra.mxu0 0.0
    %1078 = vmatprep.subr.mxu0 0.0
    %1079 = vmatpush1.msra.mxu0 0.0
    %1080 = vmatprep.subr.mxu0 0.0
    %1081 = vmatpush1.msra.mxu0 0.0
    %1082 = vmatprep.subr.mxu0 0.0
    %1083 = vmatpush1.msra.mxu0 0.0
    %1084 = vmatprep.subr.mxu0 0.0
    %1085 = vmatpush1.msra.mxu0 0.0
    %1086 = vmatprep.subr.mxu0 0.0
    %1087 = vmatpush1.msra.mxu0 0.0
    %1088 = vmatprep.subr.mxu0 0.0
    %1089 = vmatpush1.msra.mxu0 0.0
    %1090 = vmatprep.subr.mxu0 0.0
    %1091 = vmatpush1.msra.mxu0 0.0
    %1092 = vmatprep.subr.mxu0 0.0
    %1093 = vmatpush1.msra.mxu0 0.0
    %1094 = vmatprep.subr.mxu0 0.0
    %1095 = vmatpush1.msra.mxu0 0.0
    %1096 = vmatprep.subr.mxu0 0.0
    %1097 = vmatpush1.msra.mxu0 0.0
    %1098 = vmatprep.subr.mxu0 0.0
    %1099 = vmatpush1.msra.mxu0 0.0
    %1100 = vmatprep.subr.mxu0 0.0
    %1101 = vmatpush1.msra.mxu0 0.0
    %1102 = vmatprep.subr.mxu0 0.0
    %1103 = vmatpush1.msra.mxu0 0.0
    %1104 = vmatprep.subr.mxu0 0.0
    %1105 = vmatpush1.msra.mxu0 0.0
    %1106 = vmatprep.subr.mxu0 0.0
    %1107 = vmatpush1.msra.mxu0 0.0
    %1108 = vmatprep.subr.mxu0 0.0
    %1109 = vmatpush1.msra.mxu0 0.0
    %1110 = vmatprep.subr.mxu0 0.0
    %1111 = vmatpush1.msra.mxu0 0.0
    %1112 = vmatprep.subr.mxu0 0.0
    %1113 = vmatpush1.msra.mxu0 0.0
    %1114 = vmatprep.subr.mxu0 0.0
    %1115 = vmatpush1.msra.mxu0 0.0
    %1116 = vmatprep.subr.mxu0 0.0
    %1117 = vmatpush1.msra.mxu0 0.0
    %1118 = vmatprep.mubr.f32.mxu0 0.0
    %1119 = vmatmul.mubr.f32.gmra.mrb[0].mxu0 %v1049
    %v1120 = vpop.f32.mrb[0].mxu0
    %v1121 = vadd.f32 0.0, %v1120
    %v1122 = vpop.f32.mrb[0].mxu0
    %1123 = vdwg.mxu0
    %v1125 = vsel %vm58, %v40, 0
    %v1128 = vsel %vm62, %v56, 0
    %1130 = vmatprep.subr.mxu0 0.0
    %1131 = vmatpush1.msra.mxu0 %v1128
    %1132 = vmatprep.subr.mxu0 0.0
    %1133 = vmatpush1.msra.mxu0 0.0
    %1134 = vmatprep.subr.mxu0 0.0
    %1135 = vmatpush1.msra.mxu0 0.0
    %1136 = vmatprep.subr.mxu0 0.0
    %1137 = vmatpush1.msra.mxu0 0.0
    %1138 = vmatprep.subr.mxu0 0.0
    %1139 = vmatpush1.msra.mxu0 0.0
    %1140 = vmatprep.subr.mxu0 0.0
    %1141 = vmatpush1.msra.mxu0 0.0
    %1142 = vmatprep.subr.mxu0 0.0
    %1143 = vmatpush1.msra.mxu0 0.0
    %1144 = vmatprep.subr.mxu0 0.0
    %1145 = vmatpush1.msra.mxu0 0.0
    %1146 = vmatprep.subr.mxu0 0.0
    %1147 = vmatpush1.msra.mxu0 0.0
    %1148 = vmatprep.subr.mxu0 0.0
    %1149 = vmatpush1.msra.mxu0 0.0
    %1150 = vmatprep.subr.mxu0 0.0
    %1151 = vmatpush1.msra.mxu0 0.0
    %1152 = vmatprep.subr.mxu0 0.0
    %1153 = vmatpush1.msra.mxu0 0.0
    %1154 = vmatprep.subr.mxu0 0.0
    %1155 = vmatpush1.msra.mxu0 0.0
    %1156 = vmatprep.subr.mxu0 0.0
    %1157 = vmatpush1.msra.mxu0 0.0
    %1158 = vmatprep.subr.mxu0 0.0
    %1159 = vmatpush1.msra.mxu0 0.0
    %1160 = vmatprep.subr.mxu0 0.0
    %1161 = vmatpush1.msra.mxu0 0.0
    %1162 = vmatprep.subr.mxu0 0.0
    %1163 = vmatpush1.msra.mxu0 0.0
    %1164 = vmatprep.subr.mxu0 0.0
    %1165 = vmatpush1.msra.mxu0 0.0
    %1166 = vmatprep.subr.mxu0 0.0
    %1167 = vmatpush1.msra.mxu0 0.0
    %1168 = vmatprep.subr.mxu0 0.0
    %1169 = vmatpush1.msra.mxu0 0.0
    %1170 = vmatprep.subr.mxu0 0.0
    %1171 = vmatpush1.msra.mxu0 0.0
    %1172 = vmatprep.subr.mxu0 0.0
    %1173 = vmatpush1.msra.mxu0 0.0
    %1174 = vmatprep.subr.mxu0 0.0
    %1175 = vmatpush1.msra.mxu0 0.0
    %1176 = vmatprep.subr.mxu0 0.0
    %1177 = vmatpush1.msra.mxu0 0.0
    %1178 = vmatprep.subr.mxu0 0.0
    %1179 = vmatpush1.msra.mxu0 0.0
    %1180 = vmatprep.subr.mxu0 0.0
    %1181 = vmatpush1.msra.mxu0 0.0
    %1182 = vmatprep.subr.mxu0 0.0
    %1183 = vmatpush1.msra.mxu0 0.0
    %1184 = vmatprep.subr.mxu0 0.0
    %1185 = vmatpush1.msra.mxu0 0.0
    %1186 = vmatprep.subr.mxu0 0.0
    %1187 = vmatpush1.msra.mxu0 0.0
    %1188 = vmatprep.subr.mxu0 0.0
    %1189 = vmatpush1.msra.mxu0 0.0
    %1190 = vmatprep.subr.mxu0 0.0
    %1191 = vmatpush1.msra.mxu0 0.0
    %1192 = vmatprep.subr.mxu0 0.0
    %1193 = vmatpush1.msra.mxu0 0.0
    %1194 = vmatprep.mubr.f32.mxu0 0.0
    %1195 = vmatmul.mubr.f32.gmra.mrb[0].mxu0 %v1125
    %v1196 = vpop.f32.mrb[0].mxu0
    %v1197 = vadd.f32 0.0, %v1196
    %v1198 = vpop.f32.mrb[0].mxu0
    %1199 = vdwg.mxu0
    %v1201 = vsel %vm58, %v41, 0
    %v1204 = vsel %vm62, %v57, 0
    %1206 = vmatprep.subr.mxu0 0.0
    %1207 = vmatpush1.msra.mxu0 %v1204
    %1208 = vmatprep.subr.mxu0 0.0
    %1209 = vmatpush1.msra.mxu0 0.0
    %1210 = vmatprep.subr.mxu0 0.0
    %1211 = vmatpush1.msra.mxu0 0.0
    %1212 = vmatprep.subr.mxu0 0.0
    %1213 = vmatpush1.msra.mxu0 0.0
    %1214 = vmatprep.subr.mxu0 0.0
    %1215 = vmatpush1.msra.mxu0 0.0
    %1216 = vmatprep.subr.mxu0 0.0
    %1217 = vmatpush1.msra.mxu0 0.0
    %1218 = vmatprep.subr.mxu0 0.0
    %1219 = vmatpush1.msra.mxu0 0.0
    %1220 = vmatprep.subr.mxu0 0.0
    %1221 = vmatpush1.msra.mxu0 0.0
    %1222 = vmatprep.subr.mxu0 0.0
    %1223 = vmatpush1.msra.mxu0 0.0
    %1224 = vmatprep.subr.mxu0 0.0
    %1225 = vmatpush1.msra.mxu0 0.0
    %1226 = vmatprep.subr.mxu0 0.0
    %1227 = vmatpush1.msra.mxu0 0.0
    %1228 = vmatprep.subr.mxu0 0.0
    %1229 = vmatpush1.msra.mxu0 0.0
    %1230 = vmatprep.subr.mxu0 0.0
    %1231 = vmatpush1.msra.mxu0 0.0
    %1232 = vmatprep.subr.mxu0 0.0
    %1233 = vmatpush1.msra.mxu0 0.0
    %1234 = vmatprep.subr.mxu0 0.0
    %1235 = vmatpush1.msra.mxu0 0.0
    %1236 = vmatprep.subr.mxu0 0.0
    %1237 = vmatpush1.msra.mxu0 0.0
    %1238 = vmatprep.subr.mxu0 0.0
    %1239 = vmatpush1.msra.mxu0 0.0
    %1240 = vmatprep.subr.mxu0 0.0
    %1241 = vmatpush1.msra.mxu0 0.0
    %1242 = vmatprep.subr.mxu0 0.0
    %1243 = vmatpush1.msra.mxu0 0.0
    %1244 = vmatprep.subr.mxu0 0.0
    %1245 = vmatpush1.msra.mxu0 0.0
    %1246 = vmatprep.subr.mxu0 0.0
    %1247 = vmatpush1.msra.mxu0 0.0
    %1248 = vmatprep.subr.mxu0 0.0
    %1249 = vmatpush1.msra.mxu0 0.0
    %1250 = vmatprep.subr.mxu0 0.0
    %1251 = vmatpush1.msra.mxu0 0.0
    %1252 = vmatprep.subr.mxu0 0.0
    %1253 = vmatpush1.msra.mxu0 0.0
    %1254 = vmatprep.subr.mxu0 0.0
    %1255 = vmatpush1.msra.mxu0 0.0
    %1256 = vmatprep.subr.mxu0 0.0
    %1257 = vmatpush1.msra.mxu0 0.0
    %1258 = vmatprep.subr.mxu0 0.0
    %1259 = vmatpush1.msra.mxu0 0.0
    %1260 = vmatprep.subr.mxu0 0.0
    %1261 = vmatpush1.msra.mxu0 0.0
    %1262 = vmatprep.subr.mxu0 0.0
    %1263 = vmatpush1.msra.mxu0 0.0
    %1264 = vmatprep.subr.mxu0 0.0
    %1265 = vmatpush1.msra.mxu0 0.0
    %1266 = vmatprep.subr.mxu0 0.0
    %1267 = vmatpush1.msra.mxu0 0.0
    %1268 = vmatprep.subr.mxu0 0.0
    %1269 = vmatpush1.msra.mxu0 0.0
    %1270 = vmatprep.mubr.f32.mxu0 0.0
    %1271 = vmatmul.mubr.f32.gmra.mrb[0].mxu0 %v1201
    %v1272 = vpop.f32.mrb[0].mxu0
    %v1273 = vadd.f32 0.0, %v1272
    %v1274 = vpop.f32.mrb[0].mxu0
    %1275 = vdwg.mxu0
    %v1292 = vrot.slane %v209, 7
    %vm1293 = vcmask 1041409
    %v1294 = vsel %vm1293, %v1292, %v133
    %v1295 = vrot.slane %v285, 6
    %vm1296 = vcmask 1042434
    %v1297 = vsel %vm1296, %v1295, %v1294
    %v1298 = vrot.slane %v361, 5
    %vm1299 = vcmask 1043459
    %v1300 = vsel %vm1299, %v1298, %v1297
    %v1301 = vrot.slane %v437, 4
    %vm1302 = vcmask 1044484
    %v1303 = vsel %vm1302, %v1301, %v1300
    %v1304 = vrot.slane %v513, 3
    %vm1305 = vcmask 1045509
    %v1306 = vsel %vm1305, %v1304, %v1303
    %v1307 = vrot.slane %v589, 2
    %vm1308 = vcmask 1046534
    %v1309 = vsel %vm1308, %v1307, %v1306
    %v1310 = vrot.slane %v665, 1
    %vm1311 = vcmask 1047559
    %v1312 = vsel %vm1311, %v1310, %v1309
    %v1313 = vrot.slane %v817, 7
    %v1314 = vsel %vm1293, %v1313, %v741
    %v1315 = vrot.slane %v893, 6
    %v1316 = vsel %vm1296, %v1315, %v1314
    %v1317 = vrot.slane %v969, 5
    %v1318 = vsel %vm1299, %v1317, %v1316
    %v1319 = vrot.slane %v1045, 4
    %v1320 = vsel %vm1302, %v1319, %v1318
    %v1321 = vrot.slane %v1121, 3
    %v1322 = vsel %vm1305, %v1321, %v1320
    %v1323 = vrot.slane %v1197, 2
    %v1324 = vsel %vm1308, %v1323, %v1322
    %v1325 = vrot.slane %v1273, 1
    %v1326 = vsel %vm1311, %v1325, %v1324
    %1329 = vxpose.xlu0.b32.start [1/16] %v1312, 128
    %1330 = vxpose.xlu0.b32.cont [2/16] %v1326, 128
    %1331 = vxpose.xlu0.b32.cont [3/16] 0.0, 128
    %1332 = vxpose.xlu0.b32.cont [4/16] 0.0, 128
    %1333 = vxpose.xlu0.b32.cont [5/16] 0.0, 128
    %1334 = vxpose.xlu0.b32.cont [6/16] 0.0, 128
    %1335 = vxpose.xlu0.b32.cont [7/16] 0.0, 128
    %1336 = vxpose.xlu0.b32.cont [8/16] 0.0, 128
    %1337 = vxpose.xlu0.b32.cont [9/16] 0.0, 128
    %1338 = vxpose.xlu0.b32.cont [10/16] 0.0, 128
    %1339 = vxpose.xlu0.b32.cont [11/16] 0.0, 128
    %1340 = vxpose.xlu0.b32.cont [12/16] 0.0, 128
    %1341 = vxpose.xlu0.b32.cont [13/16] 0.0, 128
    %1342 = vxpose.xlu0.b32.cont [14/16] 0.0, 128
    %1343 = vxpose.xlu0.b32.cont [15/16] 0.0, 128
    %1344 = vxpose.xlu0.b32.end [16/16] 0.0, 128
    %v1345 = vpop.trf.xlu0
    %v1346 = vpop.trf.xlu0
    %v1347 = vpop.trf.xlu0
    %v1348 = vpop.trf.xlu0
    %v1349 = vpop.trf.xlu0
    %v1350 = vpop.trf.xlu0
    %v1351 = vpop.trf.xlu0
    %v1352 = vpop.trf.xlu0
    %v1353 = vpop.trf.xlu0
    %v1354 = vpop.trf.xlu0
    %v1355 = vpop.trf.xlu0
    %v1356 = vpop.trf.xlu0
    %v1357 = vpop.trf.xlu0
    %v1358 = vpop.trf.xlu0
    %v1359 = vpop.trf.xlu0
    %v1360 = vpop.trf.xlu0
    %v1361 = vrot.slane %v133, 1
    %v1362 = vsel %vm1293, %v209, %v1361
    %v1363 = vrot.slane %v285, 7
    %v1364 = vsel %vm1296, %v1363, %v1362
    %v1365 = vrot.slane %v361, 6
    %v1366 = vsel %vm1299, %v1365, %v1364
    %v1367 = vrot.slane %v437, 5
    %v1368 = vsel %vm1302, %v1367, %v1366
    %v1369 = vrot.slane %v513, 4
    %v1370 = vsel %vm1305, %v1369, %v1368
    %v1371 = vrot.slane %v589, 3
    %v1372 = vsel %vm1308, %v1371, %v1370
    %v1373 = vrot.slane %v665, 2
    %v1374 = vsel %vm1311, %v1373, %v1372
    %v1375 = vrot.slane %v741, 1
    %v1376 = vsel %vm1293, %v817, %v1375
    %v1377 = vrot.slane %v893, 7
    %v1378 = vsel %vm1296, %v1377, %v1376
    %v1379 = vrot.slane %v969, 6
    %v1380 = vsel %vm1299, %v1379, %v1378
    %v1381 = vrot.slane %v1045, 5
    %v1382 = vsel %vm1302, %v1381, %v1380
    %v1383 = vrot.slane %v1121, 4
    %v1384 = vsel %vm1305, %v1383, %v1382
    %v1385 = vrot.slane %v1197, 3
    %v1386 = vsel %vm1308, %v1385, %v1384
    %v1387 = vrot.slane %v1273, 2
    %v1388 = vsel %vm1311, %v1387, %v1386
    %1391 = vxpose.xlu0.b32.start [1/16] %v1374, 128
    %1392 = vxpose.xlu0.b32.cont [2/16] %v1388, 128
    %1393 = vxpose.xlu0.b32.cont [3/16] 0.0, 128
    %1394 = vxpose.xlu0.b32.cont [4/16] 0.0, 128
    %1395 = vxpose.xlu0.b32.cont [5/16] 0.0, 128
    %1396 = vxpose.xlu0.b32.cont [6/16] 0.0, 128
    %1397 = vxpose.xlu0.b32.cont [7/16] 0.0, 128
    %1398 = vxpose.xlu0.b32.cont [8/16] 0.0, 128
    %1399 = vxpose.xlu0.b32.cont [9/16] 0.0, 128
    %1400 = vxpose.xlu0.b32.cont [10/16] 0.0, 128
    %1401 = vxpose.xlu0.b32.cont [11/16] 0.0, 128
    %1402 = vxpose.xlu0.b32.cont [12/16] 0.0, 128
    %1403 = vxpose.xlu0.b32.cont [13/16] 0.0, 128
    %1404 = vxpose.xlu0.b32.cont [14/16] 0.0, 128
    %1405 = vxpose.xlu0.b32.cont [15/16] 0.0, 128
    %1406 = vxpose.xlu0.b32.end [16/16] 0.0, 128
    %v1407 = vpop.trf.xlu0
    %v1408 = vpop.trf.xlu0
    %v1409 = vpop.trf.xlu0
    %v1410 = vpop.trf.xlu0
    %v1411 = vpop.trf.xlu0
    %v1412 = vpop.trf.xlu0
    %v1413 = vpop.trf.xlu0
    %v1414 = vpop.trf.xlu0
    %v1415 = vpop.trf.xlu0
    %v1416 = vpop.trf.xlu0
    %v1417 = vpop.trf.xlu0
    %v1418 = vpop.trf.xlu0
    %v1419 = vpop.trf.xlu0
    %v1420 = vpop.trf.xlu0
    %v1421 = vpop.trf.xlu0
    %v1422 = vpop.trf.xlu0
    %vm1423 = vcmask 130048
    %v1425 = vsel %vm1423, 0.0625, 0
    %v1428 = vsel %vm1423, %v1345, 0
    %v1431 = vsel %vm1423, %v1346, 0
    %1433 = vmatprep.subr.mxu0 0.0
    %1434 = vmatpush1.xpose.msra.mxu0 %v1428
    %1435 = vmatprep.subr.mxu0 0.0
    %1436 = vmatpush1.xpose.msra.mxu0 %v1431
    %1437 = vmatprep.subr.mxu0 0.0
    %1438 = vmatpush1.xpose.msra.mxu0 0.0
    %1439 = vmatprep.subr.mxu0 0.0
    %1440 = vmatpush1.xpose.msra.mxu0 0.0
    %1441 = vmatprep.subr.mxu0 0.0
    %1442 = vmatpush1.xpose.msra.mxu0 0.0
    %1443 = vmatprep.subr.mxu0 0.0
    %1444 = vmatpush1.xpose.msra.mxu0 0.0
    %1445 = vmatprep.subr.mxu0 0.0
    %1446 = vmatpush1.xpose.msra.mxu0 0.0
    %1447 = vmatprep.subr.mxu0 0.0
    %1448 = vmatpush1.xpose.msra.mxu0 0.0
    %1449 = vmatprep.subr.mxu0 0.0
    %1450 = vmatpush1.xpose.msra.mxu0 0.0
    %1451 = vmatprep.subr.mxu0 0.0
    %1452 = vmatpush1.xpose.msra.mxu0 0.0
    %1453 = vmatprep.subr.mxu0 0.0
    %1454 = vmatpush1.xpose.msra.mxu0 0.0
    %1455 = vmatprep.subr.mxu0 0.0
    %1456 = vmatpush1.xpose.msra.mxu0 0.0
    %1457 = vmatprep.subr.mxu0 0.0
    %1458 = vmatpush1.xpose.msra.mxu0 0.0
    %1459 = vmatprep.subr.mxu0 0.0
    %1460 = vmatpush1.xpose.msra.mxu0 0.0
    %1461 = vmatprep.subr.mxu0 0.0
    %1462 = vmatpush1.xpose.msra.mxu0 0.0
    %1463 = vmatprep.subr.mxu0 0.0
    %1464 = vmatpush1.xpose.msra.mxu0 0.0
    %1465 = vmatprep.subr.mxu0 0.0
    %1466 = vmatpush1.xpose.msra.mxu0 0.0
    %1467 = vmatprep.subr.mxu0 0.0
    %1468 = vmatpush1.xpose.msra.mxu0 0.0
    %1469 = vmatprep.subr.mxu0 0.0
    %1470 = vmatpush1.xpose.msra.mxu0 0.0
    %1471 = vmatprep.subr.mxu0 0.0
    %1472 = vmatpush1.xpose.msra.mxu0 0.0
    %1473 = vmatprep.subr.mxu0 0.0
    %1474 = vmatpush1.xpose.msra.mxu0 0.0
    %1475 = vmatprep.subr.mxu0 0.0
    %1476 = vmatpush1.xpose.msra.mxu0 0.0
    %1477 = vmatprep.subr.mxu0 0.0
    %1478 = vmatpush1.xpose.msra.mxu0 0.0
    %1479 = vmatprep.subr.mxu0 0.0
    %1480 = vmatpush1.xpose.msra.mxu0 0.0
    %1481 = vmatprep.subr.mxu0 0.0
    %1482 = vmatpush1.xpose.msra.mxu0 0.0
    %1483 = vmatprep.subr.mxu0 0.0
    %1484 = vmatpush1.xpose.msra.mxu0 0.0
    %1485 = vmatprep.subr.mxu0 0.0
    %1486 = vmatpush1.xpose.msra.mxu0 0.0
    %1487 = vmatprep.subr.mxu0 0.0
    %1488 = vmatpush1.xpose.msra.mxu0 0.0
    %1489 = vmatprep.subr.mxu0 0.0
    %1490 = vmatpush1.xpose.msra.mxu0 0.0
    %1491 = vmatprep.subr.mxu0 0.0
    %1492 = vmatpush1.xpose.msra.mxu0 0.0
    %1493 = vmatprep.subr.mxu0 0.0
    %1494 = vmatpush1.xpose.msra.mxu0 0.0
    %1495 = vmatprep.subr.mxu0 0.0
    %1496 = vmatpush1.xpose.msra.mxu0 0.0
    %1497 = vmatprep.mubr.f32.mxu0 0.0
    %1498 = vmatmul.mubr.f32.gmra.mrb[0].mxu0 %v1425
    %v1499 = vpop.f32.mrb[0].mxu0
    %v1500 = vadd.f32 0.0, %v1499
    %v1501 = vpop.f32.mrb[0].mxu0
    %1502 = vdwg.mxu0
    %v1504 = vsel %vm1423, %v1347, 0
    %v1507 = vsel %vm1423, %v1348, 0
    %1509 = vmatprep.subr.mxu0 0.0
    %1510 = vmatpush1.xpose.msra.mxu0 %v1504
    %1511 = vmatprep.subr.mxu0 0.0
    %1512 = vmatpush1.xpose.msra.mxu0 %v1507
    %1513 = vmatprep.subr.mxu0 0.0
    %1514 = vmatpush1.xpose.msra.mxu0 0.0
    %1515 = vmatprep.subr.mxu0 0.0
    %1516 = vmatpush1.xpose.msra.mxu0 0.0
    %1517 = vmatprep.subr.mxu0 0.0
    %1518 = vmatpush1.xpose.msra.mxu0 0.0
    %1519 = vmatprep.subr.mxu0 0.0
    %1520 = vmatpush1.xpose.msra.mxu0 0.0
    %1521 = vmatprep.subr.mxu0 0.0
    %1522 = vmatpush1.xpose.msra.mxu0 0.0
    %1523 = vmatprep.subr.mxu0 0.0
    %1524 = vmatpush1.xpose.msra.mxu0 0.0
    %1525 = vmatprep.subr.mxu0 0.0
    %1526 = vmatpush1.xpose.msra.mxu0 0.0
    %1527 = vmatprep.subr.mxu0 0.0
    %1528 = vmatpush1.xpose.msra.mxu0 0.0
    %1529 = vmatprep.subr.mxu0 0.0
    %1530 = vmatpush1.xpose.msra.mxu0 0.0
    %1531 = vmatprep.subr.mxu0 0.0
    %1532 = vmatpush1.xpose.msra.mxu0 0.0
    %1533 = vmatprep.subr.mxu0 0.0
    %1534 = vmatpush1.xpose.msra.mxu0 0.0
    %1535 = vmatprep.subr.mxu0 0.0
    %1536 = vmatpush1.xpose.msra.mxu0 0.0
    %1537 = vmatprep.subr.mxu0 0.0
    %1538 = vmatpush1.xpose.msra.mxu0 0.0
    %1539 = vmatprep.subr.mxu0 0.0
    %1540 = vmatpush1.xpose.msra.mxu0 0.0
    %1541 = vmatprep.subr.mxu0 0.0
    %1542 = vmatpush1.xpose.msra.mxu0 0.0
    %1543 = vmatprep.subr.mxu0 0.0
    %1544 = vmatpush1.xpose.msra.mxu0 0.0
    %1545 = vmatprep.subr.mxu0 0.0
    %1546 = vmatpush1.xpose.msra.mxu0 0.0
    %1547 = vmatprep.subr.mxu0 0.0
    %1548 = vmatpush1.xpose.msra.mxu0 0.0
    %1549 = vmatprep.subr.mxu0 0.0
    %1550 = vmatpush1.xpose.msra.mxu0 0.0
    %1551 = vmatprep.subr.mxu0 0.0
    %1552 = vmatpush1.xpose.msra.mxu0 0.0
    %1553 = vmatprep.subr.mxu0 0.0
    %1554 = vmatpush1.xpose.msra.mxu0 0.0
    %1555 = vmatprep.subr.mxu0 0.0
    %1556 = vmatpush1.xpose.msra.mxu0 0.0
    %1557 = vmatprep.subr.mxu0 0.0
    %1558 = vmatpush1.xpose.msra.mxu0 0.0
    %1559 = vmatprep.subr.mxu0 0.0
    %1560 = vmatpush1.xpose.msra.mxu0 0.0
    %1561 = vmatprep.subr.mxu0 0.0
    %1562 = vmatpush1.xpose.msra.mxu0 0.0
    %1563 = vmatprep.subr.mxu0 0.0
    %1564 = vmatpush1.xpose.msra.mxu0 0.0
    %1565 = vmatprep.subr.mxu0 0.0
    %1566 = vmatpush1.xpose.msra.mxu0 0.0
    %1567 = vmatprep.subr.mxu0 0.0
    %1568 = vmatpush1.xpose.msra.mxu0 0.0
    %1569 = vmatprep.subr.mxu0 0.0
    %1570 = vmatpush1.xpose.msra.mxu0 0.0
    %1571 = vmatprep.subr.mxu0 0.0
    %1572 = vmatpush1.xpose.msra.mxu0 0.0
    %1573 = vmatprep.mubr.f32.mxu0 0.0
    %1574 = vmatmul.mubr.f32.gmra.mrb[0].mxu0 %v1425
    %v1575 = vpop.f32.mrb[0].mxu0
    %v1576 = vadd.f32 0.0, %v1575
    %v1577 = vpop.f32.mrb[0].mxu0
    %1578 = vdwg.mxu0
    %v1580 = vsel %vm1423, %v1349, 0
    %v1583 = vsel %vm1423, %v1350, 0
    %1585 = vmatprep.subr.mxu0 0.0
    %1586 = vmatpush1.xpose.msra.mxu0 %v1580
    %1587 = vmatprep.subr.mxu0 0.0
    %1588 = vmatpush1.xpose.msra.mxu0 %v1583
    %1589 = vmatprep.subr.mxu0 0.0
    %1590 = vmatpush1.xpose.msra.mxu0 0.0
    %1591 = vmatprep.subr.mxu0 0.0
    %1592 = vmatpush1.xpose.msra.mxu0 0.0
    %1593 = vmatprep.subr.mxu0 0.0
    %1594 = vmatpush1.xpose.msra.mxu0 0.0
    %1595 = vmatprep.subr.mxu0 0.0
    %1596 = vmatpush1.xpose.msra.mxu0 0.0
    %1597 = vmatprep.subr.mxu0 0.0
    %1598 = vmatpush1.xpose.msra.mxu0 0.0
    %1599 = vmatprep.subr.mxu0 0.0
    %1600 = vmatpush1.xpose.msra.mxu0 0.0
    %1601 = vmatprep.subr.mxu0 0.0
    %1602 = vmatpush1.xpose.msra.mxu0 0.0
    %1603 = vmatprep.subr.mxu0 0.0
    %1604 = vmatpush1.xpose.msra.mxu0 0.0
    %1605 = vmatprep.subr.mxu0 0.0
    %1606 = vmatpush1.xpose.msra.mxu0 0.0
    %1607 = vmatprep.subr.mxu0 0.0
    %1608 = vmatpush1.xpose.msra.mxu0 0.0
    %1609 = vmatprep.subr.mxu0 0.0
    %1610 = vmatpush1.xpose.msra.mxu0 0.0
    %1611 = vmatprep.subr.mxu0 0.0
    %1612 = vmatpush1.xpose.msra.mxu0 0.0
    %1613 = vmatprep.subr.mxu0 0.0
    %1614 = vmatpush1.xpose.msra.mxu0 0.0
    %1615 = vmatprep.subr.mxu0 0.0
    %1616 = vmatpush1.xpose.msra.mxu0 0.0
    %1617 = vmatprep.subr.mxu0 0.0
    %1618 = vmatpush1.xpose.msra.mxu0 0.0
    %1619 = vmatprep.subr.mxu0 0.0
    %1620 = vmatpush1.xpose.msra.mxu0 0.0
    %1621 = vmatprep.subr.mxu0 0.0
    %1622 = vmatpush1.xpose.msra.mxu0 0.0
    %1623 = vmatprep.subr.mxu0 0.0
    %1624 = vmatpush1.xpose.msra.mxu0 0.0
    %1625 = vmatprep.subr.mxu0 0.0
    %1626 = vmatpush1.xpose.msra.mxu0 0.0
    %1627 = vmatprep.subr.mxu0 0.0
    %1628 = vmatpush1.xpose.msra.mxu0 0.0
    %1629 = vmatprep.subr.mxu0 0.0
    %1630 = vmatpush1.xpose.msra.mxu0 0.0
    %1631 = vmatprep.subr.mxu0 0.0
    %1632 = vmatpush1.xpose.msra.mxu0 0.0
    %1633 = vmatprep.subr.mxu0 0.0
    %1634 = vmatpush1.xpose.msra.mxu0 0.0
    %1635 = vmatprep.subr.mxu0 0.0
    %1636 = vmatpush1.xpose.msra.mxu0 0.0
    %1637 = vmatprep.subr.mxu0 0.0
    %1638 = vmatpush1.xpose.msra.mxu0 0.0
    %1639 = vmatprep.subr.mxu0 0.0
    %1640 = vmatpush1.xpose.msra.mxu0 0.0
    %1641 = vmatprep.subr.mxu0 0.0
    %1642 = vmatpush1.xpose.msra.mxu0 0.0
    %1643 = vmatprep.subr.mxu0 0.0
    %1644 = vmatpush1.xpose.msra.mxu0 0.0
    %1645 = vmatprep.subr.mxu0 0.0
    %1646 = vmatpush1.xpose.msra.mxu0 0.0
    %1647 = vmatprep.subr.mxu0 0.0
    %1648 = vmatpush1.xpose.msra.mxu0 0.0
    %1649 = vmatprep.mubr.f32.mxu0 0.0
    %1650 = vmatmul.mubr.f32.gmra.mrb[0].mxu0 %v1425
    %v1651 = vpop.f32.mrb[0].mxu0
    %v1652 = vadd.f32 0.0, %v1651
    %v1653 = vpop.f32.mrb[0].mxu0
    %1654 = vdwg.mxu0
    %v1656 = vsel %vm1423, %v1351, 0
    %v1659 = vsel %vm1423, %v1352, 0
    %1661 = vmatprep.subr.mxu0 0.0
    %1662 = vmatpush1.xpose.msra.mxu0 %v1656
    %1663 = vmatprep.subr.mxu0 0.0
    %1664 = vmatpush1.xpose.msra.mxu0 %v1659
    %1665 = vmatprep.subr.mxu0 0.0
    %1666 = vmatpush1.xpose.msra.mxu0 0.0
    %1667 = vmatprep.subr.mxu0 0.0
    %1668 = vmatpush1.xpose.msra.mxu0 0.0
    %1669 = vmatprep.subr.mxu0 0.0
    %1670 = vmatpush1.xpose.msra.mxu0 0.0
    %1671 = vmatprep.subr.mxu0 0.0
    %1672 = vmatpush1.xpose.msra.mxu0 0.0
    %1673 = vmatprep.subr.mxu0 0.0
    %1674 = vmatpush1.xpose.msra.mxu0 0.0
    %1675 = vmatprep.subr.mxu0 0.0
    %1676 = vmatpush1.xpose.msra.mxu0 0.0
    %1677 = vmatprep.subr.mxu0 0.0
    %1678 = vmatpush1.xpose.msra.mxu0 0.0
    %1679 = vmatprep.subr.mxu0 0.0
    %1680 = vmatpush1.xpose.msra.mxu0 0.0
    %1681 = vmatprep.subr.mxu0 0.0
    %1682 = vmatpush1.xpose.msra.mxu0 0.0
    %1683 = vmatprep.subr.mxu0 0.0
    %1684 = vmatpush1.xpose.msra.mxu0 0.0
    %1685 = vmatprep.subr.mxu0 0.0
    %1686 = vmatpush1.xpose.msra.mxu0 0.0
    %1687 = vmatprep.subr.mxu0 0.0
    %1688 = vmatpush1.xpose.msra.mxu0 0.0
    %1689 = vmatprep.subr.mxu0 0.0
    %1690 = vmatpush1.xpose.msra.mxu0 0.0
    %1691 = vmatprep.subr.mxu0 0.0
    %1692 = vmatpush1.xpose.msra.mxu0 0.0
    %1693 = vmatprep.subr.mxu0 0.0
    %1694 = vmatpush1.xpose.msra.mxu0 0.0
    %1695 = vmatprep.subr.mxu0 0.0
    %1696 = vmatpush1.xpose.msra.mxu0 0.0
    %1697 = vmatprep.subr.mxu0 0.0
    %1698 = vmatpush1.xpose.msra.mxu0 0.0
    %1699 = vmatprep.subr.mxu0 0.0
    %1700 = vmatpush1.xpose.msra.mxu0 0.0
    %1701 = vmatprep.subr.mxu0 0.0
    %1702 = vmatpush1.xpose.msra.mxu0 0.0
    %1703 = vmatprep.subr.mxu0 0.0
    %1704 = vmatpush1.xpose.msra.mxu0 0.0
    %1705 = vmatprep.subr.mxu0 0.0
    %1706 = vmatpush1.xpose.msra.mxu0 0.0
    %1707 = vmatprep.subr.mxu0 0.0
    %1708 = vmatpush1.xpose.msra.mxu0 0.0
    %1709 = vmatprep.subr.mxu0 0.0
    %1710 = vmatpush1.xpose.msra.mxu0 0.0
    %1711 = vmatprep.subr.mxu0 0.0
    %1712 = vmatpush1.xpose.msra.mxu0 0.0
    %1713 = vmatprep.subr.mxu0 0.0
    %1714 = vmatpush1.xpose.msra.mxu0 0.0
    %1715 = vmatprep.subr.mxu0 0.0
    %1716 = vmatpush1.xpose.msra.mxu0 0.0
    %1717 = vmatprep.subr.mxu0 0.0
    %1718 = vmatpush1.xpose.msra.mxu0 0.0
    %1719 = vmatprep.subr.mxu0 0.0
    %1720 = vmatpush1.xpose.msra.mxu0 0.0
    %1721 = vmatprep.subr.mxu0 0.0
    %1722 = vmatpush1.xpose.msra.mxu0 0.0
    %1723 = vmatprep.subr.mxu0 0.0
    %1724 = vmatpush1.xpose.msra.mxu0 0.0
    %1725 = vmatprep.mubr.f32.mxu0 0.0
    %1726 = vmatmul.mubr.f32.gmra.mrb[0].mxu0 %v1425
    %v1727 = vpop.f32.mrb[0].mxu0
    %v1728 = vadd.f32 0.0, %v1727
    %v1729 = vpop.f32.mrb[0].mxu0
    %1730 = vdwg.mxu0
    %v1732 = vsel %vm1423, %v1353, 0
    %v1735 = vsel %vm1423, %v1354, 0
    %1737 = vmatprep.subr.mxu0 0.0
    %1738 = vmatpush1.xpose.msra.mxu0 %v1732
    %1739 = vmatprep.subr.mxu0 0.0
    %1740 = vmatpush1.xpose.msra.mxu0 %v1735
    %1741 = vmatprep.subr.mxu0 0.0
    %1742 = vmatpush1.xpose.msra.mxu0 0.0
    %1743 = vmatprep.subr.mxu0 0.0
    %1744 = vmatpush1.xpose.msra.mxu0 0.0
    %1745 = vmatprep.subr.mxu0 0.0
    %1746 = vmatpush1.xpose.msra.mxu0 0.0
    %1747 = vmatprep.subr.mxu0 0.0
    %1748 = vmatpush1.xpose.msra.mxu0 0.0
    %1749 = vmatprep.subr.mxu0 0.0
    %1750 = vmatpush1.xpose.msra.mxu0 0.0
    %1751 = vmatprep.subr.mxu0 0.0
    %1752 = vmatpush1.xpose.msra.mxu0 0.0
    %1753 = vmatprep.subr.mxu0 0.0
    %1754 = vmatpush1.xpose.msra.mxu0 0.0
    %1755 = vmatprep.subr.mxu0 0.0
    %1756 = vmatpush1.xpose.msra.mxu0 0.0
    %1757 = vmatprep.subr.mxu0 0.0
    %1758 = vmatpush1.xpose.msra.mxu0 0.0
    %1759 = vmatprep.subr.mxu0 0.0
    %1760 = vmatpush1.xpose.msra.mxu0 0.0
    %1761 = vmatprep.subr.mxu0 0.0
    %1762 = vmatpush1.xpose.msra.mxu0 0.0
    %1763 = vmatprep.subr.mxu0 0.0
    %1764 = vmatpush1.xpose.msra.mxu0 0.0
    %1765 = vmatprep.subr.mxu0 0.0
    %1766 = vmatpush1.xpose.msra.mxu0 0.0
    %1767 = vmatprep.subr.mxu0 0.0
    %1768 = vmatpush1.xpose.msra.mxu0 0.0
    %1769 = vmatprep.subr.mxu0 0.0
    %1770 = vmatpush1.xpose.msra.mxu0 0.0
    %1771 = vmatprep.subr.mxu0 0.0
    %1772 = vmatpush1.xpose.msra.mxu0 0.0
    %1773 = vmatprep.subr.mxu0 0.0
    %1774 = vmatpush1.xpose.msra.mxu0 0.0
    %1775 = vmatprep.subr.mxu0 0.0
    %1776 = vmatpush1.xpose.msra.mxu0 0.0
    %1777 = vmatprep.subr.mxu0 0.0
    %1778 = vmatpush1.xpose.msra.mxu0 0.0
    %1779 = vmatprep.subr.mxu0 0.0
    %1780 = vmatpush1.xpose.msra.mxu0 0.0
    %1781 = vmatprep.subr.mxu0 0.0
    %1782 = vmatpush1.xpose.msra.mxu0 0.0
    %1783 = vmatprep.subr.mxu0 0.0
    %1784 = vmatpush1.xpose.msra.mxu0 0.0
    %1785 = vmatprep.subr.mxu0 0.0
    %1786 = vmatpush1.xpose.msra.mxu0 0.0
    %1787 = vmatprep.subr.mxu0 0.0
    %1788 = vmatpush1.xpose.msra.mxu0 0.0
    %1789 = vmatprep.subr.mxu0 0.0
    %1790 = vmatpush1.xpose.msra.mxu0 0.0
    %1791 = vmatprep.subr.mxu0 0.0
    %1792 = vmatpush1.xpose.msra.mxu0 0.0
    %1793 = vmatprep.subr.mxu0 0.0
    %1794 = vmatpush1.xpose.msra.mxu0 0.0
    %1795 = vmatprep.subr.mxu0 0.0
    %1796 = vmatpush1.xpose.msra.mxu0 0.0
    %1797 = vmatprep.subr.mxu0 0.0
    %1798 = vmatpush1.xpose.msra.mxu0 0.0
    %1799 = vmatprep.subr.mxu0 0.0
    %1800 = vmatpush1.xpose.msra.mxu0 0.0
    %1801 = vmatprep.mubr.f32.mxu0 0.0
    %1802 = vmatmul.mubr.f32.gmra.mrb[0].mxu0 %v1425
    %v1803 = vpop.f32.mrb[0].mxu0
    %v1804 = vadd.f32 0.0, %v1803
    %v1805 = vpop.f32.mrb[0].mxu0
    %1806 = vdwg.mxu0
    %v1808 = vsel %vm1423, %v1355, 0
    %v1811 = vsel %vm1423, %v1356, 0
    %1813 = vmatprep.subr.mxu0 0.0
    %1814 = vmatpush1.xpose.msra.mxu0 %v1808
    %1815 = vmatprep.subr.mxu0 0.0
    %1816 = vmatpush1.xpose.msra.mxu0 %v1811
    %1817 = vmatprep.subr.mxu0 0.0
    %1818 = vmatpush1.xpose.msra.mxu0 0.0
    %1819 = vmatprep.subr.mxu0 0.0
    %1820 = vmatpush1.xpose.msra.mxu0 0.0
    %1821 = vmatprep.subr.mxu0 0.0
    %1822 = vmatpush1.xpose.msra.mxu0 0.0
    %1823 = vmatprep.subr.mxu0 0.0
    %1824 = vmatpush1.xpose.msra.mxu0 0.0
    %1825 = vmatprep.subr.mxu0 0.0
    %1826 = vmatpush1.xpose.msra.mxu0 0.0
    %1827 = vmatprep.subr.mxu0 0.0
    %1828 = vmatpush1.xpose.msra.mxu0 0.0
    %1829 = vmatprep.subr.mxu0 0.0
    %1830 = vmatpush1.xpose.msra.mxu0 0.0
    %1831 = vmatprep.subr.mxu0 0.0
    %1832 = vmatpush1.xpose.msra.mxu0 0.0
    %1833 = vmatprep.subr.mxu0 0.0
    %1834 = vmatpush1.xpose.msra.mxu0 0.0
    %1835 = vmatprep.subr.mxu0 0.0
    %1836 = vmatpush1.xpose.msra.mxu0 0.0
    %1837 = vmatprep.subr.mxu0 0.0
    %1838 = vmatpush1.xpose.msra.mxu0 0.0
    %1839 = vmatprep.subr.mxu0 0.0
    %1840 = vmatpush1.xpose.msra.mxu0 0.0
    %1841 = vmatprep.subr.mxu0 0.0
    %1842 = vmatpush1.xpose.msra.mxu0 0.0
    %1843 = vmatprep.subr.mxu0 0.0
    %1844 = vmatpush1.xpose.msra.mxu0 0.0
    %1845 = vmatprep.subr.mxu0 0.0
    %1846 = vmatpush1.xpose.msra.mxu0 0.0
    %1847 = vmatprep.subr.mxu0 0.0
    %1848 = vmatpush1.xpose.msra.mxu0 0.0
    %1849 = vmatprep.subr.mxu0 0.0
    %1850 = vmatpush1.xpose.msra.mxu0 0.0
    %1851 = vmatprep.subr.mxu0 0.0
    %1852 = vmatpush1.xpose.msra.mxu0 0.0
    %1853 = vmatprep.subr.mxu0 0.0
    %1854 = vmatpush1.xpose.msra.mxu0 0.0
    %1855 = vmatprep.subr.mxu0 0.0
    %1856 = vmatpush1.xpose.msra.mxu0 0.0
    %1857 = vmatprep.subr.mxu0 0.0
    %1858 = vmatpush1.xpose.msra.mxu0 0.0
    %1859 = vmatprep.subr.mxu0 0.0
    %1860 = vmatpush1.xpose.msra.mxu0 0.0
    %1861 = vmatprep.subr.mxu0 0.0
    %1862 = vmatpush1.xpose.msra.mxu0 0.0
    %1863 = vmatprep.subr.mxu0 0.0
    %1864 = vmatpush1.xpose.msra.mxu0 0.0
    %1865 = vmatprep.subr.mxu0 0.0
    %1866 = vmatpush1.xpose.msra.mxu0 0.0
    %1867 = vmatprep.subr.mxu0 0.0
    %1868 = vmatpush1.xpose.msra.mxu0 0.0
    %1869 = vmatprep.subr.mxu0 0.0
    %1870 = vmatpush1.xpose.msra.mxu0 0.0
    %1871 = vmatprep.subr.mxu0 0.0
    %1872 = vmatpush1.xpose.msra.mxu0 0.0
    %1873 = vmatprep.subr.mxu0 0.0
    %1874 = vmatpush1.xpose.msra.mxu0 0.0
    %1875 = vmatprep.subr.mxu0 0.0
    %1876 = vmatpush1.xpose.msra.mxu0 0.0
    %1877 = vmatprep.mubr.f32.mxu0 0.0
    %1878 = vmatmul.mubr.f32.gmra.mrb[0].mxu0 %v1425
    %v1879 = vpop.f32.mrb[0].mxu0
    %v1880 = vadd.f32 0.0, %v1879
    %v1881 = vpop.f32.mrb[0].mxu0
    %1882 = vdwg.mxu0
    %v1884 = vsel %vm1423, %v1357, 0
    %v1887 = vsel %vm1423, %v1358, 0
    %1889 = vmatprep.subr.mxu0 0.0
    %1890 = vmatpush1.xpose.msra.mxu0 %v1884
    %1891 = vmatprep.subr.mxu0 0.0
    %1892 = vmatpush1.xpose.msra.mxu0 %v1887
    %1893 = vmatprep.subr.mxu0 0.0
    %1894 = vmatpush1.xpose.msra.mxu0 0.0
    %1895 = vmatprep.subr.mxu0 0.0
    %1896 = vmatpush1.xpose.msra.mxu0 0.0
    %1897 = vmatprep.subr.mxu0 0.0
    %1898 = vmatpush1.xpose.msra.mxu0 0.0
    %1899 = vmatprep.subr.mxu0 0.0
    %1900 = vmatpush1.xpose.msra.mxu0 0.0
    %1901 = vmatprep.subr.mxu0 0.0
    %1902 = vmatpush1.xpose.msra.mxu0 0.0
    %1903 = vmatprep.subr.mxu0 0.0
    %1904 = vmatpush1.xpose.msra.mxu0 0.0
    %1905 = vmatprep.subr.mxu0 0.0
    %1906 = vmatpush1.xpose.msra.mxu0 0.0
    %1907 = vmatprep.subr.mxu0 0.0
    %1908 = vmatpush1.xpose.msra.mxu0 0.0
    %1909 = vmatprep.subr.mxu0 0.0
    %1910 = vmatpush1.xpose.msra.mxu0 0.0
    %1911 = vmatprep.subr.mxu0 0.0
    %1912 = vmatpush1.xpose.msra.mxu0 0.0
    %1913 = vmatprep.subr.mxu0 0.0
    %1914 = vmatpush1.xpose.msra.mxu0 0.0
    %1915 = vmatprep.subr.mxu0 0.0
    %1916 = vmatpush1.xpose.msra.mxu0 0.0
    %1917 = vmatprep.subr.mxu0 0.0
    %1918 = vmatpush1.xpose.msra.mxu0 0.0
    %1919 = vmatprep.subr.mxu0 0.0
    %1920 = vmatpush1.xpose.msra.mxu0 0.0
    %1921 = vmatprep.subr.mxu0 0.0
    %1922 = vmatpush1.xpose.msra.mxu0 0.0
    %1923 = vmatprep.subr.mxu0 0.0
    %1924 = vmatpush1.xpose.msra.mxu0 0.0
    %1925 = vmatprep.subr.mxu0 0.0
    %1926 = vmatpush1.xpose.msra.mxu0 0.0
    %1927 = vmatprep.subr.mxu0 0.0
    %1928 = vmatpush1.xpose.msra.mxu0 0.0
    %1929 = vmatprep.subr.mxu0 0.0
    %1930 = vmatpush1.xpose.msra.mxu0 0.0
    %1931 = vmatprep.subr.mxu0 0.0
    %1932 = vmatpush1.xpose.msra.mxu0 0.0
    %1933 = vmatprep.subr.mxu0 0.0
    %1934 = vmatpush1.xpose.msra.mxu0 0.0
    %1935 = vmatprep.subr.mxu0 0.0
    %1936 = vmatpush1.xpose.msra.mxu0 0.0
    %1937 = vmatprep.subr.mxu0 0.0
    %1938 = vmatpush1.xpose.msra.mxu0 0.0
    %1939 = vmatprep.subr.mxu0 0.0
    %1940 = vmatpush1.xpose.msra.mxu0 0.0
    %1941 = vmatprep.subr.mxu0 0.0
    %1942 = vmatpush1.xpose.msra.mxu0 0.0
    %1943 = vmatprep.subr.mxu0 0.0
    %1944 = vmatpush1.xpose.msra.mxu0 0.0
    %1945 = vmatprep.subr.mxu0 0.0
    %1946 = vmatpush1.xpose.msra.mxu0 0.0
    %1947 = vmatprep.subr.mxu0 0.0
    %1948 = vmatpush1.xpose.msra.mxu0 0.0
    %1949 = vmatprep.subr.mxu0 0.0
    %1950 = vmatpush1.xpose.msra.mxu0 0.0
    %1951 = vmatprep.subr.mxu0 0.0
    %1952 = vmatpush1.xpose.msra.mxu0 0.0
    %1953 = vmatprep.mubr.f32.mxu0 0.0
    %1954 = vmatmul.mubr.f32.gmra.mrb[0].mxu0 %v1425
    %v1955 = vpop.f32.mrb[0].mxu0
    %v1956 = vadd.f32 0.0, %v1955
    %v1957 = vpop.f32.mrb[0].mxu0
    %1958 = vdwg.mxu0
    %v1960 = vsel %vm1423, %v1359, 0
    %v1963 = vsel %vm1423, %v1360, 0
    %1965 = vmatprep.subr.mxu0 0.0
    %1966 = vmatpush1.xpose.msra.mxu0 %v1960
    %1967 = vmatprep.subr.mxu0 0.0
    %1968 = vmatpush1.xpose.msra.mxu0 %v1963
    %1969 = vmatprep.subr.mxu0 0.0
    %1970 = vmatpush1.xpose.msra.mxu0 0.0
    %1971 = vmatprep.subr.mxu0 0.0
    %1972 = vmatpush1.xpose.msra.mxu0 0.0
    %1973 = vmatprep.subr.mxu0 0.0
    %1974 = vmatpush1.xpose.msra.mxu0 0.0
    %1975 = vmatprep.subr.mxu0 0.0
    %1976 = vmatpush1.xpose.msra.mxu0 0.0
    %1977 = vmatprep.subr.mxu0 0.0
    %1978 = vmatpush1.xpose.msra.mxu0 0.0
    %1979 = vmatprep.subr.mxu0 0.0
    %1980 = vmatpush1.xpose.msra.mxu0 0.0
    %1981 = vmatprep.subr.mxu0 0.0
    %1982 = vmatpush1.xpose.msra.mxu0 0.0
    %1983 = vmatprep.subr.mxu0 0.0
    %1984 = vmatpush1.xpose.msra.mxu0 0.0
    %1985 = vmatprep.subr.mxu0 0.0
    %1986 = vmatpush1.xpose.msra.mxu0 0.0
    %1987 = vmatprep.subr.mxu0 0.0
    %1988 = vmatpush1.xpose.msra.mxu0 0.0
    %1989 = vmatprep.subr.mxu0 0.0
    %1990 = vmatpush1.xpose.msra.mxu0 0.0
    %1991 = vmatprep.subr.mxu0 0.0
    %1992 = vmatpush1.xpose.msra.mxu0 0.0
    %1993 = vmatprep.subr.mxu0 0.0
    %1994 = vmatpush1.xpose.msra.mxu0 0.0
    %1995 = vmatprep.subr.mxu0 0.0
    %1996 = vmatpush1.xpose.msra.mxu0 0.0
    %1997 = vmatprep.subr.mxu0 0.0
    %1998 = vmatpush1.xpose.msra.mxu0 0.0
    %1999 = vmatprep.subr.mxu0 0.0
    %2000 = vmatpush1.xpose.msra.mxu0 0.0
    %2001 = vmatprep.subr.mxu0 0.0
    %2002 = vmatpush1.xpose.msra.mxu0 0.0
    %2003 = vmatprep.subr.mxu0 0.0
    %2004 = vmatpush1.xpose.msra.mxu0 0.0
    %2005 = vmatprep.subr.mxu0 0.0
    %2006 = vmatpush1.xpose.msra.mxu0 0.0
    %2007 = vmatprep.subr.mxu0 0.0
    %2008 = vmatpush1.xpose.msra.mxu0 0.0
    %2009 = vmatprep.subr.mxu0 0.0
    %2010 = vmatpush1.xpose.msra.mxu0 0.0
    %2011 = vmatprep.subr.mxu0 0.0
    %2012 = vmatpush1.xpose.msra.mxu0 0.0
    %2013 = vmatprep.subr.mxu0 0.0
    %2014 = vmatpush1.xpose.msra.mxu0 0.0
    %2015 = vmatprep.subr.mxu0 0.0
    %2016 = vmatpush1.xpose.msra.mxu0 0.0
    %2017 = vmatprep.subr.mxu0 0.0
    %2018 = vmatpush1.xpose.msra.mxu0 0.0
    %2019 = vmatprep.subr.mxu0 0.0
    %2020 = vmatpush1.xpose.msra.mxu0 0.0
    %2021 = vmatprep.subr.mxu0 0.0
    %2022 = vmatpush1.xpose.msra.mxu0 0.0
    %2023 = vmatprep.subr.mxu0 0.0
    %2024 = vmatpush1.xpose.msra.mxu0 0.0
    %2025 = vmatprep.subr.mxu0 0.0
    %2026 = vmatpush1.xpose.msra.mxu0 0.0
    %2027 = vmatprep.subr.mxu0 0.0
    %2028 = vmatpush1.xpose.msra.mxu0 0.0
    %2029 = vmatprep.mubr.f32.mxu0 0.0
    %2030 = vmatmul.mubr.f32.gmra.mrb[0].mxu0 %v1425
    %v2031 = vpop.f32.mrb[0].mxu0
    %v2032 = vadd.f32 0.0, %v2031
    %v2033 = vpop.f32.mrb[0].mxu0
    %2034 = vdwg.mxu0
    %v2036 = vsel %vm1423, %v1407, 0
    %v2039 = vsel %vm1423, %v1408, 0
    %2041 = vmatprep.subr.mxu0 0.0
    %2042 = vmatpush1.xpose.msra.mxu0 %v2036
    %2043 = vmatprep.subr.mxu0 0.0
    %2044 = vmatpush1.xpose.msra.mxu0 %v2039
    %2045 = vmatprep.subr.mxu0 0.0
    %2046 = vmatpush1.xpose.msra.mxu0 0.0
    %2047 = vmatprep.subr.mxu0 0.0
    %2048 = vmatpush1.xpose.msra.mxu0 0.0
    %2049 = vmatprep.subr.mxu0 0.0
    %2050 = vmatpush1.xpose.msra.mxu0 0.0
    %2051 = vmatprep.subr.mxu0 0.0
    %2052 = vmatpush1.xpose.msra.mxu0 0.0
    %2053 = vmatprep.subr.mxu0 0.0
    %2054 = vmatpush1.xpose.msra.mxu0 0.0
    %2055 = vmatprep.subr.mxu0 0.0
    %2056 = vmatpush1.xpose.msra.mxu0 0.0
    %2057 = vmatprep.subr.mxu0 0.0
    %2058 = vmatpush1.xpose.msra.mxu0 0.0
    %2059 = vmatprep.subr.mxu0 0.0
    %2060 = vmatpush1.xpose.msra.mxu0 0.0
    %2061 = vmatprep.subr.mxu0 0.0
    %2062 = vmatpush1.xpose.msra.mxu0 0.0
    %2063 = vmatprep.subr.mxu0 0.0
    %2064 = vmatpush1.xpose.msra.mxu0 0.0
    %2065 = vmatprep.subr.mxu0 0.0
    %2066 = vmatpush1.xpose.msra.mxu0 0.0
    %2067 = vmatprep.subr.mxu0 0.0
    %2068 = vmatpush1.xpose.msra.mxu0 0.0
    %2069 = vmatprep.subr.mxu0 0.0
    %2070 = vmatpush1.xpose.msra.mxu0 0.0
    %2071 = vmatprep.subr.mxu0 0.0
    %2072 = vmatpush1.xpose.msra.mxu0 0.0
    %2073 = vmatprep.subr.mxu0 0.0
    %2074 = vmatpush1.xpose.msra.mxu0 0.0
    %2075 = vmatprep.subr.mxu0 0.0
    %2076 = vmatpush1.xpose.msra.mxu0 0.0
    %2077 = vmatprep.subr.mxu0 0.0
    %2078 = vmatpush1.xpose.msra.mxu0 0.0
    %2079 = vmatprep.subr.mxu0 0.0
    %2080 = vmatpush1.xpose.msra.mxu0 0.0
    %2081 = vmatprep.subr.mxu0 0.0
    %2082 = vmatpush1.xpose.msra.mxu0 0.0
    %2083 = vmatprep.subr.mxu0 0.0
    %2084 = vmatpush1.xpose.msra.mxu0 0.0
    %2085 = vmatprep.subr.mxu0 0.0
    %2086 = vmatpush1.xpose.msra.mxu0 0.0
    %2087 = vmatprep.subr.mxu0 0.0
    %2088 = vmatpush1.xpose.msra.mxu0 0.0
    %2089 = vmatprep.subr.mxu0 0.0
    %2090 = vmatpush1.xpose.msra.mxu0 0.0
    %2091 = vmatprep.subr.mxu0 0.0
    %2092 = vmatpush1.xpose.msra.mxu0 0.0
    %2093 = vmatprep.subr.mxu0 0.0
    %2094 = vmatpush1.xpose.msra.mxu0 0.0
    %2095 = vmatprep.subr.mxu0 0.0
    %2096 = vmatpush1.xpose.msra.mxu0 0.0
    %2097 = vmatprep.subr.mxu0 0.0
    %2098 = vmatpush1.xpose.msra.mxu0 0.0
    %2099 = vmatprep.subr.mxu0 0.0
    %2100 = vmatpush1.xpose.msra.mxu0 0.0
    %2101 = vmatprep.subr.mxu0 0.0
    %2102 = vmatpush1.xpose.msra.mxu0 0.0
    %2103 = vmatprep.subr.mxu0 0.0
    %2104 = vmatpush1.xpose.msra.mxu0 0.0
    %2105 = vmatprep.mubr.f32.mxu0 0.0
    %2106 = vmatmul.mubr.f32.gmra.mrb[0].mxu0 %v1425
    %v2107 = vpop.f32.mrb[0].mxu0
    %v2108 = vadd.f32 0.0, %v2107
    %v2109 = vpop.f32.mrb[0].mxu0
    %2110 = vdwg.mxu0
    %v2112 = vsel %vm1423, %v1409, 0
    %v2115 = vsel %vm1423, %v1410, 0
    %2117 = vmatprep.subr.mxu0 0.0
    %2118 = vmatpush1.xpose.msra.mxu0 %v2112
    %2119 = vmatprep.subr.mxu0 0.0
    %2120 = vmatpush1.xpose.msra.mxu0 %v2115
    %2121 = vmatprep.subr.mxu0 0.0
    %2122 = vmatpush1.xpose.msra.mxu0 0.0
    %2123 = vmatprep.subr.mxu0 0.0
    %2124 = vmatpush1.xpose.msra.mxu0 0.0
    %2125 = vmatprep.subr.mxu0 0.0
    %2126 = vmatpush1.xpose.msra.mxu0 0.0
    %2127 = vmatprep.subr.mxu0 0.0
    %2128 = vmatpush1.xpose.msra.mxu0 0.0
    %2129 = vmatprep.subr.mxu0 0.0
    %2130 = vmatpush1.xpose.msra.mxu0 0.0
    %2131 = vmatprep.subr.mxu0 0.0
    %2132 = vmatpush1.xpose.msra.mxu0 0.0
    %2133 = vmatprep.subr.mxu0 0.0
    %2134 = vmatpush1.xpose.msra.mxu0 0.0
    %2135 = vmatprep.subr.mxu0 0.0
    %2136 = vmatpush1.xpose.msra.mxu0 0.0
    %2137 = vmatprep.subr.mxu0 0.0
    %2138 = vmatpush1.xpose.msra.mxu0 0.0
    %2139 = vmatprep.subr.mxu0 0.0
    %2140 = vmatpush1.xpose.msra.mxu0 0.0
    %2141 = vmatprep.subr.mxu0 0.0
    %2142 = vmatpush1.xpose.msra.mxu0 0.0
    %2143 = vmatprep.subr.mxu0 0.0
    %2144 = vmatpush1.xpose.msra.mxu0 0.0
    %2145 = vmatprep.subr.mxu0 0.0
    %2146 = vmatpush1.xpose.msra.mxu0 0.0
    %2147 = vmatprep.subr.mxu0 0.0
    %2148 = vmatpush1.xpose.msra.mxu0 0.0
    %2149 = vmatprep.subr.mxu0 0.0
    %2150 = vmatpush1.xpose.msra.mxu0 0.0
    %2151 = vmatprep.subr.mxu0 0.0
    %2152 = vmatpush1.xpose.msra.mxu0 0.0
    %2153 = vmatprep.subr.mxu0 0.0
    %2154 = vmatpush1.xpose.msra.mxu0 0.0
    %2155 = vmatprep.subr.mxu0 0.0
    %2156 = vmatpush1.xpose.msra.mxu0 0.0
    %2157 = vmatprep.subr.mxu0 0.0
    %2158 = vmatpush1.xpose.msra.mxu0 0.0
    %2159 = vmatprep.subr.mxu0 0.0
    %2160 = vmatpush1.xpose.msra.mxu0 0.0
    %2161 = vmatprep.subr.mxu0 0.0
    %2162 = vmatpush1.xpose.msra.mxu0 0.0
    %2163 = vmatprep.subr.mxu0 0.0
    %2164 = vmatpush1.xpose.msra.mxu0 0.0
    %2165 = vmatprep.subr.mxu0 0.0
    %2166 = vmatpush1.xpose.msra.mxu0 0.0
    %2167 = vmatprep.subr.mxu0 0.0
    %2168 = vmatpush1.xpose.msra.mxu0 0.0
    %2169 = vmatprep.subr.mxu0 0.0
    %2170 = vmatpush1.xpose.msra.mxu0 0.0
    %2171 = vmatprep.subr.mxu0 0.0
    %2172 = vmatpush1.xpose.msra.mxu0 0.0
    %2173 = vmatprep.subr.mxu0 0.0
    %2174 = vmatpush1.xpose.msra.mxu0 0.0
    %2175 = vmatprep.subr.mxu0 0.0
    %2176 = vmatpush1.xpose.msra.mxu0 0.0
    %2177 = vmatprep.subr.mxu0 0.0
    %2178 = vmatpush1.xpose.msra.mxu0 0.0
    %2179 = vmatprep.subr.mxu0 0.0
    %2180 = vmatpush1.xpose.msra.mxu0 0.0
    %2181 = vmatprep.mubr.f32.mxu0 0.0
    %2182 = vmatmul.mubr.f32.gmra.mrb[0].mxu0 %v1425
    %v2183 = vpop.f32.mrb[0].mxu0
    %v2184 = vadd.f32 0.0, %v2183
    %v2185 = vpop.f32.mrb[0].mxu0
    %2186 = vdwg.mxu0
    %v2188 = vsel %vm1423, %v1411, 0
    %v2191 = vsel %vm1423, %v1412, 0
    %2193 = vmatprep.subr.mxu0 0.0
    %2194 = vmatpush1.xpose.msra.mxu0 %v2188
    %2195 = vmatprep.subr.mxu0 0.0
    %2196 = vmatpush1.xpose.msra.mxu0 %v2191
    %2197 = vmatprep.subr.mxu0 0.0
    %2198 = vmatpush1.xpose.msra.mxu0 0.0
    %2199 = vmatprep.subr.mxu0 0.0
    %2200 = vmatpush1.xpose.msra.mxu0 0.0
    %2201 = vmatprep.subr.mxu0 0.0
    %2202 = vmatpush1.xpose.msra.mxu0 0.0
    %2203 = vmatprep.subr.mxu0 0.0
    %2204 = vmatpush1.xpose.msra.mxu0 0.0
    %2205 = vmatprep.subr.mxu0 0.0
    %2206 = vmatpush1.xpose.msra.mxu0 0.0
    %2207 = vmatprep.subr.mxu0 0.0
    %2208 = vmatpush1.xpose.msra.mxu0 0.0
    %2209 = vmatprep.subr.mxu0 0.0
    %2210 = vmatpush1.xpose.msra.mxu0 0.0
    %2211 = vmatprep.subr.mxu0 0.0
    %2212 = vmatpush1.xpose.msra.mxu0 0.0
    %2213 = vmatprep.subr.mxu0 0.0
    %2214 = vmatpush1.xpose.msra.mxu0 0.0
    %2215 = vmatprep.subr.mxu0 0.0
    %2216 = vmatpush1.xpose.msra.mxu0 0.0
    %2217 = vmatprep.subr.mxu0 0.0
    %2218 = vmatpush1.xpose.msra.mxu0 0.0
    %2219 = vmatprep.subr.mxu0 0.0
    %2220 = vmatpush1.xpose.msra.mxu0 0.0
    %2221 = vmatprep.subr.mxu0 0.0
    %2222 = vmatpush1.xpose.msra.mxu0 0.0
    %2223 = vmatprep.subr.mxu0 0.0
    %2224 = vmatpush1.xpose.msra.mxu0 0.0
    %2225 = vmatprep.subr.mxu0 0.0
    %2226 = vmatpush1.xpose.msra.mxu0 0.0
    %2227 = vmatprep.subr.mxu0 0.0
    %2228 = vmatpush1.xpose.msra.mxu0 0.0
    %2229 = vmatprep.subr.mxu0 0.0
    %2230 = vmatpush1.xpose.msra.mxu0 0.0
    %2231 = vmatprep.subr.mxu0 0.0
    %2232 = vmatpush1.xpose.msra.mxu0 0.0
    %2233 = vmatprep.subr.mxu0 0.0
    %2234 = vmatpush1.xpose.msra.mxu0 0.0
    %2235 = vmatprep.subr.mxu0 0.0
    %2236 = vmatpush1.xpose.msra.mxu0 0.0
    %2237 = vmatprep.subr.mxu0 0.0
    %2238 = vmatpush1.xpose.msra.mxu0 0.0
    %2239 = vmatprep.subr.mxu0 0.0
    %2240 = vmatpush1.xpose.msra.mxu0 0.0
    %2241 = vmatprep.subr.mxu0 0.0
    %2242 = vmatpush1.xpose.msra.mxu0 0.0
    %2243 = vmatprep.subr.mxu0 0.0
    %2244 = vmatpush1.xpose.msra.mxu0 0.0
    %2245 = vmatprep.subr.mxu0 0.0
    %2246 = vmatpush1.xpose.msra.mxu0 0.0
    %2247 = vmatprep.subr.mxu0 0.0
    %2248 = vmatpush1.xpose.msra.mxu0 0.0
    %2249 = vmatprep.subr.mxu0 0.0
    %2250 = vmatpush1.xpose.msra.mxu0 0.0
    %2251 = vmatprep.subr.mxu0 0.0
    %2252 = vmatpush1.xpose.msra.mxu0 0.0
    %2253 = vmatprep.subr.mxu0 0.0
    %2254 = vmatpush1.xpose.msra.mxu0 0.0
    %2255 = vmatprep.subr.mxu0 0.0
    %2256 = vmatpush1.xpose.msra.mxu0 0.0
    %2257 = vmatprep.mubr.f32.mxu0 0.0
    %2258 = vmatmul.mubr.f32.gmra.mrb[0].mxu0 %v1425
    %v2259 = vpop.f32.mrb[0].mxu0
    %v2260 = vadd.f32 0.0, %v2259
    %v2261 = vpop.f32.mrb[0].mxu0
    %2262 = vdwg.mxu0
    %v2264 = vsel %vm1423, %v1413, 0
    %v2267 = vsel %vm1423, %v1414, 0
    %2269 = vmatprep.subr.mxu0 0.0
    %2270 = vmatpush1.xpose.msra.mxu0 %v2264
    %2271 = vmatprep.subr.mxu0 0.0
    %2272 = vmatpush1.xpose.msra.mxu0 %v2267
    %2273 = vmatprep.subr.mxu0 0.0
    %2274 = vmatpush1.xpose.msra.mxu0 0.0
    %2275 = vmatprep.subr.mxu0 0.0
    %2276 = vmatpush1.xpose.msra.mxu0 0.0
    %2277 = vmatprep.subr.mxu0 0.0
    %2278 = vmatpush1.xpose.msra.mxu0 0.0
    %2279 = vmatprep.subr.mxu0 0.0
    %2280 = vmatpush1.xpose.msra.mxu0 0.0
    %2281 = vmatprep.subr.mxu0 0.0
    %2282 = vmatpush1.xpose.msra.mxu0 0.0
    %2283 = vmatprep.subr.mxu0 0.0
    %2284 = vmatpush1.xpose.msra.mxu0 0.0
    %2285 = vmatprep.subr.mxu0 0.0
    %2286 = vmatpush1.xpose.msra.mxu0 0.0
    %2287 = vmatprep.subr.mxu0 0.0
    %2288 = vmatpush1.xpose.msra.mxu0 0.0
    %2289 = vmatprep.subr.mxu0 0.0
    %2290 = vmatpush1.xpose.msra.mxu0 0.0
    %2291 = vmatprep.subr.mxu0 0.0
    %2292 = vmatpush1.xpose.msra.mxu0 0.0
    %2293 = vmatprep.subr.mxu0 0.0
    %2294 = vmatpush1.xpose.msra.mxu0 0.0
    %2295 = vmatprep.subr.mxu0 0.0
    %2296 = vmatpush1.xpose.msra.mxu0 0.0
    %2297 = vmatprep.subr.mxu0 0.0
    %2298 = vmatpush1.xpose.msra.mxu0 0.0
    %2299 = vmatprep.subr.mxu0 0.0
    %2300 = vmatpush1.xpose.msra.mxu0 0.0
    %2301 = vmatprep.subr.mxu0 0.0
    %2302 = vmatpush1.xpose.msra.mxu0 0.0
    %2303 = vmatprep.subr.mxu0 0.0
    %2304 = vmatpush1.xpose.msra.mxu0 0.0
    %2305 = vmatprep.subr.mxu0 0.0
    %2306 = vmatpush1.xpose.msra.mxu0 0.0
    %2307 = vmatprep.subr.mxu0 0.0
    %2308 = vmatpush1.xpose.msra.mxu0 0.0
    %2309 = vmatprep.subr.mxu0 0.0
    %2310 = vmatpush1.xpose.msra.mxu0 0.0
    %2311 = vmatprep.subr.mxu0 0.0
    %2312 = vmatpush1.xpose.msra.mxu0 0.0
    %2313 = vmatprep.subr.mxu0 0.0
    %2314 = vmatpush1.xpose.msra.mxu0 0.0
    %2315 = vmatprep.subr.mxu0 0.0
    %2316 = vmatpush1.xpose.msra.mxu0 0.0
    %2317 = vmatprep.subr.mxu0 0.0
    %2318 = vmatpush1.xpose.msra.mxu0 0.0
    %2319 = vmatprep.subr.mxu0 0.0
    %2320 = vmatpush1.xpose.msra.mxu0 0.0
    %2321 = vmatprep.subr.mxu0 0.0
    %2322 = vmatpush1.xpose.msra.mxu0 0.0
    %2323 = vmatprep.subr.mxu0 0.0
    %2324 = vmatpush1.xpose.msra.mxu0 0.0
    %2325 = vmatprep.subr.mxu0 0.0
    %2326 = vmatpush1.xpose.msra.mxu0 0.0
    %2327 = vmatprep.subr.mxu0 0.0
    %2328 = vmatpush1.xpose.msra.mxu0 0.0
    %2329 = vmatprep.subr.mxu0 0.0
    %2330 = vmatpush1.xpose.msra.mxu0 0.0
    %2331 = vmatprep.subr.mxu0 0.0
    %2332 = vmatpush1.xpose.msra.mxu0 0.0
    %2333 = vmatprep.mubr.f32.mxu0 0.0
    %2334 = vmatmul.mubr.f32.gmra.mrb[0].mxu0 %v1425
    %v2335 = vpop.f32.mrb[0].mxu0
    %v2336 = vadd.f32 0.0, %v2335
    %v2337 = vpop.f32.mrb[0].mxu0
    %2338 = vdwg.mxu0
    %v2340 = vsel %vm1423, %v1415, 0
    %v2343 = vsel %vm1423, %v1416, 0
    %2345 = vmatprep.subr.mxu0 0.0
    %2346 = vmatpush1.xpose.msra.mxu0 %v2340
    %2347 = vmatprep.subr.mxu0 0.0
    %2348 = vmatpush1.xpose.msra.mxu0 %v2343
    %2349 = vmatprep.subr.mxu0 0.0
    %2350 = vmatpush1.xpose.msra.mxu0 0.0
    %2351 = vmatprep.subr.mxu0 0.0
    %2352 = vmatpush1.xpose.msra.mxu0 0.0
    %2353 = vmatprep.subr.mxu0 0.0
    %2354 = vmatpush1.xpose.msra.mxu0 0.0
    %2355 = vmatprep.subr.mxu0 0.0
    %2356 = vmatpush1.xpose.msra.mxu0 0.0
    %2357 = vmatprep.subr.mxu0 0.0
    %2358 = vmatpush1.xpose.msra.mxu0 0.0
    %2359 = vmatprep.subr.mxu0 0.0
    %2360 = vmatpush1.xpose.msra.mxu0 0.0
    %2361 = vmatprep.subr.mxu0 0.0
    %2362 = vmatpush1.xpose.msra.mxu0 0.0
    %2363 = vmatprep.subr.mxu0 0.0
    %2364 = vmatpush1.xpose.msra.mxu0 0.0
    %2365 = vmatprep.subr.mxu0 0.0
    %2366 = vmatpush1.xpose.msra.mxu0 0.0
    %2367 = vmatprep.subr.mxu0 0.0
    %2368 = vmatpush1.xpose.msra.mxu0 0.0
    %2369 = vmatprep.subr.mxu0 0.0
    %2370 = vmatpush1.xpose.msra.mxu0 0.0
    %2371 = vmatprep.subr.mxu0 0.0
    %2372 = vmatpush1.xpose.msra.mxu0 0.0
    %2373 = vmatprep.subr.mxu0 0.0
    %2374 = vmatpush1.xpose.msra.mxu0 0.0
    %2375 = vmatprep.subr.mxu0 0.0
    %2376 = vmatpush1.xpose.msra.mxu0 0.0
    %2377 = vmatprep.subr.mxu0 0.0
    %2378 = vmatpush1.xpose.msra.mxu0 0.0
    %2379 = vmatprep.subr.mxu0 0.0
    %2380 = vmatpush1.xpose.msra.mxu0 0.0
    %2381 = vmatprep.subr.mxu0 0.0
    %2382 = vmatpush1.xpose.msra.mxu0 0.0
    %2383 = vmatprep.subr.mxu0 0.0
    %2384 = vmatpush1.xpose.msra.mxu0 0.0
    %2385 = vmatprep.subr.mxu0 0.0
    %2386 = vmatpush1.xpose.msra.mxu0 0.0
    %2387 = vmatprep.subr.mxu0 0.0
    %2388 = vmatpush1.xpose.msra.mxu0 0.0
    %2389 = vmatprep.subr.mxu0 0.0
    %2390 = vmatpush1.xpose.msra.mxu0 0.0
    %2391 = vmatprep.subr.mxu0 0.0
    %2392 = vmatpush1.xpose.msra.mxu0 0.0
    %2393 = vmatprep.subr.mxu0 0.0
    %2394 = vmatpush1.xpose.msra.mxu0 0.0
    %2395 = vmatprep.subr.mxu0 0.0
    %2396 = vmatpush1.xpose.msra.mxu0 0.0
    %2397 = vmatprep.subr.mxu0 0.0
    %2398 = vmatpush1.xpose.msra.mxu0 0.0
    %2399 = vmatprep.subr.mxu0 0.0
    %2400 = vmatpush1.xpose.msra.mxu0 0.0
    %2401 = vmatprep.subr.mxu0 0.0
    %2402 = vmatpush1.xpose.msra.mxu0 0.0
    %2403 = vmatprep.subr.mxu0 0.0
    %2404 = vmatpush1.xpose.msra.mxu0 0.0
    %2405 = vmatprep.subr.mxu0 0.0
    %2406 = vmatpush1.xpose.msra.mxu0 0.0
    %2407 = vmatprep.subr.mxu0 0.0
    %2408 = vmatpush1.xpose.msra.mxu0 0.0
    %2409 = vmatprep.mubr.f32.mxu0 0.0
    %2410 = vmatmul.mubr.f32.gmra.mrb[0].mxu0 %v1425
    %v2411 = vpop.f32.mrb[0].mxu0
    %v2412 = vadd.f32 0.0, %v2411
    %v2413 = vpop.f32.mrb[0].mxu0
    %2414 = vdwg.mxu0
    %v2416 = vsel %vm1423, %v1417, 0
    %v2419 = vsel %vm1423, %v1418, 0
    %2421 = vmatprep.subr.mxu0 0.0
    %2422 = vmatpush1.xpose.msra.mxu0 %v2416
    %2423 = vmatprep.subr.mxu0 0.0
    %2424 = vmatpush1.xpose.msra.mxu0 %v2419
    %2425 = vmatprep.subr.mxu0 0.0
    %2426 = vmatpush1.xpose.msra.mxu0 0.0
    %2427 = vmatprep.subr.mxu0 0.0
    %2428 = vmatpush1.xpose.msra.mxu0 0.0
    %2429 = vmatprep.subr.mxu0 0.0
    %2430 = vmatpush1.xpose.msra.mxu0 0.0
    %2431 = vmatprep.subr.mxu0 0.0
    %2432 = vmatpush1.xpose.msra.mxu0 0.0
    %2433 = vmatprep.subr.mxu0 0.0
    %2434 = vmatpush1.xpose.msra.mxu0 0.0
    %2435 = vmatprep.subr.mxu0 0.0
    %2436 = vmatpush1.xpose.msra.mxu0 0.0
    %2437 = vmatprep.subr.mxu0 0.0
    %2438 = vmatpush1.xpose.msra.mxu0 0.0
    %2439 = vmatprep.subr.mxu0 0.0
    %2440 = vmatpush1.xpose.msra.mxu0 0.0
    %2441 = vmatprep.subr.mxu0 0.0
    %2442 = vmatpush1.xpose.msra.mxu0 0.0
    %2443 = vmatprep.subr.mxu0 0.0
    %2444 = vmatpush1.xpose.msra.mxu0 0.0
    %2445 = vmatprep.subr.mxu0 0.0
    %2446 = vmatpush1.xpose.msra.mxu0 0.0
    %2447 = vmatprep.subr.mxu0 0.0
    %2448 = vmatpush1.xpose.msra.mxu0 0.0
    %2449 = vmatprep.subr.mxu0 0.0
    %2450 = vmatpush1.xpose.msra.mxu0 0.0
    %2451 = vmatprep.subr.mxu0 0.0
    %2452 = vmatpush1.xpose.msra.mxu0 0.0
    %2453 = vmatprep.subr.mxu0 0.0
    %2454 = vmatpush1.xpose.msra.mxu0 0.0
    %2455 = vmatprep.subr.mxu0 0.0
    %2456 = vmatpush1.xpose.msra.mxu0 0.0
    %2457 = vmatprep.subr.mxu0 0.0
    %2458 = vmatpush1.xpose.msra.mxu0 0.0
    %2459 = vmatprep.subr.mxu0 0.0
    %2460 = vmatpush1.xpose.msra.mxu0 0.0
    %2461 = vmatprep.subr.mxu0 0.0
    %2462 = vmatpush1.xpose.msra.mxu0 0.0
    %2463 = vmatprep.subr.mxu0 0.0
    %2464 = vmatpush1.xpose.msra.mxu0 0.0
    %2465 = vmatprep.subr.mxu0 0.0
    %2466 = vmatpush1.xpose.msra.mxu0 0.0
    %2467 = vmatprep.subr.mxu0 0.0
    %2468 = vmatpush1.xpose.msra.mxu0 0.0
    %2469 = vmatprep.subr.mxu0 0.0
    %2470 = vmatpush1.xpose.msra.mxu0 0.0
    %2471 = vmatprep.subr.mxu0 0.0
    %2472 = vmatpush1.xpose.msra.mxu0 0.0
    %2473 = vmatprep.subr.mxu0 0.0
    %2474 = vmatpush1.xpose.msra.mxu0 0.0
    %2475 = vmatprep.subr.mxu0 0.0
    %2476 = vmatpush1.xpose.msra.mxu0 0.0
    %2477 = vmatprep.subr.mxu0 0.0
    %2478 = vmatpush1.xpose.msra.mxu0 0.0
    %2479 = vmatprep.subr.mxu0 0.0
    %2480 = vmatpush1.xpose.msra.mxu0 0.0
    %2481 = vmatprep.subr.mxu0 0.0
    %2482 = vmatpush1.xpose.msra.mxu0 0.0
    %2483 = vmatprep.subr.mxu0 0.0
    %2484 = vmatpush1.xpose.msra.mxu0 0.0
    %2485 = vmatprep.mubr.f32.mxu0 0.0
    %2486 = vmatmul.mubr.f32.gmra.mrb[0].mxu0 %v1425
    %v2487 = vpop.f32.mrb[0].mxu0
    %v2488 = vadd.f32 0.0, %v2487
    %v2489 = vpop.f32.mrb[0].mxu0
    %2490 = vdwg.mxu0
    %v2492 = vsel %vm1423, %v1419, 0
    %v2495 = vsel %vm1423, %v1420, 0
    %2497 = vmatprep.subr.mxu0 0.0
    %2498 = vmatpush1.xpose.msra.mxu0 %v2492
    %2499 = vmatprep.subr.mxu0 0.0
    %2500 = vmatpush1.xpose.msra.mxu0 %v2495
    %2501 = vmatprep.subr.mxu0 0.0
    %2502 = vmatpush1.xpose.msra.mxu0 0.0
    %2503 = vmatprep.subr.mxu0 0.0
    %2504 = vmatpush1.xpose.msra.mxu0 0.0
    %2505 = vmatprep.subr.mxu0 0.0
    %2506 = vmatpush1.xpose.msra.mxu0 0.0
    %2507 = vmatprep.subr.mxu0 0.0
    %2508 = vmatpush1.xpose.msra.mxu0 0.0
    %2509 = vmatprep.subr.mxu0 0.0
    %2510 = vmatpush1.xpose.msra.mxu0 0.0
    %2511 = vmatprep.subr.mxu0 0.0
    %2512 = vmatpush1.xpose.msra.mxu0 0.0
    %2513 = vmatprep.subr.mxu0 0.0
    %2514 = vmatpush1.xpose.msra.mxu0 0.0
    %2515 = vmatprep.subr.mxu0 0.0
    %2516 = vmatpush1.xpose.msra.mxu0 0.0
    %2517 = vmatprep.subr.mxu0 0.0
    %2518 = vmatpush1.xpose.msra.mxu0 0.0
    %2519 = vmatprep.subr.mxu0 0.0
    %2520 = vmatpush1.xpose.msra.mxu0 0.0
    %2521 = vmatprep.subr.mxu0 0.0
    %2522 = vmatpush1.xpose.msra.mxu0 0.0
    %2523 = vmatprep.subr.mxu0 0.0
    %2524 = vmatpush1.xpose.msra.mxu0 0.0
    %2525 = vmatprep.subr.mxu0 0.0
    %2526 = vmatpush1.xpose.msra.mxu0 0.0
    %2527 = vmatprep.subr.mxu0 0.0
    %2528 = vmatpush1.xpose.msra.mxu0 0.0
    %2529 = vmatprep.subr.mxu0 0.0
    %2530 = vmatpush1.xpose.msra.mxu0 0.0
    %2531 = vmatprep.subr.mxu0 0.0
    %2532 = vmatpush1.xpose.msra.mxu0 0.0
    %2533 = vmatprep.subr.mxu0 0.0
    %2534 = vmatpush1.xpose.msra.mxu0 0.0
    %2535 = vmatprep.subr.mxu0 0.0
    %2536 = vmatpush1.xpose.msra.mxu0 0.0
    %2537 = vmatprep.subr.mxu0 0.0
    %2538 = vmatpush1.xpose.msra.mxu0 0.0
    %2539 = vmatprep.subr.mxu0 0.0
    %2540 = vmatpush1.xpose.msra.mxu0 0.0
    %2541 = vmatprep.subr.mxu0 0.0
    %2542 = vmatpush1.xpose.msra.mxu0 0.0
    %2543 = vmatprep.subr.mxu0 0.0
    %2544 = vmatpush1.xpose.msra.mxu0 0.0
    %2545 = vmatprep.subr.mxu0 0.0
    %2546 = vmatpush1.xpose.msra.mxu0 0.0
    %2547 = vmatprep.subr.mxu0 0.0
    %2548 = vmatpush1.xpose.msra.mxu0 0.0
    %2549 = vmatprep.subr.mxu0 0.0
    %2550 = vmatpush1.xpose.msra.mxu0 0.0
    %2551 = vmatprep.subr.mxu0 0.0
    %2552 = vmatpush1.xpose.msra.mxu0 0.0
    %2553 = vmatprep.subr.mxu0 0.0
    %2554 = vmatpush1.xpose.msra.mxu0 0.0
    %2555 = vmatprep.subr.mxu0 0.0
    %2556 = vmatpush1.xpose.msra.mxu0 0.0
    %2557 = vmatprep.subr.mxu0 0.0
    %2558 = vmatpush1.xpose.msra.mxu0 0.0
    %2559 = vmatprep.subr.mxu0 0.0
    %2560 = vmatpush1.xpose.msra.mxu0 0.0
    %2561 = vmatprep.mubr.f32.mxu0 0.0
    %2562 = vmatmul.mubr.f32.gmra.mrb[0].mxu0 %v1425
    %v2563 = vpop.f32.mrb[0].mxu0
    %v2564 = vadd.f32 0.0, %v2563
    %v2565 = vpop.f32.mrb[0].mxu0
    %2566 = vdwg.mxu0
    %v2568 = vsel %vm1423, %v1421, 0
    %v2571 = vsel %vm1423, %v1422, 0
    %2573 = vmatprep.subr.mxu0 0.0
    %2574 = vmatpush1.xpose.msra.mxu0 %v2568
    %2575 = vmatprep.subr.mxu0 0.0
    %2576 = vmatpush1.xpose.msra.mxu0 %v2571
    %2577 = vmatprep.subr.mxu0 0.0
    %2578 = vmatpush1.xpose.msra.mxu0 0.0
    %2579 = vmatprep.subr.mxu0 0.0
    %2580 = vmatpush1.xpose.msra.mxu0 0.0
    %2581 = vmatprep.subr.mxu0 0.0
    %2582 = vmatpush1.xpose.msra.mxu0 0.0
    %2583 = vmatprep.subr.mxu0 0.0
    %2584 = vmatpush1.xpose.msra.mxu0 0.0
    %2585 = vmatprep.subr.mxu0 0.0
    %2586 = vmatpush1.xpose.msra.mxu0 0.0
    %2587 = vmatprep.subr.mxu0 0.0
    %2588 = vmatpush1.xpose.msra.mxu0 0.0
    %2589 = vmatprep.subr.mxu0 0.0
    %2590 = vmatpush1.xpose.msra.mxu0 0.0
    %2591 = vmatprep.subr.mxu0 0.0
    %2592 = vmatpush1.xpose.msra.mxu0 0.0
    %2593 = vmatprep.subr.mxu0 0.0
    %2594 = vmatpush1.xpose.msra.mxu0 0.0
    %2595 = vmatprep.subr.mxu0 0.0
    %2596 = vmatpush1.xpose.msra.mxu0 0.0
    %2597 = vmatprep.subr.mxu0 0.0
    %2598 = vmatpush1.xpose.msra.mxu0 0.0
    %2599 = vmatprep.subr.mxu0 0.0
    %2600 = vmatpush1.xpose.msra.mxu0 0.0
    %2601 = vmatprep.subr.mxu0 0.0
    %2602 = vmatpush1.xpose.msra.mxu0 0.0
    %2603 = vmatprep.subr.mxu0 0.0
    %2604 = vmatpush1.xpose.msra.mxu0 0.0
    %2605 = vmatprep.subr.mxu0 0.0
    %2606 = vmatpush1.xpose.msra.mxu0 0.0
    %2607 = vmatprep.subr.mxu0 0.0
    %2608 = vmatpush1.xpose.msra.mxu0 0.0
    %2609 = vmatprep.subr.mxu0 0.0
    %2610 = vmatpush1.xpose.msra.mxu0 0.0
    %2611 = vmatprep.subr.mxu0 0.0
    %2612 = vmatpush1.xpose.msra.mxu0 0.0
    %2613 = vmatprep.subr.mxu0 0.0
    %2614 = vmatpush1.xpose.msra.mxu0 0.0
    %2615 = vmatprep.subr.mxu0 0.0
    %2616 = vmatpush1.xpose.msra.mxu0 0.0
    %2617 = vmatprep.subr.mxu0 0.0
    %2618 = vmatpush1.xpose.msra.mxu0 0.0
    %2619 = vmatprep.subr.mxu0 0.0
    %2620 = vmatpush1.xpose.msra.mxu0 0.0
    %2621 = vmatprep.subr.mxu0 0.0
    %2622 = vmatpush1.xpose.msra.mxu0 0.0
    %2623 = vmatprep.subr.mxu0 0.0
    %2624 = vmatpush1.xpose.msra.mxu0 0.0
    %2625 = vmatprep.subr.mxu0 0.0
    %2626 = vmatpush1.xpose.msra.mxu0 0.0
    %2627 = vmatprep.subr.mxu0 0.0
    %2628 = vmatpush1.xpose.msra.mxu0 0.0
    %2629 = vmatprep.subr.mxu0 0.0
    %2630 = vmatpush1.xpose.msra.mxu0 0.0
    %2631 = vmatprep.subr.mxu0 0.0
    %2632 = vmatpush1.xpose.msra.mxu0 0.0
    %2633 = vmatprep.subr.mxu0 0.0
    %2634 = vmatpush1.xpose.msra.mxu0 0.0
    %2635 = vmatprep.subr.mxu0 0.0
    %2636 = vmatpush1.xpose.msra.mxu0 0.0
    %2637 = vmatprep.mubr.f32.mxu0 0.0
    %2638 = vmatmul.mubr.f32.gmra.mrb[0].mxu0 %v1425
    %v2639 = vpop.f32.mrb[0].mxu0
    %v2640 = vadd.f32 0.0, %v2639
    %v2641 = vpop.f32.mrb[0].mxu0
    %2642 = vdwg.mxu0
    %v2643 = vmul.f32 %v1500, %v1500
    %v2644 = vmul.f32 %v1576, %v1576
    %v2645 = vmul.f32 %v1652, %v1652
    %v2646 = vmul.f32 %v1728, %v1728
    %v2647 = vmul.f32 %v1804, %v1804
    %v2648 = vmul.f32 %v1880, %v1880
    %v2649 = vmul.f32 %v1956, %v1956
    %v2650 = vmul.f32 %v2032, %v2032
    %v2651 = vmul.f32 %v2108, %v2108
    %v2652 = vmul.f32 %v2184, %v2184
    %v2653 = vmul.f32 %v2260, %v2260
    %v2654 = vmul.f32 %v2336, %v2336
    %v2655 = vmul.f32 %v2412, %v2412
    %v2656 = vmul.f32 %v2488, %v2488
    %v2657 = vmul.f32 %v2564, %v2564
    %v2658 = vmul.f32 %v2640, %v2640
    %vm2659 = vcmask 122880
    %v2660 = vsel %vm2659, %v2643, 0.0
    %2661 = vadd.xlane.f32.xlu0 %v2660
    %v2662 = vpop.xlane.xlu0 %2661
    %v2663 = vsel %vm2659, %v2644, 0.0
    %2664 = vadd.xlane.f32.xlu0 %v2663
    %v2665 = vpop.xlane.xlu0 %2664
    %v2666 = vsel %vm2659, %v2645, 0.0
    %2667 = vadd.xlane.f32.xlu0 %v2666
    %v2668 = vpop.xlane.xlu0 %2667
    %v2669 = vsel %vm2659, %v2646, 0.0
    %2670 = vadd.xlane.f32.xlu0 %v2669
    %v2671 = vpop.xlane.xlu0 %2670
    %v2672 = vsel %vm2659, %v2647, 0.0
    %2673 = vadd.xlane.f32.xlu0 %v2672
    %v2674 = vpop.xlane.xlu0 %2673
    %v2675 = vsel %vm2659, %v2648, 0.0
    %2676 = vadd.xlane.f32.xlu0 %v2675
    %v2677 = vpop.xlane.xlu0 %2676
    %v2678 = vsel %vm2659, %v2649, 0.0
    %2679 = vadd.xlane.f32.xlu0 %v2678
    %v2680 = vpop.xlane.xlu0 %2679
    %v2681 = vsel %vm2659, %v2650, 0.0
    %2682 = vadd.xlane.f32.xlu0 %v2681
    %v2683 = vpop.xlane.xlu0 %2682
    %v2684 = vsel %vm2659, %v2651, 0.0
    %2685 = vadd.xlane.f32.xlu0 %v2684
    %v2686 = vpop.xlane.xlu0 %2685
    %v2687 = vsel %vm2659, %v2652, 0.0
    %2688 = vadd.xlane.f32.xlu0 %v2687
    %v2689 = vpop.xlane.xlu0 %2688
    %v2690 = vsel %vm2659, %v2653, 0.0
    %2691 = vadd.xlane.f32.xlu0 %v2690
    %v2692 = vpop.xlane.xlu0 %2691
    %v2693 = vsel %vm2659, %v2654, 0.0
    %2694 = vadd.xlane.f32.xlu0 %v2693
    %v2695 = vpop.xlane.xlu0 %2694
    %v2696 = vsel %vm2659, %v2655, 0.0
    %2697 = vadd.xlane.f32.xlu0 %v2696
    %v2698 = vpop.xlane.xlu0 %2697
    %v2699 = vsel %vm2659, %v2656, 0.0
    %2700 = vadd.xlane.f32.xlu0 %v2699
    %v2701 = vpop.xlane.xlu0 %2700
    %v2702 = vsel %vm2659, %v2657, 0.0
    %2703 = vadd.xlane.f32.xlu0 %v2702
    %v2704 = vpop.xlane.xlu0 %2703
    %v2705 = vsel %vm2659, %v2658, 0.0
    %2706 = vadd.xlane.f32.xlu0 %v2705
    %v2707 = vpop.xlane.xlu0 %2706
    %v2708 = vadd.f32 %v2662, 1e-08
    %v2709 = vadd.f32 %v2665, 1e-08
    %v2710 = vadd.f32 %v2668, 1e-08
    %v2711 = vadd.f32 %v2671, 1e-08
    %v2712 = vadd.f32 %v2674, 1e-08
    %v2713 = vadd.f32 %v2677, 1e-08
    %v2714 = vadd.f32 %v2680, 1e-08
    %v2715 = vadd.f32 %v2683, 1e-08
    %v2716 = vadd.f32 %v2686, 1e-08
    %v2717 = vadd.f32 %v2689, 1e-08
    %v2718 = vadd.f32 %v2692, 1e-08
    %v2719 = vadd.f32 %v2695, 1e-08
    %v2720 = vadd.f32 %v2698, 1e-08
    %v2721 = vadd.f32 %v2701, 1e-08
    %v2722 = vadd.f32 %v2704, 1e-08
    %v2723 = vadd.f32 %v2707, 1e-08
    %v2724 = vrsqrt.pop %v2708
    %v2725 = vrsqrt.pop %v2709
    %v2726 = vrsqrt.pop %v2710
    %v2727 = vrsqrt.pop %v2711
    %v2728 = vrsqrt.pop %v2712
    %v2729 = vrsqrt.pop %v2713
    %v2730 = vrsqrt.pop %v2714
    %v2731 = vrsqrt.pop %v2715
    %v2732 = vrsqrt.pop %v2716
    %v2733 = vrsqrt.pop %v2717
    %v2734 = vrsqrt.pop %v2718
    %v2735 = vrsqrt.pop %v2719
    %v2736 = vrsqrt.pop %v2720
    %v2737 = vrsqrt.pop %v2721
    %v2738 = vrsqrt.pop %v2722
    %v2739 = vrsqrt.pop %v2723
    %v2740 = vmul.f32 %v2708, %v2724
    %v2741 = vmul.f32 %v2709, %v2725
    %v2742 = vmul.f32 %v2710, %v2726
    %v2743 = vmul.f32 %v2711, %v2727
    %v2744 = vmul.f32 %v2712, %v2728
    %v2745 = vmul.f32 %v2713, %v2729
    %v2746 = vmul.f32 %v2714, %v2730
    %v2747 = vmul.f32 %v2715, %v2731
    %v2748 = vmul.f32 %v2716, %v2732
    %v2749 = vmul.f32 %v2717, %v2733
    %v2750 = vmul.f32 %v2718, %v2734
    %v2751 = vmul.f32 %v2719, %v2735
    %v2752 = vmul.f32 %v2720, %v2736
    %v2753 = vmul.f32 %v2721, %v2737
    %v2754 = vmul.f32 %v2722, %v2738
    %v2755 = vmul.f32 %v2723, %v2739
    %v2756 = vadd.f32 %v2708, 1.0
    %v2757 = vadd.f32 %v2709, 1.0
    %v2758 = vadd.f32 %v2710, 1.0
    %v2759 = vadd.f32 %v2711, 1.0
    %v2760 = vadd.f32 %v2712, 1.0
    %v2761 = vadd.f32 %v2713, 1.0
    %v2762 = vadd.f32 %v2714, 1.0
    %v2763 = vadd.f32 %v2715, 1.0
    %v2764 = vadd.f32 %v2716, 1.0
    %v2765 = vadd.f32 %v2717, 1.0
    %v2766 = vadd.f32 %v2718, 1.0
    %v2767 = vadd.f32 %v2719, 1.0
    %v2768 = vadd.f32 %v2720, 1.0
    %v2769 = vadd.f32 %v2721, 1.0
    %v2770 = vadd.f32 %v2722, 1.0
    %v2771 = vadd.f32 %v2723, 1.0
    %v2772 = vrcp.pop %v2756
    %v2773 = vmul.f32 %v2740, %v2772
    %v2774 = vrcp.pop %v2757
    %v2775 = vmul.f32 %v2741, %v2774
    %v2776 = vrcp.pop %v2758
    %v2777 = vmul.f32 %v2742, %v2776
    %v2778 = vrcp.pop %v2759
    %v2779 = vmul.f32 %v2743, %v2778
    %v2780 = vrcp.pop %v2760
    %v2781 = vmul.f32 %v2744, %v2780
    %v2782 = vrcp.pop %v2761
    %v2783 = vmul.f32 %v2745, %v2782
    %v2784 = vrcp.pop %v2762
    %v2785 = vmul.f32 %v2746, %v2784
    %v2786 = vrcp.pop %v2763
    %v2787 = vmul.f32 %v2747, %v2786
    %v2788 = vrcp.pop %v2764
    %v2789 = vmul.f32 %v2748, %v2788
    %v2790 = vrcp.pop %v2765
    %v2791 = vmul.f32 %v2749, %v2790
    %v2792 = vrcp.pop %v2766
    %v2793 = vmul.f32 %v2750, %v2792
    %v2794 = vrcp.pop %v2767
    %v2795 = vmul.f32 %v2751, %v2794
    %v2796 = vrcp.pop %v2768
    %v2797 = vmul.f32 %v2752, %v2796
    %v2798 = vrcp.pop %v2769
    %v2799 = vmul.f32 %v2753, %v2798
    %v2800 = vrcp.pop %v2770
    %v2801 = vmul.f32 %v2754, %v2800
    %v2802 = vrcp.pop %v2771
    %v2803 = vmul.f32 %v2755, %v2802
    %v2804 = vmul.f32 %v2773, %v1500
    %v2805 = vmul.f32 %v2775, %v1576
    %v2806 = vmul.f32 %v2777, %v1652
    %v2807 = vmul.f32 %v2779, %v1728
    %v2808 = vmul.f32 %v2781, %v1804
    %v2809 = vmul.f32 %v2783, %v1880
    %v2810 = vmul.f32 %v2785, %v1956
    %v2811 = vmul.f32 %v2787, %v2032
    %v2812 = vmul.f32 %v2789, %v2108
    %v2813 = vmul.f32 %v2791, %v2184
    %v2814 = vmul.f32 %v2793, %v2260
    %v2815 = vmul.f32 %v2795, %v2336
    %v2816 = vmul.f32 %v2797, %v2412
    %v2817 = vmul.f32 %v2799, %v2488
    %v2818 = vmul.f32 %v2801, %v2564
    %v2819 = vmul.f32 %v2803, %v2640
    %v2821 = vsel %vm1423, %v2804, 0
    %2823 = vmatprep.subr.mxu0 0.0
    %2824 = vmatpush1.msra.mxu0 %v1345
    %2825 = vmatprep.subr.mxu0 0.0
    %2826 = vmatpush1.msra.mxu0 %v1346
    %2827 = vmatprep.subr.mxu0 0.0
    %2828 = vmatpush1.msra.mxu0 0.0
    %2829 = vmatprep.subr.mxu0 0.0
    %2830 = vmatpush1.msra.mxu0 0.0
    %2831 = vmatprep.subr.mxu0 0.0
    %2832 = vmatpush1.msra.mxu0 0.0
    %2833 = vmatprep.subr.mxu0 0.0
    %2834 = vmatpush1.msra.mxu0 0.0
    %2835 = vmatprep.subr.mxu0 0.0
    %2836 = vmatpush1.msra.mxu0 0.0
    %2837 = vmatprep.subr.mxu0 0.0
    %2838 = vmatpush1.msra.mxu0 0.0
    %2839 = vmatprep.subr.mxu0 0.0
    %2840 = vmatpush1.msra.mxu0 0.0
    %2841 = vmatprep.subr.mxu0 0.0
    %2842 = vmatpush1.msra.mxu0 0.0
    %2843 = vmatprep.subr.mxu0 0.0
    %2844 = vmatpush1.msra.mxu0 0.0
    %2845 = vmatprep.subr.mxu0 0.0
    %2846 = vmatpush1.msra.mxu0 0.0
    %2847 = vmatprep.subr.mxu0 0.0
    %2848 = vmatpush1.msra.mxu0 0.0
    %2849 = vmatprep.subr.mxu0 0.0
    %2850 = vmatpush1.msra.mxu0 0.0
    %2851 = vmatprep.subr.mxu0 0.0
    %2852 = vmatpush1.msra.mxu0 0.0
    %2853 = vmatprep.subr.mxu0 0.0
    %2854 = vmatpush1.msra.mxu0 0.0
    %2855 = vmatprep.subr.mxu0 0.0
    %2856 = vmatpush1.msra.mxu0 0.0
    %2857 = vmatprep.subr.mxu0 0.0
    %2858 = vmatpush1.msra.mxu0 0.0
    %2859 = vmatprep.subr.mxu0 0.0
    %2860 = vmatpush1.msra.mxu0 0.0
    %2861 = vmatprep.subr.mxu0 0.0
    %2862 = vmatpush1.msra.mxu0 0.0
    %2863 = vmatprep.subr.mxu0 0.0
    %2864 = vmatpush1.msra.mxu0 0.0
    %2865 = vmatprep.subr.mxu0 0.0
    %2866 = vmatpush1.msra.mxu0 0.0
    %2867 = vmatprep.subr.mxu0 0.0
    %2868 = vmatpush1.msra.mxu0 0.0
    %2869 = vmatprep.subr.mxu0 0.0
    %2870 = vmatpush1.msra.mxu0 0.0
    %2871 = vmatprep.subr.mxu0 0.0
    %2872 = vmatpush1.msra.mxu0 0.0
    %2873 = vmatprep.subr.mxu0 0.0
    %2874 = vmatpush1.msra.mxu0 0.0
    %2875 = vmatprep.subr.mxu0 0.0
    %2876 = vmatpush1.msra.mxu0 0.0
    %2877 = vmatprep.subr.mxu0 0.0
    %2878 = vmatpush1.msra.mxu0 0.0
    %2879 = vmatprep.subr.mxu0 0.0
    %2880 = vmatpush1.msra.mxu0 0.0
    %2881 = vmatprep.subr.mxu0 0.0
    %2882 = vmatpush1.msra.mxu0 0.0
    %2883 = vmatprep.subr.mxu0 0.0
    %2884 = vmatpush1.msra.mxu0 0.0
    %2885 = vmatprep.subr.mxu0 0.0
    %2886 = vmatpush1.msra.mxu0 0.0
    %2887 = vmatprep.mubr.f32.mxu0 0.0
    %2888 = vmatmul.mubr.f32.gmra.mrb[0].mxu0 %v2821
    %v2889 = vpop.f32.mrb[0].mxu0
    %v2890 = vadd.f32 0.0, %v2889
    %v2891 = vpop.f32.mrb[0].mxu0
    %2892 = vdwg.mxu0
    %v2894 = vsel %vm1423, %v2805, 0
    %2896 = vmatprep.subr.mxu0 0.0
    %2897 = vmatpush1.msra.mxu0 %v1347
    %2898 = vmatprep.subr.mxu0 0.0
    %2899 = vmatpush1.msra.mxu0 %v1348
    %2900 = vmatprep.subr.mxu0 0.0
    %2901 = vmatpush1.msra.mxu0 0.0
    %2902 = vmatprep.subr.mxu0 0.0
    %2903 = vmatpush1.msra.mxu0 0.0
    %2904 = vmatprep.subr.mxu0 0.0
    %2905 = vmatpush1.msra.mxu0 0.0
    %2906 = vmatprep.subr.mxu0 0.0
    %2907 = vmatpush1.msra.mxu0 0.0
    %2908 = vmatprep.subr.mxu0 0.0
    %2909 = vmatpush1.msra.mxu0 0.0
    %2910 = vmatprep.subr.mxu0 0.0
    %2911 = vmatpush1.msra.mxu0 0.0
    %2912 = vmatprep.subr.mxu0 0.0
    %2913 = vmatpush1.msra.mxu0 0.0
    %2914 = vmatprep.subr.mxu0 0.0
    %2915 = vmatpush1.msra.mxu0 0.0
    %2916 = vmatprep.subr.mxu0 0.0
    %2917 = vmatpush1.msra.mxu0 0.0
    %2918 = vmatprep.subr.mxu0 0.0
    %2919 = vmatpush1.msra.mxu0 0.0
    %2920 = vmatprep.subr.mxu0 0.0
    %2921 = vmatpush1.msra.mxu0 0.0
    %2922 = vmatprep.subr.mxu0 0.0
    %2923 = vmatpush1.msra.mxu0 0.0
    %2924 = vmatprep.subr.mxu0 0.0
    %2925 = vmatpush1.msra.mxu0 0.0
    %2926 = vmatprep.subr.mxu0 0.0
    %2927 = vmatpush1.msra.mxu0 0.0
    %2928 = vmatprep.subr.mxu0 0.0
    %2929 = vmatpush1.msra.mxu0 0.0
    %2930 = vmatprep.subr.mxu0 0.0
    %2931 = vmatpush1.msra.mxu0 0.0
    %2932 = vmatprep.subr.mxu0 0.0
    %2933 = vmatpush1.msra.mxu0 0.0
    %2934 = vmatprep.subr.mxu0 0.0
    %2935 = vmatpush1.msra.mxu0 0.0
    %2936 = vmatprep.subr.mxu0 0.0
    %2937 = vmatpush1.msra.mxu0 0.0
    %2938 = vmatprep.subr.mxu0 0.0
    %2939 = vmatpush1.msra.mxu0 0.0
    %2940 = vmatprep.subr.mxu0 0.0
    %2941 = vmatpush1.msra.mxu0 0.0
    %2942 = vmatprep.subr.mxu0 0.0
    %2943 = vmatpush1.msra.mxu0 0.0
    %2944 = vmatprep.subr.mxu0 0.0
    %2945 = vmatpush1.msra.mxu0 0.0
    %2946 = vmatprep.subr.mxu0 0.0
    %2947 = vmatpush1.msra.mxu0 0.0
    %2948 = vmatprep.subr.mxu0 0.0
    %2949 = vmatpush1.msra.mxu0 0.0
    %2950 = vmatprep.subr.mxu0 0.0
    %2951 = vmatpush1.msra.mxu0 0.0
    %2952 = vmatprep.subr.mxu0 0.0
    %2953 = vmatpush1.msra.mxu0 0.0
    %2954 = vmatprep.subr.mxu0 0.0
    %2955 = vmatpush1.msra.mxu0 0.0
    %2956 = vmatprep.subr.mxu0 0.0
    %2957 = vmatpush1.msra.mxu0 0.0
    %2958 = vmatprep.subr.mxu0 0.0
    %2959 = vmatpush1.msra.mxu0 0.0
    %2960 = vmatprep.mubr.f32.mxu0 0.0
    %2961 = vmatmul.mubr.f32.gmra.mrb[0].mxu0 %v2894
    %v2962 = vpop.f32.mrb[0].mxu0
    %v2963 = vadd.f32 0.0, %v2962
    %v2964 = vpop.f32.mrb[0].mxu0
    %2965 = vdwg.mxu0
    %v2967 = vsel %vm1423, %v2806, 0
    %2969 = vmatprep.subr.mxu0 0.0
    %2970 = vmatpush1.msra.mxu0 %v1349
    %2971 = vmatprep.subr.mxu0 0.0
    %2972 = vmatpush1.msra.mxu0 %v1350
    %2973 = vmatprep.subr.mxu0 0.0
    %2974 = vmatpush1.msra.mxu0 0.0
    %2975 = vmatprep.subr.mxu0 0.0
    %2976 = vmatpush1.msra.mxu0 0.0
    %2977 = vmatprep.subr.mxu0 0.0
    %2978 = vmatpush1.msra.mxu0 0.0
    %2979 = vmatprep.subr.mxu0 0.0
    %2980 = vmatpush1.msra.mxu0 0.0
    %2981 = vmatprep.subr.mxu0 0.0
    %2982 = vmatpush1.msra.mxu0 0.0
    %2983 = vmatprep.subr.mxu0 0.0
    %2984 = vmatpush1.msra.mxu0 0.0
    %2985 = vmatprep.subr.mxu0 0.0
    %2986 = vmatpush1.msra.mxu0 0.0
    %2987 = vmatprep.subr.mxu0 0.0
    %2988 = vmatpush1.msra.mxu0 0.0
    %2989 = vmatprep.subr.mxu0 0.0
    %2990 = vmatpush1.msra.mxu0 0.0
    %2991 = vmatprep.subr.mxu0 0.0
    %2992 = vmatpush1.msra.mxu0 0.0
    %2993 = vmatprep.subr.mxu0 0.0
    %2994 = vmatpush1.msra.mxu0 0.0
    %2995 = vmatprep.subr.mxu0 0.0
    %2996 = vmatpush1.msra.mxu0 0.0
    %2997 = vmatprep.subr.mxu0 0.0
    %2998 = vmatpush1.msra.mxu0 0.0
    %2999 = vmatprep.subr.mxu0 0.0
    %3000 = vmatpush1.msra.mxu0 0.0
    %3001 = vmatprep.subr.mxu0 0.0
    %3002 = vmatpush1.msra.mxu0 0.0
    %3003 = vmatprep.subr.mxu0 0.0
    %3004 = vmatpush1.msra.mxu0 0.0
    %3005 = vmatprep.subr.mxu0 0.0
    %3006 = vmatpush1.msra.mxu0 0.0
    %3007 = vmatprep.subr.mxu0 0.0
    %3008 = vmatpush1.msra.mxu0 0.0
    %3009 = vmatprep.subr.mxu0 0.0
    %3010 = vmatpush1.msra.mxu0 0.0
    %3011 = vmatprep.subr.mxu0 0.0
    %3012 = vmatpush1.msra.mxu0 0.0
    %3013 = vmatprep.subr.mxu0 0.0
    %3014 = vmatpush1.msra.mxu0 0.0
    %3015 = vmatprep.subr.mxu0 0.0
    %3016 = vmatpush1.msra.mxu0 0.0
    %3017 = vmatprep.subr.mxu0 0.0
    %3018 = vmatpush1.msra.mxu0 0.0
    %3019 = vmatprep.subr.mxu0 0.0
    %3020 = vmatpush1.msra.mxu0 0.0
    %3021 = vmatprep.subr.mxu0 0.0
    %3022 = vmatpush1.msra.mxu0 0.0
    %3023 = vmatprep.subr.mxu0 0.0
    %3024 = vmatpush1.msra.mxu0 0.0
    %3025 = vmatprep.subr.mxu0 0.0
    %3026 = vmatpush1.msra.mxu0 0.0
    %3027 = vmatprep.subr.mxu0 0.0
    %3028 = vmatpush1.msra.mxu0 0.0
    %3029 = vmatprep.subr.mxu0 0.0
    %3030 = vmatpush1.msra.mxu0 0.0
    %3031 = vmatprep.subr.mxu0 0.0
    %3032 = vmatpush1.msra.mxu0 0.0
    %3033 = vmatprep.mubr.f32.mxu0 0.0
    %3034 = vmatmul.mubr.f32.gmra.mrb[0].mxu0 %v2967
    %v3035 = vpop.f32.mrb[0].mxu0
    %v3036 = vadd.f32 0.0, %v3035
    %v3037 = vpop.f32.mrb[0].mxu0
    %3038 = vdwg.mxu0
    %v3040 = vsel %vm1423, %v2807, 0
    %3042 = vmatprep.subr.mxu0 0.0
    %3043 = vmatpush1.msra.mxu0 %v1351
    %3044 = vmatprep.subr.mxu0 0.0
    %3045 = vmatpush1.msra.mxu0 %v1352
    %3046 = vmatprep.subr.mxu0 0.0
    %3047 = vmatpush1.msra.mxu0 0.0
    %3048 = vmatprep.subr.mxu0 0.0
    %3049 = vmatpush1.msra.mxu0 0.0
    %3050 = vmatprep.subr.mxu0 0.0
    %3051 = vmatpush1.msra.mxu0 0.0
    %3052 = vmatprep.subr.mxu0 0.0
    %3053 = vmatpush1.msra.mxu0 0.0
    %3054 = vmatprep.subr.mxu0 0.0
    %3055 = vmatpush1.msra.mxu0 0.0
    %3056 = vmatprep.subr.mxu0 0.0
    %3057 = vmatpush1.msra.mxu0 0.0
    %3058 = vmatprep.subr.mxu0 0.0
    %3059 = vmatpush1.msra.mxu0 0.0
    %3060 = vmatprep.subr.mxu0 0.0
    %3061 = vmatpush1.msra.mxu0 0.0
    %3062 = vmatprep.subr.mxu0 0.0
    %3063 = vmatpush1.msra.mxu0 0.0
    %3064 = vmatprep.subr.mxu0 0.0
    %3065 = vmatpush1.msra.mxu0 0.0
    %3066 = vmatprep.subr.mxu0 0.0
    %3067 = vmatpush1.msra.mxu0 0.0
    %3068 = vmatprep.subr.mxu0 0.0
    %3069 = vmatpush1.msra.mxu0 0.0
    %3070 = vmatprep.subr.mxu0 0.0
    %3071 = vmatpush1.msra.mxu0 0.0
    %3072 = vmatprep.subr.mxu0 0.0
    %3073 = vmatpush1.msra.mxu0 0.0
    %3074 = vmatprep.subr.mxu0 0.0
    %3075 = vmatpush1.msra.mxu0 0.0
    %3076 = vmatprep.subr.mxu0 0.0
    %3077 = vmatpush1.msra.mxu0 0.0
    %3078 = vmatprep.subr.mxu0 0.0
    %3079 = vmatpush1.msra.mxu0 0.0
    %3080 = vmatprep.subr.mxu0 0.0
    %3081 = vmatpush1.msra.mxu0 0.0
    %3082 = vmatprep.subr.mxu0 0.0
    %3083 = vmatpush1.msra.mxu0 0.0
    %3084 = vmatprep.subr.mxu0 0.0
    %3085 = vmatpush1.msra.mxu0 0.0
    %3086 = vmatprep.subr.mxu0 0.0
    %3087 = vmatpush1.msra.mxu0 0.0
    %3088 = vmatprep.subr.mxu0 0.0
    %3089 = vmatpush1.msra.mxu0 0.0
    %3090 = vmatprep.subr.mxu0 0.0
    %3091 = vmatpush1.msra.mxu0 0.0
    %3092 = vmatprep.subr.mxu0 0.0
    %3093 = vmatpush1.msra.mxu0 0.0
    %3094 = vmatprep.subr.mxu0 0.0
    %3095 = vmatpush1.msra.mxu0 0.0
    %3096 = vmatprep.subr.mxu0 0.0
    %3097 = vmatpush1.msra.mxu0 0.0
    %3098 = vmatprep.subr.mxu0 0.0
    %3099 = vmatpush1.msra.mxu0 0.0
    %3100 = vmatprep.subr.mxu0 0.0
    %3101 = vmatpush1.msra.mxu0 0.0
    %3102 = vmatprep.subr.mxu0 0.0
    %3103 = vmatpush1.msra.mxu0 0.0
    %3104 = vmatprep.subr.mxu0 0.0
    %3105 = vmatpush1.msra.mxu0 0.0
    %3106 = vmatprep.mubr.f32.mxu0 0.0
    %3107 = vmatmul.mubr.f32.gmra.mrb[0].mxu0 %v3040
    %v3108 = vpop.f32.mrb[0].mxu0
    %v3109 = vadd.f32 0.0, %v3108
    %v3110 = vpop.f32.mrb[0].mxu0
    %3111 = vdwg.mxu0
    %v3113 = vsel %vm1423, %v2808, 0
    %3115 = vmatprep.subr.mxu0 0.0
    %3116 = vmatpush1.msra.mxu0 %v1353
    %3117 = vmatprep.subr.mxu0 0.0
    %3118 = vmatpush1.msra.mxu0 %v1354
    %3119 = vmatprep.subr.mxu0 0.0
    %3120 = vmatpush1.msra.mxu0 0.0
    %3121 = vmatprep.subr.mxu0 0.0
    %3122 = vmatpush1.msra.mxu0 0.0
    %3123 = vmatprep.subr.mxu0 0.0
    %3124 = vmatpush1.msra.mxu0 0.0
    %3125 = vmatprep.subr.mxu0 0.0
    %3126 = vmatpush1.msra.mxu0 0.0
    %3127 = vmatprep.subr.mxu0 0.0
    %3128 = vmatpush1.msra.mxu0 0.0
    %3129 = vmatprep.subr.mxu0 0.0
    %3130 = vmatpush1.msra.mxu0 0.0
    %3131 = vmatprep.subr.mxu0 0.0
    %3132 = vmatpush1.msra.mxu0 0.0
    %3133 = vmatprep.subr.mxu0 0.0
    %3134 = vmatpush1.msra.mxu0 0.0
    %3135 = vmatprep.subr.mxu0 0.0
    %3136 = vmatpush1.msra.mxu0 0.0
    %3137 = vmatprep.subr.mxu0 0.0
    %3138 = vmatpush1.msra.mxu0 0.0
    %3139 = vmatprep.subr.mxu0 0.0
    %3140 = vmatpush1.msra.mxu0 0.0
    %3141 = vmatprep.subr.mxu0 0.0
    %3142 = vmatpush1.msra.mxu0 0.0
    %3143 = vmatprep.subr.mxu0 0.0
    %3144 = vmatpush1.msra.mxu0 0.0
    %3145 = vmatprep.subr.mxu0 0.0
    %3146 = vmatpush1.msra.mxu0 0.0
    %3147 = vmatprep.subr.mxu0 0.0
    %3148 = vmatpush1.msra.mxu0 0.0
    %3149 = vmatprep.subr.mxu0 0.0
    %3150 = vmatpush1.msra.mxu0 0.0
    %3151 = vmatprep.subr.mxu0 0.0
    %3152 = vmatpush1.msra.mxu0 0.0
    %3153 = vmatprep.subr.mxu0 0.0
    %3154 = vmatpush1.msra.mxu0 0.0
    %3155 = vmatprep.subr.mxu0 0.0
    %3156 = vmatpush1.msra.mxu0 0.0
    %3157 = vmatprep.subr.mxu0 0.0
    %3158 = vmatpush1.msra.mxu0 0.0
    %3159 = vmatprep.subr.mxu0 0.0
    %3160 = vmatpush1.msra.mxu0 0.0
    %3161 = vmatprep.subr.mxu0 0.0
    %3162 = vmatpush1.msra.mxu0 0.0
    %3163 = vmatprep.subr.mxu0 0.0
    %3164 = vmatpush1.msra.mxu0 0.0
    %3165 = vmatprep.subr.mxu0 0.0
    %3166 = vmatpush1.msra.mxu0 0.0
    %3167 = vmatprep.subr.mxu0 0.0
    %3168 = vmatpush1.msra.mxu0 0.0
    %3169 = vmatprep.subr.mxu0 0.0
    %3170 = vmatpush1.msra.mxu0 0.0
    %3171 = vmatprep.subr.mxu0 0.0
    %3172 = vmatpush1.msra.mxu0 0.0
    %3173 = vmatprep.subr.mxu0 0.0
    %3174 = vmatpush1.msra.mxu0 0.0
    %3175 = vmatprep.subr.mxu0 0.0
    %3176 = vmatpush1.msra.mxu0 0.0
    %3177 = vmatprep.subr.mxu0 0.0
    %3178 = vmatpush1.msra.mxu0 0.0
    %3179 = vmatprep.mubr.f32.mxu0 0.0
    %3180 = vmatmul.mubr.f32.gmra.mrb[0].mxu0 %v3113
    %v3181 = vpop.f32.mrb[0].mxu0
    %v3182 = vadd.f32 0.0, %v3181
    %v3183 = vpop.f32.mrb[0].mxu0
    %3184 = vdwg.mxu0
    %v3186 = vsel %vm1423, %v2809, 0
    %3188 = vmatprep.subr.mxu0 0.0
    %3189 = vmatpush1.msra.mxu0 %v1355
    %3190 = vmatprep.subr.mxu0 0.0
    %3191 = vmatpush1.msra.mxu0 %v1356
    %3192 = vmatprep.subr.mxu0 0.0
    %3193 = vmatpush1.msra.mxu0 0.0
    %3194 = vmatprep.subr.mxu0 0.0
    %3195 = vmatpush1.msra.mxu0 0.0
    %3196 = vmatprep.subr.mxu0 0.0
    %3197 = vmatpush1.msra.mxu0 0.0
    %3198 = vmatprep.subr.mxu0 0.0
    %3199 = vmatpush1.msra.mxu0 0.0
    %3200 = vmatprep.subr.mxu0 0.0
    %3201 = vmatpush1.msra.mxu0 0.0
    %3202 = vmatprep.subr.mxu0 0.0
    %3203 = vmatpush1.msra.mxu0 0.0
    %3204 = vmatprep.subr.mxu0 0.0
    %3205 = vmatpush1.msra.mxu0 0.0
    %3206 = vmatprep.subr.mxu0 0.0
    %3207 = vmatpush1.msra.mxu0 0.0
    %3208 = vmatprep.subr.mxu0 0.0
    %3209 = vmatpush1.msra.mxu0 0.0
    %3210 = vmatprep.subr.mxu0 0.0
    %3211 = vmatpush1.msra.mxu0 0.0
    %3212 = vmatprep.subr.mxu0 0.0
    %3213 = vmatpush1.msra.mxu0 0.0
    %3214 = vmatprep.subr.mxu0 0.0
    %3215 = vmatpush1.msra.mxu0 0.0
    %3216 = vmatprep.subr.mxu0 0.0
    %3217 = vmatpush1.msra.mxu0 0.0
    %3218 = vmatprep.subr.mxu0 0.0
    %3219 = vmatpush1.msra.mxu0 0.0
    %3220 = vmatprep.subr.mxu0 0.0
    %3221 = vmatpush1.msra.mxu0 0.0
    %3222 = vmatprep.subr.mxu0 0.0
    %3223 = vmatpush1.msra.mxu0 0.0
    %3224 = vmatprep.subr.mxu0 0.0
    %3225 = vmatpush1.msra.mxu0 0.0
    %3226 = vmatprep.subr.mxu0 0.0
    %3227 = vmatpush1.msra.mxu0 0.0
    %3228 = vmatprep.subr.mxu0 0.0
    %3229 = vmatpush1.msra.mxu0 0.0
    %3230 = vmatprep.subr.mxu0 0.0
    %3231 = vmatpush1.msra.mxu0 0.0
    %3232 = vmatprep.subr.mxu0 0.0
    %3233 = vmatpush1.msra.mxu0 0.0
    %3234 = vmatprep.subr.mxu0 0.0
    %3235 = vmatpush1.msra.mxu0 0.0
    %3236 = vmatprep.subr.mxu0 0.0
    %3237 = vmatpush1.msra.mxu0 0.0
    %3238 = vmatprep.subr.mxu0 0.0
    %3239 = vmatpush1.msra.mxu0 0.0
    %3240 = vmatprep.subr.mxu0 0.0
    %3241 = vmatpush1.msra.mxu0 0.0
    %3242 = vmatprep.subr.mxu0 0.0
    %3243 = vmatpush1.msra.mxu0 0.0
    %3244 = vmatprep.subr.mxu0 0.0
    %3245 = vmatpush1.msra.mxu0 0.0
    %3246 = vmatprep.subr.mxu0 0.0
    %3247 = vmatpush1.msra.mxu0 0.0
    %3248 = vmatprep.subr.mxu0 0.0
    %3249 = vmatpush1.msra.mxu0 0.0
    %3250 = vmatprep.subr.mxu0 0.0
    %3251 = vmatpush1.msra.mxu0 0.0
    %3252 = vmatprep.mubr.f32.mxu0 0.0
    %3253 = vmatmul.mubr.f32.gmra.mrb[0].mxu0 %v3186
    %v3254 = vpop.f32.mrb[0].mxu0
    %v3255 = vadd.f32 0.0, %v3254
    %v3256 = vpop.f32.mrb[0].mxu0
    %3257 = vdwg.mxu0
    %v3259 = vsel %vm1423, %v2810, 0
    %3261 = vmatprep.subr.mxu0 0.0
    %3262 = vmatpush1.msra.mxu0 %v1357
    %3263 = vmatprep.subr.mxu0 0.0
    %3264 = vmatpush1.msra.mxu0 %v1358
    %3265 = vmatprep.subr.mxu0 0.0
    %3266 = vmatpush1.msra.mxu0 0.0
    %3267 = vmatprep.subr.mxu0 0.0
    %3268 = vmatpush1.msra.mxu0 0.0
    %3269 = vmatprep.subr.mxu0 0.0
    %3270 = vmatpush1.msra.mxu0 0.0
    %3271 = vmatprep.subr.mxu0 0.0
    %3272 = vmatpush1.msra.mxu0 0.0
    %3273 = vmatprep.subr.mxu0 0.0
    %3274 = vmatpush1.msra.mxu0 0.0
    %3275 = vmatprep.subr.mxu0 0.0
    %3276 = vmatpush1.msra.mxu0 0.0
    %3277 = vmatprep.subr.mxu0 0.0
    %3278 = vmatpush1.msra.mxu0 0.0
    %3279 = vmatprep.subr.mxu0 0.0
    %3280 = vmatpush1.msra.mxu0 0.0
    %3281 = vmatprep.subr.mxu0 0.0
    %3282 = vmatpush1.msra.mxu0 0.0
    %3283 = vmatprep.subr.mxu0 0.0
    %3284 = vmatpush1.msra.mxu0 0.0
    %3285 = vmatprep.subr.mxu0 0.0
    %3286 = vmatpush1.msra.mxu0 0.0
    %3287 = vmatprep.subr.mxu0 0.0
    %3288 = vmatpush1.msra.mxu0 0.0
    %3289 = vmatprep.subr.mxu0 0.0
    %3290 = vmatpush1.msra.mxu0 0.0
    %3291 = vmatprep.subr.mxu0 0.0
    %3292 = vmatpush1.msra.mxu0 0.0
    %3293 = vmatprep.subr.mxu0 0.0
    %3294 = vmatpush1.msra.mxu0 0.0
    %3295 = vmatprep.subr.mxu0 0.0
    %3296 = vmatpush1.msra.mxu0 0.0
    %3297 = vmatprep.subr.mxu0 0.0
    %3298 = vmatpush1.msra.mxu0 0.0
    %3299 = vmatprep.subr.mxu0 0.0
    %3300 = vmatpush1.msra.mxu0 0.0
    %3301 = vmatprep.subr.mxu0 0.0
    %3302 = vmatpush1.msra.mxu0 0.0
    %3303 = vmatprep.subr.mxu0 0.0
    %3304 = vmatpush1.msra.mxu0 0.0
    %3305 = vmatprep.subr.mxu0 0.0
    %3306 = vmatpush1.msra.mxu0 0.0
    %3307 = vmatprep.subr.mxu0 0.0
    %3308 = vmatpush1.msra.mxu0 0.0
    %3309 = vmatprep.subr.mxu0 0.0
    %3310 = vmatpush1.msra.mxu0 0.0
    %3311 = vmatprep.subr.mxu0 0.0
    %3312 = vmatpush1.msra.mxu0 0.0
    %3313 = vmatprep.subr.mxu0 0.0
    %3314 = vmatpush1.msra.mxu0 0.0
    %3315 = vmatprep.subr.mxu0 0.0
    %3316 = vmatpush1.msra.mxu0 0.0
    %3317 = vmatprep.subr.mxu0 0.0
    %3318 = vmatpush1.msra.mxu0 0.0
    %3319 = vmatprep.subr.mxu0 0.0
    %3320 = vmatpush1.msra.mxu0 0.0
    %3321 = vmatprep.subr.mxu0 0.0
    %3322 = vmatpush1.msra.mxu0 0.0
    %3323 = vmatprep.subr.mxu0 0.0
    %3324 = vmatpush1.msra.mxu0 0.0
    %3325 = vmatprep.mubr.f32.mxu0 0.0
    %3326 = vmatmul.mubr.f32.gmra.mrb[0].mxu0 %v3259
    %v3327 = vpop.f32.mrb[0].mxu0
    %v3328 = vadd.f32 0.0, %v3327
    %v3329 = vpop.f32.mrb[0].mxu0
    %3330 = vdwg.mxu0
    %v3332 = vsel %vm1423, %v2811, 0
    %3334 = vmatprep.subr.mxu0 0.0
    %3335 = vmatpush1.msra.mxu0 %v1359
    %3336 = vmatprep.subr.mxu0 0.0
    %3337 = vmatpush1.msra.mxu0 %v1360
    %3338 = vmatprep.subr.mxu0 0.0
    %3339 = vmatpush1.msra.mxu0 0.0
    %3340 = vmatprep.subr.mxu0 0.0
    %3341 = vmatpush1.msra.mxu0 0.0
    %3342 = vmatprep.subr.mxu0 0.0
    %3343 = vmatpush1.msra.mxu0 0.0
    %3344 = vmatprep.subr.mxu0 0.0
    %3345 = vmatpush1.msra.mxu0 0.0
    %3346 = vmatprep.subr.mxu0 0.0
    %3347 = vmatpush1.msra.mxu0 0.0
    %3348 = vmatprep.subr.mxu0 0.0
    %3349 = vmatpush1.msra.mxu0 0.0
    %3350 = vmatprep.subr.mxu0 0.0
    %3351 = vmatpush1.msra.mxu0 0.0
    %3352 = vmatprep.subr.mxu0 0.0
    %3353 = vmatpush1.msra.mxu0 0.0
    %3354 = vmatprep.subr.mxu0 0.0
    %3355 = vmatpush1.msra.mxu0 0.0
    %3356 = vmatprep.subr.mxu0 0.0
    %3357 = vmatpush1.msra.mxu0 0.0
    %3358 = vmatprep.subr.mxu0 0.0
    %3359 = vmatpush1.msra.mxu0 0.0
    %3360 = vmatprep.subr.mxu0 0.0
    %3361 = vmatpush1.msra.mxu0 0.0
    %3362 = vmatprep.subr.mxu0 0.0
    %3363 = vmatpush1.msra.mxu0 0.0
    %3364 = vmatprep.subr.mxu0 0.0
    %3365 = vmatpush1.msra.mxu0 0.0
    %3366 = vmatprep.subr.mxu0 0.0
    %3367 = vmatpush1.msra.mxu0 0.0
    %3368 = vmatprep.subr.mxu0 0.0
    %3369 = vmatpush1.msra.mxu0 0.0
    %3370 = vmatprep.subr.mxu0 0.0
    %3371 = vmatpush1.msra.mxu0 0.0
    %3372 = vmatprep.subr.mxu0 0.0
    %3373 = vmatpush1.msra.mxu0 0.0
    %3374 = vmatprep.subr.mxu0 0.0
    %3375 = vmatpush1.msra.mxu0 0.0
    %3376 = vmatprep.subr.mxu0 0.0
    %3377 = vmatpush1.msra.mxu0 0.0
    %3378 = vmatprep.subr.mxu0 0.0
    %3379 = vmatpush1.msra.mxu0 0.0
    %3380 = vmatprep.subr.mxu0 0.0
    %3381 = vmatpush1.msra.mxu0 0.0
    %3382 = vmatprep.subr.mxu0 0.0
    %3383 = vmatpush1.msra.mxu0 0.0
    %3384 = vmatprep.subr.mxu0 0.0
    %3385 = vmatpush1.msra.mxu0 0.0
    %3386 = vmatprep.subr.mxu0 0.0
    %3387 = vmatpush1.msra.mxu0 0.0
    %3388 = vmatprep.subr.mxu0 0.0
    %3389 = vmatpush1.msra.mxu0 0.0
    %3390 = vmatprep.subr.mxu0 0.0
    %3391 = vmatpush1.msra.mxu0 0.0
    %3392 = vmatprep.subr.mxu0 0.0
    %3393 = vmatpush1.msra.mxu0 0.0
    %3394 = vmatprep.subr.mxu0 0.0
    %3395 = vmatpush1.msra.mxu0 0.0
    %3396 = vmatprep.subr.mxu0 0.0
    %3397 = vmatpush1.msra.mxu0 0.0
    %3398 = vmatprep.mubr.f32.mxu0 0.0
    %3399 = vmatmul.mubr.f32.gmra.mrb[0].mxu0 %v3332
    %v3400 = vpop.f32.mrb[0].mxu0
    %v3401 = vadd.f32 0.0, %v3400
    %v3402 = vpop.f32.mrb[0].mxu0
    %3403 = vdwg.mxu0
    %v3405 = vsel %vm1423, %v2812, 0
    %3407 = vmatprep.subr.mxu0 0.0
    %3408 = vmatpush1.msra.mxu0 %v1407
    %3409 = vmatprep.subr.mxu0 0.0
    %3410 = vmatpush1.msra.mxu0 %v1408
    %3411 = vmatprep.subr.mxu0 0.0
    %3412 = vmatpush1.msra.mxu0 0.0
    %3413 = vmatprep.subr.mxu0 0.0
    %3414 = vmatpush1.msra.mxu0 0.0
    %3415 = vmatprep.subr.mxu0 0.0
    %3416 = vmatpush1.msra.mxu0 0.0
    %3417 = vmatprep.subr.mxu0 0.0
    %3418 = vmatpush1.msra.mxu0 0.0
    %3419 = vmatprep.subr.mxu0 0.0
    %3420 = vmatpush1.msra.mxu0 0.0
    %3421 = vmatprep.subr.mxu0 0.0
    %3422 = vmatpush1.msra.mxu0 0.0
    %3423 = vmatprep.subr.mxu0 0.0
    %3424 = vmatpush1.msra.mxu0 0.0
    %3425 = vmatprep.subr.mxu0 0.0
    %3426 = vmatpush1.msra.mxu0 0.0
    %3427 = vmatprep.subr.mxu0 0.0
    %3428 = vmatpush1.msra.mxu0 0.0
    %3429 = vmatprep.subr.mxu0 0.0
    %3430 = vmatpush1.msra.mxu0 0.0
    %3431 = vmatprep.subr.mxu0 0.0
    %3432 = vmatpush1.msra.mxu0 0.0
    %3433 = vmatprep.subr.mxu0 0.0
    %3434 = vmatpush1.msra.mxu0 0.0
    %3435 = vmatprep.subr.mxu0 0.0
    %3436 = vmatpush1.msra.mxu0 0.0
    %3437 = vmatprep.subr.mxu0 0.0
    %3438 = vmatpush1.msra.mxu0 0.0
    %3439 = vmatprep.subr.mxu0 0.0
    %3440 = vmatpush1.msra.mxu0 0.0
    %3441 = vmatprep.subr.mxu0 0.0
    %3442 = vmatpush1.msra.mxu0 0.0
    %3443 = vmatprep.subr.mxu0 0.0
    %3444 = vmatpush1.msra.mxu0 0.0
    %3445 = vmatprep.subr.mxu0 0.0
    %3446 = vmatpush1.msra.mxu0 0.0
    %3447 = vmatprep.subr.mxu0 0.0
    %3448 = vmatpush1.msra.mxu0 0.0
    %3449 = vmatprep.subr.mxu0 0.0
    %3450 = vmatpush1.msra.mxu0 0.0
    %3451 = vmatprep.subr.mxu0 0.0
    %3452 = vmatpush1.msra.mxu0 0.0
    %3453 = vmatprep.subr.mxu0 0.0
    %3454 = vmatpush1.msra.mxu0 0.0
    %3455 = vmatprep.subr.mxu0 0.0
    %3456 = vmatpush1.msra.mxu0 0.0
    %3457 = vmatprep.subr.mxu0 0.0
    %3458 = vmatpush1.msra.mxu0 0.0
    %3459 = vmatprep.subr.mxu0 0.0
    %3460 = vmatpush1.msra.mxu0 0.0
    %3461 = vmatprep.subr.mxu0 0.0
    %3462 = vmatpush1.msra.mxu0 0.0
    %3463 = vmatprep.subr.mxu0 0.0
    %3464 = vmatpush1.msra.mxu0 0.0
    %3465 = vmatprep.subr.mxu0 0.0
    %3466 = vmatpush1.msra.mxu0 0.0
    %3467 = vmatprep.subr.mxu0 0.0
    %3468 = vmatpush1.msra.mxu0 0.0
    %3469 = vmatprep.subr.mxu0 0.0
    %3470 = vmatpush1.msra.mxu0 0.0
    %3471 = vmatprep.mubr.f32.mxu0 0.0
    %3472 = vmatmul.mubr.f32.gmra.mrb[0].mxu0 %v3405
    %v3473 = vpop.f32.mrb[0].mxu0
    %v3474 = vadd.f32 0.0, %v3473
    %v3475 = vpop.f32.mrb[0].mxu0
    %3476 = vdwg.mxu0
    %v3478 = vsel %vm1423, %v2813, 0
    %3480 = vmatprep.subr.mxu0 0.0
    %3481 = vmatpush1.msra.mxu0 %v1409
    %3482 = vmatprep.subr.mxu0 0.0
    %3483 = vmatpush1.msra.mxu0 %v1410
    %3484 = vmatprep.subr.mxu0 0.0
    %3485 = vmatpush1.msra.mxu0 0.0
    %3486 = vmatprep.subr.mxu0 0.0
    %3487 = vmatpush1.msra.mxu0 0.0
    %3488 = vmatprep.subr.mxu0 0.0
    %3489 = vmatpush1.msra.mxu0 0.0
    %3490 = vmatprep.subr.mxu0 0.0
    %3491 = vmatpush1.msra.mxu0 0.0
    %3492 = vmatprep.subr.mxu0 0.0
    %3493 = vmatpush1.msra.mxu0 0.0
    %3494 = vmatprep.subr.mxu0 0.0
    %3495 = vmatpush1.msra.mxu0 0.0
    %3496 = vmatprep.subr.mxu0 0.0
    %3497 = vmatpush1.msra.mxu0 0.0
    %3498 = vmatprep.subr.mxu0 0.0
    %3499 = vmatpush1.msra.mxu0 0.0
    %3500 = vmatprep.subr.mxu0 0.0
    %3501 = vmatpush1.msra.mxu0 0.0
    %3502 = vmatprep.subr.mxu0 0.0
    %3503 = vmatpush1.msra.mxu0 0.0
    %3504 = vmatprep.subr.mxu0 0.0
    %3505 = vmatpush1.msra.mxu0 0.0
    %3506 = vmatprep.subr.mxu0 0.0
    %3507 = vmatpush1.msra.mxu0 0.0
    %3508 = vmatprep.subr.mxu0 0.0
    %3509 = vmatpush1.msra.mxu0 0.0
    %3510 = vmatprep.subr.mxu0 0.0
    %3511 = vmatpush1.msra.mxu0 0.0
    %3512 = vmatprep.subr.mxu0 0.0
    %3513 = vmatpush1.msra.mxu0 0.0
    %3514 = vmatprep.subr.mxu0 0.0
    %3515 = vmatpush1.msra.mxu0 0.0
    %3516 = vmatprep.subr.mxu0 0.0
    %3517 = vmatpush1.msra.mxu0 0.0
    %3518 = vmatprep.subr.mxu0 0.0
    %3519 = vmatpush1.msra.mxu0 0.0
    %3520 = vmatprep.subr.mxu0 0.0
    %3521 = vmatpush1.msra.mxu0 0.0
    %3522 = vmatprep.subr.mxu0 0.0
    %3523 = vmatpush1.msra.mxu0 0.0
    %3524 = vmatprep.subr.mxu0 0.0
    %3525 = vmatpush1.msra.mxu0 0.0
    %3526 = vmatprep.subr.mxu0 0.0
    %3527 = vmatpush1.msra.mxu0 0.0
    %3528 = vmatprep.subr.mxu0 0.0
    %3529 = vmatpush1.msra.mxu0 0.0
    %3530 = vmatprep.subr.mxu0 0.0
    %3531 = vmatpush1.msra.mxu0 0.0
    %3532 = vmatprep.subr.mxu0 0.0
    %3533 = vmatpush1.msra.mxu0 0.0
    %3534 = vmatprep.subr.mxu0 0.0
    %3535 = vmatpush1.msra.mxu0 0.0
    %3536 = vmatprep.subr.mxu0 0.0
    %3537 = vmatpush1.msra.mxu0 0.0
    %3538 = vmatprep.subr.mxu0 0.0
    %3539 = vmatpush1.msra.mxu0 0.0
    %3540 = vmatprep.subr.mxu0 0.0
    %3541 = vmatpush1.msra.mxu0 0.0
    %3542 = vmatprep.subr.mxu0 0.0
    %3543 = vmatpush1.msra.mxu0 0.0
    %3544 = vmatprep.mubr.f32.mxu0 0.0
    %3545 = vmatmul.mubr.f32.gmra.mrb[0].mxu0 %v3478
    %v3546 = vpop.f32.mrb[0].mxu0
    %v3547 = vadd.f32 0.0, %v3546
    %v3548 = vpop.f32.mrb[0].mxu0
    %3549 = vdwg.mxu0
    %v3551 = vsel %vm1423, %v2814, 0
    %3553 = vmatprep.subr.mxu0 0.0
    %3554 = vmatpush1.msra.mxu0 %v1411
    %3555 = vmatprep.subr.mxu0 0.0
    %3556 = vmatpush1.msra.mxu0 %v1412
    %3557 = vmatprep.subr.mxu0 0.0
    %3558 = vmatpush1.msra.mxu0 0.0
    %3559 = vmatprep.subr.mxu0 0.0
    %3560 = vmatpush1.msra.mxu0 0.0
    %3561 = vmatprep.subr.mxu0 0.0
    %3562 = vmatpush1.msra.mxu0 0.0
    %3563 = vmatprep.subr.mxu0 0.0
    %3564 = vmatpush1.msra.mxu0 0.0
    %3565 = vmatprep.subr.mxu0 0.0
    %3566 = vmatpush1.msra.mxu0 0.0
    %3567 = vmatprep.subr.mxu0 0.0
    %3568 = vmatpush1.msra.mxu0 0.0
    %3569 = vmatprep.subr.mxu0 0.0
    %3570 = vmatpush1.msra.mxu0 0.0
    %3571 = vmatprep.subr.mxu0 0.0
    %3572 = vmatpush1.msra.mxu0 0.0
    %3573 = vmatprep.subr.mxu0 0.0
    %3574 = vmatpush1.msra.mxu0 0.0
    %3575 = vmatprep.subr.mxu0 0.0
    %3576 = vmatpush1.msra.mxu0 0.0
    %3577 = vmatprep.subr.mxu0 0.0
    %3578 = vmatpush1.msra.mxu0 0.0
    %3579 = vmatprep.subr.mxu0 0.0
    %3580 = vmatpush1.msra.mxu0 0.0
    %3581 = vmatprep.subr.mxu0 0.0
    %3582 = vmatpush1.msra.mxu0 0.0
    %3583 = vmatprep.subr.mxu0 0.0
    %3584 = vmatpush1.msra.mxu0 0.0
    %3585 = vmatprep.subr.mxu0 0.0
    %3586 = vmatpush1.msra.mxu0 0.0
    %3587 = vmatprep.subr.mxu0 0.0
    %3588 = vmatpush1.msra.mxu0 0.0
    %3589 = vmatprep.subr.mxu0 0.0
    %3590 = vmatpush1.msra.mxu0 0.0
    %3591 = vmatprep.subr.mxu0 0.0
    %3592 = vmatpush1.msra.mxu0 0.0
    %3593 = vmatprep.subr.mxu0 0.0
    %3594 = vmatpush1.msra.mxu0 0.0
    %3595 = vmatprep.subr.mxu0 0.0
    %3596 = vmatpush1.msra.mxu0 0.0
    %3597 = vmatprep.subr.mxu0 0.0
    %3598 = vmatpush1.msra.mxu0 0.0
    %3599 = vmatprep.subr.mxu0 0.0
    %3600 = vmatpush1.msra.mxu0 0.0
    %3601 = vmatprep.subr.mxu0 0.0
    %3602 = vmatpush1.msra.mxu0 0.0
    %3603 = vmatprep.subr.mxu0 0.0
    %3604 = vmatpush1.msra.mxu0 0.0
    %3605 = vmatprep.subr.mxu0 0.0
    %3606 = vmatpush1.msra.mxu0 0.0
    %3607 = vmatprep.subr.mxu0 0.0
    %3608 = vmatpush1.msra.mxu0 0.0
    %3609 = vmatprep.subr.mxu0 0.0
    %3610 = vmatpush1.msra.mxu0 0.0
    %3611 = vmatprep.subr.mxu0 0.0
    %3612 = vmatpush1.msra.mxu0 0.0
    %3613 = vmatprep.subr.mxu0 0.0
    %3614 = vmatpush1.msra.mxu0 0.0
    %3615 = vmatprep.subr.mxu0 0.0
    %3616 = vmatpush1.msra.mxu0 0.0
    %3617 = vmatprep.mubr.f32.mxu0 0.0
    %3618 = vmatmul.mubr.f32.gmra.mrb[0].mxu0 %v3551
    %v3619 = vpop.f32.mrb[0].mxu0
    %v3620 = vadd.f32 0.0, %v3619
    %v3621 = vpop.f32.mrb[0].mxu0
    %3622 = vdwg.mxu0
    %v3624 = vsel %vm1423, %v2815, 0
    %3626 = vmatprep.subr.mxu0 0.0
    %3627 = vmatpush1.msra.mxu0 %v1413
    %3628 = vmatprep.subr.mxu0 0.0
    %3629 = vmatpush1.msra.mxu0 %v1414
    %3630 = vmatprep.subr.mxu0 0.0
    %3631 = vmatpush1.msra.mxu0 0.0
    %3632 = vmatprep.subr.mxu0 0.0
    %3633 = vmatpush1.msra.mxu0 0.0
    %3634 = vmatprep.subr.mxu0 0.0
    %3635 = vmatpush1.msra.mxu0 0.0
    %3636 = vmatprep.subr.mxu0 0.0
    %3637 = vmatpush1.msra.mxu0 0.0
    %3638 = vmatprep.subr.mxu0 0.0
    %3639 = vmatpush1.msra.mxu0 0.0
    %3640 = vmatprep.subr.mxu0 0.0
    %3641 = vmatpush1.msra.mxu0 0.0
    %3642 = vmatprep.subr.mxu0 0.0
    %3643 = vmatpush1.msra.mxu0 0.0
    %3644 = vmatprep.subr.mxu0 0.0
    %3645 = vmatpush1.msra.mxu0 0.0
    %3646 = vmatprep.subr.mxu0 0.0
    %3647 = vmatpush1.msra.mxu0 0.0
    %3648 = vmatprep.subr.mxu0 0.0
    %3649 = vmatpush1.msra.mxu0 0.0
    %3650 = vmatprep.subr.mxu0 0.0
    %3651 = vmatpush1.msra.mxu0 0.0
    %3652 = vmatprep.subr.mxu0 0.0
    %3653 = vmatpush1.msra.mxu0 0.0
    %3654 = vmatprep.subr.mxu0 0.0
    %3655 = vmatpush1.msra.mxu0 0.0
    %3656 = vmatprep.subr.mxu0 0.0
    %3657 = vmatpush1.msra.mxu0 0.0
    %3658 = vmatprep.subr.mxu0 0.0
    %3659 = vmatpush1.msra.mxu0 0.0
    %3660 = vmatprep.subr.mxu0 0.0
    %3661 = vmatpush1.msra.mxu0 0.0
    %3662 = vmatprep.subr.mxu0 0.0
    %3663 = vmatpush1.msra.mxu0 0.0
    %3664 = vmatprep.subr.mxu0 0.0
    %3665 = vmatpush1.msra.mxu0 0.0
    %3666 = vmatprep.subr.mxu0 0.0
    %3667 = vmatpush1.msra.mxu0 0.0
    %3668 = vmatprep.subr.mxu0 0.0
    %3669 = vmatpush1.msra.mxu0 0.0
    %3670 = vmatprep.subr.mxu0 0.0
    %3671 = vmatpush1.msra.mxu0 0.0
    %3672 = vmatprep.subr.mxu0 0.0
    %3673 = vmatpush1.msra.mxu0 0.0
    %3674 = vmatprep.subr.mxu0 0.0
    %3675 = vmatpush1.msra.mxu0 0.0
    %3676 = vmatprep.subr.mxu0 0.0
    %3677 = vmatpush1.msra.mxu0 0.0
    %3678 = vmatprep.subr.mxu0 0.0
    %3679 = vmatpush1.msra.mxu0 0.0
    %3680 = vmatprep.subr.mxu0 0.0
    %3681 = vmatpush1.msra.mxu0 0.0
    %3682 = vmatprep.subr.mxu0 0.0
    %3683 = vmatpush1.msra.mxu0 0.0
    %3684 = vmatprep.subr.mxu0 0.0
    %3685 = vmatpush1.msra.mxu0 0.0
    %3686 = vmatprep.subr.mxu0 0.0
    %3687 = vmatpush1.msra.mxu0 0.0
    %3688 = vmatprep.subr.mxu0 0.0
    %3689 = vmatpush1.msra.mxu0 0.0
    %3690 = vmatprep.mubr.f32.mxu0 0.0
    %3691 = vmatmul.mubr.f32.gmra.mrb[0].mxu0 %v3624
    %v3692 = vpop.f32.mrb[0].mxu0
    %v3693 = vadd.f32 0.0, %v3692
    %v3694 = vpop.f32.mrb[0].mxu0
    %3695 = vdwg.mxu0
    %v3697 = vsel %vm1423, %v2816, 0
    %3699 = vmatprep.subr.mxu0 0.0
    %3700 = vmatpush1.msra.mxu0 %v1415
    %3701 = vmatprep.subr.mxu0 0.0
    %3702 = vmatpush1.msra.mxu0 %v1416
    %3703 = vmatprep.subr.mxu0 0.0
    %3704 = vmatpush1.msra.mxu0 0.0
    %3705 = vmatprep.subr.mxu0 0.0
    %3706 = vmatpush1.msra.mxu0 0.0
    %3707 = vmatprep.subr.mxu0 0.0
    %3708 = vmatpush1.msra.mxu0 0.0
    %3709 = vmatprep.subr.mxu0 0.0
    %3710 = vmatpush1.msra.mxu0 0.0
    %3711 = vmatprep.subr.mxu0 0.0
    %3712 = vmatpush1.msra.mxu0 0.0
    %3713 = vmatprep.subr.mxu0 0.0
    %3714 = vmatpush1.msra.mxu0 0.0
    %3715 = vmatprep.subr.mxu0 0.0
    %3716 = vmatpush1.msra.mxu0 0.0
    %3717 = vmatprep.subr.mxu0 0.0
    %3718 = vmatpush1.msra.mxu0 0.0
    %3719 = vmatprep.subr.mxu0 0.0
    %3720 = vmatpush1.msra.mxu0 0.0
    %3721 = vmatprep.subr.mxu0 0.0
    %3722 = vmatpush1.msra.mxu0 0.0
    %3723 = vmatprep.subr.mxu0 0.0
    %3724 = vmatpush1.msra.mxu0 0.0
    %3725 = vmatprep.subr.mxu0 0.0
    %3726 = vmatpush1.msra.mxu0 0.0
    %3727 = vmatprep.subr.mxu0 0.0
    %3728 = vmatpush1.msra.mxu0 0.0
    %3729 = vmatprep.subr.mxu0 0.0
    %3730 = vmatpush1.msra.mxu0 0.0
    %3731 = vmatprep.subr.mxu0 0.0
    %3732 = vmatpush1.msra.mxu0 0.0
    %3733 = vmatprep.subr.mxu0 0.0
    %3734 = vmatpush1.msra.mxu0 0.0
    %3735 = vmatprep.subr.mxu0 0.0
    %3736 = vmatpush1.msra.mxu0 0.0
    %3737 = vmatprep.subr.mxu0 0.0
    %3738 = vmatpush1.msra.mxu0 0.0
    %3739 = vmatprep.subr.mxu0 0.0
    %3740 = vmatpush1.msra.mxu0 0.0
    %3741 = vmatprep.subr.mxu0 0.0
    %3742 = vmatpush1.msra.mxu0 0.0
    %3743 = vmatprep.subr.mxu0 0.0
    %3744 = vmatpush1.msra.mxu0 0.0
    %3745 = vmatprep.subr.mxu0 0.0
    %3746 = vmatpush1.msra.mxu0 0.0
    %3747 = vmatprep.subr.mxu0 0.0
    %3748 = vmatpush1.msra.mxu0 0.0
    %3749 = vmatprep.subr.mxu0 0.0
    %3750 = vmatpush1.msra.mxu0 0.0
    %3751 = vmatprep.subr.mxu0 0.0
    %3752 = vmatpush1.msra.mxu0 0.0
    %3753 = vmatprep.subr.mxu0 0.0
    %3754 = vmatpush1.msra.mxu0 0.0
    %3755 = vmatprep.subr.mxu0 0.0
    %3756 = vmatpush1.msra.mxu0 0.0
    %3757 = vmatprep.subr.mxu0 0.0
    %3758 = vmatpush1.msra.mxu0 0.0
    %3759 = vmatprep.subr.mxu0 0.0
    %3760 = vmatpush1.msra.mxu0 0.0
    %3761 = vmatprep.subr.mxu0 0.0
    %3762 = vmatpush1.msra.mxu0 0.0
    %3763 = vmatprep.mubr.f32.mxu0 0.0
    %3764 = vmatmul.mubr.f32.gmra.mrb[0].mxu0 %v3697
    %v3765 = vpop.f32.mrb[0].mxu0
    %v3766 = vadd.f32 0.0, %v3765
    %v3767 = vpop.f32.mrb[0].mxu0
    %3768 = vdwg.mxu0
    %v3770 = vsel %vm1423, %v2817, 0
    %3772 = vmatprep.subr.mxu0 0.0
    %3773 = vmatpush1.msra.mxu0 %v1417
    %3774 = vmatprep.subr.mxu0 0.0
    %3775 = vmatpush1.msra.mxu0 %v1418
    %3776 = vmatprep.subr.mxu0 0.0
    %3777 = vmatpush1.msra.mxu0 0.0
    %3778 = vmatprep.subr.mxu0 0.0
    %3779 = vmatpush1.msra.mxu0 0.0
    %3780 = vmatprep.subr.mxu0 0.0
    %3781 = vmatpush1.msra.mxu0 0.0
    %3782 = vmatprep.subr.mxu0 0.0
    %3783 = vmatpush1.msra.mxu0 0.0
    %3784 = vmatprep.subr.mxu0 0.0
    %3785 = vmatpush1.msra.mxu0 0.0
    %3786 = vmatprep.subr.mxu0 0.0
    %3787 = vmatpush1.msra.mxu0 0.0
    %3788 = vmatprep.subr.mxu0 0.0
    %3789 = vmatpush1.msra.mxu0 0.0
    %3790 = vmatprep.subr.mxu0 0.0
    %3791 = vmatpush1.msra.mxu0 0.0
    %3792 = vmatprep.subr.mxu0 0.0
    %3793 = vmatpush1.msra.mxu0 0.0
    %3794 = vmatprep.subr.mxu0 0.0
    %3795 = vmatpush1.msra.mxu0 0.0
    %3796 = vmatprep.subr.mxu0 0.0
    %3797 = vmatpush1.msra.mxu0 0.0
    %3798 = vmatprep.subr.mxu0 0.0
    %3799 = vmatpush1.msra.mxu0 0.0
    %3800 = vmatprep.subr.mxu0 0.0
    %3801 = vmatpush1.msra.mxu0 0.0
    %3802 = vmatprep.subr.mxu0 0.0
    %3803 = vmatpush1.msra.mxu0 0.0
    %3804 = vmatprep.subr.mxu0 0.0
    %3805 = vmatpush1.msra.mxu0 0.0
    %3806 = vmatprep.subr.mxu0 0.0
    %3807 = vmatpush1.msra.mxu0 0.0
    %3808 = vmatprep.subr.mxu0 0.0
    %3809 = vmatpush1.msra.mxu0 0.0
    %3810 = vmatprep.subr.mxu0 0.0
    %3811 = vmatpush1.msra.mxu0 0.0
    %3812 = vmatprep.subr.mxu0 0.0
    %3813 = vmatpush1.msra.mxu0 0.0
    %3814 = vmatprep.subr.mxu0 0.0
    %3815 = vmatpush1.msra.mxu0 0.0
    %3816 = vmatprep.subr.mxu0 0.0
    %3817 = vmatpush1.msra.mxu0 0.0
    %3818 = vmatprep.subr.mxu0 0.0
    %3819 = vmatpush1.msra.mxu0 0.0
    %3820 = vmatprep.subr.mxu0 0.0
    %3821 = vmatpush1.msra.mxu0 0.0
    %3822 = vmatprep.subr.mxu0 0.0
    %3823 = vmatpush1.msra.mxu0 0.0
    %3824 = vmatprep.subr.mxu0 0.0
    %3825 = vmatpush1.msra.mxu0 0.0
    %3826 = vmatprep.subr.mxu0 0.0
    %3827 = vmatpush1.msra.mxu0 0.0
    %3828 = vmatprep.subr.mxu0 0.0
    %3829 = vmatpush1.msra.mxu0 0.0
    %3830 = vmatprep.subr.mxu0 0.0
    %3831 = vmatpush1.msra.mxu0 0.0
    %3832 = vmatprep.subr.mxu0 0.0
    %3833 = vmatpush1.msra.mxu0 0.0
    %3834 = vmatprep.subr.mxu0 0.0
    %3835 = vmatpush1.msra.mxu0 0.0
    %3836 = vmatprep.mubr.f32.mxu0 0.0
    %3837 = vmatmul.mubr.f32.gmra.mrb[0].mxu0 %v3770
    %v3838 = vpop.f32.mrb[0].mxu0
    %v3839 = vadd.f32 0.0, %v3838
    %v3840 = vpop.f32.mrb[0].mxu0
    %3841 = vdwg.mxu0
    %v3843 = vsel %vm1423, %v2818, 0
    %3845 = vmatprep.subr.mxu0 0.0
    %3846 = vmatpush1.msra.mxu0 %v1419
    %3847 = vmatprep.subr.mxu0 0.0
    %3848 = vmatpush1.msra.mxu0 %v1420
    %3849 = vmatprep.subr.mxu0 0.0
    %3850 = vmatpush1.msra.mxu0 0.0
    %3851 = vmatprep.subr.mxu0 0.0
    %3852 = vmatpush1.msra.mxu0 0.0
    %3853 = vmatprep.subr.mxu0 0.0
    %3854 = vmatpush1.msra.mxu0 0.0
    %3855 = vmatprep.subr.mxu0 0.0
    %3856 = vmatpush1.msra.mxu0 0.0
    %3857 = vmatprep.subr.mxu0 0.0
    %3858 = vmatpush1.msra.mxu0 0.0
    %3859 = vmatprep.subr.mxu0 0.0
    %3860 = vmatpush1.msra.mxu0 0.0
    %3861 = vmatprep.subr.mxu0 0.0
    %3862 = vmatpush1.msra.mxu0 0.0
    %3863 = vmatprep.subr.mxu0 0.0
    %3864 = vmatpush1.msra.mxu0 0.0
    %3865 = vmatprep.subr.mxu0 0.0
    %3866 = vmatpush1.msra.mxu0 0.0
    %3867 = vmatprep.subr.mxu0 0.0
    %3868 = vmatpush1.msra.mxu0 0.0
    %3869 = vmatprep.subr.mxu0 0.0
    %3870 = vmatpush1.msra.mxu0 0.0
    %3871 = vmatprep.subr.mxu0 0.0
    %3872 = vmatpush1.msra.mxu0 0.0
    %3873 = vmatprep.subr.mxu0 0.0
    %3874 = vmatpush1.msra.mxu0 0.0
    %3875 = vmatprep.subr.mxu0 0.0
    %3876 = vmatpush1.msra.mxu0 0.0
    %3877 = vmatprep.subr.mxu0 0.0
    %3878 = vmatpush1.msra.mxu0 0.0
    %3879 = vmatprep.subr.mxu0 0.0
    %3880 = vmatpush1.msra.mxu0 0.0
    %3881 = vmatprep.subr.mxu0 0.0
    %3882 = vmatpush1.msra.mxu0 0.0
    %3883 = vmatprep.subr.mxu0 0.0
    %3884 = vmatpush1.msra.mxu0 0.0
    %3885 = vmatprep.subr.mxu0 0.0
    %3886 = vmatpush1.msra.mxu0 0.0
    %3887 = vmatprep.subr.mxu0 0.0
    %3888 = vmatpush1.msra.mxu0 0.0
    %3889 = vmatprep.subr.mxu0 0.0
    %3890 = vmatpush1.msra.mxu0 0.0
    %3891 = vmatprep.subr.mxu0 0.0
    %3892 = vmatpush1.msra.mxu0 0.0
    %3893 = vmatprep.subr.mxu0 0.0
    %3894 = vmatpush1.msra.mxu0 0.0
    %3895 = vmatprep.subr.mxu0 0.0
    %3896 = vmatpush1.msra.mxu0 0.0
    %3897 = vmatprep.subr.mxu0 0.0
    %3898 = vmatpush1.msra.mxu0 0.0
    %3899 = vmatprep.subr.mxu0 0.0
    %3900 = vmatpush1.msra.mxu0 0.0
    %3901 = vmatprep.subr.mxu0 0.0
    %3902 = vmatpush1.msra.mxu0 0.0
    %3903 = vmatprep.subr.mxu0 0.0
    %3904 = vmatpush1.msra.mxu0 0.0
    %3905 = vmatprep.subr.mxu0 0.0
    %3906 = vmatpush1.msra.mxu0 0.0
    %3907 = vmatprep.subr.mxu0 0.0
    %3908 = vmatpush1.msra.mxu0 0.0
    %3909 = vmatprep.mubr.f32.mxu0 0.0
    %3910 = vmatmul.mubr.f32.gmra.mrb[0].mxu0 %v3843
    %v3911 = vpop.f32.mrb[0].mxu0
    %v3912 = vadd.f32 0.0, %v3911
    %v3913 = vpop.f32.mrb[0].mxu0
    %3914 = vdwg.mxu0
    %v3916 = vsel %vm1423, %v2819, 0
    %3918 = vmatprep.subr.mxu0 0.0
    %3919 = vmatpush1.msra.mxu0 %v1421
    %3920 = vmatprep.subr.mxu0 0.0
    %3921 = vmatpush1.msra.mxu0 %v1422
    %3922 = vmatprep.subr.mxu0 0.0
    %3923 = vmatpush1.msra.mxu0 0.0
    %3924 = vmatprep.subr.mxu0 0.0
    %3925 = vmatpush1.msra.mxu0 0.0
    %3926 = vmatprep.subr.mxu0 0.0
    %3927 = vmatpush1.msra.mxu0 0.0
    %3928 = vmatprep.subr.mxu0 0.0
    %3929 = vmatpush1.msra.mxu0 0.0
    %3930 = vmatprep.subr.mxu0 0.0
    %3931 = vmatpush1.msra.mxu0 0.0
    %3932 = vmatprep.subr.mxu0 0.0
    %3933 = vmatpush1.msra.mxu0 0.0
    %3934 = vmatprep.subr.mxu0 0.0
    %3935 = vmatpush1.msra.mxu0 0.0
    %3936 = vmatprep.subr.mxu0 0.0
    %3937 = vmatpush1.msra.mxu0 0.0
    %3938 = vmatprep.subr.mxu0 0.0
    %3939 = vmatpush1.msra.mxu0 0.0
    %3940 = vmatprep.subr.mxu0 0.0
    %3941 = vmatpush1.msra.mxu0 0.0
    %3942 = vmatprep.subr.mxu0 0.0
    %3943 = vmatpush1.msra.mxu0 0.0
    %3944 = vmatprep.subr.mxu0 0.0
    %3945 = vmatpush1.msra.mxu0 0.0
    %3946 = vmatprep.subr.mxu0 0.0
    %3947 = vmatpush1.msra.mxu0 0.0
    %3948 = vmatprep.subr.mxu0 0.0
    %3949 = vmatpush1.msra.mxu0 0.0
    %3950 = vmatprep.subr.mxu0 0.0
    %3951 = vmatpush1.msra.mxu0 0.0
    %3952 = vmatprep.subr.mxu0 0.0
    %3953 = vmatpush1.msra.mxu0 0.0
    %3954 = vmatprep.subr.mxu0 0.0
    %3955 = vmatpush1.msra.mxu0 0.0
    %3956 = vmatprep.subr.mxu0 0.0
    %3957 = vmatpush1.msra.mxu0 0.0
    %3958 = vmatprep.subr.mxu0 0.0
    %3959 = vmatpush1.msra.mxu0 0.0
    %3960 = vmatprep.subr.mxu0 0.0
    %3961 = vmatpush1.msra.mxu0 0.0
    %3962 = vmatprep.subr.mxu0 0.0
    %3963 = vmatpush1.msra.mxu0 0.0
    %3964 = vmatprep.subr.mxu0 0.0
    %3965 = vmatpush1.msra.mxu0 0.0
    %3966 = vmatprep.subr.mxu0 0.0
    %3967 = vmatpush1.msra.mxu0 0.0
    %3968 = vmatprep.subr.mxu0 0.0
    %3969 = vmatpush1.msra.mxu0 0.0
    %3970 = vmatprep.subr.mxu0 0.0
    %3971 = vmatpush1.msra.mxu0 0.0
    %3972 = vmatprep.subr.mxu0 0.0
    %3973 = vmatpush1.msra.mxu0 0.0
    %3974 = vmatprep.subr.mxu0 0.0
    %3975 = vmatpush1.msra.mxu0 0.0
    %3976 = vmatprep.subr.mxu0 0.0
    %3977 = vmatpush1.msra.mxu0 0.0
    %3978 = vmatprep.subr.mxu0 0.0
    %3979 = vmatpush1.msra.mxu0 0.0
    %3980 = vmatprep.subr.mxu0 0.0
    %3981 = vmatpush1.msra.mxu0 0.0
    %3982 = vmatprep.mubr.f32.mxu0 0.0
    %3983 = vmatmul.mubr.f32.gmra.mrb[0].mxu0 %v3916
    %v3984 = vpop.f32.mrb[0].mxu0
    %v3985 = vadd.f32 0.0, %v3984
    %v3986 = vpop.f32.mrb[0].mxu0
    %3987 = vdwg.mxu0
    %v3988 = vsel %vm2659, %v2890, -inf
    %3989 = vmax.xlane.f32.xlu0 %v3988
    %v3990 = vpop.xlane.xlu0 %3989
    %v3991 = vsel %vm2659, %v2963, -inf
    %3992 = vmax.xlane.f32.xlu0 %v3991
    %v3993 = vpop.xlane.xlu0 %3992
    %v3994 = vsel %vm2659, %v3036, -inf
    %3995 = vmax.xlane.f32.xlu0 %v3994
    %v3996 = vpop.xlane.xlu0 %3995
    %v3997 = vsel %vm2659, %v3109, -inf
    %3998 = vmax.xlane.f32.xlu0 %v3997
    %v3999 = vpop.xlane.xlu0 %3998
    %v4000 = vsel %vm2659, %v3182, -inf
    %4001 = vmax.xlane.f32.xlu0 %v4000
    %v4002 = vpop.xlane.xlu0 %4001
    %v4003 = vsel %vm2659, %v3255, -inf
    %4004 = vmax.xlane.f32.xlu0 %v4003
    %v4005 = vpop.xlane.xlu0 %4004
    %v4006 = vsel %vm2659, %v3328, -inf
    %4007 = vmax.xlane.f32.xlu0 %v4006
    %v4008 = vpop.xlane.xlu0 %4007
    %v4009 = vsel %vm2659, %v3401, -inf
    %4010 = vmax.xlane.f32.xlu0 %v4009
    %v4011 = vpop.xlane.xlu0 %4010
    %v4012 = vsel %vm2659, %v3474, -inf
    %4013 = vmax.xlane.f32.xlu0 %v4012
    %v4014 = vpop.xlane.xlu0 %4013
    %v4015 = vsel %vm2659, %v3547, -inf
    %4016 = vmax.xlane.f32.xlu0 %v4015
    %v4017 = vpop.xlane.xlu0 %4016
    %v4018 = vsel %vm2659, %v3620, -inf
    %4019 = vmax.xlane.f32.xlu0 %v4018
    %v4020 = vpop.xlane.xlu0 %4019
    %v4021 = vsel %vm2659, %v3693, -inf
    %4022 = vmax.xlane.f32.xlu0 %v4021
    %v4023 = vpop.xlane.xlu0 %4022
    %v4024 = vsel %vm2659, %v3766, -inf
    %4025 = vmax.xlane.f32.xlu0 %v4024
    %v4026 = vpop.xlane.xlu0 %4025
    %v4027 = vsel %vm2659, %v3839, -inf
    %4028 = vmax.xlane.f32.xlu0 %v4027
    %v4029 = vpop.xlane.xlu0 %4028
    %v4030 = vsel %vm2659, %v3912, -inf
    %4031 = vmax.xlane.f32.xlu0 %v4030
    %v4032 = vpop.xlane.xlu0 %4031
    %v4033 = vsel %vm2659, %v3985, -inf
    %4034 = vmax.xlane.f32.xlu0 %v4033
    %v4035 = vpop.xlane.xlu0 %4034
    %v4036 = vsub.f32 %v2890, %v3990
    %v4037 = vsub.f32 %v2963, %v3993
    %v4038 = vsub.f32 %v3036, %v3996
    %v4039 = vsub.f32 %v3109, %v3999
    %v4040 = vsub.f32 %v3182, %v4002
    %v4041 = vsub.f32 %v3255, %v4005
    %v4042 = vsub.f32 %v3328, %v4008
    %v4043 = vsub.f32 %v3401, %v4011
    %v4044 = vsub.f32 %v3474, %v4014
    %v4045 = vsub.f32 %v3547, %v4017
    %v4046 = vsub.f32 %v3620, %v4020
    %v4047 = vsub.f32 %v3693, %v4023
    %v4048 = vsub.f32 %v3766, %v4026
    %v4049 = vsub.f32 %v3839, %v4029
    %v4050 = vsub.f32 %v3912, %v4032
    %v4051 = vsub.f32 %v3985, %v4035
    %v4052 = vmul.f32 %v4036, 1.442695
    %v4053 = vpow.pop %v4052
    %v4054 = vmul.f32 %v4037, 1.442695
    %v4055 = vpow.pop %v4054
    %v4056 = vmul.f32 %v4038, 1.442695
    %v4057 = vpow.pop %v4056
    %v4058 = vmul.f32 %v4039, 1.442695
    %v4059 = vpow.pop %v4058
    %v4060 = vmul.f32 %v4040, 1.442695
    %v4061 = vpow.pop %v4060
    %v4062 = vmul.f32 %v4041, 1.442695
    %v4063 = vpow.pop %v4062
    %v4064 = vmul.f32 %v4042, 1.442695
    %v4065 = vpow.pop %v4064
    %v4066 = vmul.f32 %v4043, 1.442695
    %v4067 = vpow.pop %v4066
    %v4068 = vmul.f32 %v4044, 1.442695
    %v4069 = vpow.pop %v4068
    %v4070 = vmul.f32 %v4045, 1.442695
    %v4071 = vpow.pop %v4070
    %v4072 = vmul.f32 %v4046, 1.442695
    %v4073 = vpow.pop %v4072
    %v4074 = vmul.f32 %v4047, 1.442695
    %v4075 = vpow.pop %v4074
    %v4076 = vmul.f32 %v4048, 1.442695
    %v4077 = vpow.pop %v4076
    %v4078 = vmul.f32 %v4049, 1.442695
    %v4079 = vpow.pop %v4078
    %v4080 = vmul.f32 %v4050, 1.442695
    %v4081 = vpow.pop %v4080
    %v4082 = vmul.f32 %v4051, 1.442695
    %v4083 = vpow.pop %v4082
    %v4084 = vsel %vm2659, %v4053, 0.0
    %4085 = vadd.xlane.f32.xlu0 %v4084
    %v4086 = vpop.xlane.xlu0 %4085
    %v4087 = vsel %vm2659, %v4055, 0.0
    %4088 = vadd.xlane.f32.xlu0 %v4087
    %v4089 = vpop.xlane.xlu0 %4088
    %v4090 = vsel %vm2659, %v4057, 0.0
    %4091 = vadd.xlane.f32.xlu0 %v4090
    %v4092 = vpop.xlane.xlu0 %4091
    %v4093 = vsel %vm2659, %v4059, 0.0
    %4094 = vadd.xlane.f32.xlu0 %v4093
    %v4095 = vpop.xlane.xlu0 %4094
    %v4096 = vsel %vm2659, %v4061, 0.0
    %4097 = vadd.xlane.f32.xlu0 %v4096
    %v4098 = vpop.xlane.xlu0 %4097
    %v4099 = vsel %vm2659, %v4063, 0.0
    %4100 = vadd.xlane.f32.xlu0 %v4099
    %v4101 = vpop.xlane.xlu0 %4100
    %v4102 = vsel %vm2659, %v4065, 0.0
    %4103 = vadd.xlane.f32.xlu0 %v4102
    %v4104 = vpop.xlane.xlu0 %4103
    %v4105 = vsel %vm2659, %v4067, 0.0
    %4106 = vadd.xlane.f32.xlu0 %v4105
    %v4107 = vpop.xlane.xlu0 %4106
    %v4108 = vsel %vm2659, %v4069, 0.0
    %4109 = vadd.xlane.f32.xlu0 %v4108
    %v4110 = vpop.xlane.xlu0 %4109
    %v4111 = vsel %vm2659, %v4071, 0.0
    %4112 = vadd.xlane.f32.xlu0 %v4111
    %v4113 = vpop.xlane.xlu0 %4112
    %v4114 = vsel %vm2659, %v4073, 0.0
    %4115 = vadd.xlane.f32.xlu0 %v4114
    %v4116 = vpop.xlane.xlu0 %4115
    %v4117 = vsel %vm2659, %v4075, 0.0
    %4118 = vadd.xlane.f32.xlu0 %v4117
    %v4119 = vpop.xlane.xlu0 %4118
    %v4120 = vsel %vm2659, %v4077, 0.0
    %4121 = vadd.xlane.f32.xlu0 %v4120
    %v4122 = vpop.xlane.xlu0 %4121
    %v4123 = vsel %vm2659, %v4079, 0.0
    %4124 = vadd.xlane.f32.xlu0 %v4123
    %v4125 = vpop.xlane.xlu0 %4124
    %v4126 = vsel %vm2659, %v4081, 0.0
    %4127 = vadd.xlane.f32.xlu0 %v4126
    %v4128 = vpop.xlane.xlu0 %4127
    %v4129 = vsel %vm2659, %v4083, 0.0
    %4130 = vadd.xlane.f32.xlu0 %v4129
    %v4131 = vpop.xlane.xlu0 %4130
    %v4132 = vrcp.pop %v4086
    %v4133 = vmul.f32 %v4053, %v4132
    %v4134 = vrcp.pop %v4089
    %v4135 = vmul.f32 %v4055, %v4134
    %v4136 = vrcp.pop %v4092
    %v4137 = vmul.f32 %v4057, %v4136
    %v4138 = vrcp.pop %v4095
    %v4139 = vmul.f32 %v4059, %v4138
    %v4140 = vrcp.pop %v4098
    %v4141 = vmul.f32 %v4061, %v4140
    %v4142 = vrcp.pop %v4101
    %v4143 = vmul.f32 %v4063, %v4142
    %v4144 = vrcp.pop %v4104
    %v4145 = vmul.f32 %v4065, %v4144
    %v4146 = vrcp.pop %v4107
    %v4147 = vmul.f32 %v4067, %v4146
    %v4148 = vrcp.pop %v4110
    %v4149 = vmul.f32 %v4069, %v4148
    %v4150 = vrcp.pop %v4113
    %v4151 = vmul.f32 %v4071, %v4150
    %v4152 = vrcp.pop %v4116
    %v4153 = vmul.f32 %v4073, %v4152
    %v4154 = vrcp.pop %v4119
    %v4155 = vmul.f32 %v4075, %v4154
    %v4156 = vrcp.pop %v4122
    %v4157 = vmul.f32 %v4077, %v4156
    %v4158 = vrcp.pop %v4125
    %v4159 = vmul.f32 %v4079, %v4158
    %v4160 = vrcp.pop %v4128
    %v4161 = vmul.f32 %v4081, %v4160
    %v4162 = vrcp.pop %v4131
    %v4163 = vmul.f32 %v4083, %v4162
    %v4165 = vsel %vm1423, %v4133, 0
    %4167 = vmatprep.subr.mxu0 0.0
    %4168 = vmatpush1.xpose.msra.mxu0 %v1428
    %4169 = vmatprep.subr.mxu0 0.0
    %4170 = vmatpush1.xpose.msra.mxu0 %v1431
    %4171 = vmatprep.subr.mxu0 0.0
    %4172 = vmatpush1.xpose.msra.mxu0 0.0
    %4173 = vmatprep.subr.mxu0 0.0
    %4174 = vmatpush1.xpose.msra.mxu0 0.0
    %4175 = vmatprep.subr.mxu0 0.0
    %4176 = vmatpush1.xpose.msra.mxu0 0.0
    %4177 = vmatprep.subr.mxu0 0.0
    %4178 = vmatpush1.xpose.msra.mxu0 0.0
    %4179 = vmatprep.subr.mxu0 0.0
    %4180 = vmatpush1.xpose.msra.mxu0 0.0
    %4181 = vmatprep.subr.mxu0 0.0
    %4182 = vmatpush1.xpose.msra.mxu0 0.0
    %4183 = vmatprep.subr.mxu0 0.0
    %4184 = vmatpush1.xpose.msra.mxu0 0.0
    %4185 = vmatprep.subr.mxu0 0.0
    %4186 = vmatpush1.xpose.msra.mxu0 0.0
    %4187 = vmatprep.subr.mxu0 0.0
    %4188 = vmatpush1.xpose.msra.mxu0 0.0
    %4189 = vmatprep.subr.mxu0 0.0
    %4190 = vmatpush1.xpose.msra.mxu0 0.0
    %4191 = vmatprep.subr.mxu0 0.0
    %4192 = vmatpush1.xpose.msra.mxu0 0.0
    %4193 = vmatprep.subr.mxu0 0.0
    %4194 = vmatpush1.xpose.msra.mxu0 0.0
    %4195 = vmatprep.subr.mxu0 0.0
    %4196 = vmatpush1.xpose.msra.mxu0 0.0
    %4197 = vmatprep.subr.mxu0 0.0
    %4198 = vmatpush1.xpose.msra.mxu0 0.0
    %4199 = vmatprep.subr.mxu0 0.0
    %4200 = vmatpush1.xpose.msra.mxu0 0.0
    %4201 = vmatprep.subr.mxu0 0.0
    %4202 = vmatpush1.xpose.msra.mxu0 0.0
    %4203 = vmatprep.subr.mxu0 0.0
    %4204 = vmatpush1.xpose.msra.mxu0 0.0
    %4205 = vmatprep.subr.mxu0 0.0
    %4206 = vmatpush1.xpose.msra.mxu0 0.0
    %4207 = vmatprep.subr.mxu0 0.0
    %4208 = vmatpush1.xpose.msra.mxu0 0.0
    %4209 = vmatprep.subr.mxu0 0.0
    %4210 = vmatpush1.xpose.msra.mxu0 0.0
    %4211 = vmatprep.subr.mxu0 0.0
    %4212 = vmatpush1.xpose.msra.mxu0 0.0
    %4213 = vmatprep.subr.mxu0 0.0
    %4214 = vmatpush1.xpose.msra.mxu0 0.0
    %4215 = vmatprep.subr.mxu0 0.0
    %4216 = vmatpush1.xpose.msra.mxu0 0.0
    %4217 = vmatprep.subr.mxu0 0.0
    %4218 = vmatpush1.xpose.msra.mxu0 0.0
    %4219 = vmatprep.subr.mxu0 0.0
    %4220 = vmatpush1.xpose.msra.mxu0 0.0
    %4221 = vmatprep.subr.mxu0 0.0
    %4222 = vmatpush1.xpose.msra.mxu0 0.0
    %4223 = vmatprep.subr.mxu0 0.0
    %4224 = vmatpush1.xpose.msra.mxu0 0.0
    %4225 = vmatprep.subr.mxu0 0.0
    %4226 = vmatpush1.xpose.msra.mxu0 0.0
    %4227 = vmatprep.subr.mxu0 0.0
    %4228 = vmatpush1.xpose.msra.mxu0 0.0
    %4229 = vmatprep.subr.mxu0 0.0
    %4230 = vmatpush1.xpose.msra.mxu0 0.0
    %4231 = vmatprep.mubr.f32.mxu0 0.0
    %4232 = vmatmul.mubr.f32.gmra.mrb[0].mxu0 %v4165
    %v4233 = vpop.f32.mrb[0].mxu0
    %v4234 = vadd.f32 0.0, %v4233
    %v4235 = vpop.f32.mrb[0].mxu0
    %4236 = vdwg.mxu0
    %v4238 = vsel %vm1423, %v4135, 0
    %4240 = vmatprep.subr.mxu0 0.0
    %4241 = vmatpush1.xpose.msra.mxu0 %v1504
    %4242 = vmatprep.subr.mxu0 0.0
    %4243 = vmatpush1.xpose.msra.mxu0 %v1507
    %4244 = vmatprep.subr.mxu0 0.0
    %4245 = vmatpush1.xpose.msra.mxu0 0.0
    %4246 = vmatprep.subr.mxu0 0.0
    %4247 = vmatpush1.xpose.msra.mxu0 0.0
    %4248 = vmatprep.subr.mxu0 0.0
    %4249 = vmatpush1.xpose.msra.mxu0 0.0
    %4250 = vmatprep.subr.mxu0 0.0
    %4251 = vmatpush1.xpose.msra.mxu0 0.0
    %4252 = vmatprep.subr.mxu0 0.0
    %4253 = vmatpush1.xpose.msra.mxu0 0.0
    %4254 = vmatprep.subr.mxu0 0.0
    %4255 = vmatpush1.xpose.msra.mxu0 0.0
    %4256 = vmatprep.subr.mxu0 0.0
    %4257 = vmatpush1.xpose.msra.mxu0 0.0
    %4258 = vmatprep.subr.mxu0 0.0
    %4259 = vmatpush1.xpose.msra.mxu0 0.0
    %4260 = vmatprep.subr.mxu0 0.0
    %4261 = vmatpush1.xpose.msra.mxu0 0.0
    %4262 = vmatprep.subr.mxu0 0.0
    %4263 = vmatpush1.xpose.msra.mxu0 0.0
    %4264 = vmatprep.subr.mxu0 0.0
    %4265 = vmatpush1.xpose.msra.mxu0 0.0
    %4266 = vmatprep.subr.mxu0 0.0
    %4267 = vmatpush1.xpose.msra.mxu0 0.0
    %4268 = vmatprep.subr.mxu0 0.0
    %4269 = vmatpush1.xpose.msra.mxu0 0.0
    %4270 = vmatprep.subr.mxu0 0.0
    %4271 = vmatpush1.xpose.msra.mxu0 0.0
    %4272 = vmatprep.subr.mxu0 0.0
    %4273 = vmatpush1.xpose.msra.mxu0 0.0
    %4274 = vmatprep.subr.mxu0 0.0
    %4275 = vmatpush1.xpose.msra.mxu0 0.0
    %4276 = vmatprep.subr.mxu0 0.0
    %4277 = vmatpush1.xpose.msra.mxu0 0.0
    %4278 = vmatprep.subr.mxu0 0.0
    %4279 = vmatpush1.xpose.msra.mxu0 0.0
    %4280 = vmatprep.subr.mxu0 0.0
    %4281 = vmatpush1.xpose.msra.mxu0 0.0
    %4282 = vmatprep.subr.mxu0 0.0
    %4283 = vmatpush1.xpose.msra.mxu0 0.0
    %4284 = vmatprep.subr.mxu0 0.0
    %4285 = vmatpush1.xpose.msra.mxu0 0.0
    %4286 = vmatprep.subr.mxu0 0.0
    %4287 = vmatpush1.xpose.msra.mxu0 0.0
    %4288 = vmatprep.subr.mxu0 0.0
    %4289 = vmatpush1.xpose.msra.mxu0 0.0
    %4290 = vmatprep.subr.mxu0 0.0
    %4291 = vmatpush1.xpose.msra.mxu0 0.0
    %4292 = vmatprep.subr.mxu0 0.0
    %4293 = vmatpush1.xpose.msra.mxu0 0.0
    %4294 = vmatprep.subr.mxu0 0.0
    %4295 = vmatpush1.xpose.msra.mxu0 0.0
    %4296 = vmatprep.subr.mxu0 0.0
    %4297 = vmatpush1.xpose.msra.mxu0 0.0
    %4298 = vmatprep.subr.mxu0 0.0
    %4299 = vmatpush1.xpose.msra.mxu0 0.0
    %4300 = vmatprep.subr.mxu0 0.0
    %4301 = vmatpush1.xpose.msra.mxu0 0.0
    %4302 = vmatprep.subr.mxu0 0.0
    %4303 = vmatpush1.xpose.msra.mxu0 0.0
    %4304 = vmatprep.mubr.f32.mxu0 0.0
    %4305 = vmatmul.mubr.f32.gmra.mrb[0].mxu0 %v4238
    %v4306 = vpop.f32.mrb[0].mxu0
    %v4307 = vadd.f32 0.0, %v4306
    %v4308 = vpop.f32.mrb[0].mxu0
    %4309 = vdwg.mxu0
    %v4311 = vsel %vm1423, %v4137, 0
    %4313 = vmatprep.subr.mxu0 0.0
    %4314 = vmatpush1.xpose.msra.mxu0 %v1580
    %4315 = vmatprep.subr.mxu0 0.0
    %4316 = vmatpush1.xpose.msra.mxu0 %v1583
    %4317 = vmatprep.subr.mxu0 0.0
    %4318 = vmatpush1.xpose.msra.mxu0 0.0
    %4319 = vmatprep.subr.mxu0 0.0
    %4320 = vmatpush1.xpose.msra.mxu0 0.0
    %4321 = vmatprep.subr.mxu0 0.0
    %4322 = vmatpush1.xpose.msra.mxu0 0.0
    %4323 = vmatprep.subr.mxu0 0.0
    %4324 = vmatpush1.xpose.msra.mxu0 0.0
    %4325 = vmatprep.subr.mxu0 0.0
    %4326 = vmatpush1.xpose.msra.mxu0 0.0
    %4327 = vmatprep.subr.mxu0 0.0
    %4328 = vmatpush1.xpose.msra.mxu0 0.0
    %4329 = vmatprep.subr.mxu0 0.0
    %4330 = vmatpush1.xpose.msra.mxu0 0.0
    %4331 = vmatprep.subr.mxu0 0.0
    %4332 = vmatpush1.xpose.msra.mxu0 0.0
    %4333 = vmatprep.subr.mxu0 0.0
    %4334 = vmatpush1.xpose.msra.mxu0 0.0
    %4335 = vmatprep.subr.mxu0 0.0
    %4336 = vmatpush1.xpose.msra.mxu0 0.0
    %4337 = vmatprep.subr.mxu0 0.0
    %4338 = vmatpush1.xpose.msra.mxu0 0.0
    %4339 = vmatprep.subr.mxu0 0.0
    %4340 = vmatpush1.xpose.msra.mxu0 0.0
    %4341 = vmatprep.subr.mxu0 0.0
    %4342 = vmatpush1.xpose.msra.mxu0 0.0
    %4343 = vmatprep.subr.mxu0 0.0
    %4344 = vmatpush1.xpose.msra.mxu0 0.0
    %4345 = vmatprep.subr.mxu0 0.0
    %4346 = vmatpush1.xpose.msra.mxu0 0.0
    %4347 = vmatprep.subr.mxu0 0.0
    %4348 = vmatpush1.xpose.msra.mxu0 0.0
    %4349 = vmatprep.subr.mxu0 0.0
    %4350 = vmatpush1.xpose.msra.mxu0 0.0
    %4351 = vmatprep.subr.mxu0 0.0
    %4352 = vmatpush1.xpose.msra.mxu0 0.0
    %4353 = vmatprep.subr.mxu0 0.0
    %4354 = vmatpush1.xpose.msra.mxu0 0.0
    %4355 = vmatprep.subr.mxu0 0.0
    %4356 = vmatpush1.xpose.msra.mxu0 0.0
    %4357 = vmatprep.subr.mxu0 0.0
    %4358 = vmatpush1.xpose.msra.mxu0 0.0
    %4359 = vmatprep.subr.mxu0 0.0
    %4360 = vmatpush1.xpose.msra.mxu0 0.0
    %4361 = vmatprep.subr.mxu0 0.0
    %4362 = vmatpush1.xpose.msra.mxu0 0.0
    %4363 = vmatprep.subr.mxu0 0.0
    %4364 = vmatpush1.xpose.msra.mxu0 0.0
    %4365 = vmatprep.subr.mxu0 0.0
    %4366 = vmatpush1.xpose.msra.mxu0 0.0
    %4367 = vmatprep.subr.mxu0 0.0
    %4368 = vmatpush1.xpose.msra.mxu0 0.0
    %4369 = vmatprep.subr.mxu0 0.0
    %4370 = vmatpush1.xpose.msra.mxu0 0.0
    %4371 = vmatprep.subr.mxu0 0.0
    %4372 = vmatpush1.xpose.msra.mxu0 0.0
    %4373 = vmatprep.subr.mxu0 0.0
    %4374 = vmatpush1.xpose.msra.mxu0 0.0
    %4375 = vmatprep.subr.mxu0 0.0
    %4376 = vmatpush1.xpose.msra.mxu0 0.0
    %4377 = vmatprep.mubr.f32.mxu0 0.0
    %4378 = vmatmul.mubr.f32.gmra.mrb[0].mxu0 %v4311
    %v4379 = vpop.f32.mrb[0].mxu0
    %v4380 = vadd.f32 0.0, %v4379
    %v4381 = vpop.f32.mrb[0].mxu0
    %4382 = vdwg.mxu0
    %v4384 = vsel %vm1423, %v4139, 0
    %4386 = vmatprep.subr.mxu0 0.0
    %4387 = vmatpush1.xpose.msra.mxu0 %v1656
    %4388 = vmatprep.subr.mxu0 0.0
    %4389 = vmatpush1.xpose.msra.mxu0 %v1659
    %4390 = vmatprep.subr.mxu0 0.0
    %4391 = vmatpush1.xpose.msra.mxu0 0.0
    %4392 = vmatprep.subr.mxu0 0.0
    %4393 = vmatpush1.xpose.msra.mxu0 0.0
    %4394 = vmatprep.subr.mxu0 0.0
    %4395 = vmatpush1.xpose.msra.mxu0 0.0
    %4396 = vmatprep.subr.mxu0 0.0
    %4397 = vmatpush1.xpose.msra.mxu0 0.0
    %4398 = vmatprep.subr.mxu0 0.0
    %4399 = vmatpush1.xpose.msra.mxu0 0.0
    %4400 = vmatprep.subr.mxu0 0.0
    %4401 = vmatpush1.xpose.msra.mxu0 0.0
    %4402 = vmatprep.subr.mxu0 0.0
    %4403 = vmatpush1.xpose.msra.mxu0 0.0
    %4404 = vmatprep.subr.mxu0 0.0
    %4405 = vmatpush1.xpose.msra.mxu0 0.0
    %4406 = vmatprep.subr.mxu0 0.0
    %4407 = vmatpush1.xpose.msra.mxu0 0.0
    %4408 = vmatprep.subr.mxu0 0.0
    %4409 = vmatpush1.xpose.msra.mxu0 0.0
    %4410 = vmatprep.subr.mxu0 0.0
    %4411 = vmatpush1.xpose.msra.mxu0 0.0
    %4412 = vmatprep.subr.mxu0 0.0
    %4413 = vmatpush1.xpose.msra.mxu0 0.0
    %4414 = vmatprep.subr.mxu0 0.0
    %4415 = vmatpush1.xpose.msra.mxu0 0.0
    %4416 = vmatprep.subr.mxu0 0.0
    %4417 = vmatpush1.xpose.msra.mxu0 0.0
    %4418 = vmatprep.subr.mxu0 0.0
    %4419 = vmatpush1.xpose.msra.mxu0 0.0
    %4420 = vmatprep.subr.mxu0 0.0
    %4421 = vmatpush1.xpose.msra.mxu0 0.0
    %4422 = vmatprep.subr.mxu0 0.0
    %4423 = vmatpush1.xpose.msra.mxu0 0.0
    %4424 = vmatprep.subr.mxu0 0.0
    %4425 = vmatpush1.xpose.msra.mxu0 0.0
    %4426 = vmatprep.subr.mxu0 0.0
    %4427 = vmatpush1.xpose.msra.mxu0 0.0
    %4428 = vmatprep.subr.mxu0 0.0
    %4429 = vmatpush1.xpose.msra.mxu0 0.0
    %4430 = vmatprep.subr.mxu0 0.0
    %4431 = vmatpush1.xpose.msra.mxu0 0.0
    %4432 = vmatprep.subr.mxu0 0.0
    %4433 = vmatpush1.xpose.msra.mxu0 0.0
    %4434 = vmatprep.subr.mxu0 0.0
    %4435 = vmatpush1.xpose.msra.mxu0 0.0
    %4436 = vmatprep.subr.mxu0 0.0
    %4437 = vmatpush1.xpose.msra.mxu0 0.0
    %4438 = vmatprep.subr.mxu0 0.0
    %4439 = vmatpush1.xpose.msra.mxu0 0.0
    %4440 = vmatprep.subr.mxu0 0.0
    %4441 = vmatpush1.xpose.msra.mxu0 0.0
    %4442 = vmatprep.subr.mxu0 0.0
    %4443 = vmatpush1.xpose.msra.mxu0 0.0
    %4444 = vmatprep.subr.mxu0 0.0
    %4445 = vmatpush1.xpose.msra.mxu0 0.0
    %4446 = vmatprep.subr.mxu0 0.0
    %4447 = vmatpush1.xpose.msra.mxu0 0.0
    %4448 = vmatprep.subr.mxu0 0.0
    %4449 = vmatpush1.xpose.msra.mxu0 0.0
    %4450 = vmatprep.mubr.f32.mxu0 0.0
    %4451 = vmatmul.mubr.f32.gmra.mrb[0].mxu0 %v4384
    %v4452 = vpop.f32.mrb[0].mxu0
    %v4453 = vadd.f32 0.0, %v4452
    %v4454 = vpop.f32.mrb[0].mxu0
    %4455 = vdwg.mxu0
    %v4457 = vsel %vm1423, %v4141, 0
    %4459 = vmatprep.subr.mxu0 0.0
    %4460 = vmatpush1.xpose.msra.mxu0 %v1732
    %4461 = vmatprep.subr.mxu0 0.0
    %4462 = vmatpush1.xpose.msra.mxu0 %v1735
    %4463 = vmatprep.subr.mxu0 0.0
    %4464 = vmatpush1.xpose.msra.mxu0 0.0
    %4465 = vmatprep.subr.mxu0 0.0
    %4466 = vmatpush1.xpose.msra.mxu0 0.0
    %4467 = vmatprep.subr.mxu0 0.0
    %4468 = vmatpush1.xpose.msra.mxu0 0.0
    %4469 = vmatprep.subr.mxu0 0.0
    %4470 = vmatpush1.xpose.msra.mxu0 0.0
    %4471 = vmatprep.subr.mxu0 0.0
    %4472 = vmatpush1.xpose.msra.mxu0 0.0
    %4473 = vmatprep.subr.mxu0 0.0
    %4474 = vmatpush1.xpose.msra.mxu0 0.0
    %4475 = vmatprep.subr.mxu0 0.0
    %4476 = vmatpush1.xpose.msra.mxu0 0.0
    %4477 = vmatprep.subr.mxu0 0.0
    %4478 = vmatpush1.xpose.msra.mxu0 0.0
    %4479 = vmatprep.subr.mxu0 0.0
    %4480 = vmatpush1.xpose.msra.mxu0 0.0
    %4481 = vmatprep.subr.mxu0 0.0
    %4482 = vmatpush1.xpose.msra.mxu0 0.0
    %4483 = vmatprep.subr.mxu0 0.0
    %4484 = vmatpush1.xpose.msra.mxu0 0.0
    %4485 = vmatprep.subr.mxu0 0.0
    %4486 = vmatpush1.xpose.msra.mxu0 0.0
    %4487 = vmatprep.subr.mxu0 0.0
    %4488 = vmatpush1.xpose.msra.mxu0 0.0
    %4489 = vmatprep.subr.mxu0 0.0
    %4490 = vmatpush1.xpose.msra.mxu0 0.0
    %4491 = vmatprep.subr.mxu0 0.0
    %4492 = vmatpush1.xpose.msra.mxu0 0.0
    %4493 = vmatprep.subr.mxu0 0.0
    %4494 = vmatpush1.xpose.msra.mxu0 0.0
    %4495 = vmatprep.subr.mxu0 0.0
    %4496 = vmatpush1.xpose.msra.mxu0 0.0
    %4497 = vmatprep.subr.mxu0 0.0
    %4498 = vmatpush1.xpose.msra.mxu0 0.0
    %4499 = vmatprep.subr.mxu0 0.0
    %4500 = vmatpush1.xpose.msra.mxu0 0.0
    %4501 = vmatprep.subr.mxu0 0.0
    %4502 = vmatpush1.xpose.msra.mxu0 0.0
    %4503 = vmatprep.subr.mxu0 0.0
    %4504 = vmatpush1.xpose.msra.mxu0 0.0
    %4505 = vmatprep.subr.mxu0 0.0
    %4506 = vmatpush1.xpose.msra.mxu0 0.0
    %4507 = vmatprep.subr.mxu0 0.0
    %4508 = vmatpush1.xpose.msra.mxu0 0.0
    %4509 = vmatprep.subr.mxu0 0.0
    %4510 = vmatpush1.xpose.msra.mxu0 0.0
    %4511 = vmatprep.subr.mxu0 0.0
    %4512 = vmatpush1.xpose.msra.mxu0 0.0
    %4513 = vmatprep.subr.mxu0 0.0
    %4514 = vmatpush1.xpose.msra.mxu0 0.0
    %4515 = vmatprep.subr.mxu0 0.0
    %4516 = vmatpush1.xpose.msra.mxu0 0.0
    %4517 = vmatprep.subr.mxu0 0.0
    %4518 = vmatpush1.xpose.msra.mxu0 0.0
    %4519 = vmatprep.subr.mxu0 0.0
    %4520 = vmatpush1.xpose.msra.mxu0 0.0
    %4521 = vmatprep.subr.mxu0 0.0
    %4522 = vmatpush1.xpose.msra.mxu0 0.0
    %4523 = vmatprep.mubr.f32.mxu0 0.0
    %4524 = vmatmul.mubr.f32.gmra.mrb[0].mxu0 %v4457
    %v4525 = vpop.f32.mrb[0].mxu0
    %v4526 = vadd.f32 0.0, %v4525
    %v4527 = vpop.f32.mrb[0].mxu0
    %4528 = vdwg.mxu0
    %v4530 = vsel %vm1423, %v4143, 0
    %4532 = vmatprep.subr.mxu0 0.0
    %4533 = vmatpush1.xpose.msra.mxu0 %v1808
    %4534 = vmatprep.subr.mxu0 0.0
    %4535 = vmatpush1.xpose.msra.mxu0 %v1811
    %4536 = vmatprep.subr.mxu0 0.0
    %4537 = vmatpush1.xpose.msra.mxu0 0.0
    %4538 = vmatprep.subr.mxu0 0.0
    %4539 = vmatpush1.xpose.msra.mxu0 0.0
    %4540 = vmatprep.subr.mxu0 0.0
    %4541 = vmatpush1.xpose.msra.mxu0 0.0
    %4542 = vmatprep.subr.mxu0 0.0
    %4543 = vmatpush1.xpose.msra.mxu0 0.0
    %4544 = vmatprep.subr.mxu0 0.0
    %4545 = vmatpush1.xpose.msra.mxu0 0.0
    %4546 = vmatprep.subr.mxu0 0.0
    %4547 = vmatpush1.xpose.msra.mxu0 0.0
    %4548 = vmatprep.subr.mxu0 0.0
    %4549 = vmatpush1.xpose.msra.mxu0 0.0
    %4550 = vmatprep.subr.mxu0 0.0
    %4551 = vmatpush1.xpose.msra.mxu0 0.0
    %4552 = vmatprep.subr.mxu0 0.0
    %4553 = vmatpush1.xpose.msra.mxu0 0.0
    %4554 = vmatprep.subr.mxu0 0.0
    %4555 = vmatpush1.xpose.msra.mxu0 0.0
    %4556 = vmatprep.subr.mxu0 0.0
    %4557 = vmatpush1.xpose.msra.mxu0 0.0
    %4558 = vmatprep.subr.mxu0 0.0
    %4559 = vmatpush1.xpose.msra.mxu0 0.0
    %4560 = vmatprep.subr.mxu0 0.0
    %4561 = vmatpush1.xpose.msra.mxu0 0.0
    %4562 = vmatprep.subr.mxu0 0.0
    %4563 = vmatpush1.xpose.msra.mxu0 0.0
    %4564 = vmatprep.subr.mxu0 0.0
    %4565 = vmatpush1.xpose.msra.mxu0 0.0
    %4566 = vmatprep.subr.mxu0 0.0
    %4567 = vmatpush1.xpose.msra.mxu0 0.0
    %4568 = vmatprep.subr.mxu0 0.0
    %4569 = vmatpush1.xpose.msra.mxu0 0.0
    %4570 = vmatprep.subr.mxu0 0.0
    %4571 = vmatpush1.xpose.msra.mxu0 0.0
    %4572 = vmatprep.subr.mxu0 0.0
    %4573 = vmatpush1.xpose.msra.mxu0 0.0
    %4574 = vmatprep.subr.mxu0 0.0
    %4575 = vmatpush1.xpose.msra.mxu0 0.0
    %4576 = vmatprep.subr.mxu0 0.0
    %4577 = vmatpush1.xpose.msra.mxu0 0.0
    %4578 = vmatprep.subr.mxu0 0.0
    %4579 = vmatpush1.xpose.msra.mxu0 0.0
    %4580 = vmatprep.subr.mxu0 0.0
    %4581 = vmatpush1.xpose.msra.mxu0 0.0
    %4582 = vmatprep.subr.mxu0 0.0
    %4583 = vmatpush1.xpose.msra.mxu0 0.0
    %4584 = vmatprep.subr.mxu0 0.0
    %4585 = vmatpush1.xpose.msra.mxu0 0.0
    %4586 = vmatprep.subr.mxu0 0.0
    %4587 = vmatpush1.xpose.msra.mxu0 0.0
    %4588 = vmatprep.subr.mxu0 0.0
    %4589 = vmatpush1.xpose.msra.mxu0 0.0
    %4590 = vmatprep.subr.mxu0 0.0
    %4591 = vmatpush1.xpose.msra.mxu0 0.0
    %4592 = vmatprep.subr.mxu0 0.0
    %4593 = vmatpush1.xpose.msra.mxu0 0.0
    %4594 = vmatprep.subr.mxu0 0.0
    %4595 = vmatpush1.xpose.msra.mxu0 0.0
    %4596 = vmatprep.mubr.f32.mxu0 0.0
    %4597 = vmatmul.mubr.f32.gmra.mrb[0].mxu0 %v4530
    %v4598 = vpop.f32.mrb[0].mxu0
    %v4599 = vadd.f32 0.0, %v4598
    %v4600 = vpop.f32.mrb[0].mxu0
    %4601 = vdwg.mxu0
    %v4603 = vsel %vm1423, %v4145, 0
    %4605 = vmatprep.subr.mxu0 0.0
    %4606 = vmatpush1.xpose.msra.mxu0 %v1884
    %4607 = vmatprep.subr.mxu0 0.0
    %4608 = vmatpush1.xpose.msra.mxu0 %v1887
    %4609 = vmatprep.subr.mxu0 0.0
    %4610 = vmatpush1.xpose.msra.mxu0 0.0
    %4611 = vmatprep.subr.mxu0 0.0
    %4612 = vmatpush1.xpose.msra.mxu0 0.0
    %4613 = vmatprep.subr.mxu0 0.0
    %4614 = vmatpush1.xpose.msra.mxu0 0.0
    %4615 = vmatprep.subr.mxu0 0.0
    %4616 = vmatpush1.xpose.msra.mxu0 0.0
    %4617 = vmatprep.subr.mxu0 0.0
    %4618 = vmatpush1.xpose.msra.mxu0 0.0
    %4619 = vmatprep.subr.mxu0 0.0
    %4620 = vmatpush1.xpose.msra.mxu0 0.0
    %4621 = vmatprep.subr.mxu0 0.0
    %4622 = vmatpush1.xpose.msra.mxu0 0.0
    %4623 = vmatprep.subr.mxu0 0.0
    %4624 = vmatpush1.xpose.msra.mxu0 0.0
    %4625 = vmatprep.subr.mxu0 0.0
    %4626 = vmatpush1.xpose.msra.mxu0 0.0
    %4627 = vmatprep.subr.mxu0 0.0
    %4628 = vmatpush1.xpose.msra.mxu0 0.0
    %4629 = vmatprep.subr.mxu0 0.0
    %4630 = vmatpush1.xpose.msra.mxu0 0.0
    %4631 = vmatprep.subr.mxu0 0.0
    %4632 = vmatpush1.xpose.msra.mxu0 0.0
    %4633 = vmatprep.subr.mxu0 0.0
    %4634 = vmatpush1.xpose.msra.mxu0 0.0
    %4635 = vmatprep.subr.mxu0 0.0
    %4636 = vmatpush1.xpose.msra.mxu0 0.0
    %4637 = vmatprep.subr.mxu0 0.0
    %4638 = vmatpush1.xpose.msra.mxu0 0.0
    %4639 = vmatprep.subr.mxu0 0.0
    %4640 = vmatpush1.xpose.msra.mxu0 0.0
    %4641 = vmatprep.subr.mxu0 0.0
    %4642 = vmatpush1.xpose.msra.mxu0 0.0
    %4643 = vmatprep.subr.mxu0 0.0
    %4644 = vmatpush1.xpose.msra.mxu0 0.0
    %4645 = vmatprep.subr.mxu0 0.0
    %4646 = vmatpush1.xpose.msra.mxu0 0.0
    %4647 = vmatprep.subr.mxu0 0.0
    %4648 = vmatpush1.xpose.msra.mxu0 0.0
    %4649 = vmatprep.subr.mxu0 0.0
    %4650 = vmatpush1.xpose.msra.mxu0 0.0
    %4651 = vmatprep.subr.mxu0 0.0
    %4652 = vmatpush1.xpose.msra.mxu0 0.0
    %4653 = vmatprep.subr.mxu0 0.0
    %4654 = vmatpush1.xpose.msra.mxu0 0.0
    %4655 = vmatprep.subr.mxu0 0.0
    %4656 = vmatpush1.xpose.msra.mxu0 0.0
    %4657 = vmatprep.subr.mxu0 0.0
    %4658 = vmatpush1.xpose.msra.mxu0 0.0
    %4659 = vmatprep.subr.mxu0 0.0
    %4660 = vmatpush1.xpose.msra.mxu0 0.0
    %4661 = vmatprep.subr.mxu0 0.0
    %4662 = vmatpush1.xpose.msra.mxu0 0.0
    %4663 = vmatprep.subr.mxu0 0.0
    %4664 = vmatpush1.xpose.msra.mxu0 0.0
    %4665 = vmatprep.subr.mxu0 0.0
    %4666 = vmatpush1.xpose.msra.mxu0 0.0
    %4667 = vmatprep.subr.mxu0 0.0
    %4668 = vmatpush1.xpose.msra.mxu0 0.0
    %4669 = vmatprep.mubr.f32.mxu0 0.0
    %4670 = vmatmul.mubr.f32.gmra.mrb[0].mxu0 %v4603
    %v4671 = vpop.f32.mrb[0].mxu0
    %v4672 = vadd.f32 0.0, %v4671
    %v4673 = vpop.f32.mrb[0].mxu0
    %4674 = vdwg.mxu0
    %v4676 = vsel %vm1423, %v4147, 0
    %4678 = vmatprep.subr.mxu0 0.0
    %4679 = vmatpush1.xpose.msra.mxu0 %v1960
    %4680 = vmatprep.subr.mxu0 0.0
    %4681 = vmatpush1.xpose.msra.mxu0 %v1963
    %4682 = vmatprep.subr.mxu0 0.0
    %4683 = vmatpush1.xpose.msra.mxu0 0.0
    %4684 = vmatprep.subr.mxu0 0.0
    %4685 = vmatpush1.xpose.msra.mxu0 0.0
    %4686 = vmatprep.subr.mxu0 0.0
    %4687 = vmatpush1.xpose.msra.mxu0 0.0
    %4688 = vmatprep.subr.mxu0 0.0
    %4689 = vmatpush1.xpose.msra.mxu0 0.0
    %4690 = vmatprep.subr.mxu0 0.0
    %4691 = vmatpush1.xpose.msra.mxu0 0.0
    %4692 = vmatprep.subr.mxu0 0.0
    %4693 = vmatpush1.xpose.msra.mxu0 0.0
    %4694 = vmatprep.subr.mxu0 0.0
    %4695 = vmatpush1.xpose.msra.mxu0 0.0
    %4696 = vmatprep.subr.mxu0 0.0
    %4697 = vmatpush1.xpose.msra.mxu0 0.0
    %4698 = vmatprep.subr.mxu0 0.0
    %4699 = vmatpush1.xpose.msra.mxu0 0.0
    %4700 = vmatprep.subr.mxu0 0.0
    %4701 = vmatpush1.xpose.msra.mxu0 0.0
    %4702 = vmatprep.subr.mxu0 0.0
    %4703 = vmatpush1.xpose.msra.mxu0 0.0
    %4704 = vmatprep.subr.mxu0 0.0
    %4705 = vmatpush1.xpose.msra.mxu0 0.0
    %4706 = vmatprep.subr.mxu0 0.0
    %4707 = vmatpush1.xpose.msra.mxu0 0.0
    %4708 = vmatprep.subr.mxu0 0.0
    %4709 = vmatpush1.xpose.msra.mxu0 0.0
    %4710 = vmatprep.subr.mxu0 0.0
    %4711 = vmatpush1.xpose.msra.mxu0 0.0
    %4712 = vmatprep.subr.mxu0 0.0
    %4713 = vmatpush1.xpose.msra.mxu0 0.0
    %4714 = vmatprep.subr.mxu0 0.0
    %4715 = vmatpush1.xpose.msra.mxu0 0.0
    %4716 = vmatprep.subr.mxu0 0.0
    %4717 = vmatpush1.xpose.msra.mxu0 0.0
    %4718 = vmatprep.subr.mxu0 0.0
    %4719 = vmatpush1.xpose.msra.mxu0 0.0
    %4720 = vmatprep.subr.mxu0 0.0
    %4721 = vmatpush1.xpose.msra.mxu0 0.0
    %4722 = vmatprep.subr.mxu0 0.0
    %4723 = vmatpush1.xpose.msra.mxu0 0.0
    %4724 = vmatprep.subr.mxu0 0.0
    %4725 = vmatpush1.xpose.msra.mxu0 0.0
    %4726 = vmatprep.subr.mxu0 0.0
    %4727 = vmatpush1.xpose.msra.mxu0 0.0
    %4728 = vmatprep.subr.mxu0 0.0
    %4729 = vmatpush1.xpose.msra.mxu0 0.0
    %4730 = vmatprep.subr.mxu0 0.0
    %4731 = vmatpush1.xpose.msra.mxu0 0.0
    %4732 = vmatprep.subr.mxu0 0.0
    %4733 = vmatpush1.xpose.msra.mxu0 0.0
    %4734 = vmatprep.subr.mxu0 0.0
    %4735 = vmatpush1.xpose.msra.mxu0 0.0
    %4736 = vmatprep.subr.mxu0 0.0
    %4737 = vmatpush1.xpose.msra.mxu0 0.0
    %4738 = vmatprep.subr.mxu0 0.0
    %4739 = vmatpush1.xpose.msra.mxu0 0.0
    %4740 = vmatprep.subr.mxu0 0.0
    %4741 = vmatpush1.xpose.msra.mxu0 0.0
    %4742 = vmatprep.mubr.f32.mxu0 0.0
    %4743 = vmatmul.mubr.f32.gmra.mrb[0].mxu0 %v4676
    %v4744 = vpop.f32.mrb[0].mxu0
    %v4745 = vadd.f32 0.0, %v4744
    %v4746 = vpop.f32.mrb[0].mxu0
    %4747 = vdwg.mxu0
    %v4749 = vsel %vm1423, %v4149, 0
    %4751 = vmatprep.subr.mxu0 0.0
    %4752 = vmatpush1.xpose.msra.mxu0 %v2036
    %4753 = vmatprep.subr.mxu0 0.0
    %4754 = vmatpush1.xpose.msra.mxu0 %v2039
    %4755 = vmatprep.subr.mxu0 0.0
    %4756 = vmatpush1.xpose.msra.mxu0 0.0
    %4757 = vmatprep.subr.mxu0 0.0
    %4758 = vmatpush1.xpose.msra.mxu0 0.0
    %4759 = vmatprep.subr.mxu0 0.0
    %4760 = vmatpush1.xpose.msra.mxu0 0.0
    %4761 = vmatprep.subr.mxu0 0.0
    %4762 = vmatpush1.xpose.msra.mxu0 0.0
    %4763 = vmatprep.subr.mxu0 0.0
    %4764 = vmatpush1.xpose.msra.mxu0 0.0
    %4765 = vmatprep.subr.mxu0 0.0
    %4766 = vmatpush1.xpose.msra.mxu0 0.0
    %4767 = vmatprep.subr.mxu0 0.0
    %4768 = vmatpush1.xpose.msra.mxu0 0.0
    %4769 = vmatprep.subr.mxu0 0.0
    %4770 = vmatpush1.xpose.msra.mxu0 0.0
    %4771 = vmatprep.subr.mxu0 0.0
    %4772 = vmatpush1.xpose.msra.mxu0 0.0
    %4773 = vmatprep.subr.mxu0 0.0
    %4774 = vmatpush1.xpose.msra.mxu0 0.0
    %4775 = vmatprep.subr.mxu0 0.0
    %4776 = vmatpush1.xpose.msra.mxu0 0.0
    %4777 = vmatprep.subr.mxu0 0.0
    %4778 = vmatpush1.xpose.msra.mxu0 0.0
    %4779 = vmatprep.subr.mxu0 0.0
    %4780 = vmatpush1.xpose.msra.mxu0 0.0
    %4781 = vmatprep.subr.mxu0 0.0
    %4782 = vmatpush1.xpose.msra.mxu0 0.0
    %4783 = vmatprep.subr.mxu0 0.0
    %4784 = vmatpush1.xpose.msra.mxu0 0.0
    %4785 = vmatprep.subr.mxu0 0.0
    %4786 = vmatpush1.xpose.msra.mxu0 0.0
    %4787 = vmatprep.subr.mxu0 0.0
    %4788 = vmatpush1.xpose.msra.mxu0 0.0
    %4789 = vmatprep.subr.mxu0 0.0
    %4790 = vmatpush1.xpose.msra.mxu0 0.0
    %4791 = vmatprep.subr.mxu0 0.0
    %4792 = vmatpush1.xpose.msra.mxu0 0.0
    %4793 = vmatprep.subr.mxu0 0.0
    %4794 = vmatpush1.xpose.msra.mxu0 0.0
    %4795 = vmatprep.subr.mxu0 0.0
    %4796 = vmatpush1.xpose.msra.mxu0 0.0
    %4797 = vmatprep.subr.mxu0 0.0
    %4798 = vmatpush1.xpose.msra.mxu0 0.0
    %4799 = vmatprep.subr.mxu0 0.0
    %4800 = vmatpush1.xpose.msra.mxu0 0.0
    %4801 = vmatprep.subr.mxu0 0.0
    %4802 = vmatpush1.xpose.msra.mxu0 0.0
    %4803 = vmatprep.subr.mxu0 0.0
    %4804 = vmatpush1.xpose.msra.mxu0 0.0
    %4805 = vmatprep.subr.mxu0 0.0
    %4806 = vmatpush1.xpose.msra.mxu0 0.0
    %4807 = vmatprep.subr.mxu0 0.0
    %4808 = vmatpush1.xpose.msra.mxu0 0.0
    %4809 = vmatprep.subr.mxu0 0.0
    %4810 = vmatpush1.xpose.msra.mxu0 0.0
    %4811 = vmatprep.subr.mxu0 0.0
    %4812 = vmatpush1.xpose.msra.mxu0 0.0
    %4813 = vmatprep.subr.mxu0 0.0
    %4814 = vmatpush1.xpose.msra.mxu0 0.0
    %4815 = vmatprep.mubr.f32.mxu0 0.0
    %4816 = vmatmul.mubr.f32.gmra.mrb[0].mxu0 %v4749
    %v4817 = vpop.f32.mrb[0].mxu0
    %v4818 = vadd.f32 0.0, %v4817
    %v4819 = vpop.f32.mrb[0].mxu0
    %4820 = vdwg.mxu0
    %v4822 = vsel %vm1423, %v4151, 0
    %4824 = vmatprep.subr.mxu0 0.0
    %4825 = vmatpush1.xpose.msra.mxu0 %v2112
    %4826 = vmatprep.subr.mxu0 0.0
    %4827 = vmatpush1.xpose.msra.mxu0 %v2115
    %4828 = vmatprep.subr.mxu0 0.0
    %4829 = vmatpush1.xpose.msra.mxu0 0.0
    %4830 = vmatprep.subr.mxu0 0.0
    %4831 = vmatpush1.xpose.msra.mxu0 0.0
    %4832 = vmatprep.subr.mxu0 0.0
    %4833 = vmatpush1.xpose.msra.mxu0 0.0
    %4834 = vmatprep.subr.mxu0 0.0
    %4835 = vmatpush1.xpose.msra.mxu0 0.0
    %4836 = vmatprep.subr.mxu0 0.0
    %4837 = vmatpush1.xpose.msra.mxu0 0.0
    %4838 = vmatprep.subr.mxu0 0.0
    %4839 = vmatpush1.xpose.msra.mxu0 0.0
    %4840 = vmatprep.subr.mxu0 0.0
    %4841 = vmatpush1.xpose.msra.mxu0 0.0
    %4842 = vmatprep.subr.mxu0 0.0
    %4843 = vmatpush1.xpose.msra.mxu0 0.0
    %4844 = vmatprep.subr.mxu0 0.0
    %4845 = vmatpush1.xpose.msra.mxu0 0.0
    %4846 = vmatprep.subr.mxu0 0.0
    %4847 = vmatpush1.xpose.msra.mxu0 0.0
    %4848 = vmatprep.subr.mxu0 0.0
    %4849 = vmatpush1.xpose.msra.mxu0 0.0
    %4850 = vmatprep.subr.mxu0 0.0
    %4851 = vmatpush1.xpose.msra.mxu0 0.0
    %4852 = vmatprep.subr.mxu0 0.0
    %4853 = vmatpush1.xpose.msra.mxu0 0.0
    %4854 = vmatprep.subr.mxu0 0.0
    %4855 = vmatpush1.xpose.msra.mxu0 0.0
    %4856 = vmatprep.subr.mxu0 0.0
    %4857 = vmatpush1.xpose.msra.mxu0 0.0
    %4858 = vmatprep.subr.mxu0 0.0
    %4859 = vmatpush1.xpose.msra.mxu0 0.0
    %4860 = vmatprep.subr.mxu0 0.0
    %4861 = vmatpush1.xpose.msra.mxu0 0.0
    %4862 = vmatprep.subr.mxu0 0.0
    %4863 = vmatpush1.xpose.msra.mxu0 0.0
    %4864 = vmatprep.subr.mxu0 0.0
    %4865 = vmatpush1.xpose.msra.mxu0 0.0
    %4866 = vmatprep.subr.mxu0 0.0
    %4867 = vmatpush1.xpose.msra.mxu0 0.0
    %4868 = vmatprep.subr.mxu0 0.0
    %4869 = vmatpush1.xpose.msra.mxu0 0.0
    %4870 = vmatprep.subr.mxu0 0.0
    %4871 = vmatpush1.xpose.msra.mxu0 0.0
    %4872 = vmatprep.subr.mxu0 0.0
    %4873 = vmatpush1.xpose.msra.mxu0 0.0
    %4874 = vmatprep.subr.mxu0 0.0
    %4875 = vmatpush1.xpose.msra.mxu0 0.0
    %4876 = vmatprep.subr.mxu0 0.0
    %4877 = vmatpush1.xpose.msra.mxu0 0.0
    %4878 = vmatprep.subr.mxu0 0.0
    %4879 = vmatpush1.xpose.msra.mxu0 0.0
    %4880 = vmatprep.subr.mxu0 0.0
    %4881 = vmatpush1.xpose.msra.mxu0 0.0
    %4882 = vmatprep.subr.mxu0 0.0
    %4883 = vmatpush1.xpose.msra.mxu0 0.0
    %4884 = vmatprep.subr.mxu0 0.0
    %4885 = vmatpush1.xpose.msra.mxu0 0.0
    %4886 = vmatprep.subr.mxu0 0.0
    %4887 = vmatpush1.xpose.msra.mxu0 0.0
    %4888 = vmatprep.mubr.f32.mxu0 0.0
    %4889 = vmatmul.mubr.f32.gmra.mrb[0].mxu0 %v4822
    %v4890 = vpop.f32.mrb[0].mxu0
    %v4891 = vadd.f32 0.0, %v4890
    %v4892 = vpop.f32.mrb[0].mxu0
    %4893 = vdwg.mxu0
    %v4895 = vsel %vm1423, %v4153, 0
    %4897 = vmatprep.subr.mxu0 0.0
    %4898 = vmatpush1.xpose.msra.mxu0 %v2188
    %4899 = vmatprep.subr.mxu0 0.0
    %4900 = vmatpush1.xpose.msra.mxu0 %v2191
    %4901 = vmatprep.subr.mxu0 0.0
    %4902 = vmatpush1.xpose.msra.mxu0 0.0
    %4903 = vmatprep.subr.mxu0 0.0
    %4904 = vmatpush1.xpose.msra.mxu0 0.0
    %4905 = vmatprep.subr.mxu0 0.0
    %4906 = vmatpush1.xpose.msra.mxu0 0.0
    %4907 = vmatprep.subr.mxu0 0.0
    %4908 = vmatpush1.xpose.msra.mxu0 0.0
    %4909 = vmatprep.subr.mxu0 0.0
    %4910 = vmatpush1.xpose.msra.mxu0 0.0
    %4911 = vmatprep.subr.mxu0 0.0
    %4912 = vmatpush1.xpose.msra.mxu0 0.0
    %4913 = vmatprep.subr.mxu0 0.0
    %4914 = vmatpush1.xpose.msra.mxu0 0.0
    %4915 = vmatprep.subr.mxu0 0.0
    %4916 = vmatpush1.xpose.msra.mxu0 0.0
    %4917 = vmatprep.subr.mxu0 0.0
    %4918 = vmatpush1.xpose.msra.mxu0 0.0
    %4919 = vmatprep.subr.mxu0 0.0
    %4920 = vmatpush1.xpose.msra.mxu0 0.0
    %4921 = vmatprep.subr.mxu0 0.0
    %4922 = vmatpush1.xpose.msra.mxu0 0.0
    %4923 = vmatprep.subr.mxu0 0.0
    %4924 = vmatpush1.xpose.msra.mxu0 0.0
    %4925 = vmatprep.subr.mxu0 0.0
    %4926 = vmatpush1.xpose.msra.mxu0 0.0
    %4927 = vmatprep.subr.mxu0 0.0
    %4928 = vmatpush1.xpose.msra.mxu0 0.0
    %4929 = vmatprep.subr.mxu0 0.0
    %4930 = vmatpush1.xpose.msra.mxu0 0.0
    %4931 = vmatprep.subr.mxu0 0.0
    %4932 = vmatpush1.xpose.msra.mxu0 0.0
    %4933 = vmatprep.subr.mxu0 0.0
    %4934 = vmatpush1.xpose.msra.mxu0 0.0
    %4935 = vmatprep.subr.mxu0 0.0
    %4936 = vmatpush1.xpose.msra.mxu0 0.0
    %4937 = vmatprep.subr.mxu0 0.0
    %4938 = vmatpush1.xpose.msra.mxu0 0.0
    %4939 = vmatprep.subr.mxu0 0.0
    %4940 = vmatpush1.xpose.msra.mxu0 0.0
    %4941 = vmatprep.subr.mxu0 0.0
    %4942 = vmatpush1.xpose.msra.mxu0 0.0
    %4943 = vmatprep.subr.mxu0 0.0
    %4944 = vmatpush1.xpose.msra.mxu0 0.0
    %4945 = vmatprep.subr.mxu0 0.0
    %4946 = vmatpush1.xpose.msra.mxu0 0.0
    %4947 = vmatprep.subr.mxu0 0.0
    %4948 = vmatpush1.xpose.msra.mxu0 0.0
    %4949 = vmatprep.subr.mxu0 0.0
    %4950 = vmatpush1.xpose.msra.mxu0 0.0
    %4951 = vmatprep.subr.mxu0 0.0
    %4952 = vmatpush1.xpose.msra.mxu0 0.0
    %4953 = vmatprep.subr.mxu0 0.0
    %4954 = vmatpush1.xpose.msra.mxu0 0.0
    %4955 = vmatprep.subr.mxu0 0.0
    %4956 = vmatpush1.xpose.msra.mxu0 0.0
    %4957 = vmatprep.subr.mxu0 0.0
    %4958 = vmatpush1.xpose.msra.mxu0 0.0
    %4959 = vmatprep.subr.mxu0 0.0
    %4960 = vmatpush1.xpose.msra.mxu0 0.0
    %4961 = vmatprep.mubr.f32.mxu0 0.0
    %4962 = vmatmul.mubr.f32.gmra.mrb[0].mxu0 %v4895
    %v4963 = vpop.f32.mrb[0].mxu0
    %v4964 = vadd.f32 0.0, %v4963
    %v4965 = vpop.f32.mrb[0].mxu0
    %4966 = vdwg.mxu0
    %v4968 = vsel %vm1423, %v4155, 0
    %4970 = vmatprep.subr.mxu0 0.0
    %4971 = vmatpush1.xpose.msra.mxu0 %v2264
    %4972 = vmatprep.subr.mxu0 0.0
    %4973 = vmatpush1.xpose.msra.mxu0 %v2267
    %4974 = vmatprep.subr.mxu0 0.0
    %4975 = vmatpush1.xpose.msra.mxu0 0.0
    %4976 = vmatprep.subr.mxu0 0.0
    %4977 = vmatpush1.xpose.msra.mxu0 0.0
    %4978 = vmatprep.subr.mxu0 0.0
    %4979 = vmatpush1.xpose.msra.mxu0 0.0
    %4980 = vmatprep.subr.mxu0 0.0
    %4981 = vmatpush1.xpose.msra.mxu0 0.0
    %4982 = vmatprep.subr.mxu0 0.0
    %4983 = vmatpush1.xpose.msra.mxu0 0.0
    %4984 = vmatprep.subr.mxu0 0.0
    %4985 = vmatpush1.xpose.msra.mxu0 0.0
    %4986 = vmatprep.subr.mxu0 0.0
    %4987 = vmatpush1.xpose.msra.mxu0 0.0
    %4988 = vmatprep.subr.mxu0 0.0
    %4989 = vmatpush1.xpose.msra.mxu0 0.0
    %4990 = vmatprep.subr.mxu0 0.0
    %4991 = vmatpush1.xpose.msra.mxu0 0.0
    %4992 = vmatprep.subr.mxu0 0.0
    %4993 = vmatpush1.xpose.msra.mxu0 0.0
    %4994 = vmatprep.subr.mxu0 0.0
    %4995 = vmatpush1.xpose.msra.mxu0 0.0
    %4996 = vmatprep.subr.mxu0 0.0
    %4997 = vmatpush1.xpose.msra.mxu0 0.0
    %4998 = vmatprep.subr.mxu0 0.0
    %4999 = vmatpush1.xpose.msra.mxu0 0.0
    %5000 = vmatprep.subr.mxu0 0.0
    %5001 = vmatpush1.xpose.msra.mxu0 0.0
    %5002 = vmatprep.subr.mxu0 0.0
    %5003 = vmatpush1.xpose.msra.mxu0 0.0
    %5004 = vmatprep.subr.mxu0 0.0
    %5005 = vmatpush1.xpose.msra.mxu0 0.0
    %5006 = vmatprep.subr.mxu0 0.0
    %5007 = vmatpush1.xpose.msra.mxu0 0.0
    %5008 = vmatprep.subr.mxu0 0.0
    %5009 = vmatpush1.xpose.msra.mxu0 0.0
    %5010 = vmatprep.subr.mxu0 0.0
    %5011 = vmatpush1.xpose.msra.mxu0 0.0
    %5012 = vmatprep.subr.mxu0 0.0
    %5013 = vmatpush1.xpose.msra.mxu0 0.0
    %5014 = vmatprep.subr.mxu0 0.0
    %5015 = vmatpush1.xpose.msra.mxu0 0.0
    %5016 = vmatprep.subr.mxu0 0.0
    %5017 = vmatpush1.xpose.msra.mxu0 0.0
    %5018 = vmatprep.subr.mxu0 0.0
    %5019 = vmatpush1.xpose.msra.mxu0 0.0
    %5020 = vmatprep.subr.mxu0 0.0
    %5021 = vmatpush1.xpose.msra.mxu0 0.0
    %5022 = vmatprep.subr.mxu0 0.0
    %5023 = vmatpush1.xpose.msra.mxu0 0.0
    %5024 = vmatprep.subr.mxu0 0.0
    %5025 = vmatpush1.xpose.msra.mxu0 0.0
    %5026 = vmatprep.subr.mxu0 0.0
    %5027 = vmatpush1.xpose.msra.mxu0 0.0
    %5028 = vmatprep.subr.mxu0 0.0
    %5029 = vmatpush1.xpose.msra.mxu0 0.0
    %5030 = vmatprep.subr.mxu0 0.0
    %5031 = vmatpush1.xpose.msra.mxu0 0.0
    %5032 = vmatprep.subr.mxu0 0.0
    %5033 = vmatpush1.xpose.msra.mxu0 0.0
    %5034 = vmatprep.mubr.f32.mxu0 0.0
    %5035 = vmatmul.mubr.f32.gmra.mrb[0].mxu0 %v4968
    %v5036 = vpop.f32.mrb[0].mxu0
    %v5037 = vadd.f32 0.0, %v5036
    %v5038 = vpop.f32.mrb[0].mxu0
    %5039 = vdwg.mxu0
    %v5041 = vsel %vm1423, %v4157, 0
    %5043 = vmatprep.subr.mxu0 0.0
    %5044 = vmatpush1.xpose.msra.mxu0 %v2340
    %5045 = vmatprep.subr.mxu0 0.0
    %5046 = vmatpush1.xpose.msra.mxu0 %v2343
    %5047 = vmatprep.subr.mxu0 0.0
    %5048 = vmatpush1.xpose.msra.mxu0 0.0
    %5049 = vmatprep.subr.mxu0 0.0
    %5050 = vmatpush1.xpose.msra.mxu0 0.0
    %5051 = vmatprep.subr.mxu0 0.0
    %5052 = vmatpush1.xpose.msra.mxu0 0.0
    %5053 = vmatprep.subr.mxu0 0.0
    %5054 = vmatpush1.xpose.msra.mxu0 0.0
    %5055 = vmatprep.subr.mxu0 0.0
    %5056 = vmatpush1.xpose.msra.mxu0 0.0
    %5057 = vmatprep.subr.mxu0 0.0
    %5058 = vmatpush1.xpose.msra.mxu0 0.0
    %5059 = vmatprep.subr.mxu0 0.0
    %5060 = vmatpush1.xpose.msra.mxu0 0.0
    %5061 = vmatprep.subr.mxu0 0.0
    %5062 = vmatpush1.xpose.msra.mxu0 0.0
    %5063 = vmatprep.subr.mxu0 0.0
    %5064 = vmatpush1.xpose.msra.mxu0 0.0
    %5065 = vmatprep.subr.mxu0 0.0
    %5066 = vmatpush1.xpose.msra.mxu0 0.0
    %5067 = vmatprep.subr.mxu0 0.0
    %5068 = vmatpush1.xpose.msra.mxu0 0.0
    %5069 = vmatprep.subr.mxu0 0.0
    %5070 = vmatpush1.xpose.msra.mxu0 0.0
    %5071 = vmatprep.subr.mxu0 0.0
    %5072 = vmatpush1.xpose.msra.mxu0 0.0
    %5073 = vmatprep.subr.mxu0 0.0
    %5074 = vmatpush1.xpose.msra.mxu0 0.0
    %5075 = vmatprep.subr.mxu0 0.0
    %5076 = vmatpush1.xpose.msra.mxu0 0.0
    %5077 = vmatprep.subr.mxu0 0.0
    %5078 = vmatpush1.xpose.msra.mxu0 0.0
    %5079 = vmatprep.subr.mxu0 0.0
    %5080 = vmatpush1.xpose.msra.mxu0 0.0
    %5081 = vmatprep.subr.mxu0 0.0
    %5082 = vmatpush1.xpose.msra.mxu0 0.0
    %5083 = vmatprep.subr.mxu0 0.0
    %5084 = vmatpush1.xpose.msra.mxu0 0.0
    %5085 = vmatprep.subr.mxu0 0.0
    %5086 = vmatpush1.xpose.msra.mxu0 0.0
    %5087 = vmatprep.subr.mxu0 0.0
    %5088 = vmatpush1.xpose.msra.mxu0 0.0
    %5089 = vmatprep.subr.mxu0 0.0
    %5090 = vmatpush1.xpose.msra.mxu0 0.0
    %5091 = vmatprep.subr.mxu0 0.0
    %5092 = vmatpush1.xpose.msra.mxu0 0.0
    %5093 = vmatprep.subr.mxu0 0.0
    %5094 = vmatpush1.xpose.msra.mxu0 0.0
    %5095 = vmatprep.subr.mxu0 0.0
    %5096 = vmatpush1.xpose.msra.mxu0 0.0
    %5097 = vmatprep.subr.mxu0 0.0
    %5098 = vmatpush1.xpose.msra.mxu0 0.0
    %5099 = vmatprep.subr.mxu0 0.0
    %5100 = vmatpush1.xpose.msra.mxu0 0.0
    %5101 = vmatprep.subr.mxu0 0.0
    %5102 = vmatpush1.xpose.msra.mxu0 0.0
    %5103 = vmatprep.subr.mxu0 0.0
    %5104 = vmatpush1.xpose.msra.mxu0 0.0
    %5105 = vmatprep.subr.mxu0 0.0
    %5106 = vmatpush1.xpose.msra.mxu0 0.0
    %5107 = vmatprep.mubr.f32.mxu0 0.0
    %5108 = vmatmul.mubr.f32.gmra.mrb[0].mxu0 %v5041
    %v5109 = vpop.f32.mrb[0].mxu0
    %v5110 = vadd.f32 0.0, %v5109
    %v5111 = vpop.f32.mrb[0].mxu0
    %5112 = vdwg.mxu0
    %v5114 = vsel %vm1423, %v4159, 0
    %5116 = vmatprep.subr.mxu0 0.0
    %5117 = vmatpush1.xpose.msra.mxu0 %v2416
    %5118 = vmatprep.subr.mxu0 0.0
    %5119 = vmatpush1.xpose.msra.mxu0 %v2419
    %5120 = vmatprep.subr.mxu0 0.0
    %5121 = vmatpush1.xpose.msra.mxu0 0.0
    %5122 = vmatprep.subr.mxu0 0.0
    %5123 = vmatpush1.xpose.msra.mxu0 0.0
    %5124 = vmatprep.subr.mxu0 0.0
    %5125 = vmatpush1.xpose.msra.mxu0 0.0
    %5126 = vmatprep.subr.mxu0 0.0
    %5127 = vmatpush1.xpose.msra.mxu0 0.0
    %5128 = vmatprep.subr.mxu0 0.0
    %5129 = vmatpush1.xpose.msra.mxu0 0.0
    %5130 = vmatprep.subr.mxu0 0.0
    %5131 = vmatpush1.xpose.msra.mxu0 0.0
    %5132 = vmatprep.subr.mxu0 0.0
    %5133 = vmatpush1.xpose.msra.mxu0 0.0
    %5134 = vmatprep.subr.mxu0 0.0
    %5135 = vmatpush1.xpose.msra.mxu0 0.0
    %5136 = vmatprep.subr.mxu0 0.0
    %5137 = vmatpush1.xpose.msra.mxu0 0.0
    %5138 = vmatprep.subr.mxu0 0.0
    %5139 = vmatpush1.xpose.msra.mxu0 0.0
    %5140 = vmatprep.subr.mxu0 0.0
    %5141 = vmatpush1.xpose.msra.mxu0 0.0
    %5142 = vmatprep.subr.mxu0 0.0
    %5143 = vmatpush1.xpose.msra.mxu0 0.0
    %5144 = vmatprep.subr.mxu0 0.0
    %5145 = vmatpush1.xpose.msra.mxu0 0.0
    %5146 = vmatprep.subr.mxu0 0.0
    %5147 = vmatpush1.xpose.msra.mxu0 0.0
    %5148 = vmatprep.subr.mxu0 0.0
    %5149 = vmatpush1.xpose.msra.mxu0 0.0
    %5150 = vmatprep.subr.mxu0 0.0
    %5151 = vmatpush1.xpose.msra.mxu0 0.0
    %5152 = vmatprep.subr.mxu0 0.0
    %5153 = vmatpush1.xpose.msra.mxu0 0.0
    %5154 = vmatprep.subr.mxu0 0.0
    %5155 = vmatpush1.xpose.msra.mxu0 0.0
    %5156 = vmatprep.subr.mxu0 0.0
    %5157 = vmatpush1.xpose.msra.mxu0 0.0
    %5158 = vmatprep.subr.mxu0 0.0
    %5159 = vmatpush1.xpose.msra.mxu0 0.0
    %5160 = vmatprep.subr.mxu0 0.0
    %5161 = vmatpush1.xpose.msra.mxu0 0.0
    %5162 = vmatprep.subr.mxu0 0.0
    %5163 = vmatpush1.xpose.msra.mxu0 0.0
    %5164 = vmatprep.subr.mxu0 0.0
    %5165 = vmatpush1.xpose.msra.mxu0 0.0
    %5166 = vmatprep.subr.mxu0 0.0
    %5167 = vmatpush1.xpose.msra.mxu0 0.0
    %5168 = vmatprep.subr.mxu0 0.0
    %5169 = vmatpush1.xpose.msra.mxu0 0.0
    %5170 = vmatprep.subr.mxu0 0.0
    %5171 = vmatpush1.xpose.msra.mxu0 0.0
    %5172 = vmatprep.subr.mxu0 0.0
    %5173 = vmatpush1.xpose.msra.mxu0 0.0
    %5174 = vmatprep.subr.mxu0 0.0
    %5175 = vmatpush1.xpose.msra.mxu0 0.0
    %5176 = vmatprep.subr.mxu0 0.0
    %5177 = vmatpush1.xpose.msra.mxu0 0.0
    %5178 = vmatprep.subr.mxu0 0.0
    %5179 = vmatpush1.xpose.msra.mxu0 0.0
    %5180 = vmatprep.mubr.f32.mxu0 0.0
    %5181 = vmatmul.mubr.f32.gmra.mrb[0].mxu0 %v5114
    %v5182 = vpop.f32.mrb[0].mxu0
    %v5183 = vadd.f32 0.0, %v5182
    %v5184 = vpop.f32.mrb[0].mxu0
    %5185 = vdwg.mxu0
    %v5187 = vsel %vm1423, %v4161, 0
    %5189 = vmatprep.subr.mxu0 0.0
    %5190 = vmatpush1.xpose.msra.mxu0 %v2492
    %5191 = vmatprep.subr.mxu0 0.0
    %5192 = vmatpush1.xpose.msra.mxu0 %v2495
    %5193 = vmatprep.subr.mxu0 0.0
    %5194 = vmatpush1.xpose.msra.mxu0 0.0
    %5195 = vmatprep.subr.mxu0 0.0
    %5196 = vmatpush1.xpose.msra.mxu0 0.0
    %5197 = vmatprep.subr.mxu0 0.0
    %5198 = vmatpush1.xpose.msra.mxu0 0.0
    %5199 = vmatprep.subr.mxu0 0.0
    %5200 = vmatpush1.xpose.msra.mxu0 0.0
    %5201 = vmatprep.subr.mxu0 0.0
    %5202 = vmatpush1.xpose.msra.mxu0 0.0
    %5203 = vmatprep.subr.mxu0 0.0
    %5204 = vmatpush1.xpose.msra.mxu0 0.0
    %5205 = vmatprep.subr.mxu0 0.0
    %5206 = vmatpush1.xpose.msra.mxu0 0.0
    %5207 = vmatprep.subr.mxu0 0.0
    %5208 = vmatpush1.xpose.msra.mxu0 0.0
    %5209 = vmatprep.subr.mxu0 0.0
    %5210 = vmatpush1.xpose.msra.mxu0 0.0
    %5211 = vmatprep.subr.mxu0 0.0
    %5212 = vmatpush1.xpose.msra.mxu0 0.0
    %5213 = vmatprep.subr.mxu0 0.0
    %5214 = vmatpush1.xpose.msra.mxu0 0.0
    %5215 = vmatprep.subr.mxu0 0.0
    %5216 = vmatpush1.xpose.msra.mxu0 0.0
    %5217 = vmatprep.subr.mxu0 0.0
    %5218 = vmatpush1.xpose.msra.mxu0 0.0
    %5219 = vmatprep.subr.mxu0 0.0
    %5220 = vmatpush1.xpose.msra.mxu0 0.0
    %5221 = vmatprep.subr.mxu0 0.0
    %5222 = vmatpush1.xpose.msra.mxu0 0.0
    %5223 = vmatprep.subr.mxu0 0.0
    %5224 = vmatpush1.xpose.msra.mxu0 0.0
    %5225 = vmatprep.subr.mxu0 0.0
    %5226 = vmatpush1.xpose.msra.mxu0 0.0
    %5227 = vmatprep.subr.mxu0 0.0
    %5228 = vmatpush1.xpose.msra.mxu0 0.0
    %5229 = vmatprep.subr.mxu0 0.0
    %5230 = vmatpush1.xpose.msra.mxu0 0.0
    %5231 = vmatprep.subr.mxu0 0.0
    %5232 = vmatpush1.xpose.msra.mxu0 0.0
    %5233 = vmatprep.subr.mxu0 0.0
    %5234 = vmatpush1.xpose.msra.mxu0 0.0
    %5235 = vmatprep.subr.mxu0 0.0
    %5236 = vmatpush1.xpose.msra.mxu0 0.0
    %5237 = vmatprep.subr.mxu0 0.0
    %5238 = vmatpush1.xpose.msra.mxu0 0.0
    %5239 = vmatprep.subr.mxu0 0.0
    %5240 = vmatpush1.xpose.msra.mxu0 0.0
    %5241 = vmatprep.subr.mxu0 0.0
    %5242 = vmatpush1.xpose.msra.mxu0 0.0
    %5243 = vmatprep.subr.mxu0 0.0
    %5244 = vmatpush1.xpose.msra.mxu0 0.0
    %5245 = vmatprep.subr.mxu0 0.0
    %5246 = vmatpush1.xpose.msra.mxu0 0.0
    %5247 = vmatprep.subr.mxu0 0.0
    %5248 = vmatpush1.xpose.msra.mxu0 0.0
    %5249 = vmatprep.subr.mxu0 0.0
    %5250 = vmatpush1.xpose.msra.mxu0 0.0
    %5251 = vmatprep.subr.mxu0 0.0
    %5252 = vmatpush1.xpose.msra.mxu0 0.0
    %5253 = vmatprep.mubr.f32.mxu0 0.0
    %5254 = vmatmul.mubr.f32.gmra.mrb[0].mxu0 %v5187
    %v5255 = vpop.f32.mrb[0].mxu0
    %v5256 = vadd.f32 0.0, %v5255
    %v5257 = vpop.f32.mrb[0].mxu0
    %5258 = vdwg.mxu0
    %v5260 = vsel %vm1423, %v4163, 0
    %5262 = vmatprep.subr.mxu0 0.0
    %5263 = vmatpush1.xpose.msra.mxu0 %v2568
    %5264 = vmatprep.subr.mxu0 0.0
    %5265 = vmatpush1.xpose.msra.mxu0 %v2571
    %5266 = vmatprep.subr.mxu0 0.0
    %5267 = vmatpush1.xpose.msra.mxu0 0.0
    %5268 = vmatprep.subr.mxu0 0.0
    %5269 = vmatpush1.xpose.msra.mxu0 0.0
    %5270 = vmatprep.subr.mxu0 0.0
    %5271 = vmatpush1.xpose.msra.mxu0 0.0
    %5272 = vmatprep.subr.mxu0 0.0
    %5273 = vmatpush1.xpose.msra.mxu0 0.0
    %5274 = vmatprep.subr.mxu0 0.0
    %5275 = vmatpush1.xpose.msra.mxu0 0.0
    %5276 = vmatprep.subr.mxu0 0.0
    %5277 = vmatpush1.xpose.msra.mxu0 0.0
    %5278 = vmatprep.subr.mxu0 0.0
    %5279 = vmatpush1.xpose.msra.mxu0 0.0
    %5280 = vmatprep.subr.mxu0 0.0
    %5281 = vmatpush1.xpose.msra.mxu0 0.0
    %5282 = vmatprep.subr.mxu0 0.0
    %5283 = vmatpush1.xpose.msra.mxu0 0.0
    %5284 = vmatprep.subr.mxu0 0.0
    %5285 = vmatpush1.xpose.msra.mxu0 0.0
    %5286 = vmatprep.subr.mxu0 0.0
    %5287 = vmatpush1.xpose.msra.mxu0 0.0
    %5288 = vmatprep.subr.mxu0 0.0
    %5289 = vmatpush1.xpose.msra.mxu0 0.0
    %5290 = vmatprep.subr.mxu0 0.0
    %5291 = vmatpush1.xpose.msra.mxu0 0.0
    %5292 = vmatprep.subr.mxu0 0.0
    %5293 = vmatpush1.xpose.msra.mxu0 0.0
    %5294 = vmatprep.subr.mxu0 0.0
    %5295 = vmatpush1.xpose.msra.mxu0 0.0
    %5296 = vmatprep.subr.mxu0 0.0
    %5297 = vmatpush1.xpose.msra.mxu0 0.0
    %5298 = vmatprep.subr.mxu0 0.0
    %5299 = vmatpush1.xpose.msra.mxu0 0.0
    %5300 = vmatprep.subr.mxu0 0.0
    %5301 = vmatpush1.xpose.msra.mxu0 0.0
    %5302 = vmatprep.subr.mxu0 0.0
    %5303 = vmatpush1.xpose.msra.mxu0 0.0
    %5304 = vmatprep.subr.mxu0 0.0
    %5305 = vmatpush1.xpose.msra.mxu0 0.0
    %5306 = vmatprep.subr.mxu0 0.0
    %5307 = vmatpush1.xpose.msra.mxu0 0.0
    %5308 = vmatprep.subr.mxu0 0.0
    %5309 = vmatpush1.xpose.msra.mxu0 0.0
    %5310 = vmatprep.subr.mxu0 0.0
    %5311 = vmatpush1.xpose.msra.mxu0 0.0
    %5312 = vmatprep.subr.mxu0 0.0
    %5313 = vmatpush1.xpose.msra.mxu0 0.0
    %5314 = vmatprep.subr.mxu0 0.0
    %5315 = vmatpush1.xpose.msra.mxu0 0.0
    %5316 = vmatprep.subr.mxu0 0.0
    %5317 = vmatpush1.xpose.msra.mxu0 0.0
    %5318 = vmatprep.subr.mxu0 0.0
    %5319 = vmatpush1.xpose.msra.mxu0 0.0
    %5320 = vmatprep.subr.mxu0 0.0
    %5321 = vmatpush1.xpose.msra.mxu0 0.0
    %5322 = vmatprep.subr.mxu0 0.0
    %5323 = vmatpush1.xpose.msra.mxu0 0.0
    %5324 = vmatprep.subr.mxu0 0.0
    %5325 = vmatpush1.xpose.msra.mxu0 0.0
    %5326 = vmatprep.mubr.f32.mxu0 0.0
    %5327 = vmatmul.mubr.f32.gmra.mrb[0].mxu0 %v5260
    %v5328 = vpop.f32.mrb[0].mxu0
    %v5329 = vadd.f32 0.0, %v5328
    %v5330 = vpop.f32.mrb[0].mxu0
    %5331 = vdwg.mxu0
    %v5332 = vmul.f32 %v4234, %v4234
    %v5333 = vmul.f32 %v4307, %v4307
    %v5334 = vmul.f32 %v4380, %v4380
    %v5335 = vmul.f32 %v4453, %v4453
    %v5336 = vmul.f32 %v4526, %v4526
    %v5337 = vmul.f32 %v4599, %v4599
    %v5338 = vmul.f32 %v4672, %v4672
    %v5339 = vmul.f32 %v4745, %v4745
    %v5340 = vmul.f32 %v4818, %v4818
    %v5341 = vmul.f32 %v4891, %v4891
    %v5342 = vmul.f32 %v4964, %v4964
    %v5343 = vmul.f32 %v5037, %v5037
    %v5344 = vmul.f32 %v5110, %v5110
    %v5345 = vmul.f32 %v5183, %v5183
    %v5346 = vmul.f32 %v5256, %v5256
    %v5347 = vmul.f32 %v5329, %v5329
    %v5348 = vsel %vm2659, %v5332, 0.0
    %5349 = vadd.xlane.f32.xlu0 %v5348
    %v5350 = vpop.xlane.xlu0 %5349
    %v5351 = vsel %vm2659, %v5333, 0.0
    %5352 = vadd.xlane.f32.xlu0 %v5351
    %v5353 = vpop.xlane.xlu0 %5352
    %v5354 = vsel %vm2659, %v5334, 0.0
    %5355 = vadd.xlane.f32.xlu0 %v5354
    %v5356 = vpop.xlane.xlu0 %5355
    %v5357 = vsel %vm2659, %v5335, 0.0
    %5358 = vadd.xlane.f32.xlu0 %v5357
    %v5359 = vpop.xlane.xlu0 %5358
    %v5360 = vsel %vm2659, %v5336, 0.0
    %5361 = vadd.xlane.f32.xlu0 %v5360
    %v5362 = vpop.xlane.xlu0 %5361
    %v5363 = vsel %vm2659, %v5337, 0.0
    %5364 = vadd.xlane.f32.xlu0 %v5363
    %v5365 = vpop.xlane.xlu0 %5364
    %v5366 = vsel %vm2659, %v5338, 0.0
    %5367 = vadd.xlane.f32.xlu0 %v5366
    %v5368 = vpop.xlane.xlu0 %5367
    %v5369 = vsel %vm2659, %v5339, 0.0
    %5370 = vadd.xlane.f32.xlu0 %v5369
    %v5371 = vpop.xlane.xlu0 %5370
    %v5372 = vsel %vm2659, %v5340, 0.0
    %5373 = vadd.xlane.f32.xlu0 %v5372
    %v5374 = vpop.xlane.xlu0 %5373
    %v5375 = vsel %vm2659, %v5341, 0.0
    %5376 = vadd.xlane.f32.xlu0 %v5375
    %v5377 = vpop.xlane.xlu0 %5376
    %v5378 = vsel %vm2659, %v5342, 0.0
    %5379 = vadd.xlane.f32.xlu0 %v5378
    %v5380 = vpop.xlane.xlu0 %5379
    %v5381 = vsel %vm2659, %v5343, 0.0
    %5382 = vadd.xlane.f32.xlu0 %v5381
    %v5383 = vpop.xlane.xlu0 %5382
    %v5384 = vsel %vm2659, %v5344, 0.0
    %5385 = vadd.xlane.f32.xlu0 %v5384
    %v5386 = vpop.xlane.xlu0 %5385
    %v5387 = vsel %vm2659, %v5345, 0.0
    %5388 = vadd.xlane.f32.xlu0 %v5387
    %v5389 = vpop.xlane.xlu0 %5388
    %v5390 = vsel %vm2659, %v5346, 0.0
    %5391 = vadd.xlane.f32.xlu0 %v5390
    %v5392 = vpop.xlane.xlu0 %5391
    %v5393 = vsel %vm2659, %v5347, 0.0
    %5394 = vadd.xlane.f32.xlu0 %v5393
    %v5395 = vpop.xlane.xlu0 %5394
    %v5396 = vadd.f32 %v5350, 1e-08
    %v5397 = vadd.f32 %v5353, 1e-08
    %v5398 = vadd.f32 %v5356, 1e-08
    %v5399 = vadd.f32 %v5359, 1e-08
    %v5400 = vadd.f32 %v5362, 1e-08
    %v5401 = vadd.f32 %v5365, 1e-08
    %v5402 = vadd.f32 %v5368, 1e-08
    %v5403 = vadd.f32 %v5371, 1e-08
    %v5404 = vadd.f32 %v5374, 1e-08
    %v5405 = vadd.f32 %v5377, 1e-08
    %v5406 = vadd.f32 %v5380, 1e-08
    %v5407 = vadd.f32 %v5383, 1e-08
    %v5408 = vadd.f32 %v5386, 1e-08
    %v5409 = vadd.f32 %v5389, 1e-08
    %v5410 = vadd.f32 %v5392, 1e-08
    %v5411 = vadd.f32 %v5395, 1e-08
    %v5412 = vrsqrt.pop %v5396
    %v5413 = vrsqrt.pop %v5397
    %v5414 = vrsqrt.pop %v5398
    %v5415 = vrsqrt.pop %v5399
    %v5416 = vrsqrt.pop %v5400
    %v5417 = vrsqrt.pop %v5401
    %v5418 = vrsqrt.pop %v5402
    %v5419 = vrsqrt.pop %v5403
    %v5420 = vrsqrt.pop %v5404
    %v5421 = vrsqrt.pop %v5405
    %v5422 = vrsqrt.pop %v5406
    %v5423 = vrsqrt.pop %v5407
    %v5424 = vrsqrt.pop %v5408
    %v5425 = vrsqrt.pop %v5409
    %v5426 = vrsqrt.pop %v5410
    %v5427 = vrsqrt.pop %v5411
    %v5428 = vmul.f32 %v5396, %v5412
    %v5429 = vmul.f32 %v5397, %v5413
    %v5430 = vmul.f32 %v5398, %v5414
    %v5431 = vmul.f32 %v5399, %v5415
    %v5432 = vmul.f32 %v5400, %v5416
    %v5433 = vmul.f32 %v5401, %v5417
    %v5434 = vmul.f32 %v5402, %v5418
    %v5435 = vmul.f32 %v5403, %v5419
    %v5436 = vmul.f32 %v5404, %v5420
    %v5437 = vmul.f32 %v5405, %v5421
    %v5438 = vmul.f32 %v5406, %v5422
    %v5439 = vmul.f32 %v5407, %v5423
    %v5440 = vmul.f32 %v5408, %v5424
    %v5441 = vmul.f32 %v5409, %v5425
    %v5442 = vmul.f32 %v5410, %v5426
    %v5443 = vmul.f32 %v5411, %v5427
    %v5444 = vadd.f32 %v5396, 1.0
    %v5445 = vadd.f32 %v5397, 1.0
    %v5446 = vadd.f32 %v5398, 1.0
    %v5447 = vadd.f32 %v5399, 1.0
    %v5448 = vadd.f32 %v5400, 1.0
    %v5449 = vadd.f32 %v5401, 1.0
    %v5450 = vadd.f32 %v5402, 1.0
    %v5451 = vadd.f32 %v5403, 1.0
    %v5452 = vadd.f32 %v5404, 1.0
    %v5453 = vadd.f32 %v5405, 1.0
    %v5454 = vadd.f32 %v5406, 1.0
    %v5455 = vadd.f32 %v5407, 1.0
    %v5456 = vadd.f32 %v5408, 1.0
    %v5457 = vadd.f32 %v5409, 1.0
    %v5458 = vadd.f32 %v5410, 1.0
    %v5459 = vadd.f32 %v5411, 1.0
    %v5460 = vrcp.pop %v5444
    %v5461 = vmul.f32 %v5428, %v5460
    %v5462 = vrcp.pop %v5445
    %v5463 = vmul.f32 %v5429, %v5462
    %v5464 = vrcp.pop %v5446
    %v5465 = vmul.f32 %v5430, %v5464
    %v5466 = vrcp.pop %v5447
    %v5467 = vmul.f32 %v5431, %v5466
    %v5468 = vrcp.pop %v5448
    %v5469 = vmul.f32 %v5432, %v5468
    %v5470 = vrcp.pop %v5449
    %v5471 = vmul.f32 %v5433, %v5470
    %v5472 = vrcp.pop %v5450
    %v5473 = vmul.f32 %v5434, %v5472
    %v5474 = vrcp.pop %v5451
    %v5475 = vmul.f32 %v5435, %v5474
    %v5476 = vrcp.pop %v5452
    %v5477 = vmul.f32 %v5436, %v5476
    %v5478 = vrcp.pop %v5453
    %v5479 = vmul.f32 %v5437, %v5478
    %v5480 = vrcp.pop %v5454
    %v5481 = vmul.f32 %v5438, %v5480
    %v5482 = vrcp.pop %v5455
    %v5483 = vmul.f32 %v5439, %v5482
    %v5484 = vrcp.pop %v5456
    %v5485 = vmul.f32 %v5440, %v5484
    %v5486 = vrcp.pop %v5457
    %v5487 = vmul.f32 %v5441, %v5486
    %v5488 = vrcp.pop %v5458
    %v5489 = vmul.f32 %v5442, %v5488
    %v5490 = vrcp.pop %v5459
    %v5491 = vmul.f32 %v5443, %v5490
    %v5492 = vmul.f32 %v5461, %v4234
    %v5493 = vmul.f32 %v5463, %v4307
    %v5494 = vmul.f32 %v5465, %v4380
    %v5495 = vmul.f32 %v5467, %v4453
    %v5496 = vmul.f32 %v5469, %v4526
    %v5497 = vmul.f32 %v5471, %v4599
    %v5498 = vmul.f32 %v5473, %v4672
    %v5499 = vmul.f32 %v5475, %v4745
    %v5500 = vmul.f32 %v5477, %v4818
    %v5501 = vmul.f32 %v5479, %v4891
    %v5502 = vmul.f32 %v5481, %v4964
    %v5503 = vmul.f32 %v5483, %v5037
    %v5504 = vmul.f32 %v5485, %v5110
    %v5505 = vmul.f32 %v5487, %v5183
    %v5506 = vmul.f32 %v5489, %v5256
    %v5507 = vmul.f32 %v5491, %v5329
    %v5509 = vsel %vm1423, %v5492, 0
    %5511 = vmatprep.subr.mxu0 0.0
    %5512 = vmatpush1.msra.mxu0 %v1345
    %5513 = vmatprep.subr.mxu0 0.0
    %5514 = vmatpush1.msra.mxu0 %v1346
    %5515 = vmatprep.subr.mxu0 0.0
    %5516 = vmatpush1.msra.mxu0 0.0
    %5517 = vmatprep.subr.mxu0 0.0
    %5518 = vmatpush1.msra.mxu0 0.0
    %5519 = vmatprep.subr.mxu0 0.0
    %5520 = vmatpush1.msra.mxu0 0.0
    %5521 = vmatprep.subr.mxu0 0.0
    %5522 = vmatpush1.msra.mxu0 0.0
    %5523 = vmatprep.subr.mxu0 0.0
    %5524 = vmatpush1.msra.mxu0 0.0
    %5525 = vmatprep.subr.mxu0 0.0
    %5526 = vmatpush1.msra.mxu0 0.0
    %5527 = vmatprep.subr.mxu0 0.0
    %5528 = vmatpush1.msra.mxu0 0.0
    %5529 = vmatprep.subr.mxu0 0.0
    %5530 = vmatpush1.msra.mxu0 0.0
    %5531 = vmatprep.subr.mxu0 0.0
    %5532 = vmatpush1.msra.mxu0 0.0
    %5533 = vmatprep.subr.mxu0 0.0
    %5534 = vmatpush1.msra.mxu0 0.0
    %5535 = vmatprep.subr.mxu0 0.0
    %5536 = vmatpush1.msra.mxu0 0.0
    %5537 = vmatprep.subr.mxu0 0.0
    %5538 = vmatpush1.msra.mxu0 0.0
    %5539 = vmatprep.subr.mxu0 0.0
    %5540 = vmatpush1.msra.mxu0 0.0
    %5541 = vmatprep.subr.mxu0 0.0
    %5542 = vmatpush1.msra.mxu0 0.0
    %5543 = vmatprep.subr.mxu0 0.0
    %5544 = vmatpush1.msra.mxu0 0.0
    %5545 = vmatprep.subr.mxu0 0.0
    %5546 = vmatpush1.msra.mxu0 0.0
    %5547 = vmatprep.subr.mxu0 0.0
    %5548 = vmatpush1.msra.mxu0 0.0
    %5549 = vmatprep.subr.mxu0 0.0
    %5550 = vmatpush1.msra.mxu0 0.0
    %5551 = vmatprep.subr.mxu0 0.0
    %5552 = vmatpush1.msra.mxu0 0.0
    %5553 = vmatprep.subr.mxu0 0.0
    %5554 = vmatpush1.msra.mxu0 0.0
    %5555 = vmatprep.subr.mxu0 0.0
    %5556 = vmatpush1.msra.mxu0 0.0
    %5557 = vmatprep.subr.mxu0 0.0
    %5558 = vmatpush1.msra.mxu0 0.0
    %5559 = vmatprep.subr.mxu0 0.0
    %5560 = vmatpush1.msra.mxu0 0.0
    %5561 = vmatprep.subr.mxu0 0.0
    %5562 = vmatpush1.msra.mxu0 0.0
    %5563 = vmatprep.subr.mxu0 0.0
    %5564 = vmatpush1.msra.mxu0 0.0
    %5565 = vmatprep.subr.mxu0 0.0
    %5566 = vmatpush1.msra.mxu0 0.0
    %5567 = vmatprep.subr.mxu0 0.0
    %5568 = vmatpush1.msra.mxu0 0.0
    %5569 = vmatprep.subr.mxu0 0.0
    %5570 = vmatpush1.msra.mxu0 0.0
    %5571 = vmatprep.subr.mxu0 0.0
    %5572 = vmatpush1.msra.mxu0 0.0
    %5573 = vmatprep.subr.mxu0 0.0
    %5574 = vmatpush1.msra.mxu0 0.0
    %5575 = vmatprep.mubr.f32.mxu0 0.0
    %5576 = vmatmul.mubr.f32.gmra.mrb[0].mxu0 %v5509
    %v5577 = vpop.f32.mrb[0].mxu0
    %v5578 = vadd.f32 0.0, %v5577
    %v5579 = vpop.f32.mrb[0].mxu0
    %5580 = vdwg.mxu0
    %v5582 = vsel %vm1423, %v5493, 0
    %5584 = vmatprep.subr.mxu0 0.0
    %5585 = vmatpush1.msra.mxu0 %v1347
    %5586 = vmatprep.subr.mxu0 0.0
    %5587 = vmatpush1.msra.mxu0 %v1348
    %5588 = vmatprep.subr.mxu0 0.0
    %5589 = vmatpush1.msra.mxu0 0.0
    %5590 = vmatprep.subr.mxu0 0.0
    %5591 = vmatpush1.msra.mxu0 0.0
    %5592 = vmatprep.subr.mxu0 0.0
    %5593 = vmatpush1.msra.mxu0 0.0
    %5594 = vmatprep.subr.mxu0 0.0
    %5595 = vmatpush1.msra.mxu0 0.0
    %5596 = vmatprep.subr.mxu0 0.0
    %5597 = vmatpush1.msra.mxu0 0.0
    %5598 = vmatprep.subr.mxu0 0.0
    %5599 = vmatpush1.msra.mxu0 0.0
    %5600 = vmatprep.subr.mxu0 0.0
    %5601 = vmatpush1.msra.mxu0 0.0
    %5602 = vmatprep.subr.mxu0 0.0
    %5603 = vmatpush1.msra.mxu0 0.0
    %5604 = vmatprep.subr.mxu0 0.0
    %5605 = vmatpush1.msra.mxu0 0.0
    %5606 = vmatprep.subr.mxu0 0.0
    %5607 = vmatpush1.msra.mxu0 0.0
    %5608 = vmatprep.subr.mxu0 0.0
    %5609 = vmatpush1.msra.mxu0 0.0
    %5610 = vmatprep.subr.mxu0 0.0
    %5611 = vmatpush1.msra.mxu0 0.0
    %5612 = vmatprep.subr.mxu0 0.0
    %5613 = vmatpush1.msra.mxu0 0.0
    %5614 = vmatprep.subr.mxu0 0.0
    %5615 = vmatpush1.msra.mxu0 0.0
    %5616 = vmatprep.subr.mxu0 0.0
    %5617 = vmatpush1.msra.mxu0 0.0
    %5618 = vmatprep.subr.mxu0 0.0
    %5619 = vmatpush1.msra.mxu0 0.0
    %5620 = vmatprep.subr.mxu0 0.0
    %5621 = vmatpush1.msra.mxu0 0.0
    %5622 = vmatprep.subr.mxu0 0.0
    %5623 = vmatpush1.msra.mxu0 0.0
    %5624 = vmatprep.subr.mxu0 0.0
    %5625 = vmatpush1.msra.mxu0 0.0
    %5626 = vmatprep.subr.mxu0 0.0
    %5627 = vmatpush1.msra.mxu0 0.0
    %5628 = vmatprep.subr.mxu0 0.0
    %5629 = vmatpush1.msra.mxu0 0.0
    %5630 = vmatprep.subr.mxu0 0.0
    %5631 = vmatpush1.msra.mxu0 0.0
    %5632 = vmatprep.subr.mxu0 0.0
    %5633 = vmatpush1.msra.mxu0 0.0
    %5634 = vmatprep.subr.mxu0 0.0
    %5635 = vmatpush1.msra.mxu0 0.0
    %5636 = vmatprep.subr.mxu0 0.0
    %5637 = vmatpush1.msra.mxu0 0.0
    %5638 = vmatprep.subr.mxu0 0.0
    %5639 = vmatpush1.msra.mxu0 0.0
    %5640 = vmatprep.subr.mxu0 0.0
    %5641 = vmatpush1.msra.mxu0 0.0
    %5642 = vmatprep.subr.mxu0 0.0
    %5643 = vmatpush1.msra.mxu0 0.0
    %5644 = vmatprep.subr.mxu0 0.0
    %5645 = vmatpush1.msra.mxu0 0.0
    %5646 = vmatprep.subr.mxu0 0.0
    %5647 = vmatpush1.msra.mxu0 0.0
    %5648 = vmatprep.mubr.f32.mxu0 0.0
    %5649 = vmatmul.mubr.f32.gmra.mrb[0].mxu0 %v5582
    %v5650 = vpop.f32.mrb[0].mxu0
    %v5651 = vadd.f32 0.0, %v5650
    %v5652 = vpop.f32.mrb[0].mxu0
    %5653 = vdwg.mxu0
    %v5655 = vsel %vm1423, %v5494, 0
    %5657 = vmatprep.subr.mxu0 0.0
    %5658 = vmatpush1.msra.mxu0 %v1349
    %5659 = vmatprep.subr.mxu0 0.0
    %5660 = vmatpush1.msra.mxu0 %v1350
    %5661 = vmatprep.subr.mxu0 0.0
    %5662 = vmatpush1.msra.mxu0 0.0
    %5663 = vmatprep.subr.mxu0 0.0
    %5664 = vmatpush1.msra.mxu0 0.0
    %5665 = vmatprep.subr.mxu0 0.0
    %5666 = vmatpush1.msra.mxu0 0.0
    %5667 = vmatprep.subr.mxu0 0.0
    %5668 = vmatpush1.msra.mxu0 0.0
    %5669 = vmatprep.subr.mxu0 0.0
    %5670 = vmatpush1.msra.mxu0 0.0
    %5671 = vmatprep.subr.mxu0 0.0
    %5672 = vmatpush1.msra.mxu0 0.0
    %5673 = vmatprep.subr.mxu0 0.0
    %5674 = vmatpush1.msra.mxu0 0.0
    %5675 = vmatprep.subr.mxu0 0.0
    %5676 = vmatpush1.msra.mxu0 0.0
    %5677 = vmatprep.subr.mxu0 0.0
    %5678 = vmatpush1.msra.mxu0 0.0
    %5679 = vmatprep.subr.mxu0 0.0
    %5680 = vmatpush1.msra.mxu0 0.0
    %5681 = vmatprep.subr.mxu0 0.0
    %5682 = vmatpush1.msra.mxu0 0.0
    %5683 = vmatprep.subr.mxu0 0.0
    %5684 = vmatpush1.msra.mxu0 0.0
    %5685 = vmatprep.subr.mxu0 0.0
    %5686 = vmatpush1.msra.mxu0 0.0
    %5687 = vmatprep.subr.mxu0 0.0
    %5688 = vmatpush1.msra.mxu0 0.0
    %5689 = vmatprep.subr.mxu0 0.0
    %5690 = vmatpush1.msra.mxu0 0.0
    %5691 = vmatprep.subr.mxu0 0.0
    %5692 = vmatpush1.msra.mxu0 0.0
    %5693 = vmatprep.subr.mxu0 0.0
    %5694 = vmatpush1.msra.mxu0 0.0
    %5695 = vmatprep.subr.mxu0 0.0
    %5696 = vmatpush1.msra.mxu0 0.0
    %5697 = vmatprep.subr.mxu0 0.0
    %5698 = vmatpush1.msra.mxu0 0.0
    %5699 = vmatprep.subr.mxu0 0.0
    %5700 = vmatpush1.msra.mxu0 0.0
    %5701 = vmatprep.subr.mxu0 0.0
    %5702 = vmatpush1.msra.mxu0 0.0
    %5703 = vmatprep.subr.mxu0 0.0
    %5704 = vmatpush1.msra.mxu0 0.0
    %5705 = vmatprep.subr.mxu0 0.0
    %5706 = vmatpush1.msra.mxu0 0.0
    %5707 = vmatprep.subr.mxu0 0.0
    %5708 = vmatpush1.msra.mxu0 0.0
    %5709 = vmatprep.subr.mxu0 0.0
    %5710 = vmatpush1.msra.mxu0 0.0
    %5711 = vmatprep.subr.mxu0 0.0
    %5712 = vmatpush1.msra.mxu0 0.0
    %5713 = vmatprep.subr.mxu0 0.0
    %5714 = vmatpush1.msra.mxu0 0.0
    %5715 = vmatprep.subr.mxu0 0.0
    %5716 = vmatpush1.msra.mxu0 0.0
    %5717 = vmatprep.subr.mxu0 0.0
    %5718 = vmatpush1.msra.mxu0 0.0
    %5719 = vmatprep.subr.mxu0 0.0
    %5720 = vmatpush1.msra.mxu0 0.0
    %5721 = vmatprep.mubr.f32.mxu0 0.0
    %5722 = vmatmul.mubr.f32.gmra.mrb[0].mxu0 %v5655
    %v5723 = vpop.f32.mrb[0].mxu0
    %v5724 = vadd.f32 0.0, %v5723
    %v5725 = vpop.f32.mrb[0].mxu0
    %5726 = vdwg.mxu0
    %v5728 = vsel %vm1423, %v5495, 0
    %5730 = vmatprep.subr.mxu0 0.0
    %5731 = vmatpush1.msra.mxu0 %v1351
    %5732 = vmatprep.subr.mxu0 0.0
    %5733 = vmatpush1.msra.mxu0 %v1352
    %5734 = vmatprep.subr.mxu0 0.0
    %5735 = vmatpush1.msra.mxu0 0.0
    %5736 = vmatprep.subr.mxu0 0.0
    %5737 = vmatpush1.msra.mxu0 0.0
    %5738 = vmatprep.subr.mxu0 0.0
    %5739 = vmatpush1.msra.mxu0 0.0
    %5740 = vmatprep.subr.mxu0 0.0
    %5741 = vmatpush1.msra.mxu0 0.0
    %5742 = vmatprep.subr.mxu0 0.0
    %5743 = vmatpush1.msra.mxu0 0.0
    %5744 = vmatprep.subr.mxu0 0.0
    %5745 = vmatpush1.msra.mxu0 0.0
    %5746 = vmatprep.subr.mxu0 0.0
    %5747 = vmatpush1.msra.mxu0 0.0
    %5748 = vmatprep.subr.mxu0 0.0
    %5749 = vmatpush1.msra.mxu0 0.0
    %5750 = vmatprep.subr.mxu0 0.0
    %5751 = vmatpush1.msra.mxu0 0.0
    %5752 = vmatprep.subr.mxu0 0.0
    %5753 = vmatpush1.msra.mxu0 0.0
    %5754 = vmatprep.subr.mxu0 0.0
    %5755 = vmatpush1.msra.mxu0 0.0
    %5756 = vmatprep.subr.mxu0 0.0
    %5757 = vmatpush1.msra.mxu0 0.0
    %5758 = vmatprep.subr.mxu0 0.0
    %5759 = vmatpush1.msra.mxu0 0.0
    %5760 = vmatprep.subr.mxu0 0.0
    %5761 = vmatpush1.msra.mxu0 0.0
    %5762 = vmatprep.subr.mxu0 0.0
    %5763 = vmatpush1.msra.mxu0 0.0
    %5764 = vmatprep.subr.mxu0 0.0
    %5765 = vmatpush1.msra.mxu0 0.0
    %5766 = vmatprep.subr.mxu0 0.0
    %5767 = vmatpush1.msra.mxu0 0.0
    %5768 = vmatprep.subr.mxu0 0.0
    %5769 = vmatpush1.msra.mxu0 0.0
    %5770 = vmatprep.subr.mxu0 0.0
    %5771 = vmatpush1.msra.mxu0 0.0
    %5772 = vmatprep.subr.mxu0 0.0
    %5773 = vmatpush1.msra.mxu0 0.0
    %5774 = vmatprep.subr.mxu0 0.0
    %5775 = vmatpush1.msra.mxu0 0.0
    %5776 = vmatprep.subr.mxu0 0.0
    %5777 = vmatpush1.msra.mxu0 0.0
    %5778 = vmatprep.subr.mxu0 0.0
    %5779 = vmatpush1.msra.mxu0 0.0
    %5780 = vmatprep.subr.mxu0 0.0
    %5781 = vmatpush1.msra.mxu0 0.0
    %5782 = vmatprep.subr.mxu0 0.0
    %5783 = vmatpush1.msra.mxu0 0.0
    %5784 = vmatprep.subr.mxu0 0.0
    %5785 = vmatpush1.msra.mxu0 0.0
    %5786 = vmatprep.subr.mxu0 0.0
    %5787 = vmatpush1.msra.mxu0 0.0
    %5788 = vmatprep.subr.mxu0 0.0
    %5789 = vmatpush1.msra.mxu0 0.0
    %5790 = vmatprep.subr.mxu0 0.0
    %5791 = vmatpush1.msra.mxu0 0.0
    %5792 = vmatprep.subr.mxu0 0.0
    %5793 = vmatpush1.msra.mxu0 0.0
    %5794 = vmatprep.mubr.f32.mxu0 0.0
    %5795 = vmatmul.mubr.f32.gmra.mrb[0].mxu0 %v5728
    %v5796 = vpop.f32.mrb[0].mxu0
    %v5797 = vadd.f32 0.0, %v5796
    %v5798 = vpop.f32.mrb[0].mxu0
    %5799 = vdwg.mxu0
    %v5801 = vsel %vm1423, %v5496, 0
    %5803 = vmatprep.subr.mxu0 0.0
    %5804 = vmatpush1.msra.mxu0 %v1353
    %5805 = vmatprep.subr.mxu0 0.0
    %5806 = vmatpush1.msra.mxu0 %v1354
    %5807 = vmatprep.subr.mxu0 0.0
    %5808 = vmatpush1.msra.mxu0 0.0
    %5809 = vmatprep.subr.mxu0 0.0
    %5810 = vmatpush1.msra.mxu0 0.0
    %5811 = vmatprep.subr.mxu0 0.0
    %5812 = vmatpush1.msra.mxu0 0.0
    %5813 = vmatprep.subr.mxu0 0.0
    %5814 = vmatpush1.msra.mxu0 0.0
    %5815 = vmatprep.subr.mxu0 0.0
    %5816 = vmatpush1.msra.mxu0 0.0
    %5817 = vmatprep.subr.mxu0 0.0
    %5818 = vmatpush1.msra.mxu0 0.0
    %5819 = vmatprep.subr.mxu0 0.0
    %5820 = vmatpush1.msra.mxu0 0.0
    %5821 = vmatprep.subr.mxu0 0.0
    %5822 = vmatpush1.msra.mxu0 0.0
    %5823 = vmatprep.subr.mxu0 0.0
    %5824 = vmatpush1.msra.mxu0 0.0
    %5825 = vmatprep.subr.mxu0 0.0
    %5826 = vmatpush1.msra.mxu0 0.0
    %5827 = vmatprep.subr.mxu0 0.0
    %5828 = vmatpush1.msra.mxu0 0.0
    %5829 = vmatprep.subr.mxu0 0.0
    %5830 = vmatpush1.msra.mxu0 0.0
    %5831 = vmatprep.subr.mxu0 0.0
    %5832 = vmatpush1.msra.mxu0 0.0
    %5833 = vmatprep.subr.mxu0 0.0
    %5834 = vmatpush1.msra.mxu0 0.0
    %5835 = vmatprep.subr.mxu0 0.0
    %5836 = vmatpush1.msra.mxu0 0.0
    %5837 = vmatprep.subr.mxu0 0.0
    %5838 = vmatpush1.msra.mxu0 0.0
    %5839 = vmatprep.subr.mxu0 0.0
    %5840 = vmatpush1.msra.mxu0 0.0
    %5841 = vmatprep.subr.mxu0 0.0
    %5842 = vmatpush1.msra.mxu0 0.0
    %5843 = vmatprep.subr.mxu0 0.0
    %5844 = vmatpush1.msra.mxu0 0.0
    %5845 = vmatprep.subr.mxu0 0.0
    %5846 = vmatpush1.msra.mxu0 0.0
    %5847 = vmatprep.subr.mxu0 0.0
    %5848 = vmatpush1.msra.mxu0 0.0
    %5849 = vmatprep.subr.mxu0 0.0
    %5850 = vmatpush1.msra.mxu0 0.0
    %5851 = vmatprep.subr.mxu0 0.0
    %5852 = vmatpush1.msra.mxu0 0.0
    %5853 = vmatprep.subr.mxu0 0.0
    %5854 = vmatpush1.msra.mxu0 0.0
    %5855 = vmatprep.subr.mxu0 0.0
    %5856 = vmatpush1.msra.mxu0 0.0
    %5857 = vmatprep.subr.mxu0 0.0
    %5858 = vmatpush1.msra.mxu0 0.0
    %5859 = vmatprep.subr.mxu0 0.0
    %5860 = vmatpush1.msra.mxu0 0.0
    %5861 = vmatprep.subr.mxu0 0.0
    %5862 = vmatpush1.msra.mxu0 0.0
    %5863 = vmatprep.subr.mxu0 0.0
    %5864 = vmatpush1.msra.mxu0 0.0
    %5865 = vmatprep.subr.mxu0 0.0
    %5866 = vmatpush1.msra.mxu0 0.0
    %5867 = vmatprep.mubr.f32.mxu0 0.0
    %5868 = vmatmul.mubr.f32.gmra.mrb[0].mxu0 %v5801
    %v5869 = vpop.f32.mrb[0].mxu0
    %v5870 = vadd.f32 0.0, %v5869
    %v5871 = vpop.f32.mrb[0].mxu0
    %5872 = vdwg.mxu0
    %v5874 = vsel %vm1423, %v5497, 0
    %5876 = vmatprep.subr.mxu0 0.0
    %5877 = vmatpush1.msra.mxu0 %v1355
    %5878 = vmatprep.subr.mxu0 0.0
    %5879 = vmatpush1.msra.mxu0 %v1356
    %5880 = vmatprep.subr.mxu0 0.0
    %5881 = vmatpush1.msra.mxu0 0.0
    %5882 = vmatprep.subr.mxu0 0.0
    %5883 = vmatpush1.msra.mxu0 0.0
    %5884 = vmatprep.subr.mxu0 0.0
    %5885 = vmatpush1.msra.mxu0 0.0
    %5886 = vmatprep.subr.mxu0 0.0
    %5887 = vmatpush1.msra.mxu0 0.0
    %5888 = vmatprep.subr.mxu0 0.0
    %5889 = vmatpush1.msra.mxu0 0.0
    %5890 = vmatprep.subr.mxu0 0.0
    %5891 = vmatpush1.msra.mxu0 0.0
    %5892 = vmatprep.subr.mxu0 0.0
    %5893 = vmatpush1.msra.mxu0 0.0
    %5894 = vmatprep.subr.mxu0 0.0
    %5895 = vmatpush1.msra.mxu0 0.0
    %5896 = vmatprep.subr.mxu0 0.0
    %5897 = vmatpush1.msra.mxu0 0.0
    %5898 = vmatprep.subr.mxu0 0.0
    %5899 = vmatpush1.msra.mxu0 0.0
    %5900 = vmatprep.subr.mxu0 0.0
    %5901 = vmatpush1.msra.mxu0 0.0
    %5902 = vmatprep.subr.mxu0 0.0
    %5903 = vmatpush1.msra.mxu0 0.0
    %5904 = vmatprep.subr.mxu0 0.0
    %5905 = vmatpush1.msra.mxu0 0.0
    %5906 = vmatprep.subr.mxu0 0.0
    %5907 = vmatpush1.msra.mxu0 0.0
    %5908 = vmatprep.subr.mxu0 0.0
    %5909 = vmatpush1.msra.mxu0 0.0
    %5910 = vmatprep.subr.mxu0 0.0
    %5911 = vmatpush1.msra.mxu0 0.0
    %5912 = vmatprep.subr.mxu0 0.0
    %5913 = vmatpush1.msra.mxu0 0.0
    %5914 = vmatprep.subr.mxu0 0.0
    %5915 = vmatpush1.msra.mxu0 0.0
    %5916 = vmatprep.subr.mxu0 0.0
    %5917 = vmatpush1.msra.mxu0 0.0
    %5918 = vmatprep.subr.mxu0 0.0
    %5919 = vmatpush1.msra.mxu0 0.0
    %5920 = vmatprep.subr.mxu0 0.0
    %5921 = vmatpush1.msra.mxu0 0.0
    %5922 = vmatprep.subr.mxu0 0.0
    %5923 = vmatpush1.msra.mxu0 0.0
    %5924 = vmatprep.subr.mxu0 0.0
    %5925 = vmatpush1.msra.mxu0 0.0
    %5926 = vmatprep.subr.mxu0 0.0
    %5927 = vmatpush1.msra.mxu0 0.0
    %5928 = vmatprep.subr.mxu0 0.0
    %5929 = vmatpush1.msra.mxu0 0.0
    %5930 = vmatprep.subr.mxu0 0.0
    %5931 = vmatpush1.msra.mxu0 0.0
    %5932 = vmatprep.subr.mxu0 0.0
    %5933 = vmatpush1.msra.mxu0 0.0
    %5934 = vmatprep.subr.mxu0 0.0
    %5935 = vmatpush1.msra.mxu0 0.0
    %5936 = vmatprep.subr.mxu0 0.0
    %5937 = vmatpush1.msra.mxu0 0.0
    %5938 = vmatprep.subr.mxu0 0.0
    %5939 = vmatpush1.msra.mxu0 0.0
    %5940 = vmatprep.mubr.f32.mxu0 0.0
    %5941 = vmatmul.mubr.f32.gmra.mrb[0].mxu0 %v5874
    %v5942 = vpop.f32.mrb[0].mxu0
    %v5943 = vadd.f32 0.0, %v5942
    %v5944 = vpop.f32.mrb[0].mxu0
    %5945 = vdwg.mxu0
    %v5947 = vsel %vm1423, %v5498, 0
    %5949 = vmatprep.subr.mxu0 0.0
    %5950 = vmatpush1.msra.mxu0 %v1357
    %5951 = vmatprep.subr.mxu0 0.0
    %5952 = vmatpush1.msra.mxu0 %v1358
    %5953 = vmatprep.subr.mxu0 0.0
    %5954 = vmatpush1.msra.mxu0 0.0
    %5955 = vmatprep.subr.mxu0 0.0
    %5956 = vmatpush1.msra.mxu0 0.0
    %5957 = vmatprep.subr.mxu0 0.0
    %5958 = vmatpush1.msra.mxu0 0.0
    %5959 = vmatprep.subr.mxu0 0.0
    %5960 = vmatpush1.msra.mxu0 0.0
    %5961 = vmatprep.subr.mxu0 0.0
    %5962 = vmatpush1.msra.mxu0 0.0
    %5963 = vmatprep.subr.mxu0 0.0
    %5964 = vmatpush1.msra.mxu0 0.0
    %5965 = vmatprep.subr.mxu0 0.0
    %5966 = vmatpush1.msra.mxu0 0.0
    %5967 = vmatprep.subr.mxu0 0.0
    %5968 = vmatpush1.msra.mxu0 0.0
    %5969 = vmatprep.subr.mxu0 0.0
    %5970 = vmatpush1.msra.mxu0 0.0
    %5971 = vmatprep.subr.mxu0 0.0
    %5972 = vmatpush1.msra.mxu0 0.0
    %5973 = vmatprep.subr.mxu0 0.0
    %5974 = vmatpush1.msra.mxu0 0.0
    %5975 = vmatprep.subr.mxu0 0.0
    %5976 = vmatpush1.msra.mxu0 0.0
    %5977 = vmatprep.subr.mxu0 0.0
    %5978 = vmatpush1.msra.mxu0 0.0
    %5979 = vmatprep.subr.mxu0 0.0
    %5980 = vmatpush1.msra.mxu0 0.0
    %5981 = vmatprep.subr.mxu0 0.0
    %5982 = vmatpush1.msra.mxu0 0.0
    %5983 = vmatprep.subr.mxu0 0.0
    %5984 = vmatpush1.msra.mxu0 0.0
    %5985 = vmatprep.subr.mxu0 0.0
    %5986 = vmatpush1.msra.mxu0 0.0
    %5987 = vmatprep.subr.mxu0 0.0
    %5988 = vmatpush1.msra.mxu0 0.0
    %5989 = vmatprep.subr.mxu0 0.0
    %5990 = vmatpush1.msra.mxu0 0.0
    %5991 = vmatprep.subr.mxu0 0.0
    %5992 = vmatpush1.msra.mxu0 0.0
    %5993 = vmatprep.subr.mxu0 0.0
    %5994 = vmatpush1.msra.mxu0 0.0
    %5995 = vmatprep.subr.mxu0 0.0
    %5996 = vmatpush1.msra.mxu0 0.0
    %5997 = vmatprep.subr.mxu0 0.0
    %5998 = vmatpush1.msra.mxu0 0.0
    %5999 = vmatprep.subr.mxu0 0.0
    %6000 = vmatpush1.msra.mxu0 0.0
    %6001 = vmatprep.subr.mxu0 0.0
    %6002 = vmatpush1.msra.mxu0 0.0
    %6003 = vmatprep.subr.mxu0 0.0
    %6004 = vmatpush1.msra.mxu0 0.0
    %6005 = vmatprep.subr.mxu0 0.0
    %6006 = vmatpush1.msra.mxu0 0.0
    %6007 = vmatprep.subr.mxu0 0.0
    %6008 = vmatpush1.msra.mxu0 0.0
    %6009 = vmatprep.subr.mxu0 0.0
    %6010 = vmatpush1.msra.mxu0 0.0
    %6011 = vmatprep.subr.mxu0 0.0
    %6012 = vmatpush1.msra.mxu0 0.0
    %6013 = vmatprep.mubr.f32.mxu0 0.0
    %6014 = vmatmul.mubr.f32.gmra.mrb[0].mxu0 %v5947
    %v6015 = vpop.f32.mrb[0].mxu0
    %v6016 = vadd.f32 0.0, %v6015
    %v6017 = vpop.f32.mrb[0].mxu0
    %6018 = vdwg.mxu0
    %v6020 = vsel %vm1423, %v5499, 0
    %6022 = vmatprep.subr.mxu0 0.0
    %6023 = vmatpush1.msra.mxu0 %v1359
    %6024 = vmatprep.subr.mxu0 0.0
    %6025 = vmatpush1.msra.mxu0 %v1360
    %6026 = vmatprep.subr.mxu0 0.0
    %6027 = vmatpush1.msra.mxu0 0.0
    %6028 = vmatprep.subr.mxu0 0.0
    %6029 = vmatpush1.msra.mxu0 0.0
    %6030 = vmatprep.subr.mxu0 0.0
    %6031 = vmatpush1.msra.mxu0 0.0
    %6032 = vmatprep.subr.mxu0 0.0
    %6033 = vmatpush1.msra.mxu0 0.0
    %6034 = vmatprep.subr.mxu0 0.0
    %6035 = vmatpush1.msra.mxu0 0.0
    %6036 = vmatprep.subr.mxu0 0.0
    %6037 = vmatpush1.msra.mxu0 0.0
    %6038 = vmatprep.subr.mxu0 0.0
    %6039 = vmatpush1.msra.mxu0 0.0
    %6040 = vmatprep.subr.mxu0 0.0
    %6041 = vmatpush1.msra.mxu0 0.0
    %6042 = vmatprep.subr.mxu0 0.0
    %6043 = vmatpush1.msra.mxu0 0.0
    %6044 = vmatprep.subr.mxu0 0.0
    %6045 = vmatpush1.msra.mxu0 0.0
    %6046 = vmatprep.subr.mxu0 0.0
    %6047 = vmatpush1.msra.mxu0 0.0
    %6048 = vmatprep.subr.mxu0 0.0
    %6049 = vmatpush1.msra.mxu0 0.0
    %6050 = vmatprep.subr.mxu0 0.0
    %6051 = vmatpush1.msra.mxu0 0.0
    %6052 = vmatprep.subr.mxu0 0.0
    %6053 = vmatpush1.msra.mxu0 0.0
    %6054 = vmatprep.subr.mxu0 0.0
    %6055 = vmatpush1.msra.mxu0 0.0
    %6056 = vmatprep.subr.mxu0 0.0
    %6057 = vmatpush1.msra.mxu0 0.0
    %6058 = vmatprep.subr.mxu0 0.0
    %6059 = vmatpush1.msra.mxu0 0.0
    %6060 = vmatprep.subr.mxu0 0.0
    %6061 = vmatpush1.msra.mxu0 0.0
    %6062 = vmatprep.subr.mxu0 0.0
    %6063 = vmatpush1.msra.mxu0 0.0
    %6064 = vmatprep.subr.mxu0 0.0
    %6065 = vmatpush1.msra.mxu0 0.0
    %6066 = vmatprep.subr.mxu0 0.0
    %6067 = vmatpush1.msra.mxu0 0.0
    %6068 = vmatprep.subr.mxu0 0.0
    %6069 = vmatpush1.msra.mxu0 0.0
    %6070 = vmatprep.subr.mxu0 0.0
    %6071 = vmatpush1.msra.mxu0 0.0
    %6072 = vmatprep.subr.mxu0 0.0
    %6073 = vmatpush1.msra.mxu0 0.0
    %6074 = vmatprep.subr.mxu0 0.0
    %6075 = vmatpush1.msra.mxu0 0.0
    %6076 = vmatprep.subr.mxu0 0.0
    %6077 = vmatpush1.msra.mxu0 0.0
    %6078 = vmatprep.subr.mxu0 0.0
    %6079 = vmatpush1.msra.mxu0 0.0
    %6080 = vmatprep.subr.mxu0 0.0
    %6081 = vmatpush1.msra.mxu0 0.0
    %6082 = vmatprep.subr.mxu0 0.0
    %6083 = vmatpush1.msra.mxu0 0.0
    %6084 = vmatprep.subr.mxu0 0.0
    %6085 = vmatpush1.msra.mxu0 0.0
    %6086 = vmatprep.mubr.f32.mxu0 0.0
    %6087 = vmatmul.mubr.f32.gmra.mrb[0].mxu0 %v6020
    %v6088 = vpop.f32.mrb[0].mxu0
    %v6089 = vadd.f32 0.0, %v6088
    %v6090 = vpop.f32.mrb[0].mxu0
    %6091 = vdwg.mxu0
    %v6093 = vsel %vm1423, %v5500, 0
    %6095 = vmatprep.subr.mxu0 0.0
    %6096 = vmatpush1.msra.mxu0 %v1407
    %6097 = vmatprep.subr.mxu0 0.0
    %6098 = vmatpush1.msra.mxu0 %v1408
    %6099 = vmatprep.subr.mxu0 0.0
    %6100 = vmatpush1.msra.mxu0 0.0
    %6101 = vmatprep.subr.mxu0 0.0
    %6102 = vmatpush1.msra.mxu0 0.0
    %6103 = vmatprep.subr.mxu0 0.0
    %6104 = vmatpush1.msra.mxu0 0.0
    %6105 = vmatprep.subr.mxu0 0.0
    %6106 = vmatpush1.msra.mxu0 0.0
    %6107 = vmatprep.subr.mxu0 0.0
    %6108 = vmatpush1.msra.mxu0 0.0
    %6109 = vmatprep.subr.mxu0 0.0
    %6110 = vmatpush1.msra.mxu0 0.0
    %6111 = vmatprep.subr.mxu0 0.0
    %6112 = vmatpush1.msra.mxu0 0.0
    %6113 = vmatprep.subr.mxu0 0.0
    %6114 = vmatpush1.msra.mxu0 0.0
    %6115 = vmatprep.subr.mxu0 0.0
    %6116 = vmatpush1.msra.mxu0 0.0
    %6117 = vmatprep.subr.mxu0 0.0
    %6118 = vmatpush1.msra.mxu0 0.0
    %6119 = vmatprep.subr.mxu0 0.0
    %6120 = vmatpush1.msra.mxu0 0.0
    %6121 = vmatprep.subr.mxu0 0.0
    %6122 = vmatpush1.msra.mxu0 0.0
    %6123 = vmatprep.subr.mxu0 0.0
    %6124 = vmatpush1.msra.mxu0 0.0
    %6125 = vmatprep.subr.mxu0 0.0
    %6126 = vmatpush1.msra.mxu0 0.0
    %6127 = vmatprep.subr.mxu0 0.0
    %6128 = vmatpush1.msra.mxu0 0.0
    %6129 = vmatprep.subr.mxu0 0.0
    %6130 = vmatpush1.msra.mxu0 0.0
    %6131 = vmatprep.subr.mxu0 0.0
    %6132 = vmatpush1.msra.mxu0 0.0
    %6133 = vmatprep.subr.mxu0 0.0
    %6134 = vmatpush1.msra.mxu0 0.0
    %6135 = vmatprep.subr.mxu0 0.0
    %6136 = vmatpush1.msra.mxu0 0.0
    %6137 = vmatprep.subr.mxu0 0.0
    %6138 = vmatpush1.msra.mxu0 0.0
    %6139 = vmatprep.subr.mxu0 0.0
    %6140 = vmatpush1.msra.mxu0 0.0
    %6141 = vmatprep.subr.mxu0 0.0
    %6142 = vmatpush1.msra.mxu0 0.0
    %6143 = vmatprep.subr.mxu0 0.0
    %6144 = vmatpush1.msra.mxu0 0.0
    %6145 = vmatprep.subr.mxu0 0.0
    %6146 = vmatpush1.msra.mxu0 0.0
    %6147 = vmatprep.subr.mxu0 0.0
    %6148 = vmatpush1.msra.mxu0 0.0
    %6149 = vmatprep.subr.mxu0 0.0
    %6150 = vmatpush1.msra.mxu0 0.0
    %6151 = vmatprep.subr.mxu0 0.0
    %6152 = vmatpush1.msra.mxu0 0.0
    %6153 = vmatprep.subr.mxu0 0.0
    %6154 = vmatpush1.msra.mxu0 0.0
    %6155 = vmatprep.subr.mxu0 0.0
    %6156 = vmatpush1.msra.mxu0 0.0
    %6157 = vmatprep.subr.mxu0 0.0
    %6158 = vmatpush1.msra.mxu0 0.0
    %6159 = vmatprep.mubr.f32.mxu0 0.0
    %6160 = vmatmul.mubr.f32.gmra.mrb[0].mxu0 %v6093
    %v6161 = vpop.f32.mrb[0].mxu0
    %v6162 = vadd.f32 0.0, %v6161
    %v6163 = vpop.f32.mrb[0].mxu0
    %6164 = vdwg.mxu0
    %v6166 = vsel %vm1423, %v5501, 0
    %6168 = vmatprep.subr.mxu0 0.0
    %6169 = vmatpush1.msra.mxu0 %v1409
    %6170 = vmatprep.subr.mxu0 0.0
    %6171 = vmatpush1.msra.mxu0 %v1410
    %6172 = vmatprep.subr.mxu0 0.0
    %6173 = vmatpush1.msra.mxu0 0.0
    %6174 = vmatprep.subr.mxu0 0.0
    %6175 = vmatpush1.msra.mxu0 0.0
    %6176 = vmatprep.subr.mxu0 0.0
    %6177 = vmatpush1.msra.mxu0 0.0
    %6178 = vmatprep.subr.mxu0 0.0
    %6179 = vmatpush1.msra.mxu0 0.0
    %6180 = vmatprep.subr.mxu0 0.0
    %6181 = vmatpush1.msra.mxu0 0.0
    %6182 = vmatprep.subr.mxu0 0.0
    %6183 = vmatpush1.msra.mxu0 0.0
    %6184 = vmatprep.subr.mxu0 0.0
    %6185 = vmatpush1.msra.mxu0 0.0
    %6186 = vmatprep.subr.mxu0 0.0
    %6187 = vmatpush1.msra.mxu0 0.0
    %6188 = vmatprep.subr.mxu0 0.0
    %6189 = vmatpush1.msra.mxu0 0.0
    %6190 = vmatprep.subr.mxu0 0.0
    %6191 = vmatpush1.msra.mxu0 0.0
    %6192 = vmatprep.subr.mxu0 0.0
    %6193 = vmatpush1.msra.mxu0 0.0
    %6194 = vmatprep.subr.mxu0 0.0
    %6195 = vmatpush1.msra.mxu0 0.0
    %6196 = vmatprep.subr.mxu0 0.0
    %6197 = vmatpush1.msra.mxu0 0.0
    %6198 = vmatprep.subr.mxu0 0.0
    %6199 = vmatpush1.msra.mxu0 0.0
    %6200 = vmatprep.subr.mxu0 0.0
    %6201 = vmatpush1.msra.mxu0 0.0
    %6202 = vmatprep.subr.mxu0 0.0
    %6203 = vmatpush1.msra.mxu0 0.0
    %6204 = vmatprep.subr.mxu0 0.0
    %6205 = vmatpush1.msra.mxu0 0.0
    %6206 = vmatprep.subr.mxu0 0.0
    %6207 = vmatpush1.msra.mxu0 0.0
    %6208 = vmatprep.subr.mxu0 0.0
    %6209 = vmatpush1.msra.mxu0 0.0
    %6210 = vmatprep.subr.mxu0 0.0
    %6211 = vmatpush1.msra.mxu0 0.0
    %6212 = vmatprep.subr.mxu0 0.0
    %6213 = vmatpush1.msra.mxu0 0.0
    %6214 = vmatprep.subr.mxu0 0.0
    %6215 = vmatpush1.msra.mxu0 0.0
    %6216 = vmatprep.subr.mxu0 0.0
    %6217 = vmatpush1.msra.mxu0 0.0
    %6218 = vmatprep.subr.mxu0 0.0
    %6219 = vmatpush1.msra.mxu0 0.0
    %6220 = vmatprep.subr.mxu0 0.0
    %6221 = vmatpush1.msra.mxu0 0.0
    %6222 = vmatprep.subr.mxu0 0.0
    %6223 = vmatpush1.msra.mxu0 0.0
    %6224 = vmatprep.subr.mxu0 0.0
    %6225 = vmatpush1.msra.mxu0 0.0
    %6226 = vmatprep.subr.mxu0 0.0
    %6227 = vmatpush1.msra.mxu0 0.0
    %6228 = vmatprep.subr.mxu0 0.0
    %6229 = vmatpush1.msra.mxu0 0.0
    %6230 = vmatprep.subr.mxu0 0.0
    %6231 = vmatpush1.msra.mxu0 0.0
    %6232 = vmatprep.mubr.f32.mxu0 0.0
    %6233 = vmatmul.mubr.f32.gmra.mrb[0].mxu0 %v6166
    %v6234 = vpop.f32.mrb[0].mxu0
    %v6235 = vadd.f32 0.0, %v6234
    %v6236 = vpop.f32.mrb[0].mxu0
    %6237 = vdwg.mxu0
    %v6239 = vsel %vm1423, %v5502, 0
    %6241 = vmatprep.subr.mxu0 0.0
    %6242 = vmatpush1.msra.mxu0 %v1411
    %6243 = vmatprep.subr.mxu0 0.0
    %6244 = vmatpush1.msra.mxu0 %v1412
    %6245 = vmatprep.subr.mxu0 0.0
    %6246 = vmatpush1.msra.mxu0 0.0
    %6247 = vmatprep.subr.mxu0 0.0
    %6248 = vmatpush1.msra.mxu0 0.0
    %6249 = vmatprep.subr.mxu0 0.0
    %6250 = vmatpush1.msra.mxu0 0.0
    %6251 = vmatprep.subr.mxu0 0.0
    %6252 = vmatpush1.msra.mxu0 0.0
    %6253 = vmatprep.subr.mxu0 0.0
    %6254 = vmatpush1.msra.mxu0 0.0
    %6255 = vmatprep.subr.mxu0 0.0
    %6256 = vmatpush1.msra.mxu0 0.0
    %6257 = vmatprep.subr.mxu0 0.0
    %6258 = vmatpush1.msra.mxu0 0.0
    %6259 = vmatprep.subr.mxu0 0.0
    %6260 = vmatpush1.msra.mxu0 0.0
    %6261 = vmatprep.subr.mxu0 0.0
    %6262 = vmatpush1.msra.mxu0 0.0
    %6263 = vmatprep.subr.mxu0 0.0
    %6264 = vmatpush1.msra.mxu0 0.0
    %6265 = vmatprep.subr.mxu0 0.0
    %6266 = vmatpush1.msra.mxu0 0.0
    %6267 = vmatprep.subr.mxu0 0.0
    %6268 = vmatpush1.msra.mxu0 0.0
    %6269 = vmatprep.subr.mxu0 0.0
    %6270 = vmatpush1.msra.mxu0 0.0
    %6271 = vmatprep.subr.mxu0 0.0
    %6272 = vmatpush1.msra.mxu0 0.0
    %6273 = vmatprep.subr.mxu0 0.0
    %6274 = vmatpush1.msra.mxu0 0.0
    %6275 = vmatprep.subr.mxu0 0.0
    %6276 = vmatpush1.msra.mxu0 0.0
    %6277 = vmatprep.subr.mxu0 0.0
    %6278 = vmatpush1.msra.mxu0 0.0
    %6279 = vmatprep.subr.mxu0 0.0
    %6280 = vmatpush1.msra.mxu0 0.0
    %6281 = vmatprep.subr.mxu0 0.0
    %6282 = vmatpush1.msra.mxu0 0.0
    %6283 = vmatprep.subr.mxu0 0.0
    %6284 = vmatpush1.msra.mxu0 0.0
    %6285 = vmatprep.subr.mxu0 0.0
    %6286 = vmatpush1.msra.mxu0 0.0
    %6287 = vmatprep.subr.mxu0 0.0
    %6288 = vmatpush1.msra.mxu0 0.0
    %6289 = vmatprep.subr.mxu0 0.0
    %6290 = vmatpush1.msra.mxu0 0.0
    %6291 = vmatprep.subr.mxu0 0.0
    %6292 = vmatpush1.msra.mxu0 0.0
    %6293 = vmatprep.subr.mxu0 0.0
    %6294 = vmatpush1.msra.mxu0 0.0
    %6295 = vmatprep.subr.mxu0 0.0
    %6296 = vmatpush1.msra.mxu0 0.0
    %6297 = vmatprep.subr.mxu0 0.0
    %6298 = vmatpush1.msra.mxu0 0.0
    %6299 = vmatprep.subr.mxu0 0.0
    %6300 = vmatpush1.msra.mxu0 0.0
    %6301 = vmatprep.subr.mxu0 0.0
    %6302 = vmatpush1.msra.mxu0 0.0
    %6303 = vmatprep.subr.mxu0 0.0
    %6304 = vmatpush1.msra.mxu0 0.0
    %6305 = vmatprep.mubr.f32.mxu0 0.0
    %6306 = vmatmul.mubr.f32.gmra.mrb[0].mxu0 %v6239
    %v6307 = vpop.f32.mrb[0].mxu0
    %v6308 = vadd.f32 0.0, %v6307
    %v6309 = vpop.f32.mrb[0].mxu0
    %6310 = vdwg.mxu0
    %v6312 = vsel %vm1423, %v5503, 0
    %6314 = vmatprep.subr.mxu0 0.0
    %6315 = vmatpush1.msra.mxu0 %v1413
    %6316 = vmatprep.subr.mxu0 0.0
    %6317 = vmatpush1.msra.mxu0 %v1414
    %6318 = vmatprep.subr.mxu0 0.0
    %6319 = vmatpush1.msra.mxu0 0.0
    %6320 = vmatprep.subr.mxu0 0.0
    %6321 = vmatpush1.msra.mxu0 0.0
    %6322 = vmatprep.subr.mxu0 0.0
    %6323 = vmatpush1.msra.mxu0 0.0
    %6324 = vmatprep.subr.mxu0 0.0
    %6325 = vmatpush1.msra.mxu0 0.0
    %6326 = vmatprep.subr.mxu0 0.0
    %6327 = vmatpush1.msra.mxu0 0.0
    %6328 = vmatprep.subr.mxu0 0.0
    %6329 = vmatpush1.msra.mxu0 0.0
    %6330 = vmatprep.subr.mxu0 0.0
    %6331 = vmatpush1.msra.mxu0 0.0
    %6332 = vmatprep.subr.mxu0 0.0
    %6333 = vmatpush1.msra.mxu0 0.0
    %6334 = vmatprep.subr.mxu0 0.0
    %6335 = vmatpush1.msra.mxu0 0.0
    %6336 = vmatprep.subr.mxu0 0.0
    %6337 = vmatpush1.msra.mxu0 0.0
    %6338 = vmatprep.subr.mxu0 0.0
    %6339 = vmatpush1.msra.mxu0 0.0
    %6340 = vmatprep.subr.mxu0 0.0
    %6341 = vmatpush1.msra.mxu0 0.0
    %6342 = vmatprep.subr.mxu0 0.0
    %6343 = vmatpush1.msra.mxu0 0.0
    %6344 = vmatprep.subr.mxu0 0.0
    %6345 = vmatpush1.msra.mxu0 0.0
    %6346 = vmatprep.subr.mxu0 0.0
    %6347 = vmatpush1.msra.mxu0 0.0
    %6348 = vmatprep.subr.mxu0 0.0
    %6349 = vmatpush1.msra.mxu0 0.0
    %6350 = vmatprep.subr.mxu0 0.0
    %6351 = vmatpush1.msra.mxu0 0.0
    %6352 = vmatprep.subr.mxu0 0.0
    %6353 = vmatpush1.msra.mxu0 0.0
    %6354 = vmatprep.subr.mxu0 0.0
    %6355 = vmatpush1.msra.mxu0 0.0
    %6356 = vmatprep.subr.mxu0 0.0
    %6357 = vmatpush1.msra.mxu0 0.0
    %6358 = vmatprep.subr.mxu0 0.0
    %6359 = vmatpush1.msra.mxu0 0.0
    %6360 = vmatprep.subr.mxu0 0.0
    %6361 = vmatpush1.msra.mxu0 0.0
    %6362 = vmatprep.subr.mxu0 0.0
    %6363 = vmatpush1.msra.mxu0 0.0
    %6364 = vmatprep.subr.mxu0 0.0
    %6365 = vmatpush1.msra.mxu0 0.0
    %6366 = vmatprep.subr.mxu0 0.0
    %6367 = vmatpush1.msra.mxu0 0.0
    %6368 = vmatprep.subr.mxu0 0.0
    %6369 = vmatpush1.msra.mxu0 0.0
    %6370 = vmatprep.subr.mxu0 0.0
    %6371 = vmatpush1.msra.mxu0 0.0
    %6372 = vmatprep.subr.mxu0 0.0
    %6373 = vmatpush1.msra.mxu0 0.0
    %6374 = vmatprep.subr.mxu0 0.0
    %6375 = vmatpush1.msra.mxu0 0.0
    %6376 = vmatprep.subr.mxu0 0.0
    %6377 = vmatpush1.msra.mxu0 0.0
    %6378 = vmatprep.mubr.f32.mxu0 0.0
    %6379 = vmatmul.mubr.f32.gmra.mrb[0].mxu0 %v6312
    %v6380 = vpop.f32.mrb[0].mxu0
    %v6381 = vadd.f32 0.0, %v6380
    %v6382 = vpop.f32.mrb[0].mxu0
    %6383 = vdwg.mxu0
    %v6385 = vsel %vm1423, %v5504, 0
    %6387 = vmatprep.subr.mxu0 0.0
    %6388 = vmatpush1.msra.mxu0 %v1415
    %6389 = vmatprep.subr.mxu0 0.0
    %6390 = vmatpush1.msra.mxu0 %v1416
    %6391 = vmatprep.subr.mxu0 0.0
    %6392 = vmatpush1.msra.mxu0 0.0
    %6393 = vmatprep.subr.mxu0 0.0
    %6394 = vmatpush1.msra.mxu0 0.0
    %6395 = vmatprep.subr.mxu0 0.0
    %6396 = vmatpush1.msra.mxu0 0.0
    %6397 = vmatprep.subr.mxu0 0.0
    %6398 = vmatpush1.msra.mxu0 0.0
    %6399 = vmatprep.subr.mxu0 0.0
    %6400 = vmatpush1.msra.mxu0 0.0
    %6401 = vmatprep.subr.mxu0 0.0
    %6402 = vmatpush1.msra.mxu0 0.0
    %6403 = vmatprep.subr.mxu0 0.0
    %6404 = vmatpush1.msra.mxu0 0.0
    %6405 = vmatprep.subr.mxu0 0.0
    %6406 = vmatpush1.msra.mxu0 0.0
    %6407 = vmatprep.subr.mxu0 0.0
    %6408 = vmatpush1.msra.mxu0 0.0
    %6409 = vmatprep.subr.mxu0 0.0
    %6410 = vmatpush1.msra.mxu0 0.0
    %6411 = vmatprep.subr.mxu0 0.0
    %6412 = vmatpush1.msra.mxu0 0.0
    %6413 = vmatprep.subr.mxu0 0.0
    %6414 = vmatpush1.msra.mxu0 0.0
    %6415 = vmatprep.subr.mxu0 0.0
    %6416 = vmatpush1.msra.mxu0 0.0
    %6417 = vmatprep.subr.mxu0 0.0
    %6418 = vmatpush1.msra.mxu0 0.0
    %6419 = vmatprep.subr.mxu0 0.0
    %6420 = vmatpush1.msra.mxu0 0.0
    %6421 = vmatprep.subr.mxu0 0.0
    %6422 = vmatpush1.msra.mxu0 0.0
    %6423 = vmatprep.subr.mxu0 0.0
    %6424 = vmatpush1.msra.mxu0 0.0
    %6425 = vmatprep.subr.mxu0 0.0
    %6426 = vmatpush1.msra.mxu0 0.0
    %6427 = vmatprep.subr.mxu0 0.0
    %6428 = vmatpush1.msra.mxu0 0.0
    %6429 = vmatprep.subr.mxu0 0.0
    %6430 = vmatpush1.msra.mxu0 0.0
    %6431 = vmatprep.subr.mxu0 0.0
    %6432 = vmatpush1.msra.mxu0 0.0
    %6433 = vmatprep.subr.mxu0 0.0
    %6434 = vmatpush1.msra.mxu0 0.0
    %6435 = vmatprep.subr.mxu0 0.0
    %6436 = vmatpush1.msra.mxu0 0.0
    %6437 = vmatprep.subr.mxu0 0.0
    %6438 = vmatpush1.msra.mxu0 0.0
    %6439 = vmatprep.subr.mxu0 0.0
    %6440 = vmatpush1.msra.mxu0 0.0
    %6441 = vmatprep.subr.mxu0 0.0
    %6442 = vmatpush1.msra.mxu0 0.0
    %6443 = vmatprep.subr.mxu0 0.0
    %6444 = vmatpush1.msra.mxu0 0.0
    %6445 = vmatprep.subr.mxu0 0.0
    %6446 = vmatpush1.msra.mxu0 0.0
    %6447 = vmatprep.subr.mxu0 0.0
    %6448 = vmatpush1.msra.mxu0 0.0
    %6449 = vmatprep.subr.mxu0 0.0
    %6450 = vmatpush1.msra.mxu0 0.0
    %6451 = vmatprep.mubr.f32.mxu0 0.0
    %6452 = vmatmul.mubr.f32.gmra.mrb[0].mxu0 %v6385
    %v6453 = vpop.f32.mrb[0].mxu0
    %v6454 = vadd.f32 0.0, %v6453
    %v6455 = vpop.f32.mrb[0].mxu0
    %6456 = vdwg.mxu0
    %v6458 = vsel %vm1423, %v5505, 0
    %6460 = vmatprep.subr.mxu0 0.0
    %6461 = vmatpush1.msra.mxu0 %v1417
    %6462 = vmatprep.subr.mxu0 0.0
    %6463 = vmatpush1.msra.mxu0 %v1418
    %6464 = vmatprep.subr.mxu0 0.0
    %6465 = vmatpush1.msra.mxu0 0.0
    %6466 = vmatprep.subr.mxu0 0.0
    %6467 = vmatpush1.msra.mxu0 0.0
    %6468 = vmatprep.subr.mxu0 0.0
    %6469 = vmatpush1.msra.mxu0 0.0
    %6470 = vmatprep.subr.mxu0 0.0
    %6471 = vmatpush1.msra.mxu0 0.0
    %6472 = vmatprep.subr.mxu0 0.0
    %6473 = vmatpush1.msra.mxu0 0.0
    %6474 = vmatprep.subr.mxu0 0.0
    %6475 = vmatpush1.msra.mxu0 0.0
    %6476 = vmatprep.subr.mxu0 0.0
    %6477 = vmatpush1.msra.mxu0 0.0
    %6478 = vmatprep.subr.mxu0 0.0
    %6479 = vmatpush1.msra.mxu0 0.0
    %6480 = vmatprep.subr.mxu0 0.0
    %6481 = vmatpush1.msra.mxu0 0.0
    %6482 = vmatprep.subr.mxu0 0.0
    %6483 = vmatpush1.msra.mxu0 0.0
    %6484 = vmatprep.subr.mxu0 0.0
    %6485 = vmatpush1.msra.mxu0 0.0
    %6486 = vmatprep.subr.mxu0 0.0
    %6487 = vmatpush1.msra.mxu0 0.0
    %6488 = vmatprep.subr.mxu0 0.0
    %6489 = vmatpush1.msra.mxu0 0.0
    %6490 = vmatprep.subr.mxu0 0.0
    %6491 = vmatpush1.msra.mxu0 0.0
    %6492 = vmatprep.subr.mxu0 0.0
    %6493 = vmatpush1.msra.mxu0 0.0
    %6494 = vmatprep.subr.mxu0 0.0
    %6495 = vmatpush1.msra.mxu0 0.0
    %6496 = vmatprep.subr.mxu0 0.0
    %6497 = vmatpush1.msra.mxu0 0.0
    %6498 = vmatprep.subr.mxu0 0.0
    %6499 = vmatpush1.msra.mxu0 0.0
    %6500 = vmatprep.subr.mxu0 0.0
    %6501 = vmatpush1.msra.mxu0 0.0
    %6502 = vmatprep.subr.mxu0 0.0
    %6503 = vmatpush1.msra.mxu0 0.0
    %6504 = vmatprep.subr.mxu0 0.0
    %6505 = vmatpush1.msra.mxu0 0.0
    %6506 = vmatprep.subr.mxu0 0.0
    %6507 = vmatpush1.msra.mxu0 0.0
    %6508 = vmatprep.subr.mxu0 0.0
    %6509 = vmatpush1.msra.mxu0 0.0
    %6510 = vmatprep.subr.mxu0 0.0
    %6511 = vmatpush1.msra.mxu0 0.0
    %6512 = vmatprep.subr.mxu0 0.0
    %6513 = vmatpush1.msra.mxu0 0.0
    %6514 = vmatprep.subr.mxu0 0.0
    %6515 = vmatpush1.msra.mxu0 0.0
    %6516 = vmatprep.subr.mxu0 0.0
    %6517 = vmatpush1.msra.mxu0 0.0
    %6518 = vmatprep.subr.mxu0 0.0
    %6519 = vmatpush1.msra.mxu0 0.0
    %6520 = vmatprep.subr.mxu0 0.0
    %6521 = vmatpush1.msra.mxu0 0.0
    %6522 = vmatprep.subr.mxu0 0.0
    %6523 = vmatpush1.msra.mxu0 0.0
    %6524 = vmatprep.mubr.f32.mxu0 0.0
    %6525 = vmatmul.mubr.f32.gmra.mrb[0].mxu0 %v6458
    %v6526 = vpop.f32.mrb[0].mxu0
    %v6527 = vadd.f32 0.0, %v6526
    %v6528 = vpop.f32.mrb[0].mxu0
    %6529 = vdwg.mxu0
    %v6531 = vsel %vm1423, %v5506, 0
    %6533 = vmatprep.subr.mxu0 0.0
    %6534 = vmatpush1.msra.mxu0 %v1419
    %6535 = vmatprep.subr.mxu0 0.0
    %6536 = vmatpush1.msra.mxu0 %v1420
    %6537 = vmatprep.subr.mxu0 0.0
    %6538 = vmatpush1.msra.mxu0 0.0
    %6539 = vmatprep.subr.mxu0 0.0
    %6540 = vmatpush1.msra.mxu0 0.0
    %6541 = vmatprep.subr.mxu0 0.0
    %6542 = vmatpush1.msra.mxu0 0.0
    %6543 = vmatprep.subr.mxu0 0.0
    %6544 = vmatpush1.msra.mxu0 0.0
    %6545 = vmatprep.subr.mxu0 0.0
    %6546 = vmatpush1.msra.mxu0 0.0
    %6547 = vmatprep.subr.mxu0 0.0
    %6548 = vmatpush1.msra.mxu0 0.0
    %6549 = vmatprep.subr.mxu0 0.0
    %6550 = vmatpush1.msra.mxu0 0.0
    %6551 = vmatprep.subr.mxu0 0.0
    %6552 = vmatpush1.msra.mxu0 0.0
    %6553 = vmatprep.subr.mxu0 0.0
    %6554 = vmatpush1.msra.mxu0 0.0
    %6555 = vmatprep.subr.mxu0 0.0
    %6556 = vmatpush1.msra.mxu0 0.0
    %6557 = vmatprep.subr.mxu0 0.0
    %6558 = vmatpush1.msra.mxu0 0.0
    %6559 = vmatprep.subr.mxu0 0.0
    %6560 = vmatpush1.msra.mxu0 0.0
    %6561 = vmatprep.subr.mxu0 0.0
    %6562 = vmatpush1.msra.mxu0 0.0
    %6563 = vmatprep.subr.mxu0 0.0
    %6564 = vmatpush1.msra.mxu0 0.0
    %6565 = vmatprep.subr.mxu0 0.0
    %6566 = vmatpush1.msra.mxu0 0.0
    %6567 = vmatprep.subr.mxu0 0.0
    %6568 = vmatpush1.msra.mxu0 0.0
    %6569 = vmatprep.subr.mxu0 0.0
    %6570 = vmatpush1.msra.mxu0 0.0
    %6571 = vmatprep.subr.mxu0 0.0
    %6572 = vmatpush1.msra.mxu0 0.0
    %6573 = vmatprep.subr.mxu0 0.0
    %6574 = vmatpush1.msra.mxu0 0.0
    %6575 = vmatprep.subr.mxu0 0.0
    %6576 = vmatpush1.msra.mxu0 0.0
    %6577 = vmatprep.subr.mxu0 0.0
    %6578 = vmatpush1.msra.mxu0 0.0
    %6579 = vmatprep.subr.mxu0 0.0
    %6580 = vmatpush1.msra.mxu0 0.0
    %6581 = vmatprep.subr.mxu0 0.0
    %6582 = vmatpush1.msra.mxu0 0.0
    %6583 = vmatprep.subr.mxu0 0.0
    %6584 = vmatpush1.msra.mxu0 0.0
    %6585 = vmatprep.subr.mxu0 0.0
    %6586 = vmatpush1.msra.mxu0 0.0
    %6587 = vmatprep.subr.mxu0 0.0
    %6588 = vmatpush1.msra.mxu0 0.0
    %6589 = vmatprep.subr.mxu0 0.0
    %6590 = vmatpush1.msra.mxu0 0.0
    %6591 = vmatprep.subr.mxu0 0.0
    %6592 = vmatpush1.msra.mxu0 0.0
    %6593 = vmatprep.subr.mxu0 0.0
    %6594 = vmatpush1.msra.mxu0 0.0
    %6595 = vmatprep.subr.mxu0 0.0
    %6596 = vmatpush1.msra.mxu0 0.0
    %6597 = vmatprep.mubr.f32.mxu0 0.0
    %6598 = vmatmul.mubr.f32.gmra.mrb[0].mxu0 %v6531
    %v6599 = vpop.f32.mrb[0].mxu0
    %v6600 = vadd.f32 0.0, %v6599
    %v6601 = vpop.f32.mrb[0].mxu0
    %6602 = vdwg.mxu0
    %v6604 = vsel %vm1423, %v5507, 0
    %6606 = vmatprep.subr.mxu0 0.0
    %6607 = vmatpush1.msra.mxu0 %v1421
    %6608 = vmatprep.subr.mxu0 0.0
    %6609 = vmatpush1.msra.mxu0 %v1422
    %6610 = vmatprep.subr.mxu0 0.0
    %6611 = vmatpush1.msra.mxu0 0.0
    %6612 = vmatprep.subr.mxu0 0.0
    %6613 = vmatpush1.msra.mxu0 0.0
    %6614 = vmatprep.subr.mxu0 0.0
    %6615 = vmatpush1.msra.mxu0 0.0
    %6616 = vmatprep.subr.mxu0 0.0
    %6617 = vmatpush1.msra.mxu0 0.0
    %6618 = vmatprep.subr.mxu0 0.0
    %6619 = vmatpush1.msra.mxu0 0.0
    %6620 = vmatprep.subr.mxu0 0.0
    %6621 = vmatpush1.msra.mxu0 0.0
    %6622 = vmatprep.subr.mxu0 0.0
    %6623 = vmatpush1.msra.mxu0 0.0
    %6624 = vmatprep.subr.mxu0 0.0
    %6625 = vmatpush1.msra.mxu0 0.0
    %6626 = vmatprep.subr.mxu0 0.0
    %6627 = vmatpush1.msra.mxu0 0.0
    %6628 = vmatprep.subr.mxu0 0.0
    %6629 = vmatpush1.msra.mxu0 0.0
    %6630 = vmatprep.subr.mxu0 0.0
    %6631 = vmatpush1.msra.mxu0 0.0
    %6632 = vmatprep.subr.mxu0 0.0
    %6633 = vmatpush1.msra.mxu0 0.0
    %6634 = vmatprep.subr.mxu0 0.0
    %6635 = vmatpush1.msra.mxu0 0.0
    %6636 = vmatprep.subr.mxu0 0.0
    %6637 = vmatpush1.msra.mxu0 0.0
    %6638 = vmatprep.subr.mxu0 0.0
    %6639 = vmatpush1.msra.mxu0 0.0
    %6640 = vmatprep.subr.mxu0 0.0
    %6641 = vmatpush1.msra.mxu0 0.0
    %6642 = vmatprep.subr.mxu0 0.0
    %6643 = vmatpush1.msra.mxu0 0.0
    %6644 = vmatprep.subr.mxu0 0.0
    %6645 = vmatpush1.msra.mxu0 0.0
    %6646 = vmatprep.subr.mxu0 0.0
    %6647 = vmatpush1.msra.mxu0 0.0
    %6648 = vmatprep.subr.mxu0 0.0
    %6649 = vmatpush1.msra.mxu0 0.0
    %6650 = vmatprep.subr.mxu0 0.0
    %6651 = vmatpush1.msra.mxu0 0.0
    %6652 = vmatprep.subr.mxu0 0.0
    %6653 = vmatpush1.msra.mxu0 0.0
    %6654 = vmatprep.subr.mxu0 0.0
    %6655 = vmatpush1.msra.mxu0 0.0
    %6656 = vmatprep.subr.mxu0 0.0
    %6657 = vmatpush1.msra.mxu0 0.0
    %6658 = vmatprep.subr.mxu0 0.0
    %6659 = vmatpush1.msra.mxu0 0.0
    %6660 = vmatprep.subr.mxu0 0.0
    %6661 = vmatpush1.msra.mxu0 0.0
    %6662 = vmatprep.subr.mxu0 0.0
    %6663 = vmatpush1.msra.mxu0 0.0
    %6664 = vmatprep.subr.mxu0 0.0
    %6665 = vmatpush1.msra.mxu0 0.0
    %6666 = vmatprep.subr.mxu0 0.0
    %6667 = vmatpush1.msra.mxu0 0.0
    %6668 = vmatprep.subr.mxu0 0.0
    %6669 = vmatpush1.msra.mxu0 0.0
    %6670 = vmatprep.mubr.f32.mxu0 0.0
    %6671 = vmatmul.mubr.f32.gmra.mrb[0].mxu0 %v6604
    %v6672 = vpop.f32.mrb[0].mxu0
    %v6673 = vadd.f32 0.0, %v6672
    %v6674 = vpop.f32.mrb[0].mxu0
    %6675 = vdwg.mxu0
    %v6676 = vadd.f32 %v2890, %v5578
    %v6677 = vadd.f32 %v2963, %v5651
    %v6678 = vadd.f32 %v3036, %v5724
    %v6679 = vadd.f32 %v3109, %v5797
    %v6680 = vadd.f32 %v3182, %v5870
    %v6681 = vadd.f32 %v3255, %v5943
    %v6682 = vadd.f32 %v3328, %v6016
    %v6683 = vadd.f32 %v3401, %v6089
    %v6684 = vadd.f32 %v3474, %v6162
    %v6685 = vadd.f32 %v3547, %v6235
    %v6686 = vadd.f32 %v3620, %v6308
    %v6687 = vadd.f32 %v3693, %v6381
    %v6688 = vadd.f32 %v3766, %v6454
    %v6689 = vadd.f32 %v3839, %v6527
    %v6690 = vadd.f32 %v3912, %v6600
    %v6691 = vadd.f32 %v3985, %v6673
    %v6692 = vsel %vm2659, %v6676, -inf
    %6693 = vmax.xlane.f32.xlu0 %v6692
    %v6694 = vpop.xlane.xlu0 %6693
    %v6695 = vsel %vm2659, %v6677, -inf
    %6696 = vmax.xlane.f32.xlu0 %v6695
    %v6697 = vpop.xlane.xlu0 %6696
    %v6698 = vsel %vm2659, %v6678, -inf
    %6699 = vmax.xlane.f32.xlu0 %v6698
    %v6700 = vpop.xlane.xlu0 %6699
    %v6701 = vsel %vm2659, %v6679, -inf
    %6702 = vmax.xlane.f32.xlu0 %v6701
    %v6703 = vpop.xlane.xlu0 %6702
    %v6704 = vsel %vm2659, %v6680, -inf
    %6705 = vmax.xlane.f32.xlu0 %v6704
    %v6706 = vpop.xlane.xlu0 %6705
    %v6707 = vsel %vm2659, %v6681, -inf
    %6708 = vmax.xlane.f32.xlu0 %v6707
    %v6709 = vpop.xlane.xlu0 %6708
    %v6710 = vsel %vm2659, %v6682, -inf
    %6711 = vmax.xlane.f32.xlu0 %v6710
    %v6712 = vpop.xlane.xlu0 %6711
    %v6713 = vsel %vm2659, %v6683, -inf
    %6714 = vmax.xlane.f32.xlu0 %v6713
    %v6715 = vpop.xlane.xlu0 %6714
    %v6716 = vsel %vm2659, %v6684, -inf
    %6717 = vmax.xlane.f32.xlu0 %v6716
    %v6718 = vpop.xlane.xlu0 %6717
    %v6719 = vsel %vm2659, %v6685, -inf
    %6720 = vmax.xlane.f32.xlu0 %v6719
    %v6721 = vpop.xlane.xlu0 %6720
    %v6722 = vsel %vm2659, %v6686, -inf
    %6723 = vmax.xlane.f32.xlu0 %v6722
    %v6724 = vpop.xlane.xlu0 %6723
    %v6725 = vsel %vm2659, %v6687, -inf
    %6726 = vmax.xlane.f32.xlu0 %v6725
    %v6727 = vpop.xlane.xlu0 %6726
    %v6728 = vsel %vm2659, %v6688, -inf
    %6729 = vmax.xlane.f32.xlu0 %v6728
    %v6730 = vpop.xlane.xlu0 %6729
    %v6731 = vsel %vm2659, %v6689, -inf
    %6732 = vmax.xlane.f32.xlu0 %v6731
    %v6733 = vpop.xlane.xlu0 %6732
    %v6734 = vsel %vm2659, %v6690, -inf
    %6735 = vmax.xlane.f32.xlu0 %v6734
    %v6736 = vpop.xlane.xlu0 %6735
    %v6737 = vsel %vm2659, %v6691, -inf
    %6738 = vmax.xlane.f32.xlu0 %v6737
    %v6739 = vpop.xlane.xlu0 %6738
    %v6740 = vsub.f32 %v6676, %v6694
    %v6741 = vsub.f32 %v6677, %v6697
    %v6742 = vsub.f32 %v6678, %v6700
    %v6743 = vsub.f32 %v6679, %v6703
    %v6744 = vsub.f32 %v6680, %v6706
    %v6745 = vsub.f32 %v6681, %v6709
    %v6746 = vsub.f32 %v6682, %v6712
    %v6747 = vsub.f32 %v6683, %v6715
    %v6748 = vsub.f32 %v6684, %v6718
    %v6749 = vsub.f32 %v6685, %v6721
    %v6750 = vsub.f32 %v6686, %v6724
    %v6751 = vsub.f32 %v6687, %v6727
    %v6752 = vsub.f32 %v6688, %v6730
    %v6753 = vsub.f32 %v6689, %v6733
    %v6754 = vsub.f32 %v6690, %v6736
    %v6755 = vsub.f32 %v6691, %v6739
    %v6756 = vmul.f32 %v6740, 1.442695
    %v6757 = vpow.pop %v6756
    %v6758 = vmul.f32 %v6741, 1.442695
    %v6759 = vpow.pop %v6758
    %v6760 = vmul.f32 %v6742, 1.442695
    %v6761 = vpow.pop %v6760
    %v6762 = vmul.f32 %v6743, 1.442695
    %v6763 = vpow.pop %v6762
    %v6764 = vmul.f32 %v6744, 1.442695
    %v6765 = vpow.pop %v6764
    %v6766 = vmul.f32 %v6745, 1.442695
    %v6767 = vpow.pop %v6766
    %v6768 = vmul.f32 %v6746, 1.442695
    %v6769 = vpow.pop %v6768
    %v6770 = vmul.f32 %v6747, 1.442695
    %v6771 = vpow.pop %v6770
    %v6772 = vmul.f32 %v6748, 1.442695
    %v6773 = vpow.pop %v6772
    %v6774 = vmul.f32 %v6749, 1.442695
    %v6775 = vpow.pop %v6774
    %v6776 = vmul.f32 %v6750, 1.442695
    %v6777 = vpow.pop %v6776
    %v6778 = vmul.f32 %v6751, 1.442695
    %v6779 = vpow.pop %v6778
    %v6780 = vmul.f32 %v6752, 1.442695
    %v6781 = vpow.pop %v6780
    %v6782 = vmul.f32 %v6753, 1.442695
    %v6783 = vpow.pop %v6782
    %v6784 = vmul.f32 %v6754, 1.442695
    %v6785 = vpow.pop %v6784
    %v6786 = vmul.f32 %v6755, 1.442695
    %v6787 = vpow.pop %v6786
    %v6788 = vsel %vm2659, %v6757, 0.0
    %6789 = vadd.xlane.f32.xlu0 %v6788
    %v6790 = vpop.xlane.xlu0 %6789
    %v6791 = vsel %vm2659, %v6759, 0.0
    %6792 = vadd.xlane.f32.xlu0 %v6791
    %v6793 = vpop.xlane.xlu0 %6792
    %v6794 = vsel %vm2659, %v6761, 0.0
    %6795 = vadd.xlane.f32.xlu0 %v6794
    %v6796 = vpop.xlane.xlu0 %6795
    %v6797 = vsel %vm2659, %v6763, 0.0
    %6798 = vadd.xlane.f32.xlu0 %v6797
    %v6799 = vpop.xlane.xlu0 %6798
    %v6800 = vsel %vm2659, %v6765, 0.0
    %6801 = vadd.xlane.f32.xlu0 %v6800
    %v6802 = vpop.xlane.xlu0 %6801
    %v6803 = vsel %vm2659, %v6767, 0.0
    %6804 = vadd.xlane.f32.xlu0 %v6803
    %v6805 = vpop.xlane.xlu0 %6804
    %v6806 = vsel %vm2659, %v6769, 0.0
    %6807 = vadd.xlane.f32.xlu0 %v6806
    %v6808 = vpop.xlane.xlu0 %6807
    %v6809 = vsel %vm2659, %v6771, 0.0
    %6810 = vadd.xlane.f32.xlu0 %v6809
    %v6811 = vpop.xlane.xlu0 %6810
    %v6812 = vsel %vm2659, %v6773, 0.0
    %6813 = vadd.xlane.f32.xlu0 %v6812
    %v6814 = vpop.xlane.xlu0 %6813
    %v6815 = vsel %vm2659, %v6775, 0.0
    %6816 = vadd.xlane.f32.xlu0 %v6815
    %v6817 = vpop.xlane.xlu0 %6816
    %v6818 = vsel %vm2659, %v6777, 0.0
    %6819 = vadd.xlane.f32.xlu0 %v6818
    %v6820 = vpop.xlane.xlu0 %6819
    %v6821 = vsel %vm2659, %v6779, 0.0
    %6822 = vadd.xlane.f32.xlu0 %v6821
    %v6823 = vpop.xlane.xlu0 %6822
    %v6824 = vsel %vm2659, %v6781, 0.0
    %6825 = vadd.xlane.f32.xlu0 %v6824
    %v6826 = vpop.xlane.xlu0 %6825
    %v6827 = vsel %vm2659, %v6783, 0.0
    %6828 = vadd.xlane.f32.xlu0 %v6827
    %v6829 = vpop.xlane.xlu0 %6828
    %v6830 = vsel %vm2659, %v6785, 0.0
    %6831 = vadd.xlane.f32.xlu0 %v6830
    %v6832 = vpop.xlane.xlu0 %6831
    %v6833 = vsel %vm2659, %v6787, 0.0
    %6834 = vadd.xlane.f32.xlu0 %v6833
    %v6835 = vpop.xlane.xlu0 %6834
    %v6836 = vrcp.pop %v6790
    %v6837 = vmul.f32 %v6757, %v6836
    %v6838 = vrcp.pop %v6793
    %v6839 = vmul.f32 %v6759, %v6838
    %v6840 = vrcp.pop %v6796
    %v6841 = vmul.f32 %v6761, %v6840
    %v6842 = vrcp.pop %v6799
    %v6843 = vmul.f32 %v6763, %v6842
    %v6844 = vrcp.pop %v6802
    %v6845 = vmul.f32 %v6765, %v6844
    %v6846 = vrcp.pop %v6805
    %v6847 = vmul.f32 %v6767, %v6846
    %v6848 = vrcp.pop %v6808
    %v6849 = vmul.f32 %v6769, %v6848
    %v6850 = vrcp.pop %v6811
    %v6851 = vmul.f32 %v6771, %v6850
    %v6852 = vrcp.pop %v6814
    %v6853 = vmul.f32 %v6773, %v6852
    %v6854 = vrcp.pop %v6817
    %v6855 = vmul.f32 %v6775, %v6854
    %v6856 = vrcp.pop %v6820
    %v6857 = vmul.f32 %v6777, %v6856
    %v6858 = vrcp.pop %v6823
    %v6859 = vmul.f32 %v6779, %v6858
    %v6860 = vrcp.pop %v6826
    %v6861 = vmul.f32 %v6781, %v6860
    %v6862 = vrcp.pop %v6829
    %v6863 = vmul.f32 %v6783, %v6862
    %v6864 = vrcp.pop %v6832
    %v6865 = vmul.f32 %v6785, %v6864
    %v6866 = vrcp.pop %v6835
    %v6867 = vmul.f32 %v6787, %v6866
    %v6869 = vsel %vm1423, %v6837, 0
    %6871 = vmatprep.subr.mxu0 0.0
    %6872 = vmatpush1.xpose.msra.mxu0 %v1428
    %6873 = vmatprep.subr.mxu0 0.0
    %6874 = vmatpush1.xpose.msra.mxu0 %v1431
    %6875 = vmatprep.subr.mxu0 0.0
    %6876 = vmatpush1.xpose.msra.mxu0 0.0
    %6877 = vmatprep.subr.mxu0 0.0
    %6878 = vmatpush1.xpose.msra.mxu0 0.0
    %6879 = vmatprep.subr.mxu0 0.0
    %6880 = vmatpush1.xpose.msra.mxu0 0.0
    %6881 = vmatprep.subr.mxu0 0.0
    %6882 = vmatpush1.xpose.msra.mxu0 0.0
    %6883 = vmatprep.subr.mxu0 0.0
    %6884 = vmatpush1.xpose.msra.mxu0 0.0
    %6885 = vmatprep.subr.mxu0 0.0
    %6886 = vmatpush1.xpose.msra.mxu0 0.0
    %6887 = vmatprep.subr.mxu0 0.0
    %6888 = vmatpush1.xpose.msra.mxu0 0.0
    %6889 = vmatprep.subr.mxu0 0.0
    %6890 = vmatpush1.xpose.msra.mxu0 0.0
    %6891 = vmatprep.subr.mxu0 0.0
    %6892 = vmatpush1.xpose.msra.mxu0 0.0
    %6893 = vmatprep.subr.mxu0 0.0
    %6894 = vmatpush1.xpose.msra.mxu0 0.0
    %6895 = vmatprep.subr.mxu0 0.0
    %6896 = vmatpush1.xpose.msra.mxu0 0.0
    %6897 = vmatprep.subr.mxu0 0.0
    %6898 = vmatpush1.xpose.msra.mxu0 0.0
    %6899 = vmatprep.subr.mxu0 0.0
    %6900 = vmatpush1.xpose.msra.mxu0 0.0
    %6901 = vmatprep.subr.mxu0 0.0
    %6902 = vmatpush1.xpose.msra.mxu0 0.0
    %6903 = vmatprep.subr.mxu0 0.0
    %6904 = vmatpush1.xpose.msra.mxu0 0.0
    %6905 = vmatprep.subr.mxu0 0.0
    %6906 = vmatpush1.xpose.msra.mxu0 0.0
    %6907 = vmatprep.subr.mxu0 0.0
    %6908 = vmatpush1.xpose.msra.mxu0 0.0
    %6909 = vmatprep.subr.mxu0 0.0
    %6910 = vmatpush1.xpose.msra.mxu0 0.0
    %6911 = vmatprep.subr.mxu0 0.0
    %6912 = vmatpush1.xpose.msra.mxu0 0.0
    %6913 = vmatprep.subr.mxu0 0.0
    %6914 = vmatpush1.xpose.msra.mxu0 0.0
    %6915 = vmatprep.subr.mxu0 0.0
    %6916 = vmatpush1.xpose.msra.mxu0 0.0
    %6917 = vmatprep.subr.mxu0 0.0
    %6918 = vmatpush1.xpose.msra.mxu0 0.0
    %6919 = vmatprep.subr.mxu0 0.0
    %6920 = vmatpush1.xpose.msra.mxu0 0.0
    %6921 = vmatprep.subr.mxu0 0.0
    %6922 = vmatpush1.xpose.msra.mxu0 0.0
    %6923 = vmatprep.subr.mxu0 0.0
    %6924 = vmatpush1.xpose.msra.mxu0 0.0
    %6925 = vmatprep.subr.mxu0 0.0
    %6926 = vmatpush1.xpose.msra.mxu0 0.0
    %6927 = vmatprep.subr.mxu0 0.0
    %6928 = vmatpush1.xpose.msra.mxu0 0.0
    %6929 = vmatprep.subr.mxu0 0.0
    %6930 = vmatpush1.xpose.msra.mxu0 0.0
    %6931 = vmatprep.subr.mxu0 0.0
    %6932 = vmatpush1.xpose.msra.mxu0 0.0
    %6933 = vmatprep.subr.mxu0 0.0
    %6934 = vmatpush1.xpose.msra.mxu0 0.0
    %6935 = vmatprep.mubr.f32.mxu0 0.0
    %6936 = vmatmul.mubr.f32.gmra.mrb[0].mxu0 %v6869
    %v6937 = vpop.f32.mrb[0].mxu0
    %v6938 = vadd.f32 0.0, %v6937
    %v6939 = vpop.f32.mrb[0].mxu0
    %6940 = vdwg.mxu0
    %v6942 = vsel %vm1423, %v6839, 0
    %6944 = vmatprep.subr.mxu0 0.0
    %6945 = vmatpush1.xpose.msra.mxu0 %v1504
    %6946 = vmatprep.subr.mxu0 0.0
    %6947 = vmatpush1.xpose.msra.mxu0 %v1507
    %6948 = vmatprep.subr.mxu0 0.0
    %6949 = vmatpush1.xpose.msra.mxu0 0.0
    %6950 = vmatprep.subr.mxu0 0.0
    %6951 = vmatpush1.xpose.msra.mxu0 0.0
    %6952 = vmatprep.subr.mxu0 0.0
    %6953 = vmatpush1.xpose.msra.mxu0 0.0
    %6954 = vmatprep.subr.mxu0 0.0
    %6955 = vmatpush1.xpose.msra.mxu0 0.0
    %6956 = vmatprep.subr.mxu0 0.0
    %6957 = vmatpush1.xpose.msra.mxu0 0.0
    %6958 = vmatprep.subr.mxu0 0.0
    %6959 = vmatpush1.xpose.msra.mxu0 0.0
    %6960 = vmatprep.subr.mxu0 0.0
    %6961 = vmatpush1.xpose.msra.mxu0 0.0
    %6962 = vmatprep.subr.mxu0 0.0
    %6963 = vmatpush1.xpose.msra.mxu0 0.0
    %6964 = vmatprep.subr.mxu0 0.0
    %6965 = vmatpush1.xpose.msra.mxu0 0.0
    %6966 = vmatprep.subr.mxu0 0.0
    %6967 = vmatpush1.xpose.msra.mxu0 0.0
    %6968 = vmatprep.subr.mxu0 0.0
    %6969 = vmatpush1.xpose.msra.mxu0 0.0
    %6970 = vmatprep.subr.mxu0 0.0
    %6971 = vmatpush1.xpose.msra.mxu0 0.0
    %6972 = vmatprep.subr.mxu0 0.0
    %6973 = vmatpush1.xpose.msra.mxu0 0.0
    %6974 = vmatprep.subr.mxu0 0.0
    %6975 = vmatpush1.xpose.msra.mxu0 0.0
    %6976 = vmatprep.subr.mxu0 0.0
    %6977 = vmatpush1.xpose.msra.mxu0 0.0
    %6978 = vmatprep.subr.mxu0 0.0
    %6979 = vmatpush1.xpose.msra.mxu0 0.0
    %6980 = vmatprep.subr.mxu0 0.0
    %6981 = vmatpush1.xpose.msra.mxu0 0.0
    %6982 = vmatprep.subr.mxu0 0.0
    %6983 = vmatpush1.xpose.msra.mxu0 0.0
    %6984 = vmatprep.subr.mxu0 0.0
    %6985 = vmatpush1.xpose.msra.mxu0 0.0
    %6986 = vmatprep.subr.mxu0 0.0
    %6987 = vmatpush1.xpose.msra.mxu0 0.0
    %6988 = vmatprep.subr.mxu0 0.0
    %6989 = vmatpush1.xpose.msra.mxu0 0.0
    %6990 = vmatprep.subr.mxu0 0.0
    %6991 = vmatpush1.xpose.msra.mxu0 0.0
    %6992 = vmatprep.subr.mxu0 0.0
    %6993 = vmatpush1.xpose.msra.mxu0 0.0
    %6994 = vmatprep.subr.mxu0 0.0
    %6995 = vmatpush1.xpose.msra.mxu0 0.0
    %6996 = vmatprep.subr.mxu0 0.0
    %6997 = vmatpush1.xpose.msra.mxu0 0.0
    %6998 = vmatprep.subr.mxu0 0.0
    %6999 = vmatpush1.xpose.msra.mxu0 0.0
    %7000 = vmatprep.subr.mxu0 0.0
    %7001 = vmatpush1.xpose.msra.mxu0 0.0
    %7002 = vmatprep.subr.mxu0 0.0
    %7003 = vmatpush1.xpose.msra.mxu0 0.0
    %7004 = vmatprep.subr.mxu0 0.0
    %7005 = vmatpush1.xpose.msra.mxu0 0.0
    %7006 = vmatprep.subr.mxu0 0.0
    %7007 = vmatpush1.xpose.msra.mxu0 0.0
    %7008 = vmatprep.mubr.f32.mxu0 0.0
    %7009 = vmatmul.mubr.f32.gmra.mrb[0].mxu0 %v6942
    %v7010 = vpop.f32.mrb[0].mxu0
    %v7011 = vadd.f32 0.0, %v7010
    %v7012 = vpop.f32.mrb[0].mxu0
    %7013 = vdwg.mxu0
    %v7015 = vsel %vm1423, %v6841, 0
    %7017 = vmatprep.subr.mxu0 0.0
    %7018 = vmatpush1.xpose.msra.mxu0 %v1580
    %7019 = vmatprep.subr.mxu0 0.0
    %7020 = vmatpush1.xpose.msra.mxu0 %v1583
    %7021 = vmatprep.subr.mxu0 0.0
    %7022 = vmatpush1.xpose.msra.mxu0 0.0
    %7023 = vmatprep.subr.mxu0 0.0
    %7024 = vmatpush1.xpose.msra.mxu0 0.0
    %7025 = vmatprep.subr.mxu0 0.0
    %7026 = vmatpush1.xpose.msra.mxu0 0.0
    %7027 = vmatprep.subr.mxu0 0.0
    %7028 = vmatpush1.xpose.msra.mxu0 0.0
    %7029 = vmatprep.subr.mxu0 0.0
    %7030 = vmatpush1.xpose.msra.mxu0 0.0
    %7031 = vmatprep.subr.mxu0 0.0
    %7032 = vmatpush1.xpose.msra.mxu0 0.0
    %7033 = vmatprep.subr.mxu0 0.0
    %7034 = vmatpush1.xpose.msra.mxu0 0.0
    %7035 = vmatprep.subr.mxu0 0.0
    %7036 = vmatpush1.xpose.msra.mxu0 0.0
    %7037 = vmatprep.subr.mxu0 0.0
    %7038 = vmatpush1.xpose.msra.mxu0 0.0
    %7039 = vmatprep.subr.mxu0 0.0
    %7040 = vmatpush1.xpose.msra.mxu0 0.0
    %7041 = vmatprep.subr.mxu0 0.0
    %7042 = vmatpush1.xpose.msra.mxu0 0.0
    %7043 = vmatprep.subr.mxu0 0.0
    %7044 = vmatpush1.xpose.msra.mxu0 0.0
    %7045 = vmatprep.subr.mxu0 0.0
    %7046 = vmatpush1.xpose.msra.mxu0 0.0
    %7047 = vmatprep.subr.mxu0 0.0
    %7048 = vmatpush1.xpose.msra.mxu0 0.0
    %7049 = vmatprep.subr.mxu0 0.0
    %7050 = vmatpush1.xpose.msra.mxu0 0.0
    %7051 = vmatprep.subr.mxu0 0.0
    %7052 = vmatpush1.xpose.msra.mxu0 0.0
    %7053 = vmatprep.subr.mxu0 0.0
    %7054 = vmatpush1.xpose.msra.mxu0 0.0
    %7055 = vmatprep.subr.mxu0 0.0
    %7056 = vmatpush1.xpose.msra.mxu0 0.0
    %7057 = vmatprep.subr.mxu0 0.0
    %7058 = vmatpush1.xpose.msra.mxu0 0.0
    %7059 = vmatprep.subr.mxu0 0.0
    %7060 = vmatpush1.xpose.msra.mxu0 0.0
    %7061 = vmatprep.subr.mxu0 0.0
    %7062 = vmatpush1.xpose.msra.mxu0 0.0
    %7063 = vmatprep.subr.mxu0 0.0
    %7064 = vmatpush1.xpose.msra.mxu0 0.0
    %7065 = vmatprep.subr.mxu0 0.0
    %7066 = vmatpush1.xpose.msra.mxu0 0.0
    %7067 = vmatprep.subr.mxu0 0.0
    %7068 = vmatpush1.xpose.msra.mxu0 0.0
    %7069 = vmatprep.subr.mxu0 0.0
    %7070 = vmatpush1.xpose.msra.mxu0 0.0
    %7071 = vmatprep.subr.mxu0 0.0
    %7072 = vmatpush1.xpose.msra.mxu0 0.0
    %7073 = vmatprep.subr.mxu0 0.0
    %7074 = vmatpush1.xpose.msra.mxu0 0.0
    %7075 = vmatprep.subr.mxu0 0.0
    %7076 = vmatpush1.xpose.msra.mxu0 0.0
    %7077 = vmatprep.subr.mxu0 0.0
    %7078 = vmatpush1.xpose.msra.mxu0 0.0
    %7079 = vmatprep.subr.mxu0 0.0
    %7080 = vmatpush1.xpose.msra.mxu0 0.0
    %7081 = vmatprep.mubr.f32.mxu0 0.0
    %7082 = vmatmul.mubr.f32.gmra.mrb[0].mxu0 %v7015
    %v7083 = vpop.f32.mrb[0].mxu0
    %v7084 = vadd.f32 0.0, %v7083
    %v7085 = vpop.f32.mrb[0].mxu0
    %7086 = vdwg.mxu0
    %v7088 = vsel %vm1423, %v6843, 0
    %7090 = vmatprep.subr.mxu0 0.0
    %7091 = vmatpush1.xpose.msra.mxu0 %v1656
    %7092 = vmatprep.subr.mxu0 0.0
    %7093 = vmatpush1.xpose.msra.mxu0 %v1659
    %7094 = vmatprep.subr.mxu0 0.0
    %7095 = vmatpush1.xpose.msra.mxu0 0.0
    %7096 = vmatprep.subr.mxu0 0.0
    %7097 = vmatpush1.xpose.msra.mxu0 0.0
    %7098 = vmatprep.subr.mxu0 0.0
    %7099 = vmatpush1.xpose.msra.mxu0 0.0
    %7100 = vmatprep.subr.mxu0 0.0
    %7101 = vmatpush1.xpose.msra.mxu0 0.0
    %7102 = vmatprep.subr.mxu0 0.0
    %7103 = vmatpush1.xpose.msra.mxu0 0.0
    %7104 = vmatprep.subr.mxu0 0.0
    %7105 = vmatpush1.xpose.msra.mxu0 0.0
    %7106 = vmatprep.subr.mxu0 0.0
    %7107 = vmatpush1.xpose.msra.mxu0 0.0
    %7108 = vmatprep.subr.mxu0 0.0
    %7109 = vmatpush1.xpose.msra.mxu0 0.0
    %7110 = vmatprep.subr.mxu0 0.0
    %7111 = vmatpush1.xpose.msra.mxu0 0.0
    %7112 = vmatprep.subr.mxu0 0.0
    %7113 = vmatpush1.xpose.msra.mxu0 0.0
    %7114 = vmatprep.subr.mxu0 0.0
    %7115 = vmatpush1.xpose.msra.mxu0 0.0
    %7116 = vmatprep.subr.mxu0 0.0
    %7117 = vmatpush1.xpose.msra.mxu0 0.0
    %7118 = vmatprep.subr.mxu0 0.0
    %7119 = vmatpush1.xpose.msra.mxu0 0.0
    %7120 = vmatprep.subr.mxu0 0.0
    %7121 = vmatpush1.xpose.msra.mxu0 0.0
    %7122 = vmatprep.subr.mxu0 0.0
    %7123 = vmatpush1.xpose.msra.mxu0 0.0
    %7124 = vmatprep.subr.mxu0 0.0
    %7125 = vmatpush1.xpose.msra.mxu0 0.0
    %7126 = vmatprep.subr.mxu0 0.0
    %7127 = vmatpush1.xpose.msra.mxu0 0.0
    %7128 = vmatprep.subr.mxu0 0.0
    %7129 = vmatpush1.xpose.msra.mxu0 0.0
    %7130 = vmatprep.subr.mxu0 0.0
    %7131 = vmatpush1.xpose.msra.mxu0 0.0
    %7132 = vmatprep.subr.mxu0 0.0
    %7133 = vmatpush1.xpose.msra.mxu0 0.0
    %7134 = vmatprep.subr.mxu0 0.0
    %7135 = vmatpush1.xpose.msra.mxu0 0.0
    %7136 = vmatprep.subr.mxu0 0.0
    %7137 = vmatpush1.xpose.msra.mxu0 0.0
    %7138 = vmatprep.subr.mxu0 0.0
    %7139 = vmatpush1.xpose.msra.mxu0 0.0
    %7140 = vmatprep.subr.mxu0 0.0
    %7141 = vmatpush1.xpose.msra.mxu0 0.0
    %7142 = vmatprep.subr.mxu0 0.0
    %7143 = vmatpush1.xpose.msra.mxu0 0.0
    %7144 = vmatprep.subr.mxu0 0.0
    %7145 = vmatpush1.xpose.msra.mxu0 0.0
    %7146 = vmatprep.subr.mxu0 0.0
    %7147 = vmatpush1.xpose.msra.mxu0 0.0
    %7148 = vmatprep.subr.mxu0 0.0
    %7149 = vmatpush1.xpose.msra.mxu0 0.0
    %7150 = vmatprep.subr.mxu0 0.0
    %7151 = vmatpush1.xpose.msra.mxu0 0.0
    %7152 = vmatprep.subr.mxu0 0.0
    %7153 = vmatpush1.xpose.msra.mxu0 0.0
    %7154 = vmatprep.mubr.f32.mxu0 0.0
    %7155 = vmatmul.mubr.f32.gmra.mrb[0].mxu0 %v7088
    %v7156 = vpop.f32.mrb[0].mxu0
    %v7157 = vadd.f32 0.0, %v7156
    %v7158 = vpop.f32.mrb[0].mxu0
    %7159 = vdwg.mxu0
    %v7161 = vsel %vm1423, %v6845, 0
    %7163 = vmatprep.subr.mxu0 0.0
    %7164 = vmatpush1.xpose.msra.mxu0 %v1732
    %7165 = vmatprep.subr.mxu0 0.0
    %7166 = vmatpush1.xpose.msra.mxu0 %v1735
    %7167 = vmatprep.subr.mxu0 0.0
    %7168 = vmatpush1.xpose.msra.mxu0 0.0
    %7169 = vmatprep.subr.mxu0 0.0
    %7170 = vmatpush1.xpose.msra.mxu0 0.0
    %7171 = vmatprep.subr.mxu0 0.0
    %7172 = vmatpush1.xpose.msra.mxu0 0.0
    %7173 = vmatprep.subr.mxu0 0.0
    %7174 = vmatpush1.xpose.msra.mxu0 0.0
    %7175 = vmatprep.subr.mxu0 0.0
    %7176 = vmatpush1.xpose.msra.mxu0 0.0
    %7177 = vmatprep.subr.mxu0 0.0
    %7178 = vmatpush1.xpose.msra.mxu0 0.0
    %7179 = vmatprep.subr.mxu0 0.0
    %7180 = vmatpush1.xpose.msra.mxu0 0.0
    %7181 = vmatprep.subr.mxu0 0.0
    %7182 = vmatpush1.xpose.msra.mxu0 0.0
    %7183 = vmatprep.subr.mxu0 0.0
    %7184 = vmatpush1.xpose.msra.mxu0 0.0
    %7185 = vmatprep.subr.mxu0 0.0
    %7186 = vmatpush1.xpose.msra.mxu0 0.0
    %7187 = vmatprep.subr.mxu0 0.0
    %7188 = vmatpush1.xpose.msra.mxu0 0.0
    %7189 = vmatprep.subr.mxu0 0.0
    %7190 = vmatpush1.xpose.msra.mxu0 0.0
    %7191 = vmatprep.subr.mxu0 0.0
    %7192 = vmatpush1.xpose.msra.mxu0 0.0
    %7193 = vmatprep.subr.mxu0 0.0
    %7194 = vmatpush1.xpose.msra.mxu0 0.0
    %7195 = vmatprep.subr.mxu0 0.0
    %7196 = vmatpush1.xpose.msra.mxu0 0.0
    %7197 = vmatprep.subr.mxu0 0.0
    %7198 = vmatpush1.xpose.msra.mxu0 0.0
    %7199 = vmatprep.subr.mxu0 0.0
    %7200 = vmatpush1.xpose.msra.mxu0 0.0
    %7201 = vmatprep.subr.mxu0 0.0
    %7202 = vmatpush1.xpose.msra.mxu0 0.0
    %7203 = vmatprep.subr.mxu0 0.0
    %7204 = vmatpush1.xpose.msra.mxu0 0.0
    %7205 = vmatprep.subr.mxu0 0.0
    %7206 = vmatpush1.xpose.msra.mxu0 0.0
    %7207 = vmatprep.subr.mxu0 0.0
    %7208 = vmatpush1.xpose.msra.mxu0 0.0
    %7209 = vmatprep.subr.mxu0 0.0
    %7210 = vmatpush1.xpose.msra.mxu0 0.0
    %7211 = vmatprep.subr.mxu0 0.0
    %7212 = vmatpush1.xpose.msra.mxu0 0.0
    %7213 = vmatprep.subr.mxu0 0.0
    %7214 = vmatpush1.xpose.msra.mxu0 0.0
    %7215 = vmatprep.subr.mxu0 0.0
    %7216 = vmatpush1.xpose.msra.mxu0 0.0
    %7217 = vmatprep.subr.mxu0 0.0
    %7218 = vmatpush1.xpose.msra.mxu0 0.0
    %7219 = vmatprep.subr.mxu0 0.0
    %7220 = vmatpush1.xpose.msra.mxu0 0.0
    %7221 = vmatprep.subr.mxu0 0.0
    %7222 = vmatpush1.xpose.msra.mxu0 0.0
    %7223 = vmatprep.subr.mxu0 0.0
    %7224 = vmatpush1.xpose.msra.mxu0 0.0
    %7225 = vmatprep.subr.mxu0 0.0
    %7226 = vmatpush1.xpose.msra.mxu0 0.0
    %7227 = vmatprep.mubr.f32.mxu0 0.0
    %7228 = vmatmul.mubr.f32.gmra.mrb[0].mxu0 %v7161
    %v7229 = vpop.f32.mrb[0].mxu0
    %v7230 = vadd.f32 0.0, %v7229
    %v7231 = vpop.f32.mrb[0].mxu0
    %7232 = vdwg.mxu0
    %v7234 = vsel %vm1423, %v6847, 0
    %7236 = vmatprep.subr.mxu0 0.0
    %7237 = vmatpush1.xpose.msra.mxu0 %v1808
    %7238 = vmatprep.subr.mxu0 0.0
    %7239 = vmatpush1.xpose.msra.mxu0 %v1811
    %7240 = vmatprep.subr.mxu0 0.0
    %7241 = vmatpush1.xpose.msra.mxu0 0.0
    %7242 = vmatprep.subr.mxu0 0.0
    %7243 = vmatpush1.xpose.msra.mxu0 0.0
    %7244 = vmatprep.subr.mxu0 0.0
    %7245 = vmatpush1.xpose.msra.mxu0 0.0
    %7246 = vmatprep.subr.mxu0 0.0
    %7247 = vmatpush1.xpose.msra.mxu0 0.0
    %7248 = vmatprep.subr.mxu0 0.0
    %7249 = vmatpush1.xpose.msra.mxu0 0.0
    %7250 = vmatprep.subr.mxu0 0.0
    %7251 = vmatpush1.xpose.msra.mxu0 0.0
    %7252 = vmatprep.subr.mxu0 0.0
    %7253 = vmatpush1.xpose.msra.mxu0 0.0
    %7254 = vmatprep.subr.mxu0 0.0
    %7255 = vmatpush1.xpose.msra.mxu0 0.0
    %7256 = vmatprep.subr.mxu0 0.0
    %7257 = vmatpush1.xpose.msra.mxu0 0.0
    %7258 = vmatprep.subr.mxu0 0.0
    %7259 = vmatpush1.xpose.msra.mxu0 0.0
    %7260 = vmatprep.subr.mxu0 0.0
    %7261 = vmatpush1.xpose.msra.mxu0 0.0
    %7262 = vmatprep.subr.mxu0 0.0
    %7263 = vmatpush1.xpose.msra.mxu0 0.0
    %7264 = vmatprep.subr.mxu0 0.0
    %7265 = vmatpush1.xpose.msra.mxu0 0.0
    %7266 = vmatprep.subr.mxu0 0.0
    %7267 = vmatpush1.xpose.msra.mxu0 0.0
    %7268 = vmatprep.subr.mxu0 0.0
    %7269 = vmatpush1.xpose.msra.mxu0 0.0
    %7270 = vmatprep.subr.mxu0 0.0
    %7271 = vmatpush1.xpose.msra.mxu0 0.0
    %7272 = vmatprep.subr.mxu0 0.0
    %7273 = vmatpush1.xpose.msra.mxu0 0.0
    %7274 = vmatprep.subr.mxu0 0.0
    %7275 = vmatpush1.xpose.msra.mxu0 0.0
    %7276 = vmatprep.subr.mxu0 0.0
    %7277 = vmatpush1.xpose.msra.mxu0 0.0
    %7278 = vmatprep.subr.mxu0 0.0
    %7279 = vmatpush1.xpose.msra.mxu0 0.0
    %7280 = vmatprep.subr.mxu0 0.0
    %7281 = vmatpush1.xpose.msra.mxu0 0.0
    %7282 = vmatprep.subr.mxu0 0.0
    %7283 = vmatpush1.xpose.msra.mxu0 0.0
    %7284 = vmatprep.subr.mxu0 0.0
    %7285 = vmatpush1.xpose.msra.mxu0 0.0
    %7286 = vmatprep.subr.mxu0 0.0
    %7287 = vmatpush1.xpose.msra.mxu0 0.0
    %7288 = vmatprep.subr.mxu0 0.0
    %7289 = vmatpush1.xpose.msra.mxu0 0.0
    %7290 = vmatprep.subr.mxu0 0.0
    %7291 = vmatpush1.xpose.msra.mxu0 0.0
    %7292 = vmatprep.subr.mxu0 0.0
    %7293 = vmatpush1.xpose.msra.mxu0 0.0
    %7294 = vmatprep.subr.mxu0 0.0
    %7295 = vmatpush1.xpose.msra.mxu0 0.0
    %7296 = vmatprep.subr.mxu0 0.0
    %7297 = vmatpush1.xpose.msra.mxu0 0.0
    %7298 = vmatprep.subr.mxu0 0.0
    %7299 = vmatpush1.xpose.msra.mxu0 0.0
    %7300 = vmatprep.mubr.f32.mxu0 0.0
    %7301 = vmatmul.mubr.f32.gmra.mrb[0].mxu0 %v7234
    %v7302 = vpop.f32.mrb[0].mxu0
    %v7303 = vadd.f32 0.0, %v7302
    %v7304 = vpop.f32.mrb[0].mxu0
    %7305 = vdwg.mxu0
    %v7307 = vsel %vm1423, %v6849, 0
    %7309 = vmatprep.subr.mxu0 0.0
    %7310 = vmatpush1.xpose.msra.mxu0 %v1884
    %7311 = vmatprep.subr.mxu0 0.0
    %7312 = vmatpush1.xpose.msra.mxu0 %v1887
    %7313 = vmatprep.subr.mxu0 0.0
    %7314 = vmatpush1.xpose.msra.mxu0 0.0
    %7315 = vmatprep.subr.mxu0 0.0
    %7316 = vmatpush1.xpose.msra.mxu0 0.0
    %7317 = vmatprep.subr.mxu0 0.0
    %7318 = vmatpush1.xpose.msra.mxu0 0.0
    %7319 = vmatprep.subr.mxu0 0.0
    %7320 = vmatpush1.xpose.msra.mxu0 0.0
    %7321 = vmatprep.subr.mxu0 0.0
    %7322 = vmatpush1.xpose.msra.mxu0 0.0
    %7323 = vmatprep.subr.mxu0 0.0
    %7324 = vmatpush1.xpose.msra.mxu0 0.0
    %7325 = vmatprep.subr.mxu0 0.0
    %7326 = vmatpush1.xpose.msra.mxu0 0.0
    %7327 = vmatprep.subr.mxu0 0.0
    %7328 = vmatpush1.xpose.msra.mxu0 0.0
    %7329 = vmatprep.subr.mxu0 0.0
    %7330 = vmatpush1.xpose.msra.mxu0 0.0
    %7331 = vmatprep.subr.mxu0 0.0
    %7332 = vmatpush1.xpose.msra.mxu0 0.0
    %7333 = vmatprep.subr.mxu0 0.0
    %7334 = vmatpush1.xpose.msra.mxu0 0.0
    %7335 = vmatprep.subr.mxu0 0.0
    %7336 = vmatpush1.xpose.msra.mxu0 0.0
    %7337 = vmatprep.subr.mxu0 0.0
    %7338 = vmatpush1.xpose.msra.mxu0 0.0
    %7339 = vmatprep.subr.mxu0 0.0
    %7340 = vmatpush1.xpose.msra.mxu0 0.0
    %7341 = vmatprep.subr.mxu0 0.0
    %7342 = vmatpush1.xpose.msra.mxu0 0.0
    %7343 = vmatprep.subr.mxu0 0.0
    %7344 = vmatpush1.xpose.msra.mxu0 0.0
    %7345 = vmatprep.subr.mxu0 0.0
    %7346 = vmatpush1.xpose.msra.mxu0 0.0
    %7347 = vmatprep.subr.mxu0 0.0
    %7348 = vmatpush1.xpose.msra.mxu0 0.0
    %7349 = vmatprep.subr.mxu0 0.0
    %7350 = vmatpush1.xpose.msra.mxu0 0.0
    %7351 = vmatprep.subr.mxu0 0.0
    %7352 = vmatpush1.xpose.msra.mxu0 0.0
    %7353 = vmatprep.subr.mxu0 0.0
    %7354 = vmatpush1.xpose.msra.mxu0 0.0
    %7355 = vmatprep.subr.mxu0 0.0
    %7356 = vmatpush1.xpose.msra.mxu0 0.0
    %7357 = vmatprep.subr.mxu0 0.0
    %7358 = vmatpush1.xpose.msra.mxu0 0.0
    %7359 = vmatprep.subr.mxu0 0.0
    %7360 = vmatpush1.xpose.msra.mxu0 0.0
    %7361 = vmatprep.subr.mxu0 0.0
    %7362 = vmatpush1.xpose.msra.mxu0 0.0
    %7363 = vmatprep.subr.mxu0 0.0
    %7364 = vmatpush1.xpose.msra.mxu0 0.0
    %7365 = vmatprep.subr.mxu0 0.0
    %7366 = vmatpush1.xpose.msra.mxu0 0.0
    %7367 = vmatprep.subr.mxu0 0.0
    %7368 = vmatpush1.xpose.msra.mxu0 0.0
    %7369 = vmatprep.subr.mxu0 0.0
    %7370 = vmatpush1.xpose.msra.mxu0 0.0
    %7371 = vmatprep.subr.mxu0 0.0
    %7372 = vmatpush1.xpose.msra.mxu0 0.0
    %7373 = vmatprep.mubr.f32.mxu0 0.0
    %7374 = vmatmul.mubr.f32.gmra.mrb[0].mxu0 %v7307
    %v7375 = vpop.f32.mrb[0].mxu0
    %v7376 = vadd.f32 0.0, %v7375
    %v7377 = vpop.f32.mrb[0].mxu0
    %7378 = vdwg.mxu0
    %v7380 = vsel %vm1423, %v6851, 0
    %7382 = vmatprep.subr.mxu0 0.0
    %7383 = vmatpush1.xpose.msra.mxu0 %v1960
    %7384 = vmatprep.subr.mxu0 0.0
    %7385 = vmatpush1.xpose.msra.mxu0 %v1963
    %7386 = vmatprep.subr.mxu0 0.0
    %7387 = vmatpush1.xpose.msra.mxu0 0.0
    %7388 = vmatprep.subr.mxu0 0.0
    %7389 = vmatpush1.xpose.msra.mxu0 0.0
    %7390 = vmatprep.subr.mxu0 0.0
    %7391 = vmatpush1.xpose.msra.mxu0 0.0
    %7392 = vmatprep.subr.mxu0 0.0
    %7393 = vmatpush1.xpose.msra.mxu0 0.0
    %7394 = vmatprep.subr.mxu0 0.0
    %7395 = vmatpush1.xpose.msra.mxu0 0.0
    %7396 = vmatprep.subr.mxu0 0.0
    %7397 = vmatpush1.xpose.msra.mxu0 0.0
    %7398 = vmatprep.subr.mxu0 0.0
    %7399 = vmatpush1.xpose.msra.mxu0 0.0
    %7400 = vmatprep.subr.mxu0 0.0
    %7401 = vmatpush1.xpose.msra.mxu0 0.0
    %7402 = vmatprep.subr.mxu0 0.0
    %7403 = vmatpush1.xpose.msra.mxu0 0.0
    %7404 = vmatprep.subr.mxu0 0.0
    %7405 = vmatpush1.xpose.msra.mxu0 0.0
    %7406 = vmatprep.subr.mxu0 0.0
    %7407 = vmatpush1.xpose.msra.mxu0 0.0
    %7408 = vmatprep.subr.mxu0 0.0
    %7409 = vmatpush1.xpose.msra.mxu0 0.0
    %7410 = vmatprep.subr.mxu0 0.0
    %7411 = vmatpush1.xpose.msra.mxu0 0.0
    %7412 = vmatprep.subr.mxu0 0.0
    %7413 = vmatpush1.xpose.msra.mxu0 0.0
    %7414 = vmatprep.subr.mxu0 0.0
    %7415 = vmatpush1.xpose.msra.mxu0 0.0
    %7416 = vmatprep.subr.mxu0 0.0
    %7417 = vmatpush1.xpose.msra.mxu0 0.0
    %7418 = vmatprep.subr.mxu0 0.0
    %7419 = vmatpush1.xpose.msra.mxu0 0.0
    %7420 = vmatprep.subr.mxu0 0.0
    %7421 = vmatpush1.xpose.msra.mxu0 0.0
    %7422 = vmatprep.subr.mxu0 0.0
    %7423 = vmatpush1.xpose.msra.mxu0 0.0
    %7424 = vmatprep.subr.mxu0 0.0
    %7425 = vmatpush1.xpose.msra.mxu0 0.0
    %7426 = vmatprep.subr.mxu0 0.0
    %7427 = vmatpush1.xpose.msra.mxu0 0.0
    %7428 = vmatprep.subr.mxu0 0.0
    %7429 = vmatpush1.xpose.msra.mxu0 0.0
    %7430 = vmatprep.subr.mxu0 0.0
    %7431 = vmatpush1.xpose.msra.mxu0 0.0
    %7432 = vmatprep.subr.mxu0 0.0
    %7433 = vmatpush1.xpose.msra.mxu0 0.0
    %7434 = vmatprep.subr.mxu0 0.0
    %7435 = vmatpush1.xpose.msra.mxu0 0.0
    %7436 = vmatprep.subr.mxu0 0.0
    %7437 = vmatpush1.xpose.msra.mxu0 0.0
    %7438 = vmatprep.subr.mxu0 0.0
    %7439 = vmatpush1.xpose.msra.mxu0 0.0
    %7440 = vmatprep.subr.mxu0 0.0
    %7441 = vmatpush1.xpose.msra.mxu0 0.0
    %7442 = vmatprep.subr.mxu0 0.0
    %7443 = vmatpush1.xpose.msra.mxu0 0.0
    %7444 = vmatprep.subr.mxu0 0.0
    %7445 = vmatpush1.xpose.msra.mxu0 0.0
    %7446 = vmatprep.mubr.f32.mxu0 0.0
    %7447 = vmatmul.mubr.f32.gmra.mrb[0].mxu0 %v7380
    %v7448 = vpop.f32.mrb[0].mxu0
    %v7449 = vadd.f32 0.0, %v7448
    %v7450 = vpop.f32.mrb[0].mxu0
    %7451 = vdwg.mxu0
    %v7453 = vsel %vm1423, %v6853, 0
    %7455 = vmatprep.subr.mxu0 0.0
    %7456 = vmatpush1.xpose.msra.mxu0 %v2036
    %7457 = vmatprep.subr.mxu0 0.0
    %7458 = vmatpush1.xpose.msra.mxu0 %v2039
    %7459 = vmatprep.subr.mxu0 0.0
    %7460 = vmatpush1.xpose.msra.mxu0 0.0
    %7461 = vmatprep.subr.mxu0 0.0
    %7462 = vmatpush1.xpose.msra.mxu0 0.0
    %7463 = vmatprep.subr.mxu0 0.0
    %7464 = vmatpush1.xpose.msra.mxu0 0.0
    %7465 = vmatprep.subr.mxu0 0.0
    %7466 = vmatpush1.xpose.msra.mxu0 0.0
    %7467 = vmatprep.subr.mxu0 0.0
    %7468 = vmatpush1.xpose.msra.mxu0 0.0
    %7469 = vmatprep.subr.mxu0 0.0
    %7470 = vmatpush1.xpose.msra.mxu0 0.0
    %7471 = vmatprep.subr.mxu0 0.0
    %7472 = vmatpush1.xpose.msra.mxu0 0.0
    %7473 = vmatprep.subr.mxu0 0.0
    %7474 = vmatpush1.xpose.msra.mxu0 0.0
    %7475 = vmatprep.subr.mxu0 0.0
    %7476 = vmatpush1.xpose.msra.mxu0 0.0
    %7477 = vmatprep.subr.mxu0 0.0
    %7478 = vmatpush1.xpose.msra.mxu0 0.0
    %7479 = vmatprep.subr.mxu0 0.0
    %7480 = vmatpush1.xpose.msra.mxu0 0.0
    %7481 = vmatprep.subr.mxu0 0.0
    %7482 = vmatpush1.xpose.msra.mxu0 0.0
    %7483 = vmatprep.subr.mxu0 0.0
    %7484 = vmatpush1.xpose.msra.mxu0 0.0
    %7485 = vmatprep.subr.mxu0 0.0
    %7486 = vmatpush1.xpose.msra.mxu0 0.0
    %7487 = vmatprep.subr.mxu0 0.0
    %7488 = vmatpush1.xpose.msra.mxu0 0.0
    %7489 = vmatprep.subr.mxu0 0.0
    %7490 = vmatpush1.xpose.msra.mxu0 0.0
    %7491 = vmatprep.subr.mxu0 0.0
    %7492 = vmatpush1.xpose.msra.mxu0 0.0
    %7493 = vmatprep.subr.mxu0 0.0
    %7494 = vmatpush1.xpose.msra.mxu0 0.0
    %7495 = vmatprep.subr.mxu0 0.0
    %7496 = vmatpush1.xpose.msra.mxu0 0.0
    %7497 = vmatprep.subr.mxu0 0.0
    %7498 = vmatpush1.xpose.msra.mxu0 0.0
    %7499 = vmatprep.subr.mxu0 0.0
    %7500 = vmatpush1.xpose.msra.mxu0 0.0
    %7501 = vmatprep.subr.mxu0 0.0
    %7502 = vmatpush1.xpose.msra.mxu0 0.0
    %7503 = vmatprep.subr.mxu0 0.0
    %7504 = vmatpush1.xpose.msra.mxu0 0.0
    %7505 = vmatprep.subr.mxu0 0.0
    %7506 = vmatpush1.xpose.msra.mxu0 0.0
    %7507 = vmatprep.subr.mxu0 0.0
    %7508 = vmatpush1.xpose.msra.mxu0 0.0
    %7509 = vmatprep.subr.mxu0 0.0
    %7510 = vmatpush1.xpose.msra.mxu0 0.0
    %7511 = vmatprep.subr.mxu0 0.0
    %7512 = vmatpush1.xpose.msra.mxu0 0.0
    %7513 = vmatprep.subr.mxu0 0.0
    %7514 = vmatpush1.xpose.msra.mxu0 0.0
    %7515 = vmatprep.subr.mxu0 0.0
    %7516 = vmatpush1.xpose.msra.mxu0 0.0
    %7517 = vmatprep.subr.mxu0 0.0
    %7518 = vmatpush1.xpose.msra.mxu0 0.0
    %7519 = vmatprep.mubr.f32.mxu0 0.0
    %7520 = vmatmul.mubr.f32.gmra.mrb[0].mxu0 %v7453
    %v7521 = vpop.f32.mrb[0].mxu0
    %v7522 = vadd.f32 0.0, %v7521
    %v7523 = vpop.f32.mrb[0].mxu0
    %7524 = vdwg.mxu0
    %v7526 = vsel %vm1423, %v6855, 0
    %7528 = vmatprep.subr.mxu0 0.0
    %7529 = vmatpush1.xpose.msra.mxu0 %v2112
    %7530 = vmatprep.subr.mxu0 0.0
    %7531 = vmatpush1.xpose.msra.mxu0 %v2115
    %7532 = vmatprep.subr.mxu0 0.0
    %7533 = vmatpush1.xpose.msra.mxu0 0.0
    %7534 = vmatprep.subr.mxu0 0.0
    %7535 = vmatpush1.xpose.msra.mxu0 0.0
    %7536 = vmatprep.subr.mxu0 0.0
    %7537 = vmatpush1.xpose.msra.mxu0 0.0
    %7538 = vmatprep.subr.mxu0 0.0
    %7539 = vmatpush1.xpose.msra.mxu0 0.0
    %7540 = vmatprep.subr.mxu0 0.0
    %7541 = vmatpush1.xpose.msra.mxu0 0.0
    %7542 = vmatprep.subr.mxu0 0.0
    %7543 = vmatpush1.xpose.msra.mxu0 0.0
    %7544 = vmatprep.subr.mxu0 0.0
    %7545 = vmatpush1.xpose.msra.mxu0 0.0
    %7546 = vmatprep.subr.mxu0 0.0
    %7547 = vmatpush1.xpose.msra.mxu0 0.0
    %7548 = vmatprep.subr.mxu0 0.0
    %7549 = vmatpush1.xpose.msra.mxu0 0.0
    %7550 = vmatprep.subr.mxu0 0.0
    %7551 = vmatpush1.xpose.msra.mxu0 0.0
    %7552 = vmatprep.subr.mxu0 0.0
    %7553 = vmatpush1.xpose.msra.mxu0 0.0
    %7554 = vmatprep.subr.mxu0 0.0
    %7555 = vmatpush1.xpose.msra.mxu0 0.0
    %7556 = vmatprep.subr.mxu0 0.0
    %7557 = vmatpush1.xpose.msra.mxu0 0.0
    %7558 = vmatprep.subr.mxu0 0.0
    %7559 = vmatpush1.xpose.msra.mxu0 0.0
    %7560 = vmatprep.subr.mxu0 0.0
    %7561 = vmatpush1.xpose.msra.mxu0 0.0
    %7562 = vmatprep.subr.mxu0 0.0
    %7563 = vmatpush1.xpose.msra.mxu0 0.0
    %7564 = vmatprep.subr.mxu0 0.0
    %7565 = vmatpush1.xpose.msra.mxu0 0.0
    %7566 = vmatprep.subr.mxu0 0.0
    %7567 = vmatpush1.xpose.msra.mxu0 0.0
    %7568 = vmatprep.subr.mxu0 0.0
    %7569 = vmatpush1.xpose.msra.mxu0 0.0
    %7570 = vmatprep.subr.mxu0 0.0
    %7571 = vmatpush1.xpose.msra.mxu0 0.0
    %7572 = vmatprep.subr.mxu0 0.0
    %7573 = vmatpush1.xpose.msra.mxu0 0.0
    %7574 = vmatprep.subr.mxu0 0.0
    %7575 = vmatpush1.xpose.msra.mxu0 0.0
    %7576 = vmatprep.subr.mxu0 0.0
    %7577 = vmatpush1.xpose.msra.mxu0 0.0
    %7578 = vmatprep.subr.mxu0 0.0
    %7579 = vmatpush1.xpose.msra.mxu0 0.0
    %7580 = vmatprep.subr.mxu0 0.0
    %7581 = vmatpush1.xpose.msra.mxu0 0.0
    %7582 = vmatprep.subr.mxu0 0.0
    %7583 = vmatpush1.xpose.msra.mxu0 0.0
    %7584 = vmatprep.subr.mxu0 0.0
    %7585 = vmatpush1.xpose.msra.mxu0 0.0
    %7586 = vmatprep.subr.mxu0 0.0
    %7587 = vmatpush1.xpose.msra.mxu0 0.0
    %7588 = vmatprep.subr.mxu0 0.0
    %7589 = vmatpush1.xpose.msra.mxu0 0.0
    %7590 = vmatprep.subr.mxu0 0.0
    %7591 = vmatpush1.xpose.msra.mxu0 0.0
    %7592 = vmatprep.mubr.f32.mxu0 0.0
    %7593 = vmatmul.mubr.f32.gmra.mrb[0].mxu0 %v7526
    %v7594 = vpop.f32.mrb[0].mxu0
    %v7595 = vadd.f32 0.0, %v7594
    %v7596 = vpop.f32.mrb[0].mxu0
    %7597 = vdwg.mxu0
    %v7599 = vsel %vm1423, %v6857, 0
    %7601 = vmatprep.subr.mxu0 0.0
    %7602 = vmatpush1.xpose.msra.mxu0 %v2188
    %7603 = vmatprep.subr.mxu0 0.0
    %7604 = vmatpush1.xpose.msra.mxu0 %v2191
    %7605 = vmatprep.subr.mxu0 0.0
    %7606 = vmatpush1.xpose.msra.mxu0 0.0
    %7607 = vmatprep.subr.mxu0 0.0
    %7608 = vmatpush1.xpose.msra.mxu0 0.0
    %7609 = vmatprep.subr.mxu0 0.0
    %7610 = vmatpush1.xpose.msra.mxu0 0.0
    %7611 = vmatprep.subr.mxu0 0.0
    %7612 = vmatpush1.xpose.msra.mxu0 0.0
    %7613 = vmatprep.subr.mxu0 0.0
    %7614 = vmatpush1.xpose.msra.mxu0 0.0
    %7615 = vmatprep.subr.mxu0 0.0
    %7616 = vmatpush1.xpose.msra.mxu0 0.0
    %7617 = vmatprep.subr.mxu0 0.0
    %7618 = vmatpush1.xpose.msra.mxu0 0.0
    %7619 = vmatprep.subr.mxu0 0.0
    %7620 = vmatpush1.xpose.msra.mxu0 0.0
    %7621 = vmatprep.subr.mxu0 0.0
    %7622 = vmatpush1.xpose.msra.mxu0 0.0
    %7623 = vmatprep.subr.mxu0 0.0
    %7624 = vmatpush1.xpose.msra.mxu0 0.0
    %7625 = vmatprep.subr.mxu0 0.0
    %7626 = vmatpush1.xpose.msra.mxu0 0.0
    %7627 = vmatprep.subr.mxu0 0.0
    %7628 = vmatpush1.xpose.msra.mxu0 0.0
    %7629 = vmatprep.subr.mxu0 0.0
    %7630 = vmatpush1.xpose.msra.mxu0 0.0
    %7631 = vmatprep.subr.mxu0 0.0
    %7632 = vmatpush1.xpose.msra.mxu0 0.0
    %7633 = vmatprep.subr.mxu0 0.0
    %7634 = vmatpush1.xpose.msra.mxu0 0.0
    %7635 = vmatprep.subr.mxu0 0.0
    %7636 = vmatpush1.xpose.msra.mxu0 0.0
    %7637 = vmatprep.subr.mxu0 0.0
    %7638 = vmatpush1.xpose.msra.mxu0 0.0
    %7639 = vmatprep.subr.mxu0 0.0
    %7640 = vmatpush1.xpose.msra.mxu0 0.0
    %7641 = vmatprep.subr.mxu0 0.0
    %7642 = vmatpush1.xpose.msra.mxu0 0.0
    %7643 = vmatprep.subr.mxu0 0.0
    %7644 = vmatpush1.xpose.msra.mxu0 0.0
    %7645 = vmatprep.subr.mxu0 0.0
    %7646 = vmatpush1.xpose.msra.mxu0 0.0
    %7647 = vmatprep.subr.mxu0 0.0
    %7648 = vmatpush1.xpose.msra.mxu0 0.0
    %7649 = vmatprep.subr.mxu0 0.0
    %7650 = vmatpush1.xpose.msra.mxu0 0.0
    %7651 = vmatprep.subr.mxu0 0.0
    %7652 = vmatpush1.xpose.msra.mxu0 0.0
    %7653 = vmatprep.subr.mxu0 0.0
    %7654 = vmatpush1.xpose.msra.mxu0 0.0
    %7655 = vmatprep.subr.mxu0 0.0
    %7656 = vmatpush1.xpose.msra.mxu0 0.0
    %7657 = vmatprep.subr.mxu0 0.0
    %7658 = vmatpush1.xpose.msra.mxu0 0.0
    %7659 = vmatprep.subr.mxu0 0.0
    %7660 = vmatpush1.xpose.msra.mxu0 0.0
    %7661 = vmatprep.subr.mxu0 0.0
    %7662 = vmatpush1.xpose.msra.mxu0 0.0
    %7663 = vmatprep.subr.mxu0 0.0
    %7664 = vmatpush1.xpose.msra.mxu0 0.0
    %7665 = vmatprep.mubr.f32.mxu0 0.0
    %7666 = vmatmul.mubr.f32.gmra.mrb[0].mxu0 %v7599
    %v7667 = vpop.f32.mrb[0].mxu0
    %v7668 = vadd.f32 0.0, %v7667
    %v7669 = vpop.f32.mrb[0].mxu0
    %7670 = vdwg.mxu0
    %v7672 = vsel %vm1423, %v6859, 0
    %7674 = vmatprep.subr.mxu0 0.0
    %7675 = vmatpush1.xpose.msra.mxu0 %v2264
    %7676 = vmatprep.subr.mxu0 0.0
    %7677 = vmatpush1.xpose.msra.mxu0 %v2267
    %7678 = vmatprep.subr.mxu0 0.0
    %7679 = vmatpush1.xpose.msra.mxu0 0.0
    %7680 = vmatprep.subr.mxu0 0.0
    %7681 = vmatpush1.xpose.msra.mxu0 0.0
    %7682 = vmatprep.subr.mxu0 0.0
    %7683 = vmatpush1.xpose.msra.mxu0 0.0
    %7684 = vmatprep.subr.mxu0 0.0
    %7685 = vmatpush1.xpose.msra.mxu0 0.0
    %7686 = vmatprep.subr.mxu0 0.0
    %7687 = vmatpush1.xpose.msra.mxu0 0.0
    %7688 = vmatprep.subr.mxu0 0.0
    %7689 = vmatpush1.xpose.msra.mxu0 0.0
    %7690 = vmatprep.subr.mxu0 0.0
    %7691 = vmatpush1.xpose.msra.mxu0 0.0
    %7692 = vmatprep.subr.mxu0 0.0
    %7693 = vmatpush1.xpose.msra.mxu0 0.0
    %7694 = vmatprep.subr.mxu0 0.0
    %7695 = vmatpush1.xpose.msra.mxu0 0.0
    %7696 = vmatprep.subr.mxu0 0.0
    %7697 = vmatpush1.xpose.msra.mxu0 0.0
    %7698 = vmatprep.subr.mxu0 0.0
    %7699 = vmatpush1.xpose.msra.mxu0 0.0
    %7700 = vmatprep.subr.mxu0 0.0
    %7701 = vmatpush1.xpose.msra.mxu0 0.0
    %7702 = vmatprep.subr.mxu0 0.0
    %7703 = vmatpush1.xpose.msra.mxu0 0.0
    %7704 = vmatprep.subr.mxu0 0.0
    %7705 = vmatpush1.xpose.msra.mxu0 0.0
    %7706 = vmatprep.subr.mxu0 0.0
    %7707 = vmatpush1.xpose.msra.mxu0 0.0
    %7708 = vmatprep.subr.mxu0 0.0
    %7709 = vmatpush1.xpose.msra.mxu0 0.0
    %7710 = vmatprep.subr.mxu0 0.0
    %7711 = vmatpush1.xpose.msra.mxu0 0.0
    %7712 = vmatprep.subr.mxu0 0.0
    %7713 = vmatpush1.xpose.msra.mxu0 0.0
    %7714 = vmatprep.subr.mxu0 0.0
    %7715 = vmatpush1.xpose.msra.mxu0 0.0
    %7716 = vmatprep.subr.mxu0 0.0
    %7717 = vmatpush1.xpose.msra.mxu0 0.0
    %7718 = vmatprep.subr.mxu0 0.0
    %7719 = vmatpush1.xpose.msra.mxu0 0.0
    %7720 = vmatprep.subr.mxu0 0.0
    %7721 = vmatpush1.xpose.msra.mxu0 0.0
    %7722 = vmatprep.subr.mxu0 0.0
    %7723 = vmatpush1.xpose.msra.mxu0 0.0
    %7724 = vmatprep.subr.mxu0 0.0
    %7725 = vmatpush1.xpose.msra.mxu0 0.0
    %7726 = vmatprep.subr.mxu0 0.0
    %7727 = vmatpush1.xpose.msra.mxu0 0.0
    %7728 = vmatprep.subr.mxu0 0.0
    %7729 = vmatpush1.xpose.msra.mxu0 0.0
    %7730 = vmatprep.subr.mxu0 0.0
    %7731 = vmatpush1.xpose.msra.mxu0 0.0
    %7732 = vmatprep.subr.mxu0 0.0
    %7733 = vmatpush1.xpose.msra.mxu0 0.0
    %7734 = vmatprep.subr.mxu0 0.0
    %7735 = vmatpush1.xpose.msra.mxu0 0.0
    %7736 = vmatprep.subr.mxu0 0.0
    %7737 = vmatpush1.xpose.msra.mxu0 0.0
    %7738 = vmatprep.mubr.f32.mxu0 0.0
    %7739 = vmatmul.mubr.f32.gmra.mrb[0].mxu0 %v7672
    %v7740 = vpop.f32.mrb[0].mxu0
    %v7741 = vadd.f32 0.0, %v7740
    %v7742 = vpop.f32.mrb[0].mxu0
    %7743 = vdwg.mxu0
    %v7745 = vsel %vm1423, %v6861, 0
    %7747 = vmatprep.subr.mxu0 0.0
    %7748 = vmatpush1.xpose.msra.mxu0 %v2340
    %7749 = vmatprep.subr.mxu0 0.0
    %7750 = vmatpush1.xpose.msra.mxu0 %v2343
    %7751 = vmatprep.subr.mxu0 0.0
    %7752 = vmatpush1.xpose.msra.mxu0 0.0
    %7753 = vmatprep.subr.mxu0 0.0
    %7754 = vmatpush1.xpose.msra.mxu0 0.0
    %7755 = vmatprep.subr.mxu0 0.0
    %7756 = vmatpush1.xpose.msra.mxu0 0.0
    %7757 = vmatprep.subr.mxu0 0.0
    %7758 = vmatpush1.xpose.msra.mxu0 0.0
    %7759 = vmatprep.subr.mxu0 0.0
    %7760 = vmatpush1.xpose.msra.mxu0 0.0
    %7761 = vmatprep.subr.mxu0 0.0
    %7762 = vmatpush1.xpose.msra.mxu0 0.0
    %7763 = vmatprep.subr.mxu0 0.0
    %7764 = vmatpush1.xpose.msra.mxu0 0.0
    %7765 = vmatprep.subr.mxu0 0.0
    %7766 = vmatpush1.xpose.msra.mxu0 0.0
    %7767 = vmatprep.subr.mxu0 0.0
    %7768 = vmatpush1.xpose.msra.mxu0 0.0
    %7769 = vmatprep.subr.mxu0 0.0
    %7770 = vmatpush1.xpose.msra.mxu0 0.0
    %7771 = vmatprep.subr.mxu0 0.0
    %7772 = vmatpush1.xpose.msra.mxu0 0.0
    %7773 = vmatprep.subr.mxu0 0.0
    %7774 = vmatpush1.xpose.msra.mxu0 0.0
    %7775 = vmatprep.subr.mxu0 0.0
    %7776 = vmatpush1.xpose.msra.mxu0 0.0
    %7777 = vmatprep.subr.mxu0 0.0
    %7778 = vmatpush1.xpose.msra.mxu0 0.0
    %7779 = vmatprep.subr.mxu0 0.0
    %7780 = vmatpush1.xpose.msra.mxu0 0.0
    %7781 = vmatprep.subr.mxu0 0.0
    %7782 = vmatpush1.xpose.msra.mxu0 0.0
    %7783 = vmatprep.subr.mxu0 0.0
    %7784 = vmatpush1.xpose.msra.mxu0 0.0
    %7785 = vmatprep.subr.mxu0 0.0
    %7786 = vmatpush1.xpose.msra.mxu0 0.0
    %7787 = vmatprep.subr.mxu0 0.0
    %7788 = vmatpush1.xpose.msra.mxu0 0.0
    %7789 = vmatprep.subr.mxu0 0.0
    %7790 = vmatpush1.xpose.msra.mxu0 0.0
    %7791 = vmatprep.subr.mxu0 0.0
    %7792 = vmatpush1.xpose.msra.mxu0 0.0
    %7793 = vmatprep.subr.mxu0 0.0
    %7794 = vmatpush1.xpose.msra.mxu0 0.0
    %7795 = vmatprep.subr.mxu0 0.0
    %7796 = vmatpush1.xpose.msra.mxu0 0.0
    %7797 = vmatprep.subr.mxu0 0.0
    %7798 = vmatpush1.xpose.msra.mxu0 0.0
    %7799 = vmatprep.subr.mxu0 0.0
    %7800 = vmatpush1.xpose.msra.mxu0 0.0
    %7801 = vmatprep.subr.mxu0 0.0
    %7802 = vmatpush1.xpose.msra.mxu0 0.0
    %7803 = vmatprep.subr.mxu0 0.0
    %7804 = vmatpush1.xpose.msra.mxu0 0.0
    %7805 = vmatprep.subr.mxu0 0.0
    %7806 = vmatpush1.xpose.msra.mxu0 0.0
    %7807 = vmatprep.subr.mxu0 0.0
    %7808 = vmatpush1.xpose.msra.mxu0 0.0
    %7809 = vmatprep.subr.mxu0 0.0
    %7810 = vmatpush1.xpose.msra.mxu0 0.0
    %7811 = vmatprep.mubr.f32.mxu0 0.0
    %7812 = vmatmul.mubr.f32.gmra.mrb[0].mxu0 %v7745
    %v7813 = vpop.f32.mrb[0].mxu0
    %v7814 = vadd.f32 0.0, %v7813
    %v7815 = vpop.f32.mrb[0].mxu0
    %7816 = vdwg.mxu0
    %v7818 = vsel %vm1423, %v6863, 0
    %7820 = vmatprep.subr.mxu0 0.0
    %7821 = vmatpush1.xpose.msra.mxu0 %v2416
    %7822 = vmatprep.subr.mxu0 0.0
    %7823 = vmatpush1.xpose.msra.mxu0 %v2419
    %7824 = vmatprep.subr.mxu0 0.0
    %7825 = vmatpush1.xpose.msra.mxu0 0.0
    %7826 = vmatprep.subr.mxu0 0.0
    %7827 = vmatpush1.xpose.msra.mxu0 0.0
    %7828 = vmatprep.subr.mxu0 0.0
    %7829 = vmatpush1.xpose.msra.mxu0 0.0
    %7830 = vmatprep.subr.mxu0 0.0
    %7831 = vmatpush1.xpose.msra.mxu0 0.0
    %7832 = vmatprep.subr.mxu0 0.0
    %7833 = vmatpush1.xpose.msra.mxu0 0.0
    %7834 = vmatprep.subr.mxu0 0.0
    %7835 = vmatpush1.xpose.msra.mxu0 0.0
    %7836 = vmatprep.subr.mxu0 0.0
    %7837 = vmatpush1.xpose.msra.mxu0 0.0
    %7838 = vmatprep.subr.mxu0 0.0
    %7839 = vmatpush1.xpose.msra.mxu0 0.0
    %7840 = vmatprep.subr.mxu0 0.0
    %7841 = vmatpush1.xpose.msra.mxu0 0.0
    %7842 = vmatprep.subr.mxu0 0.0
    %7843 = vmatpush1.xpose.msra.mxu0 0.0
    %7844 = vmatprep.subr.mxu0 0.0
    %7845 = vmatpush1.xpose.msra.mxu0 0.0
    %7846 = vmatprep.subr.mxu0 0.0
    %7847 = vmatpush1.xpose.msra.mxu0 0.0
    %7848 = vmatprep.subr.mxu0 0.0
    %7849 = vmatpush1.xpose.msra.mxu0 0.0
    %7850 = vmatprep.subr.mxu0 0.0
    %7851 = vmatpush1.xpose.msra.mxu0 0.0
    %7852 = vmatprep.subr.mxu0 0.0
    %7853 = vmatpush1.xpose.msra.mxu0 0.0
    %7854 = vmatprep.subr.mxu0 0.0
    %7855 = vmatpush1.xpose.msra.mxu0 0.0
    %7856 = vmatprep.subr.mxu0 0.0
    %7857 = vmatpush1.xpose.msra.mxu0 0.0
    %7858 = vmatprep.subr.mxu0 0.0
    %7859 = vmatpush1.xpose.msra.mxu0 0.0
    %7860 = vmatprep.subr.mxu0 0.0
    %7861 = vmatpush1.xpose.msra.mxu0 0.0
    %7862 = vmatprep.subr.mxu0 0.0
    %7863 = vmatpush1.xpose.msra.mxu0 0.0
    %7864 = vmatprep.subr.mxu0 0.0
    %7865 = vmatpush1.xpose.msra.mxu0 0.0
    %7866 = vmatprep.subr.mxu0 0.0
    %7867 = vmatpush1.xpose.msra.mxu0 0.0
    %7868 = vmatprep.subr.mxu0 0.0
    %7869 = vmatpush1.xpose.msra.mxu0 0.0
    %7870 = vmatprep.subr.mxu0 0.0
    %7871 = vmatpush1.xpose.msra.mxu0 0.0
    %7872 = vmatprep.subr.mxu0 0.0
    %7873 = vmatpush1.xpose.msra.mxu0 0.0
    %7874 = vmatprep.subr.mxu0 0.0
    %7875 = vmatpush1.xpose.msra.mxu0 0.0
    %7876 = vmatprep.subr.mxu0 0.0
    %7877 = vmatpush1.xpose.msra.mxu0 0.0
    %7878 = vmatprep.subr.mxu0 0.0
    %7879 = vmatpush1.xpose.msra.mxu0 0.0
    %7880 = vmatprep.subr.mxu0 0.0
    %7881 = vmatpush1.xpose.msra.mxu0 0.0
    %7882 = vmatprep.subr.mxu0 0.0
    %7883 = vmatpush1.xpose.msra.mxu0 0.0
    %7884 = vmatprep.mubr.f32.mxu0 0.0
    %7885 = vmatmul.mubr.f32.gmra.mrb[0].mxu0 %v7818
    %v7886 = vpop.f32.mrb[0].mxu0
    %v7887 = vadd.f32 0.0, %v7886
    %v7888 = vpop.f32.mrb[0].mxu0
    %7889 = vdwg.mxu0
    %v7891 = vsel %vm1423, %v6865, 0
    %7893 = vmatprep.subr.mxu0 0.0
    %7894 = vmatpush1.xpose.msra.mxu0 %v2492
    %7895 = vmatprep.subr.mxu0 0.0
    %7896 = vmatpush1.xpose.msra.mxu0 %v2495
    %7897 = vmatprep.subr.mxu0 0.0
    %7898 = vmatpush1.xpose.msra.mxu0 0.0
    %7899 = vmatprep.subr.mxu0 0.0
    %7900 = vmatpush1.xpose.msra.mxu0 0.0
    %7901 = vmatprep.subr.mxu0 0.0
    %7902 = vmatpush1.xpose.msra.mxu0 0.0
    %7903 = vmatprep.subr.mxu0 0.0
    %7904 = vmatpush1.xpose.msra.mxu0 0.0
    %7905 = vmatprep.subr.mxu0 0.0
    %7906 = vmatpush1.xpose.msra.mxu0 0.0
    %7907 = vmatprep.subr.mxu0 0.0
    %7908 = vmatpush1.xpose.msra.mxu0 0.0
    %7909 = vmatprep.subr.mxu0 0.0
    %7910 = vmatpush1.xpose.msra.mxu0 0.0
    %7911 = vmatprep.subr.mxu0 0.0
    %7912 = vmatpush1.xpose.msra.mxu0 0.0
    %7913 = vmatprep.subr.mxu0 0.0
    %7914 = vmatpush1.xpose.msra.mxu0 0.0
    %7915 = vmatprep.subr.mxu0 0.0
    %7916 = vmatpush1.xpose.msra.mxu0 0.0
    %7917 = vmatprep.subr.mxu0 0.0
    %7918 = vmatpush1.xpose.msra.mxu0 0.0
    %7919 = vmatprep.subr.mxu0 0.0
    %7920 = vmatpush1.xpose.msra.mxu0 0.0
    %7921 = vmatprep.subr.mxu0 0.0
    %7922 = vmatpush1.xpose.msra.mxu0 0.0
    %7923 = vmatprep.subr.mxu0 0.0
    %7924 = vmatpush1.xpose.msra.mxu0 0.0
    %7925 = vmatprep.subr.mxu0 0.0
    %7926 = vmatpush1.xpose.msra.mxu0 0.0
    %7927 = vmatprep.subr.mxu0 0.0
    %7928 = vmatpush1.xpose.msra.mxu0 0.0
    %7929 = vmatprep.subr.mxu0 0.0
    %7930 = vmatpush1.xpose.msra.mxu0 0.0
    %7931 = vmatprep.subr.mxu0 0.0
    %7932 = vmatpush1.xpose.msra.mxu0 0.0
    %7933 = vmatprep.subr.mxu0 0.0
    %7934 = vmatpush1.xpose.msra.mxu0 0.0
    %7935 = vmatprep.subr.mxu0 0.0
    %7936 = vmatpush1.xpose.msra.mxu0 0.0
    %7937 = vmatprep.subr.mxu0 0.0
    %7938 = vmatpush1.xpose.msra.mxu0 0.0
    %7939 = vmatprep.subr.mxu0 0.0
    %7940 = vmatpush1.xpose.msra.mxu0 0.0
    %7941 = vmatprep.subr.mxu0 0.0
    %7942 = vmatpush1.xpose.msra.mxu0 0.0
    %7943 = vmatprep.subr.mxu0 0.0
    %7944 = vmatpush1.xpose.msra.mxu0 0.0
    %7945 = vmatprep.subr.mxu0 0.0
    %7946 = vmatpush1.xpose.msra.mxu0 0.0
    %7947 = vmatprep.subr.mxu0 0.0
    %7948 = vmatpush1.xpose.msra.mxu0 0.0
    %7949 = vmatprep.subr.mxu0 0.0
    %7950 = vmatpush1.xpose.msra.mxu0 0.0
    %7951 = vmatprep.subr.mxu0 0.0
    %7952 = vmatpush1.xpose.msra.mxu0 0.0
    %7953 = vmatprep.subr.mxu0 0.0
    %7954 = vmatpush1.xpose.msra.mxu0 0.0
    %7955 = vmatprep.subr.mxu0 0.0
    %7956 = vmatpush1.xpose.msra.mxu0 0.0
    %7957 = vmatprep.mubr.f32.mxu0 0.0
    %7958 = vmatmul.mubr.f32.gmra.mrb[0].mxu0 %v7891
    %v7959 = vpop.f32.mrb[0].mxu0
    %v7960 = vadd.f32 0.0, %v7959
    %v7961 = vpop.f32.mrb[0].mxu0
    %7962 = vdwg.mxu0
    %v7964 = vsel %vm1423, %v6867, 0
    %7966 = vmatprep.subr.mxu0 0.0
    %7967 = vmatpush1.xpose.msra.mxu0 %v2568
    %7968 = vmatprep.subr.mxu0 0.0
    %7969 = vmatpush1.xpose.msra.mxu0 %v2571
    %7970 = vmatprep.subr.mxu0 0.0
    %7971 = vmatpush1.xpose.msra.mxu0 0.0
    %7972 = vmatprep.subr.mxu0 0.0
    %7973 = vmatpush1.xpose.msra.mxu0 0.0
    %7974 = vmatprep.subr.mxu0 0.0
    %7975 = vmatpush1.xpose.msra.mxu0 0.0
    %7976 = vmatprep.subr.mxu0 0.0
    %7977 = vmatpush1.xpose.msra.mxu0 0.0
    %7978 = vmatprep.subr.mxu0 0.0
    %7979 = vmatpush1.xpose.msra.mxu0 0.0
    %7980 = vmatprep.subr.mxu0 0.0
    %7981 = vmatpush1.xpose.msra.mxu0 0.0
    %7982 = vmatprep.subr.mxu0 0.0
    %7983 = vmatpush1.xpose.msra.mxu0 0.0
    %7984 = vmatprep.subr.mxu0 0.0
    %7985 = vmatpush1.xpose.msra.mxu0 0.0
    %7986 = vmatprep.subr.mxu0 0.0
    %7987 = vmatpush1.xpose.msra.mxu0 0.0
    %7988 = vmatprep.subr.mxu0 0.0
    %7989 = vmatpush1.xpose.msra.mxu0 0.0
    %7990 = vmatprep.subr.mxu0 0.0
    %7991 = vmatpush1.xpose.msra.mxu0 0.0
    %7992 = vmatprep.subr.mxu0 0.0
    %7993 = vmatpush1.xpose.msra.mxu0 0.0
    %7994 = vmatprep.subr.mxu0 0.0
    %7995 = vmatpush1.xpose.msra.mxu0 0.0
    %7996 = vmatprep.subr.mxu0 0.0
    %7997 = vmatpush1.xpose.msra.mxu0 0.0
    %7998 = vmatprep.subr.mxu0 0.0
    %7999 = vmatpush1.xpose.msra.mxu0 0.0
    %8000 = vmatprep.subr.mxu0 0.0
    %8001 = vmatpush1.xpose.msra.mxu0 0.0
    %8002 = vmatprep.subr.mxu0 0.0
    %8003 = vmatpush1.xpose.msra.mxu0 0.0
    %8004 = vmatprep.subr.mxu0 0.0
    %8005 = vmatpush1.xpose.msra.mxu0 0.0
    %8006 = vmatprep.subr.mxu0 0.0
    %8007 = vmatpush1.xpose.msra.mxu0 0.0
    %8008 = vmatprep.subr.mxu0 0.0
    %8009 = vmatpush1.xpose.msra.mxu0 0.0
    %8010 = vmatprep.subr.mxu0 0.0
    %8011 = vmatpush1.xpose.msra.mxu0 0.0
    %8012 = vmatprep.subr.mxu0 0.0
    %8013 = vmatpush1.xpose.msra.mxu0 0.0
    %8014 = vmatprep.subr.mxu0 0.0
    %8015 = vmatpush1.xpose.msra.mxu0 0.0
    %8016 = vmatprep.subr.mxu0 0.0
    %8017 = vmatpush1.xpose.msra.mxu0 0.0
    %8018 = vmatprep.subr.mxu0 0.0
    %8019 = vmatpush1.xpose.msra.mxu0 0.0
    %8020 = vmatprep.subr.mxu0 0.0
    %8021 = vmatpush1.xpose.msra.mxu0 0.0
    %8022 = vmatprep.subr.mxu0 0.0
    %8023 = vmatpush1.xpose.msra.mxu0 0.0
    %8024 = vmatprep.subr.mxu0 0.0
    %8025 = vmatpush1.xpose.msra.mxu0 0.0
    %8026 = vmatprep.subr.mxu0 0.0
    %8027 = vmatpush1.xpose.msra.mxu0 0.0
    %8028 = vmatprep.subr.mxu0 0.0
    %8029 = vmatpush1.xpose.msra.mxu0 0.0
    %8030 = vmatprep.mubr.f32.mxu0 0.0
    %8031 = vmatmul.mubr.f32.gmra.mrb[0].mxu0 %v7964
    %v8032 = vpop.f32.mrb[0].mxu0
    %v8033 = vadd.f32 0.0, %v8032
    %v8034 = vpop.f32.mrb[0].mxu0
    %8035 = vdwg.mxu0
    %v8036 = vmul.f32 %v6938, %v6938
    %v8037 = vmul.f32 %v7011, %v7011
    %v8038 = vmul.f32 %v7084, %v7084
    %v8039 = vmul.f32 %v7157, %v7157
    %v8040 = vmul.f32 %v7230, %v7230
    %v8041 = vmul.f32 %v7303, %v7303
    %v8042 = vmul.f32 %v7376, %v7376
    %v8043 = vmul.f32 %v7449, %v7449
    %v8044 = vmul.f32 %v7522, %v7522
    %v8045 = vmul.f32 %v7595, %v7595
    %v8046 = vmul.f32 %v7668, %v7668
    %v8047 = vmul.f32 %v7741, %v7741
    %v8048 = vmul.f32 %v7814, %v7814
    %v8049 = vmul.f32 %v7887, %v7887
    %v8050 = vmul.f32 %v7960, %v7960
    %v8051 = vmul.f32 %v8033, %v8033
    %v8052 = vsel %vm2659, %v8036, 0.0
    %8053 = vadd.xlane.f32.xlu0 %v8052
    %v8054 = vpop.xlane.xlu0 %8053
    %v8055 = vsel %vm2659, %v8037, 0.0
    %8056 = vadd.xlane.f32.xlu0 %v8055
    %v8057 = vpop.xlane.xlu0 %8056
    %v8058 = vsel %vm2659, %v8038, 0.0
    %8059 = vadd.xlane.f32.xlu0 %v8058
    %v8060 = vpop.xlane.xlu0 %8059
    %v8061 = vsel %vm2659, %v8039, 0.0
    %8062 = vadd.xlane.f32.xlu0 %v8061
    %v8063 = vpop.xlane.xlu0 %8062
    %v8064 = vsel %vm2659, %v8040, 0.0
    %8065 = vadd.xlane.f32.xlu0 %v8064
    %v8066 = vpop.xlane.xlu0 %8065
    %v8067 = vsel %vm2659, %v8041, 0.0
    %8068 = vadd.xlane.f32.xlu0 %v8067
    %v8069 = vpop.xlane.xlu0 %8068
    %v8070 = vsel %vm2659, %v8042, 0.0
    %8071 = vadd.xlane.f32.xlu0 %v8070
    %v8072 = vpop.xlane.xlu0 %8071
    %v8073 = vsel %vm2659, %v8043, 0.0
    %8074 = vadd.xlane.f32.xlu0 %v8073
    %v8075 = vpop.xlane.xlu0 %8074
    %v8076 = vsel %vm2659, %v8044, 0.0
    %8077 = vadd.xlane.f32.xlu0 %v8076
    %v8078 = vpop.xlane.xlu0 %8077
    %v8079 = vsel %vm2659, %v8045, 0.0
    %8080 = vadd.xlane.f32.xlu0 %v8079
    %v8081 = vpop.xlane.xlu0 %8080
    %v8082 = vsel %vm2659, %v8046, 0.0
    %8083 = vadd.xlane.f32.xlu0 %v8082
    %v8084 = vpop.xlane.xlu0 %8083
    %v8085 = vsel %vm2659, %v8047, 0.0
    %8086 = vadd.xlane.f32.xlu0 %v8085
    %v8087 = vpop.xlane.xlu0 %8086
    %v8088 = vsel %vm2659, %v8048, 0.0
    %8089 = vadd.xlane.f32.xlu0 %v8088
    %v8090 = vpop.xlane.xlu0 %8089
    %v8091 = vsel %vm2659, %v8049, 0.0
    %8092 = vadd.xlane.f32.xlu0 %v8091
    %v8093 = vpop.xlane.xlu0 %8092
    %v8094 = vsel %vm2659, %v8050, 0.0
    %8095 = vadd.xlane.f32.xlu0 %v8094
    %v8096 = vpop.xlane.xlu0 %8095
    %v8097 = vsel %vm2659, %v8051, 0.0
    %8098 = vadd.xlane.f32.xlu0 %v8097
    %v8099 = vpop.xlane.xlu0 %8098
    %v8100 = vadd.f32 %v8054, 1e-08
    %v8101 = vadd.f32 %v8057, 1e-08
    %v8102 = vadd.f32 %v8060, 1e-08
    %v8103 = vadd.f32 %v8063, 1e-08
    %v8104 = vadd.f32 %v8066, 1e-08
    %v8105 = vadd.f32 %v8069, 1e-08
    %v8106 = vadd.f32 %v8072, 1e-08
    %v8107 = vadd.f32 %v8075, 1e-08
    %v8108 = vadd.f32 %v8078, 1e-08
    %v8109 = vadd.f32 %v8081, 1e-08
    %v8110 = vadd.f32 %v8084, 1e-08
    %v8111 = vadd.f32 %v8087, 1e-08
    %v8112 = vadd.f32 %v8090, 1e-08
    %v8113 = vadd.f32 %v8093, 1e-08
    %v8114 = vadd.f32 %v8096, 1e-08
    %v8115 = vadd.f32 %v8099, 1e-08
    %v8116 = vrsqrt.pop %v8100
    %v8117 = vrsqrt.pop %v8101
    %v8118 = vrsqrt.pop %v8102
    %v8119 = vrsqrt.pop %v8103
    %v8120 = vrsqrt.pop %v8104
    %v8121 = vrsqrt.pop %v8105
    %v8122 = vrsqrt.pop %v8106
    %v8123 = vrsqrt.pop %v8107
    %v8124 = vrsqrt.pop %v8108
    %v8125 = vrsqrt.pop %v8109
    %v8126 = vrsqrt.pop %v8110
    %v8127 = vrsqrt.pop %v8111
    %v8128 = vrsqrt.pop %v8112
    %v8129 = vrsqrt.pop %v8113
    %v8130 = vrsqrt.pop %v8114
    %v8131 = vrsqrt.pop %v8115
    %v8132 = vmul.f32 %v8100, %v8116
    %v8133 = vmul.f32 %v8101, %v8117
    %v8134 = vmul.f32 %v8102, %v8118
    %v8135 = vmul.f32 %v8103, %v8119
    %v8136 = vmul.f32 %v8104, %v8120
    %v8137 = vmul.f32 %v8105, %v8121
    %v8138 = vmul.f32 %v8106, %v8122
    %v8139 = vmul.f32 %v8107, %v8123
    %v8140 = vmul.f32 %v8108, %v8124
    %v8141 = vmul.f32 %v8109, %v8125
    %v8142 = vmul.f32 %v8110, %v8126
    %v8143 = vmul.f32 %v8111, %v8127
    %v8144 = vmul.f32 %v8112, %v8128
    %v8145 = vmul.f32 %v8113, %v8129
    %v8146 = vmul.f32 %v8114, %v8130
    %v8147 = vmul.f32 %v8115, %v8131
    %v8148 = vadd.f32 %v8100, 1.0
    %v8149 = vadd.f32 %v8101, 1.0
    %v8150 = vadd.f32 %v8102, 1.0
    %v8151 = vadd.f32 %v8103, 1.0
    %v8152 = vadd.f32 %v8104, 1.0
    %v8153 = vadd.f32 %v8105, 1.0
    %v8154 = vadd.f32 %v8106, 1.0
    %v8155 = vadd.f32 %v8107, 1.0
    %v8156 = vadd.f32 %v8108, 1.0
    %v8157 = vadd.f32 %v8109, 1.0
    %v8158 = vadd.f32 %v8110, 1.0
    %v8159 = vadd.f32 %v8111, 1.0
    %v8160 = vadd.f32 %v8112, 1.0
    %v8161 = vadd.f32 %v8113, 1.0
    %v8162 = vadd.f32 %v8114, 1.0
    %v8163 = vadd.f32 %v8115, 1.0
    %v8164 = vrcp.pop %v8148
    %v8165 = vmul.f32 %v8132, %v8164
    %v8166 = vrcp.pop %v8149
    %v8167 = vmul.f32 %v8133, %v8166
    %v8168 = vrcp.pop %v8150
    %v8169 = vmul.f32 %v8134, %v8168
    %v8170 = vrcp.pop %v8151
    %v8171 = vmul.f32 %v8135, %v8170
    %v8172 = vrcp.pop %v8152
    %v8173 = vmul.f32 %v8136, %v8172
    %v8174 = vrcp.pop %v8153
    %v8175 = vmul.f32 %v8137, %v8174
    %v8176 = vrcp.pop %v8154
    %v8177 = vmul.f32 %v8138, %v8176
    %v8178 = vrcp.pop %v8155
    %v8179 = vmul.f32 %v8139, %v8178
    %v8180 = vrcp.pop %v8156
    %v8181 = vmul.f32 %v8140, %v8180
    %v8182 = vrcp.pop %v8157
    %v8183 = vmul.f32 %v8141, %v8182
    %v8184 = vrcp.pop %v8158
    %v8185 = vmul.f32 %v8142, %v8184
    %v8186 = vrcp.pop %v8159
    %v8187 = vmul.f32 %v8143, %v8186
    %v8188 = vrcp.pop %v8160
    %v8189 = vmul.f32 %v8144, %v8188
    %v8190 = vrcp.pop %v8161
    %v8191 = vmul.f32 %v8145, %v8190
    %v8192 = vrcp.pop %v8162
    %v8193 = vmul.f32 %v8146, %v8192
    %v8194 = vrcp.pop %v8163
    %v8195 = vmul.f32 %v8147, %v8194
    %v8196 = vmul.f32 %v8165, %v6938
    %v8197 = vmul.f32 %v8167, %v7011
    %v8198 = vmul.f32 %v8169, %v7084
    %v8199 = vmul.f32 %v8171, %v7157
    %v8200 = vmul.f32 %v8173, %v7230
    %v8201 = vmul.f32 %v8175, %v7303
    %v8202 = vmul.f32 %v8177, %v7376
    %v8203 = vmul.f32 %v8179, %v7449
    %v8204 = vmul.f32 %v8181, %v7522
    %v8205 = vmul.f32 %v8183, %v7595
    %v8206 = vmul.f32 %v8185, %v7668
    %v8207 = vmul.f32 %v8187, %v7741
    %v8208 = vmul.f32 %v8189, %v7814
    %v8209 = vmul.f32 %v8191, %v7887
    %v8210 = vmul.f32 %v8193, %v7960
    %v8211 = vmul.f32 %v8195, %v8033
    %v8228 = vrot.slane %v8197, 7
    %v8229 = vsel %vm1293, %v8228, %v8196
    %v8230 = vrot.slane %v8198, 6
    %v8231 = vsel %vm1296, %v8230, %v8229
    %v8232 = vrot.slane %v8199, 5
    %v8233 = vsel %vm1299, %v8232, %v8231
    %v8234 = vrot.slane %v8200, 4
    %v8235 = vsel %vm1302, %v8234, %v8233
    %v8236 = vrot.slane %v8201, 3
    %v8237 = vsel %vm1305, %v8236, %v8235
    %v8238 = vrot.slane %v8202, 2
    %v8239 = vsel %vm1308, %v8238, %v8237
    %v8240 = vrot.slane %v8203, 1
    %v8241 = vsel %vm1311, %v8240, %v8239
    %v8242 = vrot.slane %v8205, 7
    %v8243 = vsel %vm1293, %v8242, %v8204
    %v8244 = vrot.slane %v8206, 6
    %v8245 = vsel %vm1296, %v8244, %v8243
    %v8246 = vrot.slane %v8207, 5
    %v8247 = vsel %vm1299, %v8246, %v8245
    %v8248 = vrot.slane %v8208, 4
    %v8249 = vsel %vm1302, %v8248, %v8247
    %v8250 = vrot.slane %v8209, 3
    %v8251 = vsel %vm1305, %v8250, %v8249
    %v8252 = vrot.slane %v8210, 2
    %v8253 = vsel %vm1308, %v8252, %v8251
    %v8254 = vrot.slane %v8211, 1
    %v8255 = vsel %vm1311, %v8254, %v8253
    %8258 = vst.msk [vmem:[#allocation5] sm:$0xff] %vm1423, %v8241
    %8259 = vst.msk [vmem:[#allocation5 + $0x8] sm:$0xff] %vm1423, %v8255
    // Predicated region
    $region14: #{tpu_custom_call.1} parent=1 // pred_check
      _
    $region15: #{tpu_custom_call.1} parent=1 // pred_check_branch
      %8261 = sbr.rel (0) target = $region17
    $region16: #{tpu_custom_call.1} parent=1 // pred_region
      %s8263 = ssub.s32 256, 256
      %8264 = vsyncadd [#allocation4], %s8263
      %s8265 = sshll.u32 [#allocation5], 4
      %s8266 = int_to_ptr.vmem [resolvable:$true] %s8265
      %8271 = dma.vmem_to_hbm [thread:$0]  %s8266, 256, %s2, [#allocation4], 128, 128, 8
    $region17: #{tpu_custom_call.1} parent=1 // pred_fallthru
      _
    // Predicated region
    $region18: #{tpu_custom_call.1} parent=1 // pred_check
      _
    $region19: #{tpu_custom_call.1} parent=1 // pred_check_branch
      %8273 = sbr.rel (0) target = $region21
    $region20: #{tpu_custom_call.1} parent=1 // pred_region
      %8274 = dma.done [#allocation4], 256
    $region21: #{tpu_custom_call.1} parent=1 // pred_fallthru
      _
    %8275 = vsyncpa [#allocation3], 1
    %8276 = vsyncpa [#allocation4], 1

</llo_original>
